<compile_context>
chip_gen: v7x
topology: tpu7x:2x2x1
jax: 0.10.0
libtpu: 0.0.40
codegen_flags: <defaults>
</compile_context>

<pallas_src>
import functools

import jax
import jax.numpy as jnp
from jax import lax
from jax.experimental import pallas as pl
from jax.experimental.pallas import tpu as pltpu


def _conv3x3_padded(padded, w_ref, *, NB, H, W, Cp):
  """3x3 conv of a zero-padded (NB, H+2, W+2, Cp) bf16 tensor.

  One MXU matmul per kernel row (K = 3*Cp), accumulated in f32.  Only the 3
  kx taps of one row are live at a time (3x the activation volume) instead of
  the previous 9x im2col LHS.
  """
  acc = jnp.zeros((NB * H * W, Cp), jnp.float32)
  for ky in range(3):
    rows = padded[:, ky:ky + H, :, :]              # major-dim slice (cheap)
    lhs = jnp.concatenate([rows[:, :, kx:kx + W, :] for kx in range(3)],
                          axis=-1).reshape(NB * H * W, 3 * Cp)
    acc = acc + jnp.dot(lhs, w_ref[ky * 3 * Cp:(ky + 1) * 3 * Cp, :],
                        preferred_element_type=jnp.float32)
  # TODO(synk): replace the kx-shifted value slices with pltpu.roll along the
  # W (sublane) axis and compute on the padded width to take the shifts off
  # the vld/vst slots entirely (XLU is a free slot here).
  return acc


def _basic_block_kernel(xpad_ref, xid_ref, w1_ref, b1_ref, w2_ref, b2_ref,
                        o_ref, mid_ref, *, NB, H, W, Cp):
  # xpad_ref: (NB, H+2, W+2, Cp) bf16  zero-padded (spatial + channel) input
  # xid_ref:  (NB, H, W, Cp)     f32   lane-aligned identity (exact residual)
  # w1_ref / w2_ref: (9*Cp, Cp)  bf16  conv weights with BN scale folded in
  # b1_ref / b2_ref: (1, Cp)     f32   folded BN biases
  # o_ref:    (NB, H, W, Cp)     f32   lane-dense output block
  # mid_ref:  (NB, H+2, W+2, Cp) bf16  persistent VMEM scratch (padded out1)
  xpad = xpad_ref[...]

  # ---- conv1 (+BN1 scale folded) -> +bias -> ReLU ----
  acc1 = _conv3x3_padded(xpad, w1_ref, NB=NB, H=H, W=W, Cp=Cp)
  out1 = jnp.maximum(acc1 + b1_ref[...], 0.0)
  out1 = out1.reshape(NB, H, W, Cp).astype(jnp.bfloat16)

  # Re-zero ONLY the 1-pixel border of the persistent scratch, then write the
  # conv1 output into the interior (no full-tensor concat copies).
  zrow = jnp.zeros((NB, 1, W + 2, Cp), jnp.bfloat16)
  zcol = jnp.zeros((NB, H + 2, 1, Cp), jnp.bfloat16)
  mid_ref[:, 0:1, :, :] = zrow
  mid_ref[:, H + 1:H + 2, :, :] = zrow
  mid_ref[:, :, 0:1, :] = zcol
  mid_ref[:, :, W + 1:W + 2, :] = zcol
  mid_ref[:, 1:H + 1, 1:W + 1, :] = out1

  # ---- conv2 (+BN2 scale folded) -> +bias -> +identity -> ReLU ----
  acc2 = _conv3x3_padded(mid_ref[...], w2_ref, NB=NB, H=H, W=W, Cp=Cp)
  out = acc2 + b2_ref[...] + xid_ref[...].reshape(NB * H * W, Cp)
  o_ref[...] = jnp.maximum(out, 0.0).reshape(NB, H, W, Cp).astype(o_ref.dtype)


def _vmem_limit_bytes():
  """Generation-aware scoped-VMEM limit (leave headroom on 64 MiB parts)."""
  phys = 128 * 1024 * 1024
  try:
    info = pltpu.get_tpu_info()
    phys = int(getattr(info, "vmem_capacity_bytes", phys)) or phys
  except Exception:
    pass
  if phys <= 64 * 1024 * 1024:       # v7x-class TensorCore (64 MiB physical)
    return 36 * 1024 * 1024
  return 80 * 1024 * 1024            # v5e / v6e (128 MiB physical)


def _pick_images_per_block(N, H, W, Cp, budget_bytes):
  """Budget the REAL per-step working set; keep grid length >= 2 (megacore)."""
  hw = H * W * Cp
  hwp = (H + 2) * (W + 2) * Cp
  per_image = (2 * hwp * 2        # padded input block, double-buffered, bf16
               + 2 * hw * 4       # identity block, double-buffered, f32
               + 2 * hw * 4       # output block, double-buffered, f32
               + hwp * 2          # padded-intermediate scratch, bf16
               + 2 * 3 * hw * 2   # per-row im2col LHS (~2 live), bf16
               + 2 * hw * 4       # f32 accumulator + epilogue temporaries
               + hw * 2)          # out1, bf16
  nb = max(1, min(N, budget_bytes // per_image))
  if N >= 2:
    nb = min(nb, N // 2)           # >= 2 grid steps so both v7x TCs get work
  nb = max(int(nb), 1)
  while N % nb:
    nb -= 1
  return nb


def basic_block_forward(x_nchw, params, *, images_per_block=None):
  """x_nchw: (N, C, H, W) float32. Returns (N, C, H, W) float32."""
  N, C, H, W = x_nchw.shape
  w1, w2 = params['w1'], params['w2']
  Cout, Cin = w1.shape[0], w1.shape[1]
  assert Cin == C and Cout == C, \
      "identity add requires inplanes == planes (downsample=None, stride=1)"
  eps = 1e-5

  # Fold BN (inference mode): y = conv(x, w*s) + (beta - rm*s)
  # TODO(synk): training-mode batch statistics are not computed in-kernel.
  s1 = params['g1'] * lax.rsqrt(params['rv1'] + eps)
  b1 = params['b1'] - params['rm1'] * s1
  s2 = params['g2'] * lax.rsqrt(params['rv2'] + eps)
  b2 = params['b2'] - params['rm2'] * s2

  # Lane-dense channel padding.
  Cp = max(128, ((C + 127) // 128) * 128)

  def prep_w(w, s):
    wf = w * s[:, None, None, None]                   # fold BN scale (f32)
    wt = jnp.transpose(wf, (2, 3, 1, 0))              # (3, 3, I, O)
    wt = jnp.pad(wt, ((0, 0), (0, 0), (0, Cp - C), (0, Cp - C)))
    return wt.reshape(9 * Cp, Cp).astype(jnp.bfloat16)

  w1t, w2t = prep_w(w1, s1), prep_w(w2, s2)
  b1p = jnp.pad(b1, (0, Cp - C)).reshape(1, Cp).astype(jnp.float32)
  b2p = jnp.pad(b2, (0, Cp - C)).reshape(1, Cp).astype(jnp.float32)

  # NCHW -> NHWC, channel-pad to Cp.  Conv inputs are bf16; the identity stays
  # f32 so the residual add matches the PyTorch module exactly.
  x_nhwc = jnp.transpose(x_nchw, (0, 2, 3, 1))
  x_cp = jnp.pad(x_nhwc, ((0, 0), (0, 0), (0, 0), (0, Cp - C)))
  xid = x_cp.astype(jnp.float32)
  xpad = jnp.pad(x_cp, ((0, 0), (1, 1), (1, 1), (0, 0))).astype(jnp.bfloat16)
  # TODO(synk): for real stages (C >= 64) emit bf16 / C-channel output and keep
  # the NHWC/Cp layout resident across consecutive blocks to cut the padded-f32
  # HBM writeback; f32 + Cp padding is kept here for precision at toy C.

  vmem_limit = _vmem_limit_bytes()
  weight_bytes = 2 * 2 * (9 * Cp * Cp * 2) + 2 * 2 * (Cp * 4)  # worst case 2-buf
  budget = max(int(vmem_limit * 0.70) - weight_bytes, 1)
  if images_per_block is None:
    images_per_block = _pick_images_per_block(N, H, W, Cp, budget)
  NB = int(images_per_block)
  assert N % NB == 0
  grid = (N // NB,)
  # TODO(synk): add an H row-strip grid axis with a 2-row halo for real ResNet
  # spatial sizes (56x56+) so accumulators / LHS scale with strip height.

  kernel = functools.partial(_basic_block_kernel, NB=NB, H=H, W=W, Cp=Cp)

  def run(weight_pipeline_mode):
    wkw = ({} if weight_pipeline_mode is None
           else dict(pipeline_mode=weight_pipeline_mode))
    grid_spec = pltpu.PrefetchScalarGridSpec(
        num_scalar_prefetch=0,
        grid=grid,
        in_specs=[
            pl.BlockSpec((NB, H + 2, W + 2, Cp), lambda n: (n, 0, 0, 0)),
            pl.BlockSpec((NB, H, W, Cp), lambda n: (n, 0, 0, 0)),
            pl.BlockSpec((9 * Cp, Cp), lambda n: (0, 0), **wkw),
            pl.BlockSpec((1, Cp), lambda n: (0, 0), **wkw),
            pl.BlockSpec((9 * Cp, Cp), lambda n: (0, 0), **wkw),
            pl.BlockSpec((1, Cp), lambda n: (0, 0), **wkw),
        ],
        out_specs=pl.BlockSpec((NB, H, W, Cp), lambda n: (n, 0, 0, 0)),
        scratch_shapes=[pltpu.VMEM((NB, H + 2, W + 2, Cp), jnp.bfloat16)],
    )
    return pl.pallas_call(
        kernel,
        out_shape=jax.ShapeDtypeStruct((N, H, W, Cp), jnp.float32),
        grid_spec=grid_spec,
        compiler_params=pltpu.CompilerParams(
            dimension_semantics=("parallel",),
            vmem_limit_bytes=vmem_limit),
    )(xpad, xid, w1t, b1p, w2t, b2p)

  try:
    # Grid-invariant weight/bias blocks: request single buffering.
    out_nhwc = run(pl.Buffered(1))
  except Exception:
    # Fallback for JAX builds without per-BlockSpec pipeline_mode support.
    out_nhwc = run(None)

  return jnp.transpose(out_nhwc[..., :C], (0, 3, 1, 2))


def _reference_forward(x_nchw, params):
  """Pure-JAX reference with matching precision: bf16 convs / f32 accumulate,
  f32 epilogue, exact-f32 residual identity (PyTorch semantics)."""
  eps = 1e-5
  s1 = params['g1'] / jnp.sqrt(params['rv1'] + eps)
  b1 = params['b1'] - params['rm1'] * s1
  s2 = params['g2'] / jnp.sqrt(params['rv2'] + eps)
  b2 = params['b2'] - params['rm2'] * s2

  x = jnp.transpose(x_nchw, (0, 2, 3, 1))
  dn = lax.conv_dimension_numbers(x.shape, (3, 3, 1, 1),
                                  ('NHWC', 'HWIO', 'NHWC'))

  def conv(inp_bf16, w_folded_f32):            # w: (O, I, 3, 3), scale folded
    w_hwio = jnp.transpose(w_folded_f32, (2, 3, 1, 0)).astype(jnp.bfloat16)
    return lax.conv_general_dilated(inp_bf16, w_hwio, (1, 1), 'SAME',
                                    dimension_numbers=dn,
                                    preferred_element_type=jnp.float32)

  w1f = params['w1'] * s1[:, None, None, None]
  w2f = params['w2'] * s2[:, None, None, None]

  out1 = jnp.maximum(conv(x.astype(jnp.bfloat16), w1f) + b1, 0.0)
  out2 = conv(out1.astype(jnp.bfloat16), w2f) + b2
  out = jnp.maximum(out2 + x, 0.0)             # exact f32 identity add
  return jnp.transpose(out, (0, 3, 1, 2))


if __name__ == "__main__":
  N, C, H, W = 2, 4, 16, 16   # inplanes = planes = 4, stride = 1
  key = jax.random.PRNGKey(0)
  ks = jax.random.split(key, 11)

  params = {
      'w1': jax.random.normal(ks[0], (C, C, 3, 3), jnp.float32) * 0.2,
      'w2': jax.random.normal(ks[1], (C, C, 3, 3), jnp.float32) * 0.2,
      'g1': jax.random.normal(ks[2], (C,), jnp.float32) * 0.1 + 1.0,
      'b1': jax.random.normal(ks[3], (C,), jnp.float32) * 0.1,
      'rm1': jax.random.normal(ks[4], (C,), jnp.float32) * 0.1,
      'rv1': jax.random.uniform(ks[5], (C,), jnp.float32, 0.5, 1.5),
      'g2': jax.random.normal(ks[6], (C,), jnp.float32) * 0.1 + 1.0,
      'b2': jax.random.normal(ks[7], (C,), jnp.float32) * 0.1,
      'rm2': jax.random.normal(ks[8], (C,), jnp.float32) * 0.1,
      'rv2': jax.random.uniform(ks[9], (C,), jnp.float32, 0.5, 1.5),
  }
  x = jax.random.normal(ks[10], (N, C, H, W), jnp.float32)

  out = jax.block_until_ready(basic_block_forward(x, params))
  ref = jax.block_until_ready(_reference_forward(x, params))

  assert out.shape == (N, C, H, W)
  max_err = float(jnp.max(jnp.abs(out - ref)))
  assert max_err < 2e-3, f"max abs err {max_err}"
  print("KERNEL_OK")
</pallas_src>

<mosaic_0001>
module attributes {stable_mosaic.version = 11 : i64} {
  func.func @_basic_block_kernel(%arg0: i32, %arg1: memref<1x18x18x128xbf16, #tpu.memory_space<vmem>>, %arg2: memref<1x16x16x128xf32, #tpu.memory_space<vmem>>, %arg3: memref<1152x128xbf16, #tpu.memory_space<vmem>>, %arg4: memref<1x128xf32, #tpu.memory_space<vmem>>, %arg5: memref<1152x128xbf16, #tpu.memory_space<vmem>>, %arg6: memref<1x128xf32, #tpu.memory_space<vmem>>, %arg7: memref<1x16x16x128xf32, #tpu.memory_space<vmem>>, %arg8: memref<1x18x18x128xbf16, #tpu.memory_space<vmem>>) attributes {dimension_semantics = [#tpu.dimension_semantics<parallel>], iteration_bounds = array<i64: 2>, scalar_prefetch = 0 : i64, scratch_operands = 1 : i64, tpu.core_type = #tpu.core_type<tc>, window_params = [{transform_indices = @transform_0, window_bounds = array<i64: 1, 18, 18, 128>}, {transform_indices = @transform_1, window_bounds = array<i64: 1, 16, 16, 128>}, {pipeline_mode = #tpu.pipeline_mode<synchronous>, transform_indices = @transform_2, window_bounds = array<i64: 1152, 128>}, {pipeline_mode = #tpu.pipeline_mode<synchronous>, transform_indices = @transform_3, window_bounds = array<i64: 1, 128>}, {pipeline_mode = #tpu.pipeline_mode<synchronous>, transform_indices = @transform_4, window_bounds = array<i64: 1152, 128>}, {pipeline_mode = #tpu.pipeline_mode<synchronous>, transform_indices = @transform_5, window_bounds = array<i64: 1, 128>}, {transform_indices = @transform_6, window_bounds = array<i64: 1, 16, 16, 128>}]} {
    %c0 = arith.constant 0 : index
    %c0_0 = arith.constant 0 : index
    %c0_1 = arith.constant 0 : index
    %c0_2 = arith.constant 0 : index
    %0 = vector.load %arg1[%c0, %c0_0, %c0_1, %c0_2] : memref<1x18x18x128xbf16, #tpu.memory_space<vmem>>, vector<1x18x18x128xbf16>
    %cst = arith.constant 0.000000e+00 : f32
    %1 = vector.broadcast %cst : f32 to vector<256x128xf32>
    %2 = vector.extract_strided_slice %0 {offsets = [0, 0, 0, 0], sizes = [1, 16, 18, 128], strides = [1, 1, 1, 1]} : vector<1x18x18x128xbf16> to vector<1x16x18x128xbf16>
    %3 = vector.extract_strided_slice %2 {offsets = [0, 0, 0, 0], sizes = [1, 16, 16, 128], strides = [1, 1, 1, 1]} : vector<1x16x18x128xbf16> to vector<1x16x16x128xbf16>
    %4 = vector.extract_strided_slice %2 {offsets = [0, 0, 1, 0], sizes = [1, 16, 16, 128], strides = [1, 1, 1, 1]} : vector<1x16x18x128xbf16> to vector<1x16x16x128xbf16>
    %5 = vector.extract_strided_slice %2 {offsets = [0, 0, 2, 0], sizes = [1, 16, 16, 128], strides = [1, 1, 1, 1]} : vector<1x16x18x128xbf16> to vector<1x16x16x128xbf16>
    %6 = tpu.concatenate %3, %4, %5 in 3 : vector<1x16x16x128xbf16>, vector<1x16x16x128xbf16>, vector<1x16x16x128xbf16> -> vector<1x16x16x384xbf16>
    %7 = vector.shape_cast %6 : vector<1x16x16x384xbf16> to vector<256x384xbf16>
    %c0_3 = arith.constant 0 : index
    %c0_4 = arith.constant 0 : index
    %8 = vector.load %arg3[%c0_3, %c0_4] : memref<1152x128xbf16, #tpu.memory_space<vmem>>, vector<384x128xbf16>
    %cst_5 = arith.constant dense<0.000000e+00> : vector<256x128xf32>
    %9 = tpu.matmul %7, %8, %cst_5 {dimension_numbers = #tpu.dot_dimension_numbers<[1], [0], [0], [1], [0, 0, 1, 1], [], []>} : vector<256x384xbf16>, vector<384x128xbf16>, vector<256x128xf32> -> vector<256x128xf32>
    %10 = arith.addf %1, %9 : vector<256x128xf32>
    %11 = vector.extract_strided_slice %0 {offsets = [0, 1, 0, 0], sizes = [1, 16, 18, 128], strides = [1, 1, 1, 1]} : vector<1x18x18x128xbf16> to vector<1x16x18x128xbf16>
    %12 = vector.extract_strided_slice %11 {offsets = [0, 0, 0, 0], sizes = [1, 16, 16, 128], strides = [1, 1, 1, 1]} : vector<1x16x18x128xbf16> to vector<1x16x16x128xbf16>
    %13 = vector.extract_strided_slice %11 {offsets = [0, 0, 1, 0], sizes = [1, 16, 16, 128], strides = [1, 1, 1, 1]} : vector<1x16x18x128xbf16> to vector<1x16x16x128xbf16>
    %14 = vector.extract_strided_slice %11 {offsets = [0, 0, 2, 0], sizes = [1, 16, 16, 128], strides = [1, 1, 1, 1]} : vector<1x16x18x128xbf16> to vector<1x16x16x128xbf16>
    %15 = tpu.concatenate %12, %13, %14 in 3 : vector<1x16x16x128xbf16>, vector<1x16x16x128xbf16>, vector<1x16x16x128xbf16> -> vector<1x16x16x384xbf16>
    %16 = vector.shape_cast %15 : vector<1x16x16x384xbf16> to vector<256x384xbf16>
    %c384 = arith.constant 384 : index
    %c0_6 = arith.constant 0 : index
    %17 = vector.load %arg3[%c384, %c0_6] : memref<1152x128xbf16, #tpu.memory_space<vmem>>, vector<384x128xbf16>
    %cst_7 = arith.constant dense<0.000000e+00> : vector<256x128xf32>
    %18 = tpu.matmul %16, %17, %cst_7 {dimension_numbers = #tpu.dot_dimension_numbers<[1], [0], [0], [1], [0, 0, 1, 1], [], []>} : vector<256x384xbf16>, vector<384x128xbf16>, vector<256x128xf32> -> vector<256x128xf32>
    %19 = arith.addf %10, %18 : vector<256x128xf32>
    %20 = vector.extract_strided_slice %0 {offsets = [0, 2, 0, 0], sizes = [1, 16, 18, 128], strides = [1, 1, 1, 1]} : vector<1x18x18x128xbf16> to vector<1x16x18x128xbf16>
    %21 = vector.extract_strided_slice %20 {offsets = [0, 0, 0, 0], sizes = [1, 16, 16, 128], strides = [1, 1, 1, 1]} : vector<1x16x18x128xbf16> to vector<1x16x16x128xbf16>
    %22 = vector.extract_strided_slice %20 {offsets = [0, 0, 1, 0], sizes = [1, 16, 16, 128], strides = [1, 1, 1, 1]} : vector<1x16x18x128xbf16> to vector<1x16x16x128xbf16>
    %23 = vector.extract_strided_slice %20 {offsets = [0, 0, 2, 0], sizes = [1, 16, 16, 128], strides = [1, 1, 1, 1]} : vector<1x16x18x128xbf16> to vector<1x16x16x128xbf16>
    %24 = tpu.concatenate %21, %22, %23 in 3 : vector<1x16x16x128xbf16>, vector<1x16x16x128xbf16>, vector<1x16x16x128xbf16> -> vector<1x16x16x384xbf16>
    %25 = vector.shape_cast %24 : vector<1x16x16x384xbf16> to vector<256x384xbf16>
    %c768 = arith.constant 768 : index
    %c0_8 = arith.constant 0 : index
    %26 = vector.load %arg3[%c768, %c0_8] : memref<1152x128xbf16, #tpu.memory_space<vmem>>, vector<384x128xbf16>
    %cst_9 = arith.constant dense<0.000000e+00> : vector<256x128xf32>
    %27 = tpu.matmul %25, %26, %cst_9 {dimension_numbers = #tpu.dot_dimension_numbers<[1], [0], [0], [1], [0, 0, 1, 1], [], []>} : vector<256x384xbf16>, vector<384x128xbf16>, vector<256x128xf32> -> vector<256x128xf32>
    %28 = arith.addf %19, %27 : vector<256x128xf32>
    %c0_10 = arith.constant 0 : index
    %c0_11 = arith.constant 0 : index
    %29 = vector.load %arg4[%c0_10, %c0_11] : memref<1x128xf32, #tpu.memory_space<vmem>>, vector<1x128xf32>
    %30 = vector.broadcast %29 : vector<1x128xf32> to vector<256x128xf32>
    %31 = arith.addf %28, %30 : vector<256x128xf32>
    %cst_12 = arith.constant 0.000000e+00 : f32
    %32 = vector.broadcast %cst_12 : f32 to vector<256x128xf32>
    %33 = arith.maximumf %31, %32 : vector<256x128xf32>
    %34 = vector.shape_cast %33 : vector<256x128xf32> to vector<1x16x16x128xf32>
    %35 = arith.truncf %34 : vector<1x16x16x128xf32> to vector<1x16x16x128xbf16>
    %cst_13 = arith.constant 0.000000e+00 : bf16
    %36 = vector.broadcast %cst_13 : bf16 to vector<1x1x18x128xbf16>
    %cst_14 = arith.constant 0.000000e+00 : bf16
    %37 = vector.broadcast %cst_14 : bf16 to vector<1x18x1x128xbf16>
    %c0_15 = arith.constant 0 : index
    %c0_16 = arith.constant 0 : index
    %c0_17 = arith.constant 0 : index
    %c0_18 = arith.constant 0 : index
    %38 = vector.load %arg8[%c0_15, %c0_16, %c0_17, %c0_18] : memref<1x18x18x128xbf16, #tpu.memory_space<vmem>>, vector<1x1x18x128xbf16>
    tpu.vector_store %arg8[%c0_15, %c0_16, %c0_17, %c0_18], %36 {strides = array<i32>} : memref<1x18x18x128xbf16, #tpu.memory_space<vmem>>, vector<1x1x18x128xbf16>,
    %c0_19 = arith.constant 0 : index
    %c17 = arith.constant 17 : index
    %c0_20 = arith.constant 0 : index
    %c0_21 = arith.constant 0 : index
    %39 = vector.load %arg8[%c0_19, %c17, %c0_20, %c0_21] : memref<1x18x18x128xbf16, #tpu.memory_space<vmem>>, vector<1x1x18x128xbf16>
    tpu.vector_store %arg8[%c0_19, %c17, %c0_20, %c0_21], %36 {strides = array<i32>} : memref<1x18x18x128xbf16, #tpu.memory_space<vmem>>, vector<1x1x18x128xbf16>,
    %c0_22 = arith.constant 0 : index
    %c0_23 = arith.constant 0 : index
    %c0_24 = arith.constant 0 : index
    %c0_25 = arith.constant 0 : index
    %40 = vector.load %arg8[%c0_22, %c0_23, %c0_24, %c0_25] : memref<1x18x18x128xbf16, #tpu.memory_space<vmem>>, vector<1x18x1x128xbf16>
    tpu.vector_store %arg8[%c0_22, %c0_23, %c0_24, %c0_25], %37 {strides = array<i32>} : memref<1x18x18x128xbf16, #tpu.memory_space<vmem>>, vector<1x18x1x128xbf16>,
    %c0_26 = arith.constant 0 : index
    %c0_27 = arith.constant 0 : index
    %c17_28 = arith.constant 17 : index
    %c0_29 = arith.constant 0 : index
    %41 = vector.load %arg8[%c0_26, %c0_27, %c17_28, %c0_29] : memref<1x18x18x128xbf16, #tpu.memory_space<vmem>>, vector<1x18x1x128xbf16>
    tpu.vector_store %arg8[%c0_26, %c0_27, %c17_28, %c0_29], %37 {strides = array<i32>} : memref<1x18x18x128xbf16, #tpu.memory_space<vmem>>, vector<1x18x1x128xbf16>,
    %c0_30 = arith.constant 0 : index
    %c1 = arith.constant 1 : index
    %c1_31 = arith.constant 1 : index
    %c0_32 = arith.constant 0 : index
    %42 = vector.load %arg8[%c0_30, %c1, %c1_31, %c0_32] : memref<1x18x18x128xbf16, #tpu.memory_space<vmem>>, vector<1x16x16x128xbf16>
    tpu.vector_store %arg8[%c0_30, %c1, %c1_31, %c0_32], %35 {strides = array<i32>} : memref<1x18x18x128xbf16, #tpu.memory_space<vmem>>, vector<1x16x16x128xbf16>,
    %c0_33 = arith.constant 0 : index
    %c0_34 = arith.constant 0 : index
    %c0_35 = arith.constant 0 : index
    %c0_36 = arith.constant 0 : index
    %43 = vector.load %arg8[%c0_33, %c0_34, %c0_35, %c0_36] : memref<1x18x18x128xbf16, #tpu.memory_space<vmem>>, vector<1x18x18x128xbf16>
    %cst_37 = arith.constant 0.000000e+00 : f32
    %44 = vector.broadcast %cst_37 : f32 to vector<256x128xf32>
    %45 = vector.extract_strided_slice %43 {offsets = [0, 0, 0, 0], sizes = [1, 16, 18, 128], strides = [1, 1, 1, 1]} : vector<1x18x18x128xbf16> to vector<1x16x18x128xbf16>
    %46 = vector.extract_strided_slice %45 {offsets = [0, 0, 0, 0], sizes = [1, 16, 16, 128], strides = [1, 1, 1, 1]} : vector<1x16x18x128xbf16> to vector<1x16x16x128xbf16>
    %47 = vector.extract_strided_slice %45 {offsets = [0, 0, 1, 0], sizes = [1, 16, 16, 128], strides = [1, 1, 1, 1]} : vector<1x16x18x128xbf16> to vector<1x16x16x128xbf16>
    %48 = vector.extract_strided_slice %45 {offsets = [0, 0, 2, 0], sizes = [1, 16, 16, 128], strides = [1, 1, 1, 1]} : vector<1x16x18x128xbf16> to vector<1x16x16x128xbf16>
    %49 = tpu.concatenate %46, %47, %48 in 3 : vector<1x16x16x128xbf16>, vector<1x16x16x128xbf16>, vector<1x16x16x128xbf16> -> vector<1x16x16x384xbf16>
    %50 = vector.shape_cast %49 : vector<1x16x16x384xbf16> to vector<256x384xbf16>
    %c0_38 = arith.constant 0 : index
    %c0_39 = arith.constant 0 : index
    %51 = vector.load %arg5[%c0_38, %c0_39] : memref<1152x128xbf16, #tpu.memory_space<vmem>>, vector<384x128xbf16>
    %cst_40 = arith.constant dense<0.000000e+00> : vector<256x128xf32>
    %52 = tpu.matmul %50, %51, %cst_40 {dimension_numbers = #tpu.dot_dimension_numbers<[1], [0], [0], [1], [0, 0, 1, 1], [], []>} : vector<256x384xbf16>, vector<384x128xbf16>, vector<256x128xf32> -> vector<256x128xf32>
    %53 = arith.addf %44, %52 : vector<256x128xf32>
    %54 = vector.extract_strided_slice %43 {offsets = [0, 1, 0, 0], sizes = [1, 16, 18, 128], strides = [1, 1, 1, 1]} : vector<1x18x18x128xbf16> to vector<1x16x18x128xbf16>
    %55 = vector.extract_strided_slice %54 {offsets = [0, 0, 0, 0], sizes = [1, 16, 16, 128], strides = [1, 1, 1, 1]} : vector<1x16x18x128xbf16> to vector<1x16x16x128xbf16>
    %56 = vector.extract_strided_slice %54 {offsets = [0, 0, 1, 0], sizes = [1, 16, 16, 128], strides = [1, 1, 1, 1]} : vector<1x16x18x128xbf16> to vector<1x16x16x128xbf16>
    %57 = vector.extract_strided_slice %54 {offsets = [0, 0, 2, 0], sizes = [1, 16, 16, 128], strides = [1, 1, 1, 1]} : vector<1x16x18x128xbf16> to vector<1x16x16x128xbf16>
    %58 = tpu.concatenate %55, %56, %57 in 3 : vector<1x16x16x128xbf16>, vector<1x16x16x128xbf16>, vector<1x16x16x128xbf16> -> vector<1x16x16x384xbf16>
    %59 = vector.shape_cast %58 : vector<1x16x16x384xbf16> to vector<256x384xbf16>
    %c384_41 = arith.constant 384 : index
    %c0_42 = arith.constant 0 : index
    %60 = vector.load %arg5[%c384_41, %c0_42] : memref<1152x128xbf16, #tpu.memory_space<vmem>>, vector<384x128xbf16>
    %cst_43 = arith.constant dense<0.000000e+00> : vector<256x128xf32>
    %61 = tpu.matmul %59, %60, %cst_43 {dimension_numbers = #tpu.dot_dimension_numbers<[1], [0], [0], [1], [0, 0, 1, 1], [], []>} : vector<256x384xbf16>, vector<384x128xbf16>, vector<256x128xf32> -> vector<256x128xf32>
    %62 = arith.addf %53, %61 : vector<256x128xf32>
    %63 = vector.extract_strided_slice %43 {offsets = [0, 2, 0, 0], sizes = [1, 16, 18, 128], strides = [1, 1, 1, 1]} : vector<1x18x18x128xbf16> to vector<1x16x18x128xbf16>
    %64 = vector.extract_strided_slice %63 {offsets = [0, 0, 0, 0], sizes = [1, 16, 16, 128], strides = [1, 1, 1, 1]} : vector<1x16x18x128xbf16> to vector<1x16x16x128xbf16>
    %65 = vector.extract_strided_slice %63 {offsets = [0, 0, 1, 0], sizes = [1, 16, 16, 128], strides = [1, 1, 1, 1]} : vector<1x16x18x128xbf16> to vector<1x16x16x128xbf16>
    %66 = vector.extract_strided_slice %63 {offsets = [0, 0, 2, 0], sizes = [1, 16, 16, 128], strides = [1, 1, 1, 1]} : vector<1x16x18x128xbf16> to vector<1x16x16x128xbf16>
    %67 = tpu.concatenate %64, %65, %66 in 3 : vector<1x16x16x128xbf16>, vector<1x16x16x128xbf16>, vector<1x16x16x128xbf16> -> vector<1x16x16x384xbf16>
    %68 = vector.shape_cast %67 : vector<1x16x16x384xbf16> to vector<256x384xbf16>
    %c768_44 = arith.constant 768 : index
    %c0_45 = arith.constant 0 : index
    %69 = vector.load %arg5[%c768_44, %c0_45] : memref<1152x128xbf16, #tpu.memory_space<vmem>>, vector<384x128xbf16>
    %cst_46 = arith.constant dense<0.000000e+00> : vector<256x128xf32>
    %70 = tpu.matmul %68, %69, %cst_46 {dimension_numbers = #tpu.dot_dimension_numbers<[1], [0], [0], [1], [0, 0, 1, 1], [], []>} : vector<256x384xbf16>, vector<384x128xbf16>, vector<256x128xf32> -> vector<256x128xf32>
    %71 = arith.addf %62, %70 : vector<256x128xf32>
    %c0_47 = arith.constant 0 : index
    %c0_48 = arith.constant 0 : index
    %72 = vector.load %arg6[%c0_47, %c0_48] : memref<1x128xf32, #tpu.memory_space<vmem>>, vector<1x128xf32>
    %73 = vector.broadcast %72 : vector<1x128xf32> to vector<256x128xf32>
    %74 = arith.addf %71, %73 : vector<256x128xf32>
    %c0_49 = arith.constant 0 : index
    %c0_50 = arith.constant 0 : index
    %c0_51 = arith.constant 0 : index
    %c0_52 = arith.constant 0 : index
    %75 = vector.load %arg2[%c0_49, %c0_50, %c0_51, %c0_52] : memref<1x16x16x128xf32, #tpu.memory_space<vmem>>, vector<1x16x16x128xf32>
    %76 = vector.shape_cast %75 : vector<1x16x16x128xf32> to vector<256x128xf32>
    %77 = arith.addf %74, %76 : vector<256x128xf32>
    %cst_53 = arith.constant 0.000000e+00 : f32
    %78 = vector.broadcast %cst_53 : f32 to vector<256x128xf32>
    %79 = arith.maximumf %77, %78 : vector<256x128xf32>
    %80 = vector.shape_cast %79 : vector<256x128xf32> to vector<1x16x16x128xf32>
    %c0_54 = arith.constant 0 : index
    %c0_55 = arith.constant 0 : index
    %c0_56 = arith.constant 0 : index
    %c0_57 = arith.constant 0 : index
    %81 = vector.load %arg7[%c0_54, %c0_55, %c0_56, %c0_57] : memref<1x16x16x128xf32, #tpu.memory_space<vmem>>, vector<1x16x16x128xf32>
    tpu.vector_store %arg7[%c0_54, %c0_55, %c0_56, %c0_57], %80 {strides = array<i32>} : memref<1x16x16x128xf32, #tpu.memory_space<vmem>>, vector<1x16x16x128xf32>,
    return
  }
  func.func @transform_0(%arg0: i32) -> (i32, i32, i32, i32) {
    %c0_i32 = arith.constant 0 : i32
    %c0_i32_0 = arith.constant 0 : i32
    %c0_i32_1 = arith.constant 0 : i32
    %c0_i32_2 = arith.constant 0 : i32
    return %arg0, %c0_i32, %c0_i32_0, %c0_i32_1 : i32, i32, i32, i32
  }
  func.func @transform_1(%arg0: i32) -> (i32, i32, i32, i32) {
    %c0_i32 = arith.constant 0 : i32
    %c0_i32_0 = arith.constant 0 : i32
    %c0_i32_1 = arith.constant 0 : i32
    %c0_i32_2 = arith.constant 0 : i32
    return %arg0, %c0_i32, %c0_i32_0, %c0_i32_1 : i32, i32, i32, i32
  }
  func.func @transform_2(%arg0: i32) -> (i32, i32) {
    %c0_i32 = arith.constant 0 : i32
    %c0_i32_0 = arith.constant 0 : i32
    %c0_i32_1 = arith.constant 0 : i32
    return %c0_i32, %c0_i32_0 : i32, i32
  }
  func.func @transform_3(%arg0: i32) -> (i32, i32) {
    %c0_i32 = arith.constant 0 : i32
    %c0_i32_0 = arith.constant 0 : i32
    %c0_i32_1 = arith.constant 0 : i32
    return %c0_i32, %c0_i32_0 : i32, i32
  }
  func.func @transform_4(%arg0: i32) -> (i32, i32) {
    %c0_i32 = arith.constant 0 : i32
    %c0_i32_0 = arith.constant 0 : i32
    %c0_i32_1 = arith.constant 0 : i32
    return %c0_i32, %c0_i32_0 : i32, i32
  }
  func.func @transform_5(%arg0: i32) -> (i32, i32) {
    %c0_i32 = arith.constant 0 : i32
    %c0_i32_0 = arith.constant 0 : i32
    %c0_i32_1 = arith.constant 0 : i32
    return %c0_i32, %c0_i32_0 : i32, i32
  }
  func.func @transform_6(%arg0: i32) -> (i32, i32, i32, i32) {
    %c0_i32 = arith.constant 0 : i32
    %c0_i32_0 = arith.constant 0 : i32
    %c0_i32_1 = arith.constant 0 : i32
    %c0_i32_2 = arith.constant 0 : i32
    return %arg0, %c0_i32, %c0_i32_0, %c0_i32_1 : i32, i32, i32, i32
  }
}

module attributes {stable_mosaic.version = 11 : i64} {
  func.func @_basic_block_kernel(%arg0: i32, %arg1: memref<1x18x18x128xbf16, #tpu.memory_space<vmem>>, %arg2: memref<1x16x16x128xf32, #tpu.memory_space<vmem>>, %arg3: memref<1152x128xbf16, #tpu.memory_space<vmem>>, %arg4: memref<1x128xf32, #tpu.memory_space<vmem>>, %arg5: memref<1152x128xbf16, #tpu.memory_space<vmem>>, %arg6: memref<1x128xf32, #tpu.memory_space<vmem>>, %arg7: memref<1x16x16x128xf32, #tpu.memory_space<vmem>>, %arg8: memref<1x18x18x128xbf16, #tpu.memory_space<vmem>>) attributes {dimension_semantics = [#tpu.dimension_semantics<parallel>], iteration_bounds = array<i64: 2>, scalar_prefetch = 0 : i64, scratch_operands = 1 : i64, tpu.core_type = #tpu.core_type<tc>, window_params = [{transform_indices = @transform_0, window_bounds = array<i64: 1, 18, 18, 128>}, {transform_indices = @transform_1, window_bounds = array<i64: 1, 16, 16, 128>}, {pipeline_mode = #tpu.pipeline_mode<synchronous>, transform_indices = @transform_2, window_bounds = array<i64: 1152, 128>}, {pipeline_mode = #tpu.pipeline_mode<synchronous>, transform_indices = @transform_3, window_bounds = array<i64: 1, 128>}, {pipeline_mode = #tpu.pipeline_mode<synchronous>, transform_indices = @transform_4, window_bounds = array<i64: 1152, 128>}, {pipeline_mode = #tpu.pipeline_mode<synchronous>, transform_indices = @transform_5, window_bounds = array<i64: 1, 128>}, {transform_indices = @transform_6, window_bounds = array<i64: 1, 16, 16, 128>}]} {
    %c0 = arith.constant 0 : index
    %c0_0 = arith.constant 0 : index
    %c0_1 = arith.constant 0 : index
    %c0_2 = arith.constant 0 : index
    %0 = vector.load %arg1[%c0, %c0_0, %c0_1, %c0_2] : memref<1x18x18x128xbf16, #tpu.memory_space<vmem>>, vector<1x18x18x128xbf16>
    %cst = arith.constant 0.000000e+00 : f32
    %1 = vector.broadcast %cst : f32 to vector<256x128xf32>
    %2 = vector.extract_strided_slice %0 {offsets = [0, 0, 0, 0], sizes = [1, 16, 18, 128], strides = [1, 1, 1, 1]} : vector<1x18x18x128xbf16> to vector<1x16x18x128xbf16>
    %3 = vector.extract_strided_slice %2 {offsets = [0, 0, 0, 0], sizes = [1, 16, 16, 128], strides = [1, 1, 1, 1]} : vector<1x16x18x128xbf16> to vector<1x16x16x128xbf16>
    %4 = vector.extract_strided_slice %2 {offsets = [0, 0, 1, 0], sizes = [1, 16, 16, 128], strides = [1, 1, 1, 1]} : vector<1x16x18x128xbf16> to vector<1x16x16x128xbf16>
    %5 = vector.extract_strided_slice %2 {offsets = [0, 0, 2, 0], sizes = [1, 16, 16, 128], strides = [1, 1, 1, 1]} : vector<1x16x18x128xbf16> to vector<1x16x16x128xbf16>
    %6 = tpu.concatenate %3, %4, %5 in 3 : vector<1x16x16x128xbf16>, vector<1x16x16x128xbf16>, vector<1x16x16x128xbf16> -> vector<1x16x16x384xbf16>
    %7 = vector.shape_cast %6 : vector<1x16x16x384xbf16> to vector<256x384xbf16>
    %c0_3 = arith.constant 0 : index
    %c0_4 = arith.constant 0 : index
    %8 = vector.load %arg3[%c0_3, %c0_4] : memref<1152x128xbf16, #tpu.memory_space<vmem>>, vector<384x128xbf16>
    %cst_5 = arith.constant dense<0.000000e+00> : vector<256x128xf32>
    %9 = tpu.matmul %7, %8, %cst_5 {dimension_numbers = #tpu.dot_dimension_numbers<[1], [0], [0], [1], [0, 0, 1, 1], [], []>} : vector<256x384xbf16>, vector<384x128xbf16>, vector<256x128xf32> -> vector<256x128xf32>
    %10 = arith.addf %1, %9 : vector<256x128xf32>
    %11 = vector.extract_strided_slice %0 {offsets = [0, 1, 0, 0], sizes = [1, 16, 18, 128], strides = [1, 1, 1, 1]} : vector<1x18x18x128xbf16> to vector<1x16x18x128xbf16>
    %12 = vector.extract_strided_slice %11 {offsets = [0, 0, 0, 0], sizes = [1, 16, 16, 128], strides = [1, 1, 1, 1]} : vector<1x16x18x128xbf16> to vector<1x16x16x128xbf16>
    %13 = vector.extract_strided_slice %11 {offsets = [0, 0, 1, 0], sizes = [1, 16, 16, 128], strides = [1, 1, 1, 1]} : vector<1x16x18x128xbf16> to vector<1x16x16x128xbf16>
    %14 = vector.extract_strided_slice %11 {offsets = [0, 0, 2, 0], sizes = [1, 16, 16, 128], strides = [1, 1, 1, 1]} : vector<1x16x18x128xbf16> to vector<1x16x16x128xbf16>
    %15 = tpu.concatenate %12, %13, %14 in 3 : vector<1x16x16x128xbf16>, vector<1x16x16x128xbf16>, vector<1x16x16x128xbf16> -> vector<1x16x16x384xbf16>
    %16 = vector.shape_cast %15 : vector<1x16x16x384xbf16> to vector<256x384xbf16>
    %c384 = arith.constant 384 : index
    %c0_6 = arith.constant 0 : index
    %17 = vector.load %arg3[%c384, %c0_6] : memref<1152x128xbf16, #tpu.memory_space<vmem>>, vector<384x128xbf16>
    %cst_7 = arith.constant dense<0.000000e+00> : vector<256x128xf32>
    %18 = tpu.matmul %16, %17, %cst_7 {dimension_numbers = #tpu.dot_dimension_numbers<[1], [0], [0], [1], [0, 0, 1, 1], [], []>} : vector<256x384xbf16>, vector<384x128xbf16>, vector<256x128xf32> -> vector<256x128xf32>
    %19 = arith.addf %10, %18 : vector<256x128xf32>
    %20 = vector.extract_strided_slice %0 {offsets = [0, 2, 0, 0], sizes = [1, 16, 18, 128], strides = [1, 1, 1, 1]} : vector<1x18x18x128xbf16> to vector<1x16x18x128xbf16>
    %21 = vector.extract_strided_slice %20 {offsets = [0, 0, 0, 0], sizes = [1, 16, 16, 128], strides = [1, 1, 1, 1]} : vector<1x16x18x128xbf16> to vector<1x16x16x128xbf16>
    %22 = vector.extract_strided_slice %20 {offsets = [0, 0, 1, 0], sizes = [1, 16, 16, 128], strides = [1, 1, 1, 1]} : vector<1x16x18x128xbf16> to vector<1x16x16x128xbf16>
    %23 = vector.extract_strided_slice %20 {offsets = [0, 0, 2, 0], sizes = [1, 16, 16, 128], strides = [1, 1, 1, 1]} : vector<1x16x18x128xbf16> to vector<1x16x16x128xbf16>
    %24 = tpu.concatenate %21, %22, %23 in 3 : vector<1x16x16x128xbf16>, vector<1x16x16x128xbf16>, vector<1x16x16x128xbf16> -> vector<1x16x16x384xbf16>
    %25 = vector.shape_cast %24 : vector<1x16x16x384xbf16> to vector<256x384xbf16>
    %c768 = arith.constant 768 : index
    %c0_8 = arith.constant 0 : index
    %26 = vector.load %arg3[%c768, %c0_8] : memref<1152x128xbf16, #tpu.memory_space<vmem>>, vector<384x128xbf16>
    %cst_9 = arith.constant dense<0.000000e+00> : vector<256x128xf32>
    %27 = tpu.matmul %25, %26, %cst_9 {dimension_numbers = #tpu.dot_dimension_numbers<[1], [0], [0], [1], [0, 0, 1, 1], [], []>} : vector<256x384xbf16>, vector<384x128xbf16>, vector<256x128xf32> -> vector<256x128xf32>
    %28 = arith.addf %19, %27 : vector<256x128xf32>
    %c0_10 = arith.constant 0 : index
    %c0_11 = arith.constant 0 : index
    %29 = vector.load %arg4[%c0_10, %c0_11] : memref<1x128xf32, #tpu.memory_space<vmem>>, vector<1x128xf32>
    %30 = vector.broadcast %29 : vector<1x128xf32> to vector<256x128xf32>
    %31 = arith.addf %28, %30 : vector<256x128xf32>
    %cst_12 = arith.constant 0.000000e+00 : f32
    %32 = vector.broadcast %cst_12 : f32 to vector<256x128xf32>
    %33 = arith.maximumf %31, %32 : vector<256x128xf32>
    %34 = vector.shape_cast %33 : vector<256x128xf32> to vector<1x16x16x128xf32>
    %35 = arith.truncf %34 : vector<1x16x16x128xf32> to vector<1x16x16x128xbf16>
    %cst_13 = arith.constant 0.000000e+00 : bf16
    %36 = vector.broadcast %cst_13 : bf16 to vector<1x1x18x128xbf16>
    %cst_14 = arith.constant 0.000000e+00 : bf16
    %37 = vector.broadcast %cst_14 : bf16 to vector<1x18x1x128xbf16>
    %c0_15 = arith.constant 0 : index
    %c0_16 = arith.constant 0 : index
    %c0_17 = arith.constant 0 : index
    %c0_18 = arith.constant 0 : index
    %38 = vector.load %arg8[%c0_15, %c0_16, %c0_17, %c0_18] : memref<1x18x18x128xbf16, #tpu.memory_space<vmem>>, vector<1x1x18x128xbf16>
    tpu.vector_store %arg8[%c0_15, %c0_16, %c0_17, %c0_18], %36 {strides = array<i32>} : memref<1x18x18x128xbf16, #tpu.memory_space<vmem>>, vector<1x1x18x128xbf16>,
    %c0_19 = arith.constant 0 : index
    %c17 = arith.constant 17 : index
    %c0_20 = arith.constant 0 : index
    %c0_21 = arith.constant 0 : index
    %39 = vector.load %arg8[%c0_19, %c17, %c0_20, %c0_21] : memref<1x18x18x128xbf16, #tpu.memory_space<vmem>>, vector<1x1x18x128xbf16>
    tpu.vector_store %arg8[%c0_19, %c17, %c0_20, %c0_21], %36 {strides = array<i32>} : memref<1x18x18x128xbf16, #tpu.memory_space<vmem>>, vector<1x1x18x128xbf16>,
    %c0_22 = arith.constant 0 : index
    %c0_23 = arith.constant 0 : index
    %c0_24 = arith.constant 0 : index
    %c0_25 = arith.constant 0 : index
    %40 = vector.load %arg8[%c0_22, %c0_23, %c0_24, %c0_25] : memref<1x18x18x128xbf16, #tpu.memory_space<vmem>>, vector<1x18x1x128xbf16>
    tpu.vector_store %arg8[%c0_22, %c0_23, %c0_24, %c0_25], %37 {strides = array<i32>} : memref<1x18x18x128xbf16, #tpu.memory_space<vmem>>, vector<1x18x1x128xbf16>,
    %c0_26 = arith.constant 0 : index
    %c0_27 = arith.constant 0 : index
    %c17_28 = arith.constant 17 : index
    %c0_29 = arith.constant 0 : index
    %41 = vector.load %arg8[%c0_26, %c0_27, %c17_28, %c0_29] : memref<1x18x18x128xbf16, #tpu.memory_space<vmem>>, vector<1x18x1x128xbf16>
    tpu.vector_store %arg8[%c0_26, %c0_27, %c17_28, %c0_29], %37 {strides = array<i32>} : memref<1x18x18x128xbf16, #tpu.memory_space<vmem>>, vector<1x18x1x128xbf16>,
    %c0_30 = arith.constant 0 : index
    %c1 = arith.constant 1 : index
    %c1_31 = arith.constant 1 : index
    %c0_32 = arith.constant 0 : index
    %42 = vector.load %arg8[%c0_30, %c1, %c1_31, %c0_32] : memref<1x18x18x128xbf16, #tpu.memory_space<vmem>>, vector<1x16x16x128xbf16>
    tpu.vector_store %arg8[%c0_30, %c1, %c1_31, %c0_32], %35 {strides = array<i32>} : memref<1x18x18x128xbf16, #tpu.memory_space<vmem>>, vector<1x16x16x128xbf16>,
    %c0_33 = arith.constant 0 : index
    %c0_34 = arith.constant 0 : index
    %c0_35 = arith.constant 0 : index
    %c0_36 = arith.constant 0 : index
    %43 = vector.load %arg8[%c0_33, %c0_34, %c0_35, %c0_36] : memref<1x18x18x128xbf16, #tpu.memory_space<vmem>>, vector<1x18x18x128xbf16>
    %cst_37 = arith.constant 0.000000e+00 : f32
    %44 = vector.broadcast %cst_37 : f32 to vector<256x128xf32>
    %45 = vector.extract_strided_slice %43 {offsets = [0, 0, 0, 0], sizes = [1, 16, 18, 128], strides = [1, 1, 1, 1]} : vector<1x18x18x128xbf16> to vector<1x16x18x128xbf16>
    %46 = vector.extract_strided_slice %45 {offsets = [0, 0, 0, 0], sizes = [1, 16, 16, 128], strides = [1, 1, 1, 1]} : vector<1x16x18x128xbf16> to vector<1x16x16x128xbf16>
    %47 = vector.extract_strided_slice %45 {offsets = [0, 0, 1, 0], sizes = [1, 16, 16, 128], strides = [1, 1, 1, 1]} : vector<1x16x18x128xbf16> to vector<1x16x16x128xbf16>
    %48 = vector.extract_strided_slice %45 {offsets = [0, 0, 2, 0], sizes = [1, 16, 16, 128], strides = [1, 1, 1, 1]} : vector<1x16x18x128xbf16> to vector<1x16x16x128xbf16>
    %49 = tpu.concatenate %46, %47, %48 in 3 : vector<1x16x16x128xbf16>, vector<1x16x16x128xbf16>, vector<1x16x16x128xbf16> -> vector<1x16x16x384xbf16>
    %50 = vector.shape_cast %49 : vector<1x16x16x384xbf16> to vector<256x384xbf16>
    %c0_38 = arith.constant 0 : index
    %c0_39 = arith.constant 0 : index
    %51 = vector.load %arg5[%c0_38, %c0_39] : memref<1152x128xbf16, #tpu.memory_space<vmem>>, vector<384x128xbf16>
    %cst_40 = arith.constant dense<0.000000e+00> : vector<256x128xf32>
    %52 = tpu.matmul %50, %51, %cst_40 {dimension_numbers = #tpu.dot_dimension_numbers<[1], [0], [0], [1], [0, 0, 1, 1], [], []>} : vector<256x384xbf16>, vector<384x128xbf16>, vector<256x128xf32> -> vector<256x128xf32>
    %53 = arith.addf %44, %52 : vector<256x128xf32>
    %54 = vector.extract_strided_slice %43 {offsets = [0, 1, 0, 0], sizes = [1, 16, 18, 128], strides = [1, 1, 1, 1]} : vector<1x18x18x128xbf16> to vector<1x16x18x128xbf16>
    %55 = vector.extract_strided_slice %54 {offsets = [0, 0, 0, 0], sizes = [1, 16, 16, 128], strides = [1, 1, 1, 1]} : vector<1x16x18x128xbf16> to vector<1x16x16x128xbf16>
    %56 = vector.extract_strided_slice %54 {offsets = [0, 0, 1, 0], sizes = [1, 16, 16, 128], strides = [1, 1, 1, 1]} : vector<1x16x18x128xbf16> to vector<1x16x16x128xbf16>
    %57 = vector.extract_strided_slice %54 {offsets = [0, 0, 2, 0], sizes = [1, 16, 16, 128], strides = [1, 1, 1, 1]} : vector<1x16x18x128xbf16> to vector<1x16x16x128xbf16>
    %58 = tpu.concatenate %55, %56, %57 in 3 : vector<1x16x16x128xbf16>, vector<1x16x16x128xbf16>, vector<1x16x16x128xbf16> -> vector<1x16x16x384xbf16>
    %59 = vector.shape_cast %58 : vector<1x16x16x384xbf16> to vector<256x384xbf16>
    %c384_41 = arith.constant 384 : index
    %c0_42 = arith.constant 0 : index
    %60 = vector.load %arg5[%c384_41, %c0_42] : memref<1152x128xbf16, #tpu.memory_space<vmem>>, vector<384x128xbf16>
    %cst_43 = arith.constant dense<0.000000e+00> : vector<256x128xf32>
    %61 = tpu.matmul %59, %60, %cst_43 {dimension_numbers = #tpu.dot_dimension_numbers<[1], [0], [0], [1], [0, 0, 1, 1], [], []>} : vector<256x384xbf16>, vector<384x128xbf16>, vector<256x128xf32> -> vector<256x128xf32>
    %62 = arith.addf %53, %61 : vector<256x128xf32>
    %63 = vector.extract_strided_slice %43 {offsets = [0, 2, 0, 0], sizes = [1, 16, 18, 128], strides = [1, 1, 1, 1]} : vector<1x18x18x128xbf16> to vector<1x16x18x128xbf16>
    %64 = vector.extract_strided_slice %63 {offsets = [0, 0, 0, 0], sizes = [1, 16, 16, 128], strides = [1, 1, 1, 1]} : vector<1x16x18x128xbf16> to vector<1x16x16x128xbf16>
    %65 = vector.extract_strided_slice %63 {offsets = [0, 0, 1, 0], sizes = [1, 16, 16, 128], strides = [1, 1, 1, 1]} : vector<1x16x18x128xbf16> to vector<1x16x16x128xbf16>
    %66 = vector.extract_strided_slice %63 {offsets = [0, 0, 2, 0], sizes = [1, 16, 16, 128], strides = [1, 1, 1, 1]} : vector<1x16x18x128xbf16> to vector<1x16x16x128xbf16>
    %67 = tpu.concatenate %64, %65, %66 in 3 : vector<1x16x16x128xbf16>, vector<1x16x16x128xbf16>, vector<1x16x16x128xbf16> -> vector<1x16x16x384xbf16>
    %68 = vector.shape_cast %67 : vector<1x16x16x384xbf16> to vector<256x384xbf16>
    %c768_44 = arith.constant 768 : index
    %c0_45 = arith.constant 0 : index
    %69 = vector.load %arg5[%c768_44, %c0_45] : memref<1152x128xbf16, #tpu.memory_space<vmem>>, vector<384x128xbf16>
    %cst_46 = arith.constant dense<0.000000e+00> : vector<256x128xf32>
    %70 = tpu.matmul %68, %69, %cst_46 {dimension_numbers = #tpu.dot_dimension_numbers<[1], [0], [0], [1], [0, 0, 1, 1], [], []>} : vector<256x384xbf16>, vector<384x128xbf16>, vector<256x128xf32> -> vector<256x128xf32>
    %71 = arith.addf %62, %70 : vector<256x128xf32>
    %c0_47 = arith.constant 0 : index
    %c0_48 = arith.constant 0 : index
    %72 = vector.load %arg6[%c0_47, %c0_48] : memref<1x128xf32, #tpu.memory_space<vmem>>, vector<1x128xf32>
    %73 = vector.broadcast %72 : vector<1x128xf32> to vector<256x128xf32>
    %74 = arith.addf %71, %73 : vector<256x128xf32>
    %c0_49 = arith.constant 0 : index
    %c0_50 = arith.constant 0 : index
    %c0_51 = arith.constant 0 : index
    %c0_52 = arith.constant 0 : index
    %75 = vector.load %arg2[%c0_49, %c0_50, %c0_51, %c0_52] : memref<1x16x16x128xf32, #tpu.memory_space<vmem>>, vector<1x16x16x128xf32>
    %76 = vector.shape_cast %75 : vector<1x16x16x128xf32> to vector<256x128xf32>
    %77 = arith.addf %74, %76 : vector<256x128xf32>
    %cst_53 = arith.constant 0.000000e+00 : f32
    %78 = vector.broadcast %cst_53 : f32 to vector<256x128xf32>
    %79 = arith.maximumf %77, %78 : vector<256x128xf32>
    %80 = vector.shape_cast %79 : vector<256x128xf32> to vector<1x16x16x128xf32>
    %c0_54 = arith.constant 0 : index
    %c0_55 = arith.constant 0 : index
    %c0_56 = arith.constant 0 : index
    %c0_57 = arith.constant 0 : index
    %81 = vector.load %arg7[%c0_54, %c0_55, %c0_56, %c0_57] : memref<1x16x16x128xf32, #tpu.memory_space<vmem>>, vector<1x16x16x128xf32>
    tpu.vector_store %arg7[%c0_54, %c0_55, %c0_56, %c0_57], %80 {strides = array<i32>} : memref<1x16x16x128xf32, #tpu.memory_space<vmem>>, vector<1x16x16x128xf32>,
    return
  }
  func.func @transform_0(%arg0: i32) -> (i32, i32, i32, i32) {
    %c0_i32 = arith.constant 0 : i32
    %c0_i32_0 = arith.constant 0 : i32
    %c0_i32_1 = arith.constant 0 : i32
    %c0_i32_2 = arith.constant 0 : i32
    return %arg0, %c0_i32, %c0_i32_0, %c0_i32_1 : i32, i32, i32, i32
  }
  func.func @transform_1(%arg0: i32) -> (i32, i32, i32, i32) {
    %c0_i32 = arith.constant 0 : i32
    %c0_i32_0 = arith.constant 0 : i32
    %c0_i32_1 = arith.constant 0 : i32
    %c0_i32_2 = arith.constant 0 : i32
    return %arg0, %c0_i32, %c0_i32_0, %c0_i32_1 : i32, i32, i32, i32
  }
  func.func @transform_2(%arg0: i32) -> (i32, i32) {
    %c0_i32 = arith.constant 0 : i32
    %c0_i32_0 = arith.constant 0 : i32
    %c0_i32_1 = arith.constant 0 : i32
    return %c0_i32, %c0_i32_0 : i32, i32
  }
  func.func @transform_3(%arg0: i32) -> (i32, i32) {
    %c0_i32 = arith.constant 0 : i32
    %c0_i32_0 = arith.constant 0 : i32
    %c0_i32_1 = arith.constant 0 : i32
    return %c0_i32, %c0_i32_0 : i32, i32
  }
  func.func @transform_4(%arg0: i32) -> (i32, i32) {
    %c0_i32 = arith.constant 0 : i32
    %c0_i32_0 = arith.constant 0 : i32
    %c0_i32_1 = arith.constant 0 : i32
    return %c0_i32, %c0_i32_0 : i32, i32
  }
  func.func @transform_5(%arg0: i32) -> (i32, i32) {
    %c0_i32 = arith.constant 0 : i32
    %c0_i32_0 = arith.constant 0 : i32
    %c0_i32_1 = arith.constant 0 : i32
    return %c0_i32, %c0_i32_0 : i32, i32
  }
  func.func @transform_6(%arg0: i32) -> (i32, i32, i32, i32) {
    %c0_i32 = arith.constant 0 : i32
    %c0_i32_0 = arith.constant 0 : i32
    %c0_i32_1 = arith.constant 0 : i32
    %c0_i32_2 = arith.constant 0 : i32
    return %arg0, %c0_i32, %c0_i32_0, %c0_i32_1 : i32, i32, i32, i32
  }
}

</mosaic_0001>

<llo_original>
// kernel: tpu_custom_call.1
$region0: #{tpu_custom_call.1}
  #allocation0 [shape = 'u32[]', space=smem, size = 0x4, offset = 0x4, fixed_abs, tag = 'smem constant byte address 0x4 - core index']
  #allocation1 [shape = 'u32[144,128]{1,0:T(1,128)}', space=vmem, size = 0x12000, scoped, tag = 'internal scratch']
  #allocation2 [shape = 'bf16[1,18,18,128]{3,2,1,0:T(8,128)(2,1)}', space=vmem, size = 0x1b000, scoped, tag = 'scratch operand']
  %s0 = inlined_call_operand.hbm [shape: bf16[2,18,18,128], index: 0, kind: input, shape index: {}]
  %s1 = inlined_call_operand.hbm [shape: f32[2,16,16,128], index: 1, kind: input, shape index: {}]
  %s2 = inlined_call_operand.hbm [shape: bf16[1152,128], index: 2, kind: input, shape index: {}]
  %s3 = inlined_call_operand.hbm [shape: f32[1,128], index: 3, kind: input, shape index: {}]
  %s4 = inlined_call_operand.hbm [shape: bf16[1152,128], index: 4, kind: input, shape index: {}]
  %s5 = inlined_call_operand.hbm [shape: f32[1,128], index: 5, kind: input, shape index: {}]
  %s6 = inlined_call_operand.hbm [shape: f32[2,16,16,128], index: 6, kind: output, shape index: {}]
  %s7 = sld [smem:[#allocation0]]
  $region81: #{tpu_custom_call.1} parent=0
    _
  %s9 = ssub.s32 1, %s7
  %s10 = scalar_select 0, %s9, %s7
  $region1: #{tpu_custom_call.1} parent=0
    #allocation3 [shape = 'u8[221184]{0}', space=vmem, size = 0x36000, scoped, tag = 'input window, operand 0']
    #allocation4 [shape = 's32[2]{0}', space=sflag, size = 0x8, scoped, tag = 'scoped memory for tpu_custom_call.1']
    #allocation5 [shape = 's32[2]{0}', space=sflag, size = 0x8, scoped, tag = 'scoped memory for tpu_custom_call.1']
    #allocation6 [shape = 'u8[262144]{0}', space=vmem, size = 0x40000, scoped, tag = 'input window, operand 1']
    #allocation7 [shape = 's32[2]{0}', space=sflag, size = 0x8, scoped, tag = 'scoped memory for tpu_custom_call.1']
    #allocation8 [shape = 'u8[294912]{0}', space=vmem, size = 0x48000, scoped, tag = 'input window, operand 2, single buffered']
    #allocation9 [shape = 'u8[512]{0}', space=vmem, size = 0x400, scoped, tag = 'input window, operand 3, single buffered']
    #allocation10 [shape = 's32[1]{0}', space=sflag, size = 0x4, scoped, tag = 'scoped memory for tpu_custom_call.1']
    #allocation11 [shape = 'u8[294912]{0}', space=vmem, size = 0x48000, scoped, tag = 'input window, operand 4, single buffered']
    #allocation12 [shape = 'u8[512]{0}', space=vmem, size = 0x400, scoped, tag = 'input window, operand 5, single buffered']
    #allocation13 [shape = 's32[1]{0}', space=sflag, size = 0x4, scoped, tag = 'scoped memory for tpu_custom_call.1']
    #allocation14 [shape = 'u8[262144]{0}', space=vmem, size = 0x40000, scoped, tag = 'output window, operand 0']
    %11 = vsyncpa [#allocation4], 0
    %s12 = scalar_lea.sflag [#allocation4], 1
    %13 = vsyncpa %s12, 0
    %14 = vsyncpa [#allocation7], 0
    %s15 = scalar_lea.sflag [#allocation7], 1
    %16 = vsyncpa %s15, 0
    %17 = vsyncpa [#allocation10], 0
    %18 = vsyncpa [#allocation13], 0
    %19 = vsyncpa [#allocation5], 0
    %s20 = scalar_lea.sflag [#allocation5], 1
    %21 = vsyncpa %s20, 0
    loop: start=0, step=1, limit=4
    $region2: #{tpu_custom_call.1} parent=1 // loop_pre_header
      _
    $region3: #{tpu_custom_call.1} parent=1 // loop_header
      %s23 = sphi 0, %s27
      %p24 = scmp.ge.s32.totalorder %s23, 4
      %s33 = sphi 0, %s35
      %s36 = sphi 0, %s33
      %s37 = sphi 0, %s36
      %s53 = sphi 0, %s37
      %s59 = sphi 0, %s61
      %s62 = sphi 0, %s59
      %s63 = sphi 0, %s62
      %s79 = sphi 0, %s63
      %s83 = sphi 0, %s83
      %s85 = sphi 0, %s83
      %s86 = sphi 0, %s85
      %s100 = sphi 0, %s86
      %s104 = sphi 0, %s104
      %s106 = sphi 0, %s104
      %s107 = sphi 0, %s106
      %s121 = sphi 0, %s107
      %s125 = sphi 0, %s125
      %s127 = sphi 0, %s125
      %s128 = sphi 0, %s127
      %s142 = sphi 0, %s128
      %s146 = sphi 0, %s146
      %s148 = sphi 0, %s146
      %s149 = sphi 0, %s148
      %s163 = sphi 0, %s149
      %s169 = sphi 0, %s171
      %s172 = sphi 0, %s169
      %s173 = sphi 0, %s172
      %s189 = sphi 0, %s173
    $region4: #{tpu_custom_call.1} parent=1 // loop_header_branch
      %26 = sbr.rel (%p24) target = $region8
    $region5: #{tpu_custom_call.1} parent=1 // loop_body
      %s28 = ssub.s32 %s23, 1
      %s29 = ssub.s32 %s23, 2
      %s30 = sadd.s32 %s23, 1
      %s31 = ssub.s32 %s23, %s30
      %p32 = scmp.eq.s32.totalorder %s31, 0
      %s34 = sadd.s32 %s33, 1
      %s35 = scalar_select %p32, %s33, %s34
      %p38 = pneg %p32
      %p39 = scmp.eq.s32.totalorder %s23, 1
      %p40 = por %p38, %p39
      %p41 = scmp.ne.s32.totalorder %s33, %s36
      %p42 = scmp.eq.s32.totalorder %s23, 0
      %p43 = por %p41, %p42
      %p44 = scmp.ne.s32.totalorder %s33, %s36
      %p45 = scmp.eq.s32.totalorder %s28, 1
      %p46 = por %p44, %p45
      %p47 = scmp.ne.s32.totalorder %s36, %s37
      %p48 = scmp.eq.s32.totalorder %s28, 0
      %p49 = por %p47, %p48
      %p50 = scmp.ne.s32.totalorder %s36, %s37
      %p51 = scmp.eq.s32.totalorder %s29, 1
      %p52 = por %p50, %p51
      %p54 = scmp.ne.s32.totalorder %s37, %s53
      %p55 = scmp.eq.s32.totalorder %s29, 0
      %p56 = por %p54, %p55
      %s57 = ssub.s32 %s23, %s30
      %p58 = scmp.eq.s32.totalorder %s57, 0
      %s60 = sadd.s32 %s59, 1
      %s61 = scalar_select %p58, %s59, %s60
      %p64 = pneg %p58
      %p65 = scmp.eq.s32.totalorder %s23, 1
      %p66 = por %p64, %p65
      %p67 = scmp.ne.s32.totalorder %s59, %s62
      %p68 = scmp.eq.s32.totalorder %s23, 0
      %p69 = por %p67, %p68
      %p70 = scmp.ne.s32.totalorder %s59, %s62
      %p71 = scmp.eq.s32.totalorder %s28, 1
      %p72 = por %p70, %p71
      %p73 = scmp.ne.s32.totalorder %s62, %s63
      %p74 = scmp.eq.s32.totalorder %s28, 0
      %p75 = por %p73, %p74
      %p76 = scmp.ne.s32.totalorder %s62, %s63
      %p77 = scmp.eq.s32.totalorder %s29, 1
      %p78 = por %p76, %p77
      %p80 = scmp.ne.s32.totalorder %s63, %s79
      %p81 = scmp.eq.s32.totalorder %s29, 0
      %p82 = por %p80, %p81
      %s84 = sadd.s32 %s83, 1
      %p87 = scmp.eq.s32.totalorder %s23, 1
      %p88 = scmp.ne.s32.totalorder %s83, %s85
      %p89 = scmp.eq.s32.totalorder %s23, 0
      %p90 = por %p88, %p89
      %p91 = scmp.ne.s32.totalorder %s83, %s85
      %p92 = scmp.eq.s32.totalorder %s28, 1
      %p93 = por %p91, %p92
      %p94 = scmp.ne.s32.totalorder %s85, %s86
      %p95 = scmp.eq.s32.totalorder %s28, 0
      %p96 = por %p94, %p95
      %p97 = scmp.ne.s32.totalorder %s85, %s86
      %p98 = scmp.eq.s32.totalorder %s29, 1
      %p99 = por %p97, %p98
      %p101 = scmp.ne.s32.totalorder %s86, %s100
      %p102 = scmp.eq.s32.totalorder %s29, 0
      %p103 = por %p101, %p102
      %s105 = sadd.s32 %s104, 1
      %p108 = scmp.eq.s32.totalorder %s23, 1
      %p109 = scmp.ne.s32.totalorder %s104, %s106
      %p110 = scmp.eq.s32.totalorder %s23, 0
      %p111 = por %p109, %p110
      %p112 = scmp.ne.s32.totalorder %s104, %s106
      %p113 = scmp.eq.s32.totalorder %s28, 1
      %p114 = por %p112, %p113
      %p115 = scmp.ne.s32.totalorder %s106, %s107
      %p116 = scmp.eq.s32.totalorder %s28, 0
      %p117 = por %p115, %p116
      %p118 = scmp.ne.s32.totalorder %s106, %s107
      %p119 = scmp.eq.s32.totalorder %s29, 1
      %p120 = por %p118, %p119
      %p122 = scmp.ne.s32.totalorder %s107, %s121
      %p123 = scmp.eq.s32.totalorder %s29, 0
      %p124 = por %p122, %p123
      %s126 = sadd.s32 %s125, 1
      %p129 = scmp.eq.s32.totalorder %s23, 1
      %p130 = scmp.ne.s32.totalorder %s125, %s127
      %p131 = scmp.eq.s32.totalorder %s23, 0
      %p132 = por %p130, %p131
      %p133 = scmp.ne.s32.totalorder %s125, %s127
      %p134 = scmp.eq.s32.totalorder %s28, 1
      %p135 = por %p133, %p134
      %p136 = scmp.ne.s32.totalorder %s127, %s128
      %p137 = scmp.eq.s32.totalorder %s28, 0
      %p138 = por %p136, %p137
      %p139 = scmp.ne.s32.totalorder %s127, %s128
      %p140 = scmp.eq.s32.totalorder %s29, 1
      %p141 = por %p139, %p140
      %p143 = scmp.ne.s32.totalorder %s128, %s142
      %p144 = scmp.eq.s32.totalorder %s29, 0
      %p145 = por %p143, %p144
      %s147 = sadd.s32 %s146, 1
      %p150 = scmp.eq.s32.totalorder %s23, 1
      %p151 = scmp.ne.s32.totalorder %s146, %s148
      %p152 = scmp.eq.s32.totalorder %s23, 0
      %p153 = por %p151, %p152
      %p154 = scmp.ne.s32.totalorder %s146, %s148
      %p155 = scmp.eq.s32.totalorder %s28, 1
      %p156 = por %p154, %p155
      %p157 = scmp.ne.s32.totalorder %s148, %s149
      %p158 = scmp.eq.s32.totalorder %s28, 0
      %p159 = por %p157, %p158
      %p160 = scmp.ne.s32.totalorder %s148, %s149
      %p161 = scmp.eq.s32.totalorder %s29, 1
      %p162 = por %p160, %p161
      %p164 = scmp.ne.s32.totalorder %s149, %s163
      %p165 = scmp.eq.s32.totalorder %s29, 0
      %p166 = por %p164, %p165
      %s167 = ssub.s32 %s23, %s30
      %p168 = scmp.eq.s32.totalorder %s167, 0
      %s170 = sadd.s32 %s169, 1
      %s171 = scalar_select %p168, %s169, %s170
      %p174 = pneg %p168
      %p175 = scmp.eq.s32.totalorder %s23, 1
      %p176 = por %p174, %p175
      %p177 = scmp.ne.s32.totalorder %s169, %s172
      %p178 = scmp.eq.s32.totalorder %s23, 0
      %p179 = por %p177, %p178
      %p180 = scmp.ne.s32.totalorder %s169, %s172
      %p181 = scmp.eq.s32.totalorder %s28, 1
      %p182 = por %p180, %p181
      %p183 = scmp.ne.s32.totalorder %s172, %s173
      %p184 = scmp.eq.s32.totalorder %s28, 0
      %p185 = por %p183, %p184
      %p186 = scmp.ne.s32.totalorder %s172, %s173
      %p187 = scmp.eq.s32.totalorder %s29, 1
      %p188 = por %p186, %p187
      %p190 = scmp.ne.s32.totalorder %s173, %s189
      %p191 = scmp.eq.s32.totalorder %s29, 0
      %p192 = por %p190, %p191
      %p193 = scmp.le.s32.totalorder 1, %s23
      %p194 = scmp.lt.s32.totalorder %s23, 3
      %p195 = pnand %p193, %p194
      %p196 = pneg %p195
      // Predicated region
      $region9: #{tpu_custom_call.1} parent=5 // pred_check
        _
      $region10: #{tpu_custom_call.1} parent=5 // pred_check_branch
        %198 = sbr.rel (%p195) target = $region12
      $region11: #{tpu_custom_call.1} parent=5 // pred_region
        %s199 = ssub.s32 %s23, 1
        // Predicated region
        $region13: #{tpu_custom_call.1} parent=11 // pred_check
          %p200 = pneg %p96
        $region14: #{tpu_custom_call.1} parent=11 // pred_check_branch
          %202 = sbr.rel (%p200) target = $region16
        $region15: #{tpu_custom_call.1} parent=11 // pred_region
          %s204 = ssub.s32 9216, 9216
          %205 = vsyncadd [#allocation7], %s204
          %s206 = sshll.u32 [#allocation8], 4
          %s207 = int_to_ptr.vmem [resolvable:$true] %s206
          %212 = dma.hbm_to_vmem [thread:$0]  %s2, 9216, %s207, [#allocation7], 64, 64, 4
        $region16: #{tpu_custom_call.1} parent=11 // pred_fallthru
          _
        // Predicated region
        $region17: #{tpu_custom_call.1} parent=11 // pred_check
          %p213 = pneg %p117
        $region18: #{tpu_custom_call.1} parent=11 // pred_check_branch
          %215 = sbr.rel (%p213) target = $region20
        $region19: #{tpu_custom_call.1} parent=11 // pred_region
          %s217 = ssub.s32 16, 16
          %218 = vsyncadd [#allocation10], %s217
          %s220 = sshll.u32 [#allocation9], 4
          %s221 = int_to_ptr.vmem [resolvable:$true] %s220
          %223 = dma.hbm_to_vmem [thread:$0]  %s3, 16, %s221, [#allocation10]
        $region20: #{tpu_custom_call.1} parent=11 // pred_fallthru
          _
        // Predicated region
        $region21: #{tpu_custom_call.1} parent=11 // pred_check
          %p224 = pneg %p138
        $region22: #{tpu_custom_call.1} parent=11 // pred_check_branch
          %226 = sbr.rel (%p224) target = $region24
        $region23: #{tpu_custom_call.1} parent=11 // pred_region
          %s228 = ssub.s32 9216, 9216
          %229 = vsyncadd [#allocation10], %s228
          %s230 = sshll.u32 [#allocation11], 4
          %s231 = int_to_ptr.vmem [resolvable:$true] %s230
          %236 = dma.hbm_to_vmem [thread:$0]  %s4, 9216, %s231, [#allocation10], 64, 64, 4
        $region24: #{tpu_custom_call.1} parent=11 // pred_fallthru
          _
        // Predicated region
        $region25: #{tpu_custom_call.1} parent=11 // pred_check
          %p237 = pneg %p159
        $region26: #{tpu_custom_call.1} parent=11 // pred_check_branch
          %239 = sbr.rel (%p237) target = $region28
        $region27: #{tpu_custom_call.1} parent=11 // pred_region
          %s241 = ssub.s32 16, 16
          %242 = vsyncadd [#allocation13], %s241
          %s244 = sshll.u32 [#allocation12], 4
          %s245 = int_to_ptr.vmem [resolvable:$true] %s244
          %247 = dma.hbm_to_vmem [thread:$0]  %s5, 16, %s245, [#allocation13]
        $region28: #{tpu_custom_call.1} parent=11 // pred_fallthru
          _
      $region12: #{tpu_custom_call.1} parent=5 // pred_fallthru
        _
      %p248 = scmp.lt.s32.totalorder %s23, 2
      // Predicated region
      $region29: #{tpu_custom_call.1} parent=5 // pred_check
        %p249 = pneg %p248
      $region30: #{tpu_custom_call.1} parent=5 // pred_check_branch
        %251 = sbr.rel (%p249) target = $region32
      $region31: #{tpu_custom_call.1} parent=5 // pred_region
        // Predicated region
        $region33: #{tpu_custom_call.1} parent=31 // pred_check
          %p252 = pneg %p43
        $region34: #{tpu_custom_call.1} parent=31 // pred_check_branch
          %254 = sbr.rel (%p252) target = $region36
        $region35: #{tpu_custom_call.1} parent=31 // pred_region
          %s255 = sand.u32 %s33, 1
          %s256 = scalar_lea.sflag [#allocation4], %s255
          %s257 = sand.u32 %s33, 1
          %s258 = smul.addr %s257, 216
          %s259 = scalar_lea.vmem [#allocation3], %s258
          %s261 = ssub.s32 3456, 3456
          %262 = vsyncadd %s256, %s261
          %s263 = smul.addr %s23, 54
          %s264 = smul.addr %s263, 64
          %s265 = scalar_lea.hbm %s0, %s264
          %s266 = sshll.u32 %s259, 4
          %s267 = int_to_ptr.vmem [resolvable:$true] %s266
          %272 = dma.hbm_to_vmem [thread:$0]  %s265, 3456, %s267, %s256, 64, 64, 4
        $region36: #{tpu_custom_call.1} parent=31 // pred_fallthru
          _
        // Predicated region
        $region37: #{tpu_custom_call.1} parent=31 // pred_check
          %p273 = pneg %p69
        $region38: #{tpu_custom_call.1} parent=31 // pred_check_branch
          %275 = sbr.rel (%p273) target = $region40
        $region39: #{tpu_custom_call.1} parent=31 // pred_region
          %s276 = sand.u32 %s23, 1
          %s277 = scalar_lea.sflag [#allocation7], %s276
          %s278 = sand.u32 %s59, 1
          %s279 = smul.addr %s278, 256
          %s280 = scalar_lea.vmem [#allocation6], %s279
          %s282 = ssub.s32 4096, 4096
          %283 = vsyncadd %s277, %s282
          %s284 = smul.addr %s23, 32
          %s285 = smul.addr %s284, 128
          %s286 = scalar_lea.hbm %s1, %s285
          %s287 = sshll.u32 %s280, 4
          %s288 = int_to_ptr.vmem [resolvable:$true] %s287
          %293 = dma.hbm_to_vmem [thread:$0]  %s286, 4096, %s288, %s277, 128, 128, 8
        $region40: #{tpu_custom_call.1} parent=31 // pred_fallthru
          _
      $region32: #{tpu_custom_call.1} parent=5 // pred_fallthru
        _
      %p294 = scmp.le.s32.totalorder 1, %s23
      %p295 = scmp.lt.s32.totalorder %s23, 3
      %p296 = pnand %p294, %p295
      %p297 = pneg %p296
      // Predicated region
      $region41: #{tpu_custom_call.1} parent=5 // pred_check
        _
      $region42: #{tpu_custom_call.1} parent=5 // pred_check_branch
        %299 = sbr.rel (%p296) target = $region44
      $region43: #{tpu_custom_call.1} parent=5 // pred_region
        %s300 = ssub.s32 %s23, 1
        %s301 = sand.u32 %s36, 1
        %s302 = scalar_lea.sflag [#allocation4], %s301
        %s303 = sand.u32 %s36, 1
        %s304 = smul.addr %s303, 216
        %s305 = scalar_lea.vmem [#allocation3], %s304
        // Predicated region
        $region45: #{tpu_custom_call.1} parent=43 // pred_check
          %p306 = pneg %p49
        $region46: #{tpu_custom_call.1} parent=43 // pred_check_branch
          %308 = sbr.rel (%p306) target = $region48
        $region47: #{tpu_custom_call.1} parent=43 // pred_region
          %309 = dma.done %s302, 3456
        $region48: #{tpu_custom_call.1} parent=43 // pred_fallthru
          _
        %s310 = sand.u32 %s28, 1
        %s311 = scalar_lea.sflag [#allocation7], %s310
        %s312 = sand.u32 %s62, 1
        %s313 = smul.addr %s312, 256
        %s314 = scalar_lea.vmem [#allocation6], %s313
        // Predicated region
        $region49: #{tpu_custom_call.1} parent=43 // pred_check
          %p315 = pneg %p75
        $region50: #{tpu_custom_call.1} parent=43 // pred_check_branch
          %317 = sbr.rel (%p315) target = $region52
        $region51: #{tpu_custom_call.1} parent=43 // pred_region
          %318 = dma.done %s311, 4096
        $region52: #{tpu_custom_call.1} parent=43 // pred_fallthru
          _
        // Predicated region
        $region53: #{tpu_custom_call.1} parent=43 // pred_check
          %p319 = pneg %p96
        $region54: #{tpu_custom_call.1} parent=43 // pred_check_branch
          %321 = sbr.rel (%p319) target = $region56
        $region55: #{tpu_custom_call.1} parent=43 // pred_region
          %322 = dma.done [#allocation7], 9216
        $region56: #{tpu_custom_call.1} parent=43 // pred_fallthru
          _
        // Predicated region
        $region57: #{tpu_custom_call.1} parent=43 // pred_check
          %p323 = pneg %p117
        $region58: #{tpu_custom_call.1} parent=43 // pred_check_branch
          %325 = sbr.rel (%p323) target = $region60
        $region59: #{tpu_custom_call.1} parent=43 // pred_region
          %326 = dma.done [#allocation10], 16
        $region60: #{tpu_custom_call.1} parent=43 // pred_fallthru
          _
        // Predicated region
        $region61: #{tpu_custom_call.1} parent=43 // pred_check
          %p327 = pneg %p138
        $region62: #{tpu_custom_call.1} parent=43 // pred_check_branch
          %329 = sbr.rel (%p327) target = $region64
        $region63: #{tpu_custom_call.1} parent=43 // pred_region
          %330 = dma.done [#allocation10], 9216
        $region64: #{tpu_custom_call.1} parent=43 // pred_fallthru
          _
        // Predicated region
        $region65: #{tpu_custom_call.1} parent=43 // pred_check
          %p331 = pneg %p159
        $region66: #{tpu_custom_call.1} parent=43 // pred_check_branch
          %333 = sbr.rel (%p331) target = $region68
        $region67: #{tpu_custom_call.1} parent=43 // pred_region
          %334 = dma.done [#allocation13], 16
        $region68: #{tpu_custom_call.1} parent=43 // pred_fallthru
          _
        %s335 = sand.u32 %s36, 1
        %s336 = scalar_lea.sflag [#allocation4], %s335
        %s337 = sand.u32 %s36, 1
        %s338 = smul.addr %s337, 216
        %s339 = scalar_lea.vmem [#allocation3], %s338
        %p340 = pneg %p49
        %p341 = pneg %p46
        %s342 = sand.u32 %s28, 1
        %s343 = scalar_lea.sflag [#allocation7], %s342
        %s344 = sand.u32 %s62, 1
        %s345 = smul.addr %s344, 256
        %s346 = scalar_lea.vmem [#allocation6], %s345
        %p347 = pneg %p75
        %p348 = pneg %p72
        %p349 = pneg %p96
        %p350 = pneg %p93
        %p351 = pneg %p117
        %p352 = pneg %p114
        %p353 = pneg %p138
        %p354 = pneg %p135
        %p355 = pneg %p159
        %p356 = pneg %p156
        %p357 = pneg %p185
        %p358 = pneg %p182
        %s359 = sand.u32 %s172, 1
        %s360 = scalar_lea.sflag [#allocation5], %s359
        %s361 = sand.u32 %s172, 1
        %s362 = smul.addr %s361, 256
        %s363 = scalar_lea.vmem [#allocation14], %s362
        %v365 = vld [vmem:[%s305] sm:$0xf]
        %v366 = vld [vmem:[%s305 + $0x4] sm:$0xf]
        %v367 = vld [vmem:[%s305 + $0x8] sm:$0x1]
        %v368 = vld [vmem:[%s305 + $0xc] sm:$0xf]
        %v369 = vld [vmem:[%s305 + $0x10] sm:$0xf]
        %v370 = vld [vmem:[%s305 + $0x14] sm:$0x1]
        %v371 = vld [vmem:[%s305 + $0x18] sm:$0xf]
        %v372 = vld [vmem:[%s305 + $0x1c] sm:$0xf]
        %v373 = vld [vmem:[%s305 + $0x20] sm:$0x1]
        %v374 = vld [vmem:[%s305 + $0x24] sm:$0xf]
        %v375 = vld [vmem:[%s305 + $0x28] sm:$0xf]
        %v376 = vld [vmem:[%s305 + $0x2c] sm:$0x1]
        %v377 = vld [vmem:[%s305 + $0x30] sm:$0xf]
        %v378 = vld [vmem:[%s305 + $0x34] sm:$0xf]
        %v379 = vld [vmem:[%s305 + $0x38] sm:$0x1]
        %v380 = vld [vmem:[%s305 + $0x3c] sm:$0xf]
        %v381 = vld [vmem:[%s305 + $0x40] sm:$0xf]
        %v382 = vld [vmem:[%s305 + $0x44] sm:$0x1]
        %v383 = vld [vmem:[%s305 + $0x48] sm:$0xf]
        %v384 = vld [vmem:[%s305 + $0x4c] sm:$0xf]
        %v385 = vld [vmem:[%s305 + $0x50] sm:$0x1]
        %v386 = vld [vmem:[%s305 + $0x54] sm:$0xf]
        %v387 = vld [vmem:[%s305 + $0x58] sm:$0xf]
        %v388 = vld [vmem:[%s305 + $0x5c] sm:$0x1]
        %v389 = vld [vmem:[%s305 + $0x60] sm:$0xf]
        %v390 = vld [vmem:[%s305 + $0x64] sm:$0xf]
        %v391 = vld [vmem:[%s305 + $0x68] sm:$0x1]
        %v392 = vld [vmem:[%s305 + $0x6c] sm:$0xf]
        %v393 = vld [vmem:[%s305 + $0x70] sm:$0xf]
        %v394 = vld [vmem:[%s305 + $0x74] sm:$0x1]
        %v395 = vld [vmem:[%s305 + $0x78] sm:$0xf]
        %v396 = vld [vmem:[%s305 + $0x7c] sm:$0xf]
        %v397 = vld [vmem:[%s305 + $0x80] sm:$0x1]
        %v398 = vld [vmem:[%s305 + $0x84] sm:$0xf]
        %v399 = vld [vmem:[%s305 + $0x88] sm:$0xf]
        %v400 = vld [vmem:[%s305 + $0x8c] sm:$0x1]
        %v401 = vld [vmem:[%s305 + $0x90] sm:$0xf]
        %v402 = vld [vmem:[%s305 + $0x94] sm:$0xf]
        %v403 = vld [vmem:[%s305 + $0x98] sm:$0x1]
        %v404 = vld [vmem:[%s305 + $0x9c] sm:$0xf]
        %v405 = vld [vmem:[%s305 + $0xa0] sm:$0xf]
        %v406 = vld [vmem:[%s305 + $0xa4] sm:$0x1]
        %v407 = vld [vmem:[%s305 + $0xa8] sm:$0xf]
        %v408 = vld [vmem:[%s305 + $0xac] sm:$0xf]
        %v409 = vld [vmem:[%s305 + $0xb0] sm:$0x1]
        %v410 = vld [vmem:[%s305 + $0xb4] sm:$0xf]
        %v411 = vld [vmem:[%s305 + $0xb8] sm:$0xf]
        %v412 = vld [vmem:[%s305 + $0xbc] sm:$0x1]
        %v413 = vld [vmem:[%s305 + $0xc0] sm:$0xf]
        %v414 = vld [vmem:[%s305 + $0xc4] sm:$0xf]
        %v415 = vld [vmem:[%s305 + $0xc8] sm:$0x1]
        %v416 = vld [vmem:[%s305 + $0xcc] sm:$0xf]
        %v417 = vld [vmem:[%s305 + $0xd0] sm:$0xf]
        %v418 = vld [vmem:[%s305 + $0xd4] sm:$0x1]
        %v451 = vunpack.c.l.b16 %v365
        %v452 = vunpack.c.l.b16 %v366
        %v453 = vunpack.c.l.b16 %v368
        %v454 = vunpack.c.l.b16 %v369
        %v455 = vunpack.c.l.b16 %v371
        %v456 = vunpack.c.l.b16 %v372
        %v457 = vunpack.c.l.b16 %v374
        %v458 = vunpack.c.l.b16 %v375
        %v459 = vunpack.c.l.b16 %v377
        %v460 = vunpack.c.l.b16 %v378
        %v461 = vunpack.c.l.b16 %v380
        %v462 = vunpack.c.l.b16 %v381
        %v463 = vunpack.c.l.b16 %v383
        %v464 = vunpack.c.l.b16 %v384
        %v465 = vunpack.c.l.b16 %v386
        %v466 = vunpack.c.l.b16 %v387
        %v467 = vunpack.c.l.b16 %v389
        %v468 = vunpack.c.l.b16 %v390
        %v469 = vunpack.c.l.b16 %v392
        %v470 = vunpack.c.l.b16 %v393
        %v471 = vunpack.c.l.b16 %v395
        %v472 = vunpack.c.l.b16 %v396
        %v473 = vunpack.c.l.b16 %v398
        %v474 = vunpack.c.l.b16 %v399
        %v475 = vunpack.c.l.b16 %v401
        %v476 = vunpack.c.l.b16 %v402
        %v477 = vunpack.c.l.b16 %v404
        %v478 = vunpack.c.l.b16 %v405
        %v479 = vunpack.c.l.b16 %v407
        %v480 = vunpack.c.l.b16 %v408
        %v481 = vunpack.c.l.b16 %v410
        %v482 = vunpack.c.l.b16 %v411
        %v483 = vpack.c.b16 %v452, %v451
        %v484 = vpack.c.b16 %v454, %v453
        %v485 = vpack.c.b16 %v456, %v455
        %v486 = vpack.c.b16 %v458, %v457
        %v487 = vpack.c.b16 %v460, %v459
        %v488 = vpack.c.b16 %v462, %v461
        %v489 = vpack.c.b16 %v464, %v463
        %v490 = vpack.c.b16 %v466, %v465
        %v491 = vpack.c.b16 %v468, %v467
        %v492 = vpack.c.b16 %v470, %v469
        %v493 = vpack.c.b16 %v472, %v471
        %v494 = vpack.c.b16 %v474, %v473
        %v495 = vpack.c.b16 %v476, %v475
        %v496 = vpack.c.b16 %v478, %v477
        %v497 = vpack.c.b16 %v480, %v479
        %v498 = vpack.c.b16 %v482, %v481
        %v531 = vunpack.c.l.b16 %v367
        %v532 = vunpack.c.l.b16 %v370
        %v533 = vunpack.c.l.b16 %v373
        %v534 = vunpack.c.l.b16 %v376
        %v535 = vunpack.c.l.b16 %v379
        %v536 = vunpack.c.l.b16 %v382
        %v537 = vunpack.c.l.b16 %v385
        %v538 = vunpack.c.l.b16 %v388
        %v539 = vunpack.c.l.b16 %v391
        %v540 = vunpack.c.l.b16 %v394
        %v541 = vunpack.c.l.b16 %v397
        %v542 = vunpack.c.l.b16 %v400
        %v543 = vunpack.c.l.b16 %v403
        %v544 = vunpack.c.l.b16 %v406
        %v545 = vunpack.c.l.b16 %v409
        %v546 = vunpack.c.l.b16 %v412
        %v547 = vpack.c.b16 %v531, %v531
        %v548 = vpack.c.b16 %v532, %v532
        %v549 = vpack.c.b16 %v533, %v533
        %v550 = vpack.c.b16 %v534, %v534
        %v551 = vpack.c.b16 %v535, %v535
        %v552 = vpack.c.b16 %v536, %v536
        %v553 = vpack.c.b16 %v537, %v537
        %v554 = vpack.c.b16 %v538, %v538
        %v555 = vpack.c.b16 %v539, %v539
        %v556 = vpack.c.b16 %v540, %v540
        %v557 = vpack.c.b16 %v541, %v541
        %v558 = vpack.c.b16 %v542, %v542
        %v559 = vpack.c.b16 %v543, %v543
        %v560 = vpack.c.b16 %v544, %v544
        %v561 = vpack.c.b16 %v545, %v545
        %v562 = vpack.c.b16 %v546, %v546
        %vm563 = vsmask.f32 7424
        %v565 = vshrl.u32 %v483, 16
        %v567 = vshll.u32 %v483, 16
        %v569 = vrot.slane %v567, 1
        %v570 = vor.u32 %v565, %v569
        %v572 = vshll.u32 %v547, 16
        %v574 = vrot.slane %v572, 1
        %v575 = vsel %vm563, %v570, %v574
        %v577 = vshrl.u32 %v484, 16
        %v579 = vshll.u32 %v484, 16
        %v581 = vrot.slane %v579, 1
        %v582 = vor.u32 %v577, %v581
        %v584 = vshll.u32 %v548, 16
        %v586 = vrot.slane %v584, 1
        %v587 = vsel %vm563, %v582, %v586
        %v589 = vshrl.u32 %v485, 16
        %v591 = vshll.u32 %v485, 16
        %v593 = vrot.slane %v591, 1
        %v594 = vor.u32 %v589, %v593
        %v596 = vshll.u32 %v549, 16
        %v598 = vrot.slane %v596, 1
        %v599 = vsel %vm563, %v594, %v598
        %v601 = vshrl.u32 %v486, 16
        %v603 = vshll.u32 %v486, 16
        %v605 = vrot.slane %v603, 1
        %v606 = vor.u32 %v601, %v605
        %v608 = vshll.u32 %v550, 16
        %v610 = vrot.slane %v608, 1
        %v611 = vsel %vm563, %v606, %v610
        %v613 = vshrl.u32 %v487, 16
        %v615 = vshll.u32 %v487, 16
        %v617 = vrot.slane %v615, 1
        %v618 = vor.u32 %v613, %v617
        %v620 = vshll.u32 %v551, 16
        %v622 = vrot.slane %v620, 1
        %v623 = vsel %vm563, %v618, %v622
        %v625 = vshrl.u32 %v488, 16
        %v627 = vshll.u32 %v488, 16
        %v629 = vrot.slane %v627, 1
        %v630 = vor.u32 %v625, %v629
        %v632 = vshll.u32 %v552, 16
        %v634 = vrot.slane %v632, 1
        %v635 = vsel %vm563, %v630, %v634
        %v637 = vshrl.u32 %v489, 16
        %v639 = vshll.u32 %v489, 16
        %v641 = vrot.slane %v639, 1
        %v642 = vor.u32 %v637, %v641
        %v644 = vshll.u32 %v553, 16
        %v646 = vrot.slane %v644, 1
        %v647 = vsel %vm563, %v642, %v646
        %v649 = vshrl.u32 %v490, 16
        %v651 = vshll.u32 %v490, 16
        %v653 = vrot.slane %v651, 1
        %v654 = vor.u32 %v649, %v653
        %v656 = vshll.u32 %v554, 16
        %v658 = vrot.slane %v656, 1
        %v659 = vsel %vm563, %v654, %v658
        %v661 = vshrl.u32 %v491, 16
        %v663 = vshll.u32 %v491, 16
        %v665 = vrot.slane %v663, 1
        %v666 = vor.u32 %v661, %v665
        %v668 = vshll.u32 %v555, 16
        %v670 = vrot.slane %v668, 1
        %v671 = vsel %vm563, %v666, %v670
        %v673 = vshrl.u32 %v492, 16
        %v675 = vshll.u32 %v492, 16
        %v677 = vrot.slane %v675, 1
        %v678 = vor.u32 %v673, %v677
        %v680 = vshll.u32 %v556, 16
        %v682 = vrot.slane %v680, 1
        %v683 = vsel %vm563, %v678, %v682
        %v685 = vshrl.u32 %v493, 16
        %v687 = vshll.u32 %v493, 16
        %v689 = vrot.slane %v687, 1
        %v690 = vor.u32 %v685, %v689
        %v692 = vshll.u32 %v557, 16
        %v694 = vrot.slane %v692, 1
        %v695 = vsel %vm563, %v690, %v694
        %v697 = vshrl.u32 %v494, 16
        %v699 = vshll.u32 %v494, 16
        %v701 = vrot.slane %v699, 1
        %v702 = vor.u32 %v697, %v701
        %v704 = vshll.u32 %v558, 16
        %v706 = vrot.slane %v704, 1
        %v707 = vsel %vm563, %v702, %v706
        %v709 = vshrl.u32 %v495, 16
        %v711 = vshll.u32 %v495, 16
        %v713 = vrot.slane %v711, 1
        %v714 = vor.u32 %v709, %v713
        %v716 = vshll.u32 %v559, 16
        %v718 = vrot.slane %v716, 1
        %v719 = vsel %vm563, %v714, %v718
        %v721 = vshrl.u32 %v496, 16
        %v723 = vshll.u32 %v496, 16
        %v725 = vrot.slane %v723, 1
        %v726 = vor.u32 %v721, %v725
        %v728 = vshll.u32 %v560, 16
        %v730 = vrot.slane %v728, 1
        %v731 = vsel %vm563, %v726, %v730
        %v733 = vshrl.u32 %v497, 16
        %v735 = vshll.u32 %v497, 16
        %v737 = vrot.slane %v735, 1
        %v738 = vor.u32 %v733, %v737
        %v740 = vshll.u32 %v561, 16
        %v742 = vrot.slane %v740, 1
        %v743 = vsel %vm563, %v738, %v742
        %v745 = vshrl.u32 %v498, 16
        %v747 = vshll.u32 %v498, 16
        %v749 = vrot.slane %v747, 1
        %v750 = vor.u32 %v745, %v749
        %v752 = vshll.u32 %v562, 16
        %v754 = vrot.slane %v752, 1
        %v755 = vsel %vm563, %v750, %v754
        %vm772 = vcmask 1046528
        %v773 = vrot.slane %v483, 1
        %v774 = vrot.slane %v547, 1
        %v775 = vsel %vm772, %v773, %v774
        %v776 = vrot.slane %v484, 1
        %v777 = vrot.slane %v548, 1
        %v778 = vsel %vm772, %v776, %v777
        %v779 = vrot.slane %v485, 1
        %v780 = vrot.slane %v549, 1
        %v781 = vsel %vm772, %v779, %v780
        %v782 = vrot.slane %v486, 1
        %v783 = vrot.slane %v550, 1
        %v784 = vsel %vm772, %v782, %v783
        %v785 = vrot.slane %v487, 1
        %v786 = vrot.slane %v551, 1
        %v787 = vsel %vm772, %v785, %v786
        %v788 = vrot.slane %v488, 1
        %v789 = vrot.slane %v552, 1
        %v790 = vsel %vm772, %v788, %v789
        %v791 = vrot.slane %v489, 1
        %v792 = vrot.slane %v553, 1
        %v793 = vsel %vm772, %v791, %v792
        %v794 = vrot.slane %v490, 1
        %v795 = vrot.slane %v554, 1
        %v796 = vsel %vm772, %v794, %v795
        %v797 = vrot.slane %v491, 1
        %v798 = vrot.slane %v555, 1
        %v799 = vsel %vm772, %v797, %v798
        %v800 = vrot.slane %v492, 1
        %v801 = vrot.slane %v556, 1
        %v802 = vsel %vm772, %v800, %v801
        %v803 = vrot.slane %v493, 1
        %v804 = vrot.slane %v557, 1
        %v805 = vsel %vm772, %v803, %v804
        %v806 = vrot.slane %v494, 1
        %v807 = vrot.slane %v558, 1
        %v808 = vsel %vm772, %v806, %v807
        %v809 = vrot.slane %v495, 1
        %v810 = vrot.slane %v559, 1
        %v811 = vsel %vm772, %v809, %v810
        %v812 = vrot.slane %v496, 1
        %v813 = vrot.slane %v560, 1
        %v814 = vsel %vm772, %v812, %v813
        %v815 = vrot.slane %v497, 1
        %v816 = vrot.slane %v561, 1
        %v817 = vsel %vm772, %v815, %v816
        %v818 = vrot.slane %v498, 1
        %v819 = vrot.slane %v562, 1
        %v820 = vsel %vm772, %v818, %v819
        %v837 = vld [vmem:[#allocation8] sm:$0xf]
        %v838 = vld [vmem:[#allocation8 + $0x4] sm:$0xf]
        %v839 = vld [vmem:[#allocation8 + $0x8] sm:$0xf]
        %v840 = vld [vmem:[#allocation8 + $0xc] sm:$0xf]
        %v841 = vld [vmem:[#allocation8 + $0x10] sm:$0xf]
        %v842 = vld [vmem:[#allocation8 + $0x14] sm:$0xf]
        %v843 = vld [vmem:[#allocation8 + $0x18] sm:$0xf]
        %v844 = vld [vmem:[#allocation8 + $0x1c] sm:$0xf]
        %v845 = vld [vmem:[#allocation8 + $0x20] sm:$0xf]
        %v846 = vld [vmem:[#allocation8 + $0x24] sm:$0xf]
        %v847 = vld [vmem:[#allocation8 + $0x28] sm:$0xf]
        %v848 = vld [vmem:[#allocation8 + $0x2c] sm:$0xf]
        %v849 = vld [vmem:[#allocation8 + $0x30] sm:$0xf]
        %v850 = vld [vmem:[#allocation8 + $0x34] sm:$0xf]
        %v851 = vld [vmem:[#allocation8 + $0x38] sm:$0xf]
        %v852 = vld [vmem:[#allocation8 + $0x3c] sm:$0xf]
        %v853 = vld [vmem:[#allocation8 + $0x40] sm:$0xf]
        %v854 = vld [vmem:[#allocation8 + $0x44] sm:$0xf]
        %v855 = vld [vmem:[#allocation8 + $0x48] sm:$0xf]
        %v856 = vld [vmem:[#allocation8 + $0x4c] sm:$0xf]
        %v857 = vld [vmem:[#allocation8 + $0x50] sm:$0xf]
        %v858 = vld [vmem:[#allocation8 + $0x54] sm:$0xf]
        %v859 = vld [vmem:[#allocation8 + $0x58] sm:$0xf]
        %v860 = vld [vmem:[#allocation8 + $0x5c] sm:$0xf]
        %v861 = vld [vmem:[#allocation8 + $0x60] sm:$0xf]
        %v862 = vld [vmem:[#allocation8 + $0x64] sm:$0xf]
        %v863 = vld [vmem:[#allocation8 + $0x68] sm:$0xf]
        %v864 = vld [vmem:[#allocation8 + $0x6c] sm:$0xf]
        %v865 = vld [vmem:[#allocation8 + $0x70] sm:$0xf]
        %v866 = vld [vmem:[#allocation8 + $0x74] sm:$0xf]
        %v867 = vld [vmem:[#allocation8 + $0x78] sm:$0xf]
        %v868 = vld [vmem:[#allocation8 + $0x7c] sm:$0xf]
        %v869 = vld [vmem:[#allocation8 + $0x80] sm:$0xf]
        %v870 = vld [vmem:[#allocation8 + $0x84] sm:$0xf]
        %v871 = vld [vmem:[#allocation8 + $0x88] sm:$0xf]
        %v872 = vld [vmem:[#allocation8 + $0x8c] sm:$0xf]
        %v873 = vld [vmem:[#allocation8 + $0x90] sm:$0xf]
        %v874 = vld [vmem:[#allocation8 + $0x94] sm:$0xf]
        %v875 = vld [vmem:[#allocation8 + $0x98] sm:$0xf]
        %v876 = vld [vmem:[#allocation8 + $0x9c] sm:$0xf]
        %v877 = vld [vmem:[#allocation8 + $0xa0] sm:$0xf]
        %v878 = vld [vmem:[#allocation8 + $0xa4] sm:$0xf]
        %v879 = vld [vmem:[#allocation8 + $0xa8] sm:$0xf]
        %v880 = vld [vmem:[#allocation8 + $0xac] sm:$0xf]
        %v881 = vld [vmem:[#allocation8 + $0xb0] sm:$0xf]
        %v882 = vld [vmem:[#allocation8 + $0xb4] sm:$0xf]
        %v883 = vld [vmem:[#allocation8 + $0xb8] sm:$0xf]
        %v884 = vld [vmem:[#allocation8 + $0xbc] sm:$0xf]
        %v887 = vunpack.c.l.b16 %v413
        %v888 = vunpack.c.l.b16 %v414
        %v889 = vpack.c.b16 %v888, %v887
        %v892 = vunpack.c.l.b16 %v415
        %v893 = vpack.c.b16 %v892, %v892
        %v895 = vshrl.u32 %v889, 16
        %v897 = vshll.u32 %v889, 16
        %v899 = vrot.slane %v897, 1
        %v900 = vor.u32 %v895, %v899
        %v902 = vshll.u32 %v893, 16
        %v904 = vrot.slane %v902, 1
        %v905 = vsel %vm563, %v900, %v904
        %v907 = vrot.slane %v889, 1
        %v908 = vrot.slane %v893, 1
        %v909 = vsel %vm772, %v907, %v908
        %v911 = vld [vmem:[#allocation8 + $0xc0] sm:$0xf]
        %v912 = vld [vmem:[#allocation8 + $0xc4] sm:$0xf]
        %v913 = vld [vmem:[#allocation8 + $0xc8] sm:$0xf]
        %v914 = vld [vmem:[#allocation8 + $0xcc] sm:$0xf]
        %v915 = vld [vmem:[#allocation8 + $0xd0] sm:$0xf]
        %v916 = vld [vmem:[#allocation8 + $0xd4] sm:$0xf]
        %v917 = vld [vmem:[#allocation8 + $0xd8] sm:$0xf]
        %v918 = vld [vmem:[#allocation8 + $0xdc] sm:$0xf]
        %v919 = vld [vmem:[#allocation8 + $0xe0] sm:$0xf]
        %v920 = vld [vmem:[#allocation8 + $0xe4] sm:$0xf]
        %v921 = vld [vmem:[#allocation8 + $0xe8] sm:$0xf]
        %v922 = vld [vmem:[#allocation8 + $0xec] sm:$0xf]
        %v923 = vld [vmem:[#allocation8 + $0xf0] sm:$0xf]
        %v924 = vld [vmem:[#allocation8 + $0xf4] sm:$0xf]
        %v925 = vld [vmem:[#allocation8 + $0xf8] sm:$0xf]
        %v926 = vld [vmem:[#allocation8 + $0xfc] sm:$0xf]
        %v927 = vld [vmem:[#allocation8 + $0x100] sm:$0xf]
        %v928 = vld [vmem:[#allocation8 + $0x104] sm:$0xf]
        %v929 = vld [vmem:[#allocation8 + $0x108] sm:$0xf]
        %v930 = vld [vmem:[#allocation8 + $0x10c] sm:$0xf]
        %v931 = vld [vmem:[#allocation8 + $0x110] sm:$0xf]
        %v932 = vld [vmem:[#allocation8 + $0x114] sm:$0xf]
        %v933 = vld [vmem:[#allocation8 + $0x118] sm:$0xf]
        %v934 = vld [vmem:[#allocation8 + $0x11c] sm:$0xf]
        %v935 = vld [vmem:[#allocation8 + $0x120] sm:$0xf]
        %v936 = vld [vmem:[#allocation8 + $0x124] sm:$0xf]
        %v937 = vld [vmem:[#allocation8 + $0x128] sm:$0xf]
        %v938 = vld [vmem:[#allocation8 + $0x12c] sm:$0xf]
        %v939 = vld [vmem:[#allocation8 + $0x130] sm:$0xf]
        %v940 = vld [vmem:[#allocation8 + $0x134] sm:$0xf]
        %v941 = vld [vmem:[#allocation8 + $0x138] sm:$0xf]
        %v942 = vld [vmem:[#allocation8 + $0x13c] sm:$0xf]
        %v943 = vld [vmem:[#allocation8 + $0x140] sm:$0xf]
        %v944 = vld [vmem:[#allocation8 + $0x144] sm:$0xf]
        %v945 = vld [vmem:[#allocation8 + $0x148] sm:$0xf]
        %v946 = vld [vmem:[#allocation8 + $0x14c] sm:$0xf]
        %v947 = vld [vmem:[#allocation8 + $0x150] sm:$0xf]
        %v948 = vld [vmem:[#allocation8 + $0x154] sm:$0xf]
        %v949 = vld [vmem:[#allocation8 + $0x158] sm:$0xf]
        %v950 = vld [vmem:[#allocation8 + $0x15c] sm:$0xf]
        %v951 = vld [vmem:[#allocation8 + $0x160] sm:$0xf]
        %v952 = vld [vmem:[#allocation8 + $0x164] sm:$0xf]
        %v953 = vld [vmem:[#allocation8 + $0x168] sm:$0xf]
        %v954 = vld [vmem:[#allocation8 + $0x16c] sm:$0xf]
        %v955 = vld [vmem:[#allocation8 + $0x170] sm:$0xf]
        %v956 = vld [vmem:[#allocation8 + $0x174] sm:$0xf]
        %v957 = vld [vmem:[#allocation8 + $0x178] sm:$0xf]
        %v958 = vld [vmem:[#allocation8 + $0x17c] sm:$0xf]
        %v1007 = vunpack.c.l.b16 %v911
        %v1008 = vunpack.c.l.b16 %v912
        %v1009 = vunpack.c.l.b16 %v913
        %v1010 = vunpack.c.l.b16 %v914
        %v1011 = vunpack.c.l.b16 %v915
        %v1012 = vunpack.c.l.b16 %v916
        %v1013 = vunpack.c.l.b16 %v917
        %v1014 = vunpack.c.l.b16 %v918
        %v1015 = vunpack.c.l.b16 %v919
        %v1016 = vunpack.c.l.b16 %v920
        %v1017 = vunpack.c.l.b16 %v921
        %v1018 = vunpack.c.l.b16 %v922
        %v1019 = vunpack.c.l.b16 %v923
        %v1020 = vunpack.c.l.b16 %v924
        %v1021 = vunpack.c.l.b16 %v925
        %v1022 = vunpack.c.l.b16 %v926
        %v1023 = vunpack.c.l.b16 %v927
        %v1024 = vunpack.c.l.b16 %v928
        %v1025 = vunpack.c.l.b16 %v929
        %v1026 = vunpack.c.l.b16 %v930
        %v1027 = vunpack.c.l.b16 %v931
        %v1028 = vunpack.c.l.b16 %v932
        %v1029 = vunpack.c.l.b16 %v933
        %v1030 = vunpack.c.l.b16 %v934
        %v1031 = vunpack.c.l.b16 %v935
        %v1032 = vunpack.c.l.b16 %v936
        %v1033 = vunpack.c.l.b16 %v937
        %v1034 = vunpack.c.l.b16 %v938
        %v1035 = vunpack.c.l.b16 %v939
        %v1036 = vunpack.c.l.b16 %v940
        %v1037 = vunpack.c.l.b16 %v941
        %v1038 = vunpack.c.l.b16 %v942
        %v1039 = vunpack.c.l.b16 %v943
        %v1040 = vunpack.c.l.b16 %v944
        %v1041 = vunpack.c.l.b16 %v945
        %v1042 = vunpack.c.l.b16 %v946
        %v1043 = vunpack.c.l.b16 %v947
        %v1044 = vunpack.c.l.b16 %v948
        %v1045 = vunpack.c.l.b16 %v949
        %v1046 = vunpack.c.l.b16 %v950
        %v1047 = vunpack.c.l.b16 %v951
        %v1048 = vunpack.c.l.b16 %v952
        %v1049 = vunpack.c.l.b16 %v953
        %v1050 = vunpack.c.l.b16 %v954
        %v1051 = vunpack.c.l.b16 %v955
        %v1052 = vunpack.c.l.b16 %v956
        %v1053 = vunpack.c.l.b16 %v957
        %v1054 = vunpack.c.l.b16 %v958
        %v1055 = vpack.c.b16 %v1008, %v1007
        %v1056 = vpack.c.b16 %v1010, %v1009
        %v1057 = vpack.c.b16 %v1012, %v1011
        %v1058 = vpack.c.b16 %v1014, %v1013
        %v1059 = vpack.c.b16 %v1016, %v1015
        %v1060 = vpack.c.b16 %v1018, %v1017
        %v1061 = vpack.c.b16 %v1020, %v1019
        %v1062 = vpack.c.b16 %v1022, %v1021
        %v1063 = vpack.c.b16 %v1024, %v1023
        %v1064 = vpack.c.b16 %v1026, %v1025
        %v1065 = vpack.c.b16 %v1028, %v1027
        %v1066 = vpack.c.b16 %v1030, %v1029
        %v1067 = vpack.c.b16 %v1032, %v1031
        %v1068 = vpack.c.b16 %v1034, %v1033
        %v1069 = vpack.c.b16 %v1036, %v1035
        %v1070 = vpack.c.b16 %v1038, %v1037
        %v1071 = vpack.c.b16 %v1040, %v1039
        %v1072 = vpack.c.b16 %v1042, %v1041
        %v1073 = vpack.c.b16 %v1044, %v1043
        %v1074 = vpack.c.b16 %v1046, %v1045
        %v1075 = vpack.c.b16 %v1048, %v1047
        %v1076 = vpack.c.b16 %v1050, %v1049
        %v1077 = vpack.c.b16 %v1052, %v1051
        %v1078 = vpack.c.b16 %v1054, %v1053
        %1103 = vmatprep.subr.bf16.mxu0 0
        %1104 = vmatpush1.bf16.msra.mxu0 %v1055
        %1105 = vmatprep.subr.bf16.mxu0 0
        %1106 = vmatpush1.bf16.msra.mxu0 %v1056
        %1107 = vmatprep.subr.bf16.mxu0 0
        %1108 = vmatpush1.bf16.msra.mxu0 %v1057
        %1109 = vmatprep.subr.bf16.mxu0 0
        %1110 = vmatpush1.bf16.msra.mxu0 %v1058
        %1111 = vmatprep.subr.bf16.mxu0 0
        %1112 = vmatpush1.bf16.msra.mxu0 %v1059
        %1113 = vmatprep.subr.bf16.mxu0 0
        %1114 = vmatpush1.bf16.msra.mxu0 %v1060
        %1115 = vmatprep.subr.bf16.mxu0 0
        %1116 = vmatpush1.bf16.msra.mxu0 %v1061
        %1117 = vmatprep.subr.bf16.mxu0 0
        %1118 = vmatpush1.bf16.msra.mxu0 %v1062
        %1119 = vmatprep.subr.bf16.mxu0 0
        %1120 = vmatpush1.bf16.msra.mxu0 %v1063
        %1121 = vmatprep.subr.bf16.mxu0 0
        %1122 = vmatpush1.bf16.msra.mxu0 %v1064
        %1123 = vmatprep.subr.bf16.mxu0 0
        %1124 = vmatpush1.bf16.msra.mxu0 %v1065
        %1125 = vmatprep.subr.bf16.mxu0 0
        %1126 = vmatpush1.bf16.msra.mxu0 %v1066
        %1127 = vmatprep.subr.bf16.mxu0 0
        %1128 = vmatpush1.bf16.msra.mxu0 %v1067
        %1129 = vmatprep.subr.bf16.mxu0 0
        %1130 = vmatpush1.bf16.msra.mxu0 %v1068
        %1131 = vmatprep.subr.bf16.mxu0 0
        %1132 = vmatpush1.bf16.msra.mxu0 %v1069
        %1133 = vmatprep.subr.bf16.mxu0 0
        %1134 = vmatpush1.bf16.msra.mxu0 %v1070
        %1135 = vmatprep.mubr.bf16.mxu0 %v587
        %1136 = vmatmul.mubr.bf16.gmra.mrb[0].mxu0 %v484
        %v1137 = vpop.f32.mrb[0].mxu0
        %v1138 = vadd.f32 0.0, %v1137
        %v1139 = vpop.f32.mrb[0].mxu0
        %v1140 = vpop.f32.mrb[0].mxu0
        %v1141 = vadd.f32 0.0, %v1140
        %v1142 = vpop.f32.mrb[0].mxu0
        %1143 = vmatprep.mubr.bf16.mxu0 %v599
        %1144 = vmatmul.mubr.bf16.gmra.mrb[0].mxu0 %v485
        %v1145 = vpop.f32.mrb[0].mxu0
        %v1146 = vadd.f32 0.0, %v1145
        %v1147 = vpop.f32.mrb[0].mxu0
        %v1148 = vpop.f32.mrb[0].mxu0
        %v1149 = vadd.f32 0.0, %v1148
        %v1150 = vpop.f32.mrb[0].mxu0
        %1151 = vmatprep.mubr.bf16.mxu0 %v611
        %1152 = vmatmul.mubr.bf16.gmra.mrb[0].mxu0 %v486
        %v1153 = vpop.f32.mrb[0].mxu0
        %v1154 = vadd.f32 0.0, %v1153
        %v1155 = vpop.f32.mrb[0].mxu0
        %v1156 = vpop.f32.mrb[0].mxu0
        %v1157 = vadd.f32 0.0, %v1156
        %v1158 = vpop.f32.mrb[0].mxu0
        %1159 = vmatprep.mubr.bf16.mxu0 %v623
        %1160 = vmatmul.mubr.bf16.gmra.mrb[0].mxu0 %v487
        %v1161 = vpop.f32.mrb[0].mxu0
        %v1162 = vadd.f32 0.0, %v1161
        %v1163 = vpop.f32.mrb[0].mxu0
        %v1164 = vpop.f32.mrb[0].mxu0
        %v1165 = vadd.f32 0.0, %v1164
        %v1166 = vpop.f32.mrb[0].mxu0
        %1167 = vmatprep.mubr.bf16.mxu0 %v635
        %1168 = vmatmul.mubr.bf16.gmra.mrb[0].mxu0 %v488
        %v1169 = vpop.f32.mrb[0].mxu0
        %v1170 = vadd.f32 0.0, %v1169
        %v1171 = vpop.f32.mrb[0].mxu0
        %v1172 = vpop.f32.mrb[0].mxu0
        %v1173 = vadd.f32 0.0, %v1172
        %v1174 = vpop.f32.mrb[0].mxu0
        %1175 = vmatprep.mubr.bf16.mxu0 %v647
        %1176 = vmatmul.mubr.bf16.gmra.mrb[0].mxu0 %v489
        %v1177 = vpop.f32.mrb[0].mxu0
        %v1178 = vadd.f32 0.0, %v1177
        %v1179 = vpop.f32.mrb[0].mxu0
        %v1180 = vpop.f32.mrb[0].mxu0
        %v1181 = vadd.f32 0.0, %v1180
        %v1182 = vpop.f32.mrb[0].mxu0
        %1183 = vmatprep.mubr.bf16.mxu0 %v659
        %1184 = vmatmul.mubr.bf16.gmra.mrb[0].mxu0 %v490
        %v1185 = vpop.f32.mrb[0].mxu0
        %v1186 = vadd.f32 0.0, %v1185
        %v1187 = vpop.f32.mrb[0].mxu0
        %v1188 = vpop.f32.mrb[0].mxu0
        %v1189 = vadd.f32 0.0, %v1188
        %v1190 = vpop.f32.mrb[0].mxu0
        %1191 = vmatprep.mubr.bf16.mxu0 %v671
        %1192 = vmatmul.mubr.bf16.gmra.mrb[0].mxu0 %v491
        %v1193 = vpop.f32.mrb[0].mxu0
        %v1194 = vadd.f32 0.0, %v1193
        %v1195 = vpop.f32.mrb[0].mxu0
        %v1196 = vpop.f32.mrb[0].mxu0
        %v1197 = vadd.f32 0.0, %v1196
        %v1198 = vpop.f32.mrb[0].mxu0
        %1199 = vmatprep.mubr.bf16.mxu0 %v683
        %1200 = vmatmul.mubr.bf16.gmra.mrb[0].mxu0 %v492
        %v1201 = vpop.f32.mrb[0].mxu0
        %v1202 = vadd.f32 0.0, %v1201
        %v1203 = vpop.f32.mrb[0].mxu0
        %v1204 = vpop.f32.mrb[0].mxu0
        %v1205 = vadd.f32 0.0, %v1204
        %v1206 = vpop.f32.mrb[0].mxu0
        %1207 = vmatprep.mubr.bf16.mxu0 %v695
        %1208 = vmatmul.mubr.bf16.gmra.mrb[0].mxu0 %v493
        %v1209 = vpop.f32.mrb[0].mxu0
        %v1210 = vadd.f32 0.0, %v1209
        %v1211 = vpop.f32.mrb[0].mxu0
        %v1212 = vpop.f32.mrb[0].mxu0
        %v1213 = vadd.f32 0.0, %v1212
        %v1214 = vpop.f32.mrb[0].mxu0
        %1215 = vmatprep.mubr.bf16.mxu0 %v707
        %1216 = vmatmul.mubr.bf16.gmra.mrb[0].mxu0 %v494
        %v1217 = vpop.f32.mrb[0].mxu0
        %v1218 = vadd.f32 0.0, %v1217
        %v1219 = vpop.f32.mrb[0].mxu0
        %v1220 = vpop.f32.mrb[0].mxu0
        %v1221 = vadd.f32 0.0, %v1220
        %v1222 = vpop.f32.mrb[0].mxu0
        %1223 = vmatprep.mubr.bf16.mxu0 %v719
        %1224 = vmatmul.mubr.bf16.gmra.mrb[0].mxu0 %v495
        %v1225 = vpop.f32.mrb[0].mxu0
        %v1226 = vadd.f32 0.0, %v1225
        %v1227 = vpop.f32.mrb[0].mxu0
        %v1228 = vpop.f32.mrb[0].mxu0
        %v1229 = vadd.f32 0.0, %v1228
        %v1230 = vpop.f32.mrb[0].mxu0
        %1231 = vmatprep.mubr.bf16.mxu0 %v731
        %1232 = vmatmul.mubr.bf16.gmra.mrb[0].mxu0 %v496
        %v1233 = vpop.f32.mrb[0].mxu0
        %v1234 = vadd.f32 0.0, %v1233
        %v1235 = vpop.f32.mrb[0].mxu0
        %v1236 = vpop.f32.mrb[0].mxu0
        %v1237 = vadd.f32 0.0, %v1236
        %v1238 = vpop.f32.mrb[0].mxu0
        %1239 = vmatprep.mubr.bf16.mxu0 %v743
        %1240 = vmatmul.mubr.bf16.gmra.mrb[0].mxu0 %v497
        %v1241 = vpop.f32.mrb[0].mxu0
        %v1242 = vadd.f32 0.0, %v1241
        %v1243 = vpop.f32.mrb[0].mxu0
        %v1244 = vpop.f32.mrb[0].mxu0
        %v1245 = vadd.f32 0.0, %v1244
        %v1246 = vpop.f32.mrb[0].mxu0
        %1247 = vmatprep.mubr.bf16.mxu0 %v755
        %1248 = vmatmul.mubr.bf16.gmra.mrb[0].mxu0 %v498
        %v1249 = vpop.f32.mrb[0].mxu0
        %v1250 = vadd.f32 0.0, %v1249
        %v1251 = vpop.f32.mrb[0].mxu0
        %v1252 = vpop.f32.mrb[0].mxu0
        %v1253 = vadd.f32 0.0, %v1252
        %v1254 = vpop.f32.mrb[0].mxu0
        %1255 = vmatprep.mubr.bf16.mxu0 %v905
        %1256 = vmatmul.mubr.bf16.gmra.mrb[0].mxu0 %v889
        %v1257 = vpop.f32.mrb[0].mxu0
        %v1258 = vadd.f32 0.0, %v1257
        %v1259 = vpop.f32.mrb[0].mxu0
        %v1260 = vpop.f32.mrb[0].mxu0
        %v1261 = vadd.f32 0.0, %v1260
        %v1262 = vpop.f32.mrb[0].mxu0
        %1263 = vdwg.mxu0
        %1264 = vmatprep.subr.bf16.mxu0 0
        %1265 = vmatpush1.bf16.msra.mxu0 %v1071
        %1266 = vmatprep.subr.bf16.mxu0 0
        %1267 = vmatpush1.bf16.msra.mxu0 %v1072
        %1268 = vmatprep.subr.bf16.mxu0 0
        %1269 = vmatpush1.bf16.msra.mxu0 %v1073
        %1270 = vmatprep.subr.bf16.mxu0 0
        %1271 = vmatpush1.bf16.msra.mxu0 %v1074
        %1272 = vmatprep.subr.bf16.mxu0 0
        %1273 = vmatpush1.bf16.msra.mxu0 %v1075
        %1274 = vmatprep.subr.bf16.mxu0 0
        %1275 = vmatpush1.bf16.msra.mxu0 %v1076
        %1276 = vmatprep.subr.bf16.mxu0 0
        %1277 = vmatpush1.bf16.msra.mxu0 %v1077
        %1278 = vmatprep.subr.bf16.mxu0 0
        %1279 = vmatpush1.bf16.msra.mxu0 %v1078
        %1280 = vmatprep.subr.bf16.mxu0 0
        %1281 = vmatpush1.bf16.msra.mxu0 0
        %1282 = vmatprep.subr.bf16.mxu0 0
        %1283 = vmatpush1.bf16.msra.mxu0 0
        %1284 = vmatprep.subr.bf16.mxu0 0
        %1285 = vmatpush1.bf16.msra.mxu0 0
        %1286 = vmatprep.subr.bf16.mxu0 0
        %1287 = vmatpush1.bf16.msra.mxu0 0
        %1288 = vmatprep.subr.bf16.mxu0 0
        %1289 = vmatpush1.bf16.msra.mxu0 0
        %1290 = vmatprep.subr.bf16.mxu0 0
        %1291 = vmatpush1.bf16.msra.mxu0 0
        %1292 = vmatprep.subr.bf16.mxu0 0
        %1293 = vmatpush1.bf16.msra.mxu0 0
        %1294 = vmatprep.subr.bf16.mxu0 0
        %1295 = vmatpush1.bf16.msra.mxu0 0
        %1296 = vmatprep.mubr.bf16.mxu0 0
        %1297 = vmatmul.mubr.bf16.gmra.mrb[0].mxu0 %v778
        %v1298 = vpop.f32.mrb[0].mxu0
        %v1299 = vadd.f32 %v1138, %v1298
        %v1300 = vpop.f32.mrb[0].mxu0
        %v1301 = vpop.f32.mrb[0].mxu0
        %v1302 = vadd.f32 %v1141, %v1301
        %v1303 = vpop.f32.mrb[0].mxu0
        %1304 = vmatprep.mubr.bf16.mxu0 0
        %1305 = vmatmul.mubr.bf16.gmra.mrb[0].mxu0 %v781
        %v1306 = vpop.f32.mrb[0].mxu0
        %v1307 = vadd.f32 %v1146, %v1306
        %v1308 = vpop.f32.mrb[0].mxu0
        %v1309 = vpop.f32.mrb[0].mxu0
        %v1310 = vadd.f32 %v1149, %v1309
        %v1311 = vpop.f32.mrb[0].mxu0
        %1312 = vmatprep.mubr.bf16.mxu0 0
        %1313 = vmatmul.mubr.bf16.gmra.mrb[0].mxu0 %v784
        %v1314 = vpop.f32.mrb[0].mxu0
        %v1315 = vadd.f32 %v1154, %v1314
        %v1316 = vpop.f32.mrb[0].mxu0
        %v1317 = vpop.f32.mrb[0].mxu0
        %v1318 = vadd.f32 %v1157, %v1317
        %v1319 = vpop.f32.mrb[0].mxu0
        %1320 = vmatprep.mubr.bf16.mxu0 0
        %1321 = vmatmul.mubr.bf16.gmra.mrb[0].mxu0 %v787
        %v1322 = vpop.f32.mrb[0].mxu0
        %v1323 = vadd.f32 %v1162, %v1322
        %v1324 = vpop.f32.mrb[0].mxu0
        %v1325 = vpop.f32.mrb[0].mxu0
        %v1326 = vadd.f32 %v1165, %v1325
        %v1327 = vpop.f32.mrb[0].mxu0
        %1328 = vmatprep.mubr.bf16.mxu0 0
        %1329 = vmatmul.mubr.bf16.gmra.mrb[0].mxu0 %v790
        %v1330 = vpop.f32.mrb[0].mxu0
        %v1331 = vadd.f32 %v1170, %v1330
        %v1332 = vpop.f32.mrb[0].mxu0
        %v1333 = vpop.f32.mrb[0].mxu0
        %v1334 = vadd.f32 %v1173, %v1333
        %v1335 = vpop.f32.mrb[0].mxu0
        %1336 = vmatprep.mubr.bf16.mxu0 0
        %1337 = vmatmul.mubr.bf16.gmra.mrb[0].mxu0 %v793
        %v1338 = vpop.f32.mrb[0].mxu0
        %v1339 = vadd.f32 %v1178, %v1338
        %v1340 = vpop.f32.mrb[0].mxu0
        %v1341 = vpop.f32.mrb[0].mxu0
        %v1342 = vadd.f32 %v1181, %v1341
        %v1343 = vpop.f32.mrb[0].mxu0
        %1344 = vmatprep.mubr.bf16.mxu0 0
        %1345 = vmatmul.mubr.bf16.gmra.mrb[0].mxu0 %v796
        %v1346 = vpop.f32.mrb[0].mxu0
        %v1347 = vadd.f32 %v1186, %v1346
        %v1348 = vpop.f32.mrb[0].mxu0
        %v1349 = vpop.f32.mrb[0].mxu0
        %v1350 = vadd.f32 %v1189, %v1349
        %v1351 = vpop.f32.mrb[0].mxu0
        %1352 = vmatprep.mubr.bf16.mxu0 0
        %1353 = vmatmul.mubr.bf16.gmra.mrb[0].mxu0 %v799
        %v1354 = vpop.f32.mrb[0].mxu0
        %v1355 = vadd.f32 %v1194, %v1354
        %v1356 = vpop.f32.mrb[0].mxu0
        %v1357 = vpop.f32.mrb[0].mxu0
        %v1358 = vadd.f32 %v1197, %v1357
        %v1359 = vpop.f32.mrb[0].mxu0
        %1360 = vmatprep.mubr.bf16.mxu0 0
        %1361 = vmatmul.mubr.bf16.gmra.mrb[0].mxu0 %v802
        %v1362 = vpop.f32.mrb[0].mxu0
        %v1363 = vadd.f32 %v1202, %v1362
        %v1364 = vpop.f32.mrb[0].mxu0
        %v1365 = vpop.f32.mrb[0].mxu0
        %v1366 = vadd.f32 %v1205, %v1365
        %v1367 = vpop.f32.mrb[0].mxu0
        %1368 = vmatprep.mubr.bf16.mxu0 0
        %1369 = vmatmul.mubr.bf16.gmra.mrb[0].mxu0 %v805
        %v1370 = vpop.f32.mrb[0].mxu0
        %v1371 = vadd.f32 %v1210, %v1370
        %v1372 = vpop.f32.mrb[0].mxu0
        %v1373 = vpop.f32.mrb[0].mxu0
        %v1374 = vadd.f32 %v1213, %v1373
        %v1375 = vpop.f32.mrb[0].mxu0
        %1376 = vmatprep.mubr.bf16.mxu0 0
        %1377 = vmatmul.mubr.bf16.gmra.mrb[0].mxu0 %v808
        %v1378 = vpop.f32.mrb[0].mxu0
        %v1379 = vadd.f32 %v1218, %v1378
        %v1380 = vpop.f32.mrb[0].mxu0
        %v1381 = vpop.f32.mrb[0].mxu0
        %v1382 = vadd.f32 %v1221, %v1381
        %v1383 = vpop.f32.mrb[0].mxu0
        %1384 = vmatprep.mubr.bf16.mxu0 0
        %1385 = vmatmul.mubr.bf16.gmra.mrb[0].mxu0 %v811
        %v1386 = vpop.f32.mrb[0].mxu0
        %v1387 = vadd.f32 %v1226, %v1386
        %v1388 = vpop.f32.mrb[0].mxu0
        %v1389 = vpop.f32.mrb[0].mxu0
        %v1390 = vadd.f32 %v1229, %v1389
        %v1391 = vpop.f32.mrb[0].mxu0
        %1392 = vmatprep.mubr.bf16.mxu0 0
        %1393 = vmatmul.mubr.bf16.gmra.mrb[0].mxu0 %v814
        %v1394 = vpop.f32.mrb[0].mxu0
        %v1395 = vadd.f32 %v1234, %v1394
        %v1396 = vpop.f32.mrb[0].mxu0
        %v1397 = vpop.f32.mrb[0].mxu0
        %v1398 = vadd.f32 %v1237, %v1397
        %v1399 = vpop.f32.mrb[0].mxu0
        %1400 = vmatprep.mubr.bf16.mxu0 0
        %1401 = vmatmul.mubr.bf16.gmra.mrb[0].mxu0 %v817
        %v1402 = vpop.f32.mrb[0].mxu0
        %v1403 = vadd.f32 %v1242, %v1402
        %v1404 = vpop.f32.mrb[0].mxu0
        %v1405 = vpop.f32.mrb[0].mxu0
        %v1406 = vadd.f32 %v1245, %v1405
        %v1407 = vpop.f32.mrb[0].mxu0
        %1408 = vmatprep.mubr.bf16.mxu0 0
        %1409 = vmatmul.mubr.bf16.gmra.mrb[0].mxu0 %v820
        %v1410 = vpop.f32.mrb[0].mxu0
        %v1411 = vadd.f32 %v1250, %v1410
        %v1412 = vpop.f32.mrb[0].mxu0
        %v1413 = vpop.f32.mrb[0].mxu0
        %v1414 = vadd.f32 %v1253, %v1413
        %v1415 = vpop.f32.mrb[0].mxu0
        %1416 = vmatprep.mubr.bf16.mxu0 0
        %1417 = vmatmul.mubr.bf16.gmra.mrb[0].mxu0 %v909
        %v1418 = vpop.f32.mrb[0].mxu0
        %v1419 = vadd.f32 %v1258, %v1418
        %v1420 = vpop.f32.mrb[0].mxu0
        %v1421 = vpop.f32.mrb[0].mxu0
        %v1422 = vadd.f32 %v1261, %v1421
        %v1423 = vpop.f32.mrb[0].mxu0
        %1424 = vdwg.mxu0
        %v1473 = vunpack.c.l.b16 %v837
        %v1474 = vunpack.c.l.b16 %v838
        %v1475 = vunpack.c.l.b16 %v839
        %v1476 = vunpack.c.l.b16 %v840
        %v1477 = vunpack.c.l.b16 %v841
        %v1478 = vunpack.c.l.b16 %v842
        %v1479 = vunpack.c.l.b16 %v843
        %v1480 = vunpack.c.l.b16 %v844
        %v1481 = vunpack.c.l.b16 %v845
        %v1482 = vunpack.c.l.b16 %v846
        %v1483 = vunpack.c.l.b16 %v847
        %v1484 = vunpack.c.l.b16 %v848
        %v1485 = vunpack.c.l.b16 %v849
        %v1486 = vunpack.c.l.b16 %v850
        %v1487 = vunpack.c.l.b16 %v851
        %v1488 = vunpack.c.l.b16 %v852
        %v1489 = vunpack.c.l.b16 %v853
        %v1490 = vunpack.c.l.b16 %v854
        %v1491 = vunpack.c.l.b16 %v855
        %v1492 = vunpack.c.l.b16 %v856
        %v1493 = vunpack.c.l.b16 %v857
        %v1494 = vunpack.c.l.b16 %v858
        %v1495 = vunpack.c.l.b16 %v859
        %v1496 = vunpack.c.l.b16 %v860
        %v1497 = vunpack.c.l.b16 %v861
        %v1498 = vunpack.c.l.b16 %v862
        %v1499 = vunpack.c.l.b16 %v863
        %v1500 = vunpack.c.l.b16 %v864
        %v1501 = vunpack.c.l.b16 %v865
        %v1502 = vunpack.c.l.b16 %v866
        %v1503 = vunpack.c.l.b16 %v867
        %v1504 = vunpack.c.l.b16 %v868
        %v1505 = vunpack.c.l.b16 %v869
        %v1506 = vunpack.c.l.b16 %v870
        %v1507 = vunpack.c.l.b16 %v871
        %v1508 = vunpack.c.l.b16 %v872
        %v1509 = vunpack.c.l.b16 %v873
        %v1510 = vunpack.c.l.b16 %v874
        %v1511 = vunpack.c.l.b16 %v875
        %v1512 = vunpack.c.l.b16 %v876
        %v1513 = vunpack.c.l.b16 %v877
        %v1514 = vunpack.c.l.b16 %v878
        %v1515 = vunpack.c.l.b16 %v879
        %v1516 = vunpack.c.l.b16 %v880
        %v1517 = vunpack.c.l.b16 %v881
        %v1518 = vunpack.c.l.b16 %v882
        %v1519 = vunpack.c.l.b16 %v883
        %v1520 = vunpack.c.l.b16 %v884
        %v1521 = vpack.c.b16 %v1474, %v1473
        %v1522 = vpack.c.b16 %v1476, %v1475
        %v1523 = vpack.c.b16 %v1478, %v1477
        %v1524 = vpack.c.b16 %v1480, %v1479
        %v1525 = vpack.c.b16 %v1482, %v1481
        %v1526 = vpack.c.b16 %v1484, %v1483
        %v1527 = vpack.c.b16 %v1486, %v1485
        %v1528 = vpack.c.b16 %v1488, %v1487
        %v1529 = vpack.c.b16 %v1490, %v1489
        %v1530 = vpack.c.b16 %v1492, %v1491
        %v1531 = vpack.c.b16 %v1494, %v1493
        %v1532 = vpack.c.b16 %v1496, %v1495
        %v1533 = vpack.c.b16 %v1498, %v1497
        %v1534 = vpack.c.b16 %v1500, %v1499
        %v1535 = vpack.c.b16 %v1502, %v1501
        %v1536 = vpack.c.b16 %v1504, %v1503
        %v1537 = vpack.c.b16 %v1506, %v1505
        %v1538 = vpack.c.b16 %v1508, %v1507
        %v1539 = vpack.c.b16 %v1510, %v1509
        %v1540 = vpack.c.b16 %v1512, %v1511
        %v1541 = vpack.c.b16 %v1514, %v1513
        %v1542 = vpack.c.b16 %v1516, %v1515
        %v1543 = vpack.c.b16 %v1518, %v1517
        %v1544 = vpack.c.b16 %v1520, %v1519
        %1569 = vmatprep.subr.bf16.mxu0 0
        %1570 = vmatpush1.bf16.msra.mxu0 %v1521
        %1571 = vmatprep.subr.bf16.mxu0 0
        %1572 = vmatpush1.bf16.msra.mxu0 %v1522
        %1573 = vmatprep.subr.bf16.mxu0 0
        %1574 = vmatpush1.bf16.msra.mxu0 %v1523
        %1575 = vmatprep.subr.bf16.mxu0 0
        %1576 = vmatpush1.bf16.msra.mxu0 %v1524
        %1577 = vmatprep.subr.bf16.mxu0 0
        %1578 = vmatpush1.bf16.msra.mxu0 %v1525
        %1579 = vmatprep.subr.bf16.mxu0 0
        %1580 = vmatpush1.bf16.msra.mxu0 %v1526
        %1581 = vmatprep.subr.bf16.mxu0 0
        %1582 = vmatpush1.bf16.msra.mxu0 %v1527
        %1583 = vmatprep.subr.bf16.mxu0 0
        %1584 = vmatpush1.bf16.msra.mxu0 %v1528
        %1585 = vmatprep.subr.bf16.mxu0 0
        %1586 = vmatpush1.bf16.msra.mxu0 %v1529
        %1587 = vmatprep.subr.bf16.mxu0 0
        %1588 = vmatpush1.bf16.msra.mxu0 %v1530
        %1589 = vmatprep.subr.bf16.mxu0 0
        %1590 = vmatpush1.bf16.msra.mxu0 %v1531
        %1591 = vmatprep.subr.bf16.mxu0 0
        %1592 = vmatpush1.bf16.msra.mxu0 %v1532
        %1593 = vmatprep.subr.bf16.mxu0 0
        %1594 = vmatpush1.bf16.msra.mxu0 %v1533
        %1595 = vmatprep.subr.bf16.mxu0 0
        %1596 = vmatpush1.bf16.msra.mxu0 %v1534
        %1597 = vmatprep.subr.bf16.mxu0 0
        %1598 = vmatpush1.bf16.msra.mxu0 %v1535
        %1599 = vmatprep.subr.bf16.mxu0 0
        %1600 = vmatpush1.bf16.msra.mxu0 %v1536
        %1601 = vmatprep.mubr.bf16.mxu0 %v575
        %1602 = vmatmul.mubr.bf16.gmra.mrb[0].mxu0 %v483
        %v1603 = vpop.f32.mrb[0].mxu0
        %v1604 = vadd.f32 %v1299, %v1603
        %v1605 = vpop.f32.mrb[0].mxu0
        %v1606 = vpop.f32.mrb[0].mxu0
        %v1607 = vadd.f32 %v1302, %v1606
        %v1608 = vpop.f32.mrb[0].mxu0
        %1609 = vmatprep.mubr.bf16.mxu0 %v587
        %1610 = vmatmul.mubr.bf16.gmra.mrb[0].mxu0 %v484
        %v1611 = vpop.f32.mrb[0].mxu0
        %v1612 = vadd.f32 %v1307, %v1611
        %v1613 = vpop.f32.mrb[0].mxu0
        %v1614 = vpop.f32.mrb[0].mxu0
        %v1615 = vadd.f32 %v1310, %v1614
        %v1616 = vpop.f32.mrb[0].mxu0
        %1617 = vmatprep.mubr.bf16.mxu0 %v599
        %1618 = vmatmul.mubr.bf16.gmra.mrb[0].mxu0 %v485
        %v1619 = vpop.f32.mrb[0].mxu0
        %v1620 = vadd.f32 %v1315, %v1619
        %v1621 = vpop.f32.mrb[0].mxu0
        %v1622 = vpop.f32.mrb[0].mxu0
        %v1623 = vadd.f32 %v1318, %v1622
        %v1624 = vpop.f32.mrb[0].mxu0
        %1625 = vmatprep.mubr.bf16.mxu0 %v611
        %1626 = vmatmul.mubr.bf16.gmra.mrb[0].mxu0 %v486
        %v1627 = vpop.f32.mrb[0].mxu0
        %v1628 = vadd.f32 %v1323, %v1627
        %v1629 = vpop.f32.mrb[0].mxu0
        %v1630 = vpop.f32.mrb[0].mxu0
        %v1631 = vadd.f32 %v1326, %v1630
        %v1632 = vpop.f32.mrb[0].mxu0
        %1633 = vmatprep.mubr.bf16.mxu0 %v623
        %1634 = vmatmul.mubr.bf16.gmra.mrb[0].mxu0 %v487
        %v1635 = vpop.f32.mrb[0].mxu0
        %v1636 = vadd.f32 %v1331, %v1635
        %v1637 = vpop.f32.mrb[0].mxu0
        %v1638 = vpop.f32.mrb[0].mxu0
        %v1639 = vadd.f32 %v1334, %v1638
        %v1640 = vpop.f32.mrb[0].mxu0
        %1641 = vmatprep.mubr.bf16.mxu0 %v635
        %1642 = vmatmul.mubr.bf16.gmra.mrb[0].mxu0 %v488
        %v1643 = vpop.f32.mrb[0].mxu0
        %v1644 = vadd.f32 %v1339, %v1643
        %v1645 = vpop.f32.mrb[0].mxu0
        %v1646 = vpop.f32.mrb[0].mxu0
        %v1647 = vadd.f32 %v1342, %v1646
        %v1648 = vpop.f32.mrb[0].mxu0
        %1649 = vmatprep.mubr.bf16.mxu0 %v647
        %1650 = vmatmul.mubr.bf16.gmra.mrb[0].mxu0 %v489
        %v1651 = vpop.f32.mrb[0].mxu0
        %v1652 = vadd.f32 %v1347, %v1651
        %v1653 = vpop.f32.mrb[0].mxu0
        %v1654 = vpop.f32.mrb[0].mxu0
        %v1655 = vadd.f32 %v1350, %v1654
        %v1656 = vpop.f32.mrb[0].mxu0
        %1657 = vmatprep.mubr.bf16.mxu0 %v659
        %1658 = vmatmul.mubr.bf16.gmra.mrb[0].mxu0 %v490
        %v1659 = vpop.f32.mrb[0].mxu0
        %v1660 = vadd.f32 %v1355, %v1659
        %v1661 = vpop.f32.mrb[0].mxu0
        %v1662 = vpop.f32.mrb[0].mxu0
        %v1663 = vadd.f32 %v1358, %v1662
        %v1664 = vpop.f32.mrb[0].mxu0
        %1665 = vmatprep.mubr.bf16.mxu0 %v671
        %1666 = vmatmul.mubr.bf16.gmra.mrb[0].mxu0 %v491
        %v1667 = vpop.f32.mrb[0].mxu0
        %v1668 = vadd.f32 %v1363, %v1667
        %v1669 = vpop.f32.mrb[0].mxu0
        %v1670 = vpop.f32.mrb[0].mxu0
        %v1671 = vadd.f32 %v1366, %v1670
        %v1672 = vpop.f32.mrb[0].mxu0
        %1673 = vmatprep.mubr.bf16.mxu0 %v683
        %1674 = vmatmul.mubr.bf16.gmra.mrb[0].mxu0 %v492
        %v1675 = vpop.f32.mrb[0].mxu0
        %v1676 = vadd.f32 %v1371, %v1675
        %v1677 = vpop.f32.mrb[0].mxu0
        %v1678 = vpop.f32.mrb[0].mxu0
        %v1679 = vadd.f32 %v1374, %v1678
        %v1680 = vpop.f32.mrb[0].mxu0
        %1681 = vmatprep.mubr.bf16.mxu0 %v695
        %1682 = vmatmul.mubr.bf16.gmra.mrb[0].mxu0 %v493
        %v1683 = vpop.f32.mrb[0].mxu0
        %v1684 = vadd.f32 %v1379, %v1683
        %v1685 = vpop.f32.mrb[0].mxu0
        %v1686 = vpop.f32.mrb[0].mxu0
        %v1687 = vadd.f32 %v1382, %v1686
        %v1688 = vpop.f32.mrb[0].mxu0
        %1689 = vmatprep.mubr.bf16.mxu0 %v707
        %1690 = vmatmul.mubr.bf16.gmra.mrb[0].mxu0 %v494
        %v1691 = vpop.f32.mrb[0].mxu0
        %v1692 = vadd.f32 %v1387, %v1691
        %v1693 = vpop.f32.mrb[0].mxu0
        %v1694 = vpop.f32.mrb[0].mxu0
        %v1695 = vadd.f32 %v1390, %v1694
        %v1696 = vpop.f32.mrb[0].mxu0
        %1697 = vmatprep.mubr.bf16.mxu0 %v719
        %1698 = vmatmul.mubr.bf16.gmra.mrb[0].mxu0 %v495
        %v1699 = vpop.f32.mrb[0].mxu0
        %v1700 = vadd.f32 %v1395, %v1699
        %v1701 = vpop.f32.mrb[0].mxu0
        %v1702 = vpop.f32.mrb[0].mxu0
        %v1703 = vadd.f32 %v1398, %v1702
        %v1704 = vpop.f32.mrb[0].mxu0
        %1705 = vmatprep.mubr.bf16.mxu0 %v731
        %1706 = vmatmul.mubr.bf16.gmra.mrb[0].mxu0 %v496
        %v1707 = vpop.f32.mrb[0].mxu0
        %v1708 = vadd.f32 %v1403, %v1707
        %v1709 = vpop.f32.mrb[0].mxu0
        %v1710 = vpop.f32.mrb[0].mxu0
        %v1711 = vadd.f32 %v1406, %v1710
        %v1712 = vpop.f32.mrb[0].mxu0
        %1713 = vmatprep.mubr.bf16.mxu0 %v743
        %1714 = vmatmul.mubr.bf16.gmra.mrb[0].mxu0 %v497
        %v1715 = vpop.f32.mrb[0].mxu0
        %v1716 = vadd.f32 %v1411, %v1715
        %v1717 = vpop.f32.mrb[0].mxu0
        %v1718 = vpop.f32.mrb[0].mxu0
        %v1719 = vadd.f32 %v1414, %v1718
        %v1720 = vpop.f32.mrb[0].mxu0
        %1721 = vmatprep.mubr.bf16.mxu0 %v755
        %1722 = vmatmul.mubr.bf16.gmra.mrb[0].mxu0 %v498
        %v1723 = vpop.f32.mrb[0].mxu0
        %v1724 = vadd.f32 %v1419, %v1723
        %v1725 = vpop.f32.mrb[0].mxu0
        %v1726 = vpop.f32.mrb[0].mxu0
        %v1727 = vadd.f32 %v1422, %v1726
        %v1728 = vpop.f32.mrb[0].mxu0
        %1729 = vdwg.mxu0
        %1730 = vmatprep.subr.bf16.mxu0 0
        %1731 = vmatpush1.bf16.msra.mxu0 %v1537
        %1732 = vmatprep.subr.bf16.mxu0 0
        %1733 = vmatpush1.bf16.msra.mxu0 %v1538
        %1734 = vmatprep.subr.bf16.mxu0 0
        %1735 = vmatpush1.bf16.msra.mxu0 %v1539
        %1736 = vmatprep.subr.bf16.mxu0 0
        %1737 = vmatpush1.bf16.msra.mxu0 %v1540
        %1738 = vmatprep.subr.bf16.mxu0 0
        %1739 = vmatpush1.bf16.msra.mxu0 %v1541
        %1740 = vmatprep.subr.bf16.mxu0 0
        %1741 = vmatpush1.bf16.msra.mxu0 %v1542
        %1742 = vmatprep.subr.bf16.mxu0 0
        %1743 = vmatpush1.bf16.msra.mxu0 %v1543
        %1744 = vmatprep.subr.bf16.mxu0 0
        %1745 = vmatpush1.bf16.msra.mxu0 %v1544
        %1746 = vmatprep.subr.bf16.mxu0 0
        %1747 = vmatpush1.bf16.msra.mxu0 0
        %1748 = vmatprep.subr.bf16.mxu0 0
        %1749 = vmatpush1.bf16.msra.mxu0 0
        %1750 = vmatprep.subr.bf16.mxu0 0
        %1751 = vmatpush1.bf16.msra.mxu0 0
        %1752 = vmatprep.subr.bf16.mxu0 0
        %1753 = vmatpush1.bf16.msra.mxu0 0
        %1754 = vmatprep.subr.bf16.mxu0 0
        %1755 = vmatpush1.bf16.msra.mxu0 0
        %1756 = vmatprep.subr.bf16.mxu0 0
        %1757 = vmatpush1.bf16.msra.mxu0 0
        %1758 = vmatprep.subr.bf16.mxu0 0
        %1759 = vmatpush1.bf16.msra.mxu0 0
        %1760 = vmatprep.subr.bf16.mxu0 0
        %1761 = vmatpush1.bf16.msra.mxu0 0
        %1762 = vmatprep.mubr.bf16.mxu0 0
        %1763 = vmatmul.mubr.bf16.gmra.mrb[0].mxu0 %v775
        %v1764 = vpop.f32.mrb[0].mxu0
        %v1765 = vadd.f32 %v1604, %v1764
        %v1766 = vpop.f32.mrb[0].mxu0
        %v1767 = vpop.f32.mrb[0].mxu0
        %v1768 = vadd.f32 %v1607, %v1767
        %v1769 = vpop.f32.mrb[0].mxu0
        %1770 = vmatprep.mubr.bf16.mxu0 0
        %1771 = vmatmul.mubr.bf16.gmra.mrb[0].mxu0 %v778
        %v1772 = vpop.f32.mrb[0].mxu0
        %v1773 = vadd.f32 %v1612, %v1772
        %v1774 = vpop.f32.mrb[0].mxu0
        %v1775 = vpop.f32.mrb[0].mxu0
        %v1776 = vadd.f32 %v1615, %v1775
        %v1777 = vpop.f32.mrb[0].mxu0
        %1778 = vmatprep.mubr.bf16.mxu0 0
        %1779 = vmatmul.mubr.bf16.gmra.mrb[0].mxu0 %v781
        %v1780 = vpop.f32.mrb[0].mxu0
        %v1781 = vadd.f32 %v1620, %v1780
        %v1782 = vpop.f32.mrb[0].mxu0
        %v1783 = vpop.f32.mrb[0].mxu0
        %v1784 = vadd.f32 %v1623, %v1783
        %v1785 = vpop.f32.mrb[0].mxu0
        %1786 = vmatprep.mubr.bf16.mxu0 0
        %1787 = vmatmul.mubr.bf16.gmra.mrb[0].mxu0 %v784
        %v1788 = vpop.f32.mrb[0].mxu0
        %v1789 = vadd.f32 %v1628, %v1788
        %v1790 = vpop.f32.mrb[0].mxu0
        %v1791 = vpop.f32.mrb[0].mxu0
        %v1792 = vadd.f32 %v1631, %v1791
        %v1793 = vpop.f32.mrb[0].mxu0
        %1794 = vmatprep.mubr.bf16.mxu0 0
        %1795 = vmatmul.mubr.bf16.gmra.mrb[0].mxu0 %v787
        %v1796 = vpop.f32.mrb[0].mxu0
        %v1797 = vadd.f32 %v1636, %v1796
        %v1798 = vpop.f32.mrb[0].mxu0
        %v1799 = vpop.f32.mrb[0].mxu0
        %v1800 = vadd.f32 %v1639, %v1799
        %v1801 = vpop.f32.mrb[0].mxu0
        %1802 = vmatprep.mubr.bf16.mxu0 0
        %1803 = vmatmul.mubr.bf16.gmra.mrb[0].mxu0 %v790
        %v1804 = vpop.f32.mrb[0].mxu0
        %v1805 = vadd.f32 %v1644, %v1804
        %v1806 = vpop.f32.mrb[0].mxu0
        %v1807 = vpop.f32.mrb[0].mxu0
        %v1808 = vadd.f32 %v1647, %v1807
        %v1809 = vpop.f32.mrb[0].mxu0
        %1810 = vmatprep.mubr.bf16.mxu0 0
        %1811 = vmatmul.mubr.bf16.gmra.mrb[0].mxu0 %v793
        %v1812 = vpop.f32.mrb[0].mxu0
        %v1813 = vadd.f32 %v1652, %v1812
        %v1814 = vpop.f32.mrb[0].mxu0
        %v1815 = vpop.f32.mrb[0].mxu0
        %v1816 = vadd.f32 %v1655, %v1815
        %v1817 = vpop.f32.mrb[0].mxu0
        %1818 = vmatprep.mubr.bf16.mxu0 0
        %1819 = vmatmul.mubr.bf16.gmra.mrb[0].mxu0 %v796
        %v1820 = vpop.f32.mrb[0].mxu0
        %v1821 = vadd.f32 %v1660, %v1820
        %v1822 = vpop.f32.mrb[0].mxu0
        %v1823 = vpop.f32.mrb[0].mxu0
        %v1824 = vadd.f32 %v1663, %v1823
        %v1825 = vpop.f32.mrb[0].mxu0
        %1826 = vmatprep.mubr.bf16.mxu0 0
        %1827 = vmatmul.mubr.bf16.gmra.mrb[0].mxu0 %v799
        %v1828 = vpop.f32.mrb[0].mxu0
        %v1829 = vadd.f32 %v1668, %v1828
        %v1830 = vpop.f32.mrb[0].mxu0
        %v1831 = vpop.f32.mrb[0].mxu0
        %v1832 = vadd.f32 %v1671, %v1831
        %v1833 = vpop.f32.mrb[0].mxu0
        %1834 = vmatprep.mubr.bf16.mxu0 0
        %1835 = vmatmul.mubr.bf16.gmra.mrb[0].mxu0 %v802
        %v1836 = vpop.f32.mrb[0].mxu0
        %v1837 = vadd.f32 %v1676, %v1836
        %v1838 = vpop.f32.mrb[0].mxu0
        %v1839 = vpop.f32.mrb[0].mxu0
        %v1840 = vadd.f32 %v1679, %v1839
        %v1841 = vpop.f32.mrb[0].mxu0
        %1842 = vmatprep.mubr.bf16.mxu0 0
        %1843 = vmatmul.mubr.bf16.gmra.mrb[0].mxu0 %v805
        %v1844 = vpop.f32.mrb[0].mxu0
        %v1845 = vadd.f32 %v1684, %v1844
        %v1846 = vpop.f32.mrb[0].mxu0
        %v1847 = vpop.f32.mrb[0].mxu0
        %v1848 = vadd.f32 %v1687, %v1847
        %v1849 = vpop.f32.mrb[0].mxu0
        %1850 = vmatprep.mubr.bf16.mxu0 0
        %1851 = vmatmul.mubr.bf16.gmra.mrb[0].mxu0 %v808
        %v1852 = vpop.f32.mrb[0].mxu0
        %v1853 = vadd.f32 %v1692, %v1852
        %v1854 = vpop.f32.mrb[0].mxu0
        %v1855 = vpop.f32.mrb[0].mxu0
        %v1856 = vadd.f32 %v1695, %v1855
        %v1857 = vpop.f32.mrb[0].mxu0
        %1858 = vmatprep.mubr.bf16.mxu0 0
        %1859 = vmatmul.mubr.bf16.gmra.mrb[0].mxu0 %v811
        %v1860 = vpop.f32.mrb[0].mxu0
        %v1861 = vadd.f32 %v1700, %v1860
        %v1862 = vpop.f32.mrb[0].mxu0
        %v1863 = vpop.f32.mrb[0].mxu0
        %v1864 = vadd.f32 %v1703, %v1863
        %v1865 = vpop.f32.mrb[0].mxu0
        %1866 = vmatprep.mubr.bf16.mxu0 0
        %1867 = vmatmul.mubr.bf16.gmra.mrb[0].mxu0 %v814
        %v1868 = vpop.f32.mrb[0].mxu0
        %v1869 = vadd.f32 %v1708, %v1868
        %v1870 = vpop.f32.mrb[0].mxu0
        %v1871 = vpop.f32.mrb[0].mxu0
        %v1872 = vadd.f32 %v1711, %v1871
        %v1873 = vpop.f32.mrb[0].mxu0
        %1874 = vmatprep.mubr.bf16.mxu0 0
        %1875 = vmatmul.mubr.bf16.gmra.mrb[0].mxu0 %v817
        %v1876 = vpop.f32.mrb[0].mxu0
        %v1877 = vadd.f32 %v1716, %v1876
        %v1878 = vpop.f32.mrb[0].mxu0
        %v1879 = vpop.f32.mrb[0].mxu0
        %v1880 = vadd.f32 %v1719, %v1879
        %v1881 = vpop.f32.mrb[0].mxu0
        %1882 = vmatprep.mubr.bf16.mxu0 0
        %1883 = vmatmul.mubr.bf16.gmra.mrb[0].mxu0 %v820
        %v1884 = vpop.f32.mrb[0].mxu0
        %v1885 = vadd.f32 %v1724, %v1884
        %v1886 = vpop.f32.mrb[0].mxu0
        %v1887 = vpop.f32.mrb[0].mxu0
        %v1888 = vadd.f32 %v1727, %v1887
        %v1889 = vpop.f32.mrb[0].mxu0
        %1890 = vdwg.mxu0
        %v1893 = vunpack.c.l.b16 %v416
        %v1894 = vunpack.c.l.b16 %v417
        %v1895 = vpack.c.b16 %v1894, %v1893
        %v1898 = vunpack.c.l.b16 %v418
        %v1899 = vpack.c.b16 %v1898, %v1898
        %v1901 = vshrl.u32 %v1895, 16
        %v1903 = vshll.u32 %v1895, 16
        %v1905 = vrot.slane %v1903, 1
        %v1906 = vor.u32 %v1901, %v1905
        %v1908 = vshll.u32 %v1899, 16
        %v1910 = vrot.slane %v1908, 1
        %v1911 = vsel %vm563, %v1906, %v1910
        %v1913 = vrot.slane %v1895, 1
        %v1914 = vrot.slane %v1899, 1
        %v1915 = vsel %vm772, %v1913, %v1914
        %v1917 = vld [vmem:[#allocation8 + $0x180] sm:$0xf]
        %v1918 = vld [vmem:[#allocation8 + $0x184] sm:$0xf]
        %v1919 = vld [vmem:[#allocation8 + $0x188] sm:$0xf]
        %v1920 = vld [vmem:[#allocation8 + $0x18c] sm:$0xf]
        %v1921 = vld [vmem:[#allocation8 + $0x190] sm:$0xf]
        %v1922 = vld [vmem:[#allocation8 + $0x194] sm:$0xf]
        %v1923 = vld [vmem:[#allocation8 + $0x198] sm:$0xf]
        %v1924 = vld [vmem:[#allocation8 + $0x19c] sm:$0xf]
        %v1925 = vld [vmem:[#allocation8 + $0x1a0] sm:$0xf]
        %v1926 = vld [vmem:[#allocation8 + $0x1a4] sm:$0xf]
        %v1927 = vld [vmem:[#allocation8 + $0x1a8] sm:$0xf]
        %v1928 = vld [vmem:[#allocation8 + $0x1ac] sm:$0xf]
        %v1929 = vld [vmem:[#allocation8 + $0x1b0] sm:$0xf]
        %v1930 = vld [vmem:[#allocation8 + $0x1b4] sm:$0xf]
        %v1931 = vld [vmem:[#allocation8 + $0x1b8] sm:$0xf]
        %v1932 = vld [vmem:[#allocation8 + $0x1bc] sm:$0xf]
        %v1933 = vld [vmem:[#allocation8 + $0x1c0] sm:$0xf]
        %v1934 = vld [vmem:[#allocation8 + $0x1c4] sm:$0xf]
        %v1935 = vld [vmem:[#allocation8 + $0x1c8] sm:$0xf]
        %v1936 = vld [vmem:[#allocation8 + $0x1cc] sm:$0xf]
        %v1937 = vld [vmem:[#allocation8 + $0x1d0] sm:$0xf]
        %v1938 = vld [vmem:[#allocation8 + $0x1d4] sm:$0xf]
        %v1939 = vld [vmem:[#allocation8 + $0x1d8] sm:$0xf]
        %v1940 = vld [vmem:[#allocation8 + $0x1dc] sm:$0xf]
        %v1941 = vld [vmem:[#allocation8 + $0x1e0] sm:$0xf]
        %v1942 = vld [vmem:[#allocation8 + $0x1e4] sm:$0xf]
        %v1943 = vld [vmem:[#allocation8 + $0x1e8] sm:$0xf]
        %v1944 = vld [vmem:[#allocation8 + $0x1ec] sm:$0xf]
        %v1945 = vld [vmem:[#allocation8 + $0x1f0] sm:$0xf]
        %v1946 = vld [vmem:[#allocation8 + $0x1f4] sm:$0xf]
        %v1947 = vld [vmem:[#allocation8 + $0x1f8] sm:$0xf]
        %v1948 = vld [vmem:[#allocation8 + $0x1fc] sm:$0xf]
        %v1949 = vld [vmem:[#allocation8 + $0x200] sm:$0xf]
        %v1950 = vld [vmem:[#allocation8 + $0x204] sm:$0xf]
        %v1951 = vld [vmem:[#allocation8 + $0x208] sm:$0xf]
        %v1952 = vld [vmem:[#allocation8 + $0x20c] sm:$0xf]
        %v1953 = vld [vmem:[#allocation8 + $0x210] sm:$0xf]
        %v1954 = vld [vmem:[#allocation8 + $0x214] sm:$0xf]
        %v1955 = vld [vmem:[#allocation8 + $0x218] sm:$0xf]
        %v1956 = vld [vmem:[#allocation8 + $0x21c] sm:$0xf]
        %v1957 = vld [vmem:[#allocation8 + $0x220] sm:$0xf]
        %v1958 = vld [vmem:[#allocation8 + $0x224] sm:$0xf]
        %v1959 = vld [vmem:[#allocation8 + $0x228] sm:$0xf]
        %v1960 = vld [vmem:[#allocation8 + $0x22c] sm:$0xf]
        %v1961 = vld [vmem:[#allocation8 + $0x230] sm:$0xf]
        %v1962 = vld [vmem:[#allocation8 + $0x234] sm:$0xf]
        %v1963 = vld [vmem:[#allocation8 + $0x238] sm:$0xf]
        %v1964 = vld [vmem:[#allocation8 + $0x23c] sm:$0xf]
        %v2013 = vunpack.c.l.b16 %v1917
        %v2014 = vunpack.c.l.b16 %v1918
        %v2015 = vunpack.c.l.b16 %v1919
        %v2016 = vunpack.c.l.b16 %v1920
        %v2017 = vunpack.c.l.b16 %v1921
        %v2018 = vunpack.c.l.b16 %v1922
        %v2019 = vunpack.c.l.b16 %v1923
        %v2020 = vunpack.c.l.b16 %v1924
        %v2021 = vunpack.c.l.b16 %v1925
        %v2022 = vunpack.c.l.b16 %v1926
        %v2023 = vunpack.c.l.b16 %v1927
        %v2024 = vunpack.c.l.b16 %v1928
        %v2025 = vunpack.c.l.b16 %v1929
        %v2026 = vunpack.c.l.b16 %v1930
        %v2027 = vunpack.c.l.b16 %v1931
        %v2028 = vunpack.c.l.b16 %v1932
        %v2029 = vunpack.c.l.b16 %v1933
        %v2030 = vunpack.c.l.b16 %v1934
        %v2031 = vunpack.c.l.b16 %v1935
        %v2032 = vunpack.c.l.b16 %v1936
        %v2033 = vunpack.c.l.b16 %v1937
        %v2034 = vunpack.c.l.b16 %v1938
        %v2035 = vunpack.c.l.b16 %v1939
        %v2036 = vunpack.c.l.b16 %v1940
        %v2037 = vunpack.c.l.b16 %v1941
        %v2038 = vunpack.c.l.b16 %v1942
        %v2039 = vunpack.c.l.b16 %v1943
        %v2040 = vunpack.c.l.b16 %v1944
        %v2041 = vunpack.c.l.b16 %v1945
        %v2042 = vunpack.c.l.b16 %v1946
        %v2043 = vunpack.c.l.b16 %v1947
        %v2044 = vunpack.c.l.b16 %v1948
        %v2045 = vunpack.c.l.b16 %v1949
        %v2046 = vunpack.c.l.b16 %v1950
        %v2047 = vunpack.c.l.b16 %v1951
        %v2048 = vunpack.c.l.b16 %v1952
        %v2049 = vunpack.c.l.b16 %v1953
        %v2050 = vunpack.c.l.b16 %v1954
        %v2051 = vunpack.c.l.b16 %v1955
        %v2052 = vunpack.c.l.b16 %v1956
        %v2053 = vunpack.c.l.b16 %v1957
        %v2054 = vunpack.c.l.b16 %v1958
        %v2055 = vunpack.c.l.b16 %v1959
        %v2056 = vunpack.c.l.b16 %v1960
        %v2057 = vunpack.c.l.b16 %v1961
        %v2058 = vunpack.c.l.b16 %v1962
        %v2059 = vunpack.c.l.b16 %v1963
        %v2060 = vunpack.c.l.b16 %v1964
        %v2061 = vpack.c.b16 %v2014, %v2013
        %v2062 = vpack.c.b16 %v2016, %v2015
        %v2063 = vpack.c.b16 %v2018, %v2017
        %v2064 = vpack.c.b16 %v2020, %v2019
        %v2065 = vpack.c.b16 %v2022, %v2021
        %v2066 = vpack.c.b16 %v2024, %v2023
        %v2067 = vpack.c.b16 %v2026, %v2025
        %v2068 = vpack.c.b16 %v2028, %v2027
        %v2069 = vpack.c.b16 %v2030, %v2029
        %v2070 = vpack.c.b16 %v2032, %v2031
        %v2071 = vpack.c.b16 %v2034, %v2033
        %v2072 = vpack.c.b16 %v2036, %v2035
        %v2073 = vpack.c.b16 %v2038, %v2037
        %v2074 = vpack.c.b16 %v2040, %v2039
        %v2075 = vpack.c.b16 %v2042, %v2041
        %v2076 = vpack.c.b16 %v2044, %v2043
        %v2077 = vpack.c.b16 %v2046, %v2045
        %v2078 = vpack.c.b16 %v2048, %v2047
        %v2079 = vpack.c.b16 %v2050, %v2049
        %v2080 = vpack.c.b16 %v2052, %v2051
        %v2081 = vpack.c.b16 %v2054, %v2053
        %v2082 = vpack.c.b16 %v2056, %v2055
        %v2083 = vpack.c.b16 %v2058, %v2057
        %v2084 = vpack.c.b16 %v2060, %v2059
        %2109 = vmatprep.subr.bf16.mxu0 0
        %2110 = vmatpush1.bf16.msra.mxu0 %v2061
        %2111 = vmatprep.subr.bf16.mxu0 0
        %2112 = vmatpush1.bf16.msra.mxu0 %v2062
        %2113 = vmatprep.subr.bf16.mxu0 0
        %2114 = vmatpush1.bf16.msra.mxu0 %v2063
        %2115 = vmatprep.subr.bf16.mxu0 0
        %2116 = vmatpush1.bf16.msra.mxu0 %v2064
        %2117 = vmatprep.subr.bf16.mxu0 0
        %2118 = vmatpush1.bf16.msra.mxu0 %v2065
        %2119 = vmatprep.subr.bf16.mxu0 0
        %2120 = vmatpush1.bf16.msra.mxu0 %v2066
        %2121 = vmatprep.subr.bf16.mxu0 0
        %2122 = vmatpush1.bf16.msra.mxu0 %v2067
        %2123 = vmatprep.subr.bf16.mxu0 0
        %2124 = vmatpush1.bf16.msra.mxu0 %v2068
        %2125 = vmatprep.subr.bf16.mxu0 0
        %2126 = vmatpush1.bf16.msra.mxu0 %v2069
        %2127 = vmatprep.subr.bf16.mxu0 0
        %2128 = vmatpush1.bf16.msra.mxu0 %v2070
        %2129 = vmatprep.subr.bf16.mxu0 0
        %2130 = vmatpush1.bf16.msra.mxu0 %v2071
        %2131 = vmatprep.subr.bf16.mxu0 0
        %2132 = vmatpush1.bf16.msra.mxu0 %v2072
        %2133 = vmatprep.subr.bf16.mxu0 0
        %2134 = vmatpush1.bf16.msra.mxu0 %v2073
        %2135 = vmatprep.subr.bf16.mxu0 0
        %2136 = vmatpush1.bf16.msra.mxu0 %v2074
        %2137 = vmatprep.subr.bf16.mxu0 0
        %2138 = vmatpush1.bf16.msra.mxu0 %v2075
        %2139 = vmatprep.subr.bf16.mxu0 0
        %2140 = vmatpush1.bf16.msra.mxu0 %v2076
        %2141 = vmatprep.mubr.bf16.mxu0 %v599
        %2142 = vmatmul.mubr.bf16.gmra.mrb[0].mxu0 %v485
        %v2143 = vpop.f32.mrb[0].mxu0
        %v2144 = vadd.f32 0.0, %v2143
        %v2145 = vpop.f32.mrb[0].mxu0
        %v2146 = vpop.f32.mrb[0].mxu0
        %v2147 = vadd.f32 0.0, %v2146
        %v2148 = vpop.f32.mrb[0].mxu0
        %2149 = vmatprep.mubr.bf16.mxu0 %v611
        %2150 = vmatmul.mubr.bf16.gmra.mrb[0].mxu0 %v486
        %v2151 = vpop.f32.mrb[0].mxu0
        %v2152 = vadd.f32 0.0, %v2151
        %v2153 = vpop.f32.mrb[0].mxu0
        %v2154 = vpop.f32.mrb[0].mxu0
        %v2155 = vadd.f32 0.0, %v2154
        %v2156 = vpop.f32.mrb[0].mxu0
        %2157 = vmatprep.mubr.bf16.mxu0 %v623
        %2158 = vmatmul.mubr.bf16.gmra.mrb[0].mxu0 %v487
        %v2159 = vpop.f32.mrb[0].mxu0
        %v2160 = vadd.f32 0.0, %v2159
        %v2161 = vpop.f32.mrb[0].mxu0
        %v2162 = vpop.f32.mrb[0].mxu0
        %v2163 = vadd.f32 0.0, %v2162
        %v2164 = vpop.f32.mrb[0].mxu0
        %2165 = vmatprep.mubr.bf16.mxu0 %v635
        %2166 = vmatmul.mubr.bf16.gmra.mrb[0].mxu0 %v488
        %v2167 = vpop.f32.mrb[0].mxu0
        %v2168 = vadd.f32 0.0, %v2167
        %v2169 = vpop.f32.mrb[0].mxu0
        %v2170 = vpop.f32.mrb[0].mxu0
        %v2171 = vadd.f32 0.0, %v2170
        %v2172 = vpop.f32.mrb[0].mxu0
        %2173 = vmatprep.mubr.bf16.mxu0 %v647
        %2174 = vmatmul.mubr.bf16.gmra.mrb[0].mxu0 %v489
        %v2175 = vpop.f32.mrb[0].mxu0
        %v2176 = vadd.f32 0.0, %v2175
        %v2177 = vpop.f32.mrb[0].mxu0
        %v2178 = vpop.f32.mrb[0].mxu0
        %v2179 = vadd.f32 0.0, %v2178
        %v2180 = vpop.f32.mrb[0].mxu0
        %2181 = vmatprep.mubr.bf16.mxu0 %v659
        %2182 = vmatmul.mubr.bf16.gmra.mrb[0].mxu0 %v490
        %v2183 = vpop.f32.mrb[0].mxu0
        %v2184 = vadd.f32 0.0, %v2183
        %v2185 = vpop.f32.mrb[0].mxu0
        %v2186 = vpop.f32.mrb[0].mxu0
        %v2187 = vadd.f32 0.0, %v2186
        %v2188 = vpop.f32.mrb[0].mxu0
        %2189 = vmatprep.mubr.bf16.mxu0 %v671
        %2190 = vmatmul.mubr.bf16.gmra.mrb[0].mxu0 %v491
        %v2191 = vpop.f32.mrb[0].mxu0
        %v2192 = vadd.f32 0.0, %v2191
        %v2193 = vpop.f32.mrb[0].mxu0
        %v2194 = vpop.f32.mrb[0].mxu0
        %v2195 = vadd.f32 0.0, %v2194
        %v2196 = vpop.f32.mrb[0].mxu0
        %2197 = vmatprep.mubr.bf16.mxu0 %v683
        %2198 = vmatmul.mubr.bf16.gmra.mrb[0].mxu0 %v492
        %v2199 = vpop.f32.mrb[0].mxu0
        %v2200 = vadd.f32 0.0, %v2199
        %v2201 = vpop.f32.mrb[0].mxu0
        %v2202 = vpop.f32.mrb[0].mxu0
        %v2203 = vadd.f32 0.0, %v2202
        %v2204 = vpop.f32.mrb[0].mxu0
        %2205 = vmatprep.mubr.bf16.mxu0 %v695
        %2206 = vmatmul.mubr.bf16.gmra.mrb[0].mxu0 %v493
        %v2207 = vpop.f32.mrb[0].mxu0
        %v2208 = vadd.f32 0.0, %v2207
        %v2209 = vpop.f32.mrb[0].mxu0
        %v2210 = vpop.f32.mrb[0].mxu0
        %v2211 = vadd.f32 0.0, %v2210
        %v2212 = vpop.f32.mrb[0].mxu0
        %2213 = vmatprep.mubr.bf16.mxu0 %v707
        %2214 = vmatmul.mubr.bf16.gmra.mrb[0].mxu0 %v494
        %v2215 = vpop.f32.mrb[0].mxu0
        %v2216 = vadd.f32 0.0, %v2215
        %v2217 = vpop.f32.mrb[0].mxu0
        %v2218 = vpop.f32.mrb[0].mxu0
        %v2219 = vadd.f32 0.0, %v2218
        %v2220 = vpop.f32.mrb[0].mxu0
        %2221 = vmatprep.mubr.bf16.mxu0 %v719
        %2222 = vmatmul.mubr.bf16.gmra.mrb[0].mxu0 %v495
        %v2223 = vpop.f32.mrb[0].mxu0
        %v2224 = vadd.f32 0.0, %v2223
        %v2225 = vpop.f32.mrb[0].mxu0
        %v2226 = vpop.f32.mrb[0].mxu0
        %v2227 = vadd.f32 0.0, %v2226
        %v2228 = vpop.f32.mrb[0].mxu0
        %2229 = vmatprep.mubr.bf16.mxu0 %v731
        %2230 = vmatmul.mubr.bf16.gmra.mrb[0].mxu0 %v496
        %v2231 = vpop.f32.mrb[0].mxu0
        %v2232 = vadd.f32 0.0, %v2231
        %v2233 = vpop.f32.mrb[0].mxu0
        %v2234 = vpop.f32.mrb[0].mxu0
        %v2235 = vadd.f32 0.0, %v2234
        %v2236 = vpop.f32.mrb[0].mxu0
        %2237 = vmatprep.mubr.bf16.mxu0 %v743
        %2238 = vmatmul.mubr.bf16.gmra.mrb[0].mxu0 %v497
        %v2239 = vpop.f32.mrb[0].mxu0
        %v2240 = vadd.f32 0.0, %v2239
        %v2241 = vpop.f32.mrb[0].mxu0
        %v2242 = vpop.f32.mrb[0].mxu0
        %v2243 = vadd.f32 0.0, %v2242
        %v2244 = vpop.f32.mrb[0].mxu0
        %2245 = vmatprep.mubr.bf16.mxu0 %v755
        %2246 = vmatmul.mubr.bf16.gmra.mrb[0].mxu0 %v498
        %v2247 = vpop.f32.mrb[0].mxu0
        %v2248 = vadd.f32 0.0, %v2247
        %v2249 = vpop.f32.mrb[0].mxu0
        %v2250 = vpop.f32.mrb[0].mxu0
        %v2251 = vadd.f32 0.0, %v2250
        %v2252 = vpop.f32.mrb[0].mxu0
        %2253 = vmatprep.mubr.bf16.mxu0 %v905
        %2254 = vmatmul.mubr.bf16.gmra.mrb[0].mxu0 %v889
        %v2255 = vpop.f32.mrb[0].mxu0
        %v2256 = vadd.f32 0.0, %v2255
        %v2257 = vpop.f32.mrb[0].mxu0
        %v2258 = vpop.f32.mrb[0].mxu0
        %v2259 = vadd.f32 0.0, %v2258
        %v2260 = vpop.f32.mrb[0].mxu0
        %2261 = vmatprep.mubr.bf16.mxu0 %v1911
        %2262 = vmatmul.mubr.bf16.gmra.mrb[0].mxu0 %v1895
        %v2263 = vpop.f32.mrb[0].mxu0
        %v2264 = vadd.f32 0.0, %v2263
        %v2265 = vpop.f32.mrb[0].mxu0
        %v2266 = vpop.f32.mrb[0].mxu0
        %v2267 = vadd.f32 0.0, %v2266
        %v2268 = vpop.f32.mrb[0].mxu0
        %2269 = vdwg.mxu0
        %2270 = vmatprep.subr.bf16.mxu0 0
        %2271 = vmatpush1.bf16.msra.mxu0 %v2077
        %2272 = vmatprep.subr.bf16.mxu0 0
        %2273 = vmatpush1.bf16.msra.mxu0 %v2078
        %2274 = vmatprep.subr.bf16.mxu0 0
        %2275 = vmatpush1.bf16.msra.mxu0 %v2079
        %2276 = vmatprep.subr.bf16.mxu0 0
        %2277 = vmatpush1.bf16.msra.mxu0 %v2080
        %2278 = vmatprep.subr.bf16.mxu0 0
        %2279 = vmatpush1.bf16.msra.mxu0 %v2081
        %2280 = vmatprep.subr.bf16.mxu0 0
        %2281 = vmatpush1.bf16.msra.mxu0 %v2082
        %2282 = vmatprep.subr.bf16.mxu0 0
        %2283 = vmatpush1.bf16.msra.mxu0 %v2083
        %2284 = vmatprep.subr.bf16.mxu0 0
        %2285 = vmatpush1.bf16.msra.mxu0 %v2084
        %2286 = vmatprep.subr.bf16.mxu0 0
        %2287 = vmatpush1.bf16.msra.mxu0 0
        %2288 = vmatprep.subr.bf16.mxu0 0
        %2289 = vmatpush1.bf16.msra.mxu0 0
        %2290 = vmatprep.subr.bf16.mxu0 0
        %2291 = vmatpush1.bf16.msra.mxu0 0
        %2292 = vmatprep.subr.bf16.mxu0 0
        %2293 = vmatpush1.bf16.msra.mxu0 0
        %2294 = vmatprep.subr.bf16.mxu0 0
        %2295 = vmatpush1.bf16.msra.mxu0 0
        %2296 = vmatprep.subr.bf16.mxu0 0
        %2297 = vmatpush1.bf16.msra.mxu0 0
        %2298 = vmatprep.subr.bf16.mxu0 0
        %2299 = vmatpush1.bf16.msra.mxu0 0
        %2300 = vmatprep.subr.bf16.mxu0 0
        %2301 = vmatpush1.bf16.msra.mxu0 0
        %2302 = vmatprep.mubr.bf16.mxu0 0
        %2303 = vmatmul.mubr.bf16.gmra.mrb[0].mxu0 %v781
        %v2304 = vpop.f32.mrb[0].mxu0
        %v2305 = vadd.f32 %v2144, %v2304
        %v2306 = vpop.f32.mrb[0].mxu0
        %v2307 = vpop.f32.mrb[0].mxu0
        %v2308 = vadd.f32 %v2147, %v2307
        %v2309 = vpop.f32.mrb[0].mxu0
        %2310 = vmatprep.mubr.bf16.mxu0 0
        %2311 = vmatmul.mubr.bf16.gmra.mrb[0].mxu0 %v784
        %v2312 = vpop.f32.mrb[0].mxu0
        %v2313 = vadd.f32 %v2152, %v2312
        %v2314 = vpop.f32.mrb[0].mxu0
        %v2315 = vpop.f32.mrb[0].mxu0
        %v2316 = vadd.f32 %v2155, %v2315
        %v2317 = vpop.f32.mrb[0].mxu0
        %2318 = vmatprep.mubr.bf16.mxu0 0
        %2319 = vmatmul.mubr.bf16.gmra.mrb[0].mxu0 %v787
        %v2320 = vpop.f32.mrb[0].mxu0
        %v2321 = vadd.f32 %v2160, %v2320
        %v2322 = vpop.f32.mrb[0].mxu0
        %v2323 = vpop.f32.mrb[0].mxu0
        %v2324 = vadd.f32 %v2163, %v2323
        %v2325 = vpop.f32.mrb[0].mxu0
        %2326 = vmatprep.mubr.bf16.mxu0 0
        %2327 = vmatmul.mubr.bf16.gmra.mrb[0].mxu0 %v790
        %v2328 = vpop.f32.mrb[0].mxu0
        %v2329 = vadd.f32 %v2168, %v2328
        %v2330 = vpop.f32.mrb[0].mxu0
        %v2331 = vpop.f32.mrb[0].mxu0
        %v2332 = vadd.f32 %v2171, %v2331
        %v2333 = vpop.f32.mrb[0].mxu0
        %2334 = vmatprep.mubr.bf16.mxu0 0
        %2335 = vmatmul.mubr.bf16.gmra.mrb[0].mxu0 %v793
        %v2336 = vpop.f32.mrb[0].mxu0
        %v2337 = vadd.f32 %v2176, %v2336
        %v2338 = vpop.f32.mrb[0].mxu0
        %v2339 = vpop.f32.mrb[0].mxu0
        %v2340 = vadd.f32 %v2179, %v2339
        %v2341 = vpop.f32.mrb[0].mxu0
        %2342 = vmatprep.mubr.bf16.mxu0 0
        %2343 = vmatmul.mubr.bf16.gmra.mrb[0].mxu0 %v796
        %v2344 = vpop.f32.mrb[0].mxu0
        %v2345 = vadd.f32 %v2184, %v2344
        %v2346 = vpop.f32.mrb[0].mxu0
        %v2347 = vpop.f32.mrb[0].mxu0
        %v2348 = vadd.f32 %v2187, %v2347
        %v2349 = vpop.f32.mrb[0].mxu0
        %2350 = vmatprep.mubr.bf16.mxu0 0
        %2351 = vmatmul.mubr.bf16.gmra.mrb[0].mxu0 %v799
        %v2352 = vpop.f32.mrb[0].mxu0
        %v2353 = vadd.f32 %v2192, %v2352
        %v2354 = vpop.f32.mrb[0].mxu0
        %v2355 = vpop.f32.mrb[0].mxu0
        %v2356 = vadd.f32 %v2195, %v2355
        %v2357 = vpop.f32.mrb[0].mxu0
        %2358 = vmatprep.mubr.bf16.mxu0 0
        %2359 = vmatmul.mubr.bf16.gmra.mrb[0].mxu0 %v802
        %v2360 = vpop.f32.mrb[0].mxu0
        %v2361 = vadd.f32 %v2200, %v2360
        %v2362 = vpop.f32.mrb[0].mxu0
        %v2363 = vpop.f32.mrb[0].mxu0
        %v2364 = vadd.f32 %v2203, %v2363
        %v2365 = vpop.f32.mrb[0].mxu0
        %2366 = vmatprep.mubr.bf16.mxu0 0
        %2367 = vmatmul.mubr.bf16.gmra.mrb[0].mxu0 %v805
        %v2368 = vpop.f32.mrb[0].mxu0
        %v2369 = vadd.f32 %v2208, %v2368
        %v2370 = vpop.f32.mrb[0].mxu0
        %v2371 = vpop.f32.mrb[0].mxu0
        %v2372 = vadd.f32 %v2211, %v2371
        %v2373 = vpop.f32.mrb[0].mxu0
        %2374 = vmatprep.mubr.bf16.mxu0 0
        %2375 = vmatmul.mubr.bf16.gmra.mrb[0].mxu0 %v808
        %v2376 = vpop.f32.mrb[0].mxu0
        %v2377 = vadd.f32 %v2216, %v2376
        %v2378 = vpop.f32.mrb[0].mxu0
        %v2379 = vpop.f32.mrb[0].mxu0
        %v2380 = vadd.f32 %v2219, %v2379
        %v2381 = vpop.f32.mrb[0].mxu0
        %2382 = vmatprep.mubr.bf16.mxu0 0
        %2383 = vmatmul.mubr.bf16.gmra.mrb[0].mxu0 %v811
        %v2384 = vpop.f32.mrb[0].mxu0
        %v2385 = vadd.f32 %v2224, %v2384
        %v2386 = vpop.f32.mrb[0].mxu0
        %v2387 = vpop.f32.mrb[0].mxu0
        %v2388 = vadd.f32 %v2227, %v2387
        %v2389 = vpop.f32.mrb[0].mxu0
        %2390 = vmatprep.mubr.bf16.mxu0 0
        %2391 = vmatmul.mubr.bf16.gmra.mrb[0].mxu0 %v814
        %v2392 = vpop.f32.mrb[0].mxu0
        %v2393 = vadd.f32 %v2232, %v2392
        %v2394 = vpop.f32.mrb[0].mxu0
        %v2395 = vpop.f32.mrb[0].mxu0
        %v2396 = vadd.f32 %v2235, %v2395
        %v2397 = vpop.f32.mrb[0].mxu0
        %2398 = vmatprep.mubr.bf16.mxu0 0
        %2399 = vmatmul.mubr.bf16.gmra.mrb[0].mxu0 %v817
        %v2400 = vpop.f32.mrb[0].mxu0
        %v2401 = vadd.f32 %v2240, %v2400
        %v2402 = vpop.f32.mrb[0].mxu0
        %v2403 = vpop.f32.mrb[0].mxu0
        %v2404 = vadd.f32 %v2243, %v2403
        %v2405 = vpop.f32.mrb[0].mxu0
        %2406 = vmatprep.mubr.bf16.mxu0 0
        %2407 = vmatmul.mubr.bf16.gmra.mrb[0].mxu0 %v820
        %v2408 = vpop.f32.mrb[0].mxu0
        %v2409 = vadd.f32 %v2248, %v2408
        %v2410 = vpop.f32.mrb[0].mxu0
        %v2411 = vpop.f32.mrb[0].mxu0
        %v2412 = vadd.f32 %v2251, %v2411
        %v2413 = vpop.f32.mrb[0].mxu0
        %2414 = vmatprep.mubr.bf16.mxu0 0
        %2415 = vmatmul.mubr.bf16.gmra.mrb[0].mxu0 %v909
        %v2416 = vpop.f32.mrb[0].mxu0
        %v2417 = vadd.f32 %v2256, %v2416
        %v2418 = vpop.f32.mrb[0].mxu0
        %v2419 = vpop.f32.mrb[0].mxu0
        %v2420 = vadd.f32 %v2259, %v2419
        %v2421 = vpop.f32.mrb[0].mxu0
        %2422 = vmatprep.mubr.bf16.mxu0 0
        %2423 = vmatmul.mubr.bf16.gmra.mrb[0].mxu0 %v1915
        %v2424 = vpop.f32.mrb[0].mxu0
        %v2425 = vadd.f32 %v2264, %v2424
        %v2426 = vpop.f32.mrb[0].mxu0
        %v2427 = vpop.f32.mrb[0].mxu0
        %v2428 = vadd.f32 %v2267, %v2427
        %v2429 = vpop.f32.mrb[0].mxu0
        %2430 = vdwg.mxu0
        %v2431 = vadd.f32 %v1765, %v2305
        %v2432 = vadd.f32 %v1768, %v2308
        %v2433 = vadd.f32 %v1773, %v2313
        %v2434 = vadd.f32 %v1776, %v2316
        %v2435 = vadd.f32 %v1781, %v2321
        %v2436 = vadd.f32 %v1784, %v2324
        %v2437 = vadd.f32 %v1789, %v2329
        %v2438 = vadd.f32 %v1792, %v2332
        %v2439 = vadd.f32 %v1797, %v2337
        %v2440 = vadd.f32 %v1800, %v2340
        %v2441 = vadd.f32 %v1805, %v2345
        %v2442 = vadd.f32 %v1808, %v2348
        %v2443 = vadd.f32 %v1813, %v2353
        %v2444 = vadd.f32 %v1816, %v2356
        %v2445 = vadd.f32 %v1821, %v2361
        %v2446 = vadd.f32 %v1824, %v2364
        %v2447 = vadd.f32 %v1829, %v2369
        %v2448 = vadd.f32 %v1832, %v2372
        %v2449 = vadd.f32 %v1837, %v2377
        %v2450 = vadd.f32 %v1840, %v2380
        %v2451 = vadd.f32 %v1845, %v2385
        %v2452 = vadd.f32 %v1848, %v2388
        %v2453 = vadd.f32 %v1853, %v2393
        %v2454 = vadd.f32 %v1856, %v2396
        %v2455 = vadd.f32 %v1861, %v2401
        %v2456 = vadd.f32 %v1864, %v2404
        %v2457 = vadd.f32 %v1869, %v2409
        %v2458 = vadd.f32 %v1872, %v2412
        %v2459 = vadd.f32 %v1877, %v2417
        %v2460 = vadd.f32 %v1880, %v2420
        %v2461 = vadd.f32 %v1885, %v2425
        %v2462 = vadd.f32 %v1888, %v2428
        %v2463 = vld [vmem:[#allocation9] sm:$0x1]
        %v2465 = vlaneseq
        %v2466 = vshrl.u32 %v2465, 7
        %v2467 = vsub.s32 0, %v2466
        %v2468 = vrot.slane %v2463, %v2467
        %v2470 = vadd.f32 %v2431, %v2468
        %v2471 = vadd.f32 %v2432, %v2468
        %v2472 = vadd.f32 %v2433, %v2468
        %v2473 = vadd.f32 %v2434, %v2468
        %v2474 = vadd.f32 %v2435, %v2468
        %v2475 = vadd.f32 %v2436, %v2468
        %v2476 = vadd.f32 %v2437, %v2468
        %v2477 = vadd.f32 %v2438, %v2468
        %v2478 = vadd.f32 %v2439, %v2468
        %v2479 = vadd.f32 %v2440, %v2468
        %v2480 = vadd.f32 %v2441, %v2468
        %v2481 = vadd.f32 %v2442, %v2468
        %v2482 = vadd.f32 %v2443, %v2468
        %v2483 = vadd.f32 %v2444, %v2468
        %v2484 = vadd.f32 %v2445, %v2468
        %v2485 = vadd.f32 %v2446, %v2468
        %v2486 = vadd.f32 %v2447, %v2468
        %v2487 = vadd.f32 %v2448, %v2468
        %v2488 = vadd.f32 %v2449, %v2468
        %v2489 = vadd.f32 %v2450, %v2468
        %v2490 = vadd.f32 %v2451, %v2468
        %v2491 = vadd.f32 %v2452, %v2468
        %v2492 = vadd.f32 %v2453, %v2468
        %v2493 = vadd.f32 %v2454, %v2468
        %v2494 = vadd.f32 %v2455, %v2468
        %v2495 = vadd.f32 %v2456, %v2468
        %v2496 = vadd.f32 %v2457, %v2468
        %v2497 = vadd.f32 %v2458, %v2468
        %v2498 = vadd.f32 %v2459, %v2468
        %v2499 = vadd.f32 %v2460, %v2468
        %v2500 = vadd.f32 %v2461, %v2468
        %v2501 = vadd.f32 %v2462, %v2468
        %v2502 = vmax.f32 %v2470, 0.0
        %v2503 = vmax.f32 %v2471, 0.0
        %v2504 = vmax.f32 %v2472, 0.0
        %v2505 = vmax.f32 %v2473, 0.0
        %v2506 = vmax.f32 %v2474, 0.0
        %v2507 = vmax.f32 %v2475, 0.0
        %v2508 = vmax.f32 %v2476, 0.0
        %v2509 = vmax.f32 %v2477, 0.0
        %v2510 = vmax.f32 %v2478, 0.0
        %v2511 = vmax.f32 %v2479, 0.0
        %v2512 = vmax.f32 %v2480, 0.0
        %v2513 = vmax.f32 %v2481, 0.0
        %v2514 = vmax.f32 %v2482, 0.0
        %v2515 = vmax.f32 %v2483, 0.0
        %v2516 = vmax.f32 %v2484, 0.0
        %v2517 = vmax.f32 %v2485, 0.0
        %v2518 = vmax.f32 %v2486, 0.0
        %v2519 = vmax.f32 %v2487, 0.0
        %v2520 = vmax.f32 %v2488, 0.0
        %v2521 = vmax.f32 %v2489, 0.0
        %v2522 = vmax.f32 %v2490, 0.0
        %v2523 = vmax.f32 %v2491, 0.0
        %v2524 = vmax.f32 %v2492, 0.0
        %v2525 = vmax.f32 %v2493, 0.0
        %v2526 = vmax.f32 %v2494, 0.0
        %v2527 = vmax.f32 %v2495, 0.0
        %v2528 = vmax.f32 %v2496, 0.0
        %v2529 = vmax.f32 %v2497, 0.0
        %v2530 = vmax.f32 %v2498, 0.0
        %v2531 = vmax.f32 %v2499, 0.0
        %v2532 = vmax.f32 %v2500, 0.0
        %v2533 = vmax.f32 %v2501, 0.0
        %v2534 = vpack.c.bf16 %v2503, %v2502
        %v2535 = vpack.c.bf16 %v2505, %v2504
        %v2536 = vpack.c.bf16 %v2507, %v2506
        %v2537 = vpack.c.bf16 %v2509, %v2508
        %v2538 = vpack.c.bf16 %v2511, %v2510
        %v2539 = vpack.c.bf16 %v2513, %v2512
        %v2540 = vpack.c.bf16 %v2515, %v2514
        %v2541 = vpack.c.bf16 %v2517, %v2516
        %v2542 = vpack.c.bf16 %v2519, %v2518
        %v2543 = vpack.c.bf16 %v2521, %v2520
        %v2544 = vpack.c.bf16 %v2523, %v2522
        %v2545 = vpack.c.bf16 %v2525, %v2524
        %v2546 = vpack.c.bf16 %v2527, %v2526
        %v2547 = vpack.c.bf16 %v2529, %v2528
        %v2548 = vpack.c.bf16 %v2531, %v2530
        %v2549 = vpack.c.bf16 %v2533, %v2532
        %2550 = vst [vmem:[#allocation2] sm:$0xf] 0
        %2551 = vst [vmem:[#allocation2 + $0x4] sm:$0xf] 0
        %2552 = vst [vmem:[#allocation2 + $0x8] sm:$0x1] 0
        %s2553 = scalar_lea.vmem [#allocation2], 204
        %2554 = vst [vmem:[%s2553] sm:$0xf] 0
        %2555 = vst [vmem:[%s2553 + $0x4] sm:$0xf] 0
        %2556 = vst [vmem:[%s2553 + $0x8] sm:$0x1] 0
        %vm2557 = vcmask 1040384
        %vm2558 = vsmask.f32 256
        %vm2559 = vmand %vm2557, %vm2558
        %v2560 = vld [vmem:[#allocation2] sm:$0x1]
        %v2561 = vsel %vm2559, 0, %v2560
        %2562 = vst [vmem:[#allocation2] sm:$0x1] %v2561
        %v2563 = vld [vmem:[#allocation2 + $0xc] sm:$0x1]
        %v2564 = vsel %vm2559, 0, %v2563
        %2565 = vst [vmem:[#allocation2 + $0xc] sm:$0x1] %v2564
        %v2566 = vld [vmem:[#allocation2 + $0x18] sm:$0x1]
        %v2567 = vsel %vm2559, 0, %v2566
        %2568 = vst [vmem:[#allocation2 + $0x18] sm:$0x1] %v2567
        %v2569 = vld [vmem:[#allocation2 + $0x24] sm:$0x1]
        %v2570 = vsel %vm2559, 0, %v2569
        %2571 = vst [vmem:[#allocation2 + $0x24] sm:$0x1] %v2570
        %v2572 = vld [vmem:[#allocation2 + $0x30] sm:$0x1]
        %v2573 = vsel %vm2559, 0, %v2572
        %2574 = vst [vmem:[#allocation2 + $0x30] sm:$0x1] %v2573
        %v2575 = vld [vmem:[#allocation2 + $0x3c] sm:$0x1]
        %v2576 = vsel %vm2559, 0, %v2575
        %2577 = vst [vmem:[#allocation2 + $0x3c] sm:$0x1] %v2576
        %v2578 = vld [vmem:[#allocation2 + $0x48] sm:$0x1]
        %v2579 = vsel %vm2559, 0, %v2578
        %2580 = vst [vmem:[#allocation2 + $0x48] sm:$0x1] %v2579
        %v2581 = vld [vmem:[#allocation2 + $0x54] sm:$0x1]
        %v2582 = vsel %vm2559, 0, %v2581
        %2583 = vst [vmem:[#allocation2 + $0x54] sm:$0x1] %v2582
        %v2584 = vld [vmem:[#allocation2 + $0x60] sm:$0x1]
        %v2585 = vsel %vm2559, 0, %v2584
        %2586 = vst [vmem:[#allocation2 + $0x60] sm:$0x1] %v2585
        %v2587 = vld [vmem:[#allocation2 + $0x6c] sm:$0x1]
        %v2588 = vsel %vm2559, 0, %v2587
        %2589 = vst [vmem:[#allocation2 + $0x6c] sm:$0x1] %v2588
        %v2590 = vld [vmem:[#allocation2 + $0x78] sm:$0x1]
        %v2591 = vsel %vm2559, 0, %v2590
        %2592 = vst [vmem:[#allocation2 + $0x78] sm:$0x1] %v2591
        %v2593 = vld [vmem:[#allocation2 + $0x84] sm:$0x1]
        %v2594 = vsel %vm2559, 0, %v2593
        %2595 = vst [vmem:[#allocation2 + $0x84] sm:$0x1] %v2594
        %v2596 = vld [vmem:[#allocation2 + $0x90] sm:$0x1]
        %v2597 = vsel %vm2559, 0, %v2596
        %2598 = vst [vmem:[#allocation2 + $0x90] sm:$0x1] %v2597
        %v2599 = vld [vmem:[#allocation2 + $0x9c] sm:$0x1]
        %v2600 = vsel %vm2559, 0, %v2599
        %2601 = vst [vmem:[#allocation2 + $0x9c] sm:$0x1] %v2600
        %v2602 = vld [vmem:[#allocation2 + $0xa8] sm:$0x1]
        %v2603 = vsel %vm2559, 0, %v2602
        %2604 = vst [vmem:[#allocation2 + $0xa8] sm:$0x1] %v2603
        %v2605 = vld [vmem:[#allocation2 + $0xb4] sm:$0x1]
        %v2606 = vsel %vm2559, 0, %v2605
        %2607 = vst [vmem:[#allocation2 + $0xb4] sm:$0x1] %v2606
        %v2608 = vld [vmem:[#allocation2 + $0xc0] sm:$0x1]
        %v2609 = vsel %vm2559, 0, %v2608
        %2610 = vst [vmem:[#allocation2 + $0xc0] sm:$0x1] %v2609
        %v2611 = vld [vmem:[#allocation2 + $0xcc] sm:$0x1]
        %v2612 = vsel %vm2559, 0, %v2611
        %2613 = vst [vmem:[#allocation2 + $0xcc] sm:$0x1] %v2612
        %vm2614 = vsmask.f32 7938
        %vm2615 = vmand %vm2557, %vm2614
        %v2616 = vld [vmem:[#allocation2 + $0x8] sm:$0x1]
        %v2617 = vsel %vm2615, 0, %v2616
        %2618 = vst [vmem:[#allocation2 + $0x8] sm:$0x1] %v2617
        %v2619 = vld [vmem:[#allocation2 + $0x14] sm:$0x1]
        %v2620 = vsel %vm2615, 0, %v2619
        %2621 = vst [vmem:[#allocation2 + $0x14] sm:$0x1] %v2620
        %v2622 = vld [vmem:[#allocation2 + $0x20] sm:$0x1]
        %v2623 = vsel %vm2615, 0, %v2622
        %2624 = vst [vmem:[#allocation2 + $0x20] sm:$0x1] %v2623
        %v2625 = vld [vmem:[#allocation2 + $0x2c] sm:$0x1]
        %v2626 = vsel %vm2615, 0, %v2625
        %2627 = vst [vmem:[#allocation2 + $0x2c] sm:$0x1] %v2626
        %v2628 = vld [vmem:[#allocation2 + $0x38] sm:$0x1]
        %v2629 = vsel %vm2615, 0, %v2628
        %2630 = vst [vmem:[#allocation2 + $0x38] sm:$0x1] %v2629
        %v2631 = vld [vmem:[#allocation2 + $0x44] sm:$0x1]
        %v2632 = vsel %vm2615, 0, %v2631
        %2633 = vst [vmem:[#allocation2 + $0x44] sm:$0x1] %v2632
        %v2634 = vld [vmem:[#allocation2 + $0x50] sm:$0x1]
        %v2635 = vsel %vm2615, 0, %v2634
        %2636 = vst [vmem:[#allocation2 + $0x50] sm:$0x1] %v2635
        %v2637 = vld [vmem:[#allocation2 + $0x5c] sm:$0x1]
        %v2638 = vsel %vm2615, 0, %v2637
        %2639 = vst [vmem:[#allocation2 + $0x5c] sm:$0x1] %v2638
        %v2640 = vld [vmem:[#allocation2 + $0x68] sm:$0x1]
        %v2641 = vsel %vm2615, 0, %v2640
        %2642 = vst [vmem:[#allocation2 + $0x68] sm:$0x1] %v2641
        %v2643 = vld [vmem:[#allocation2 + $0x74] sm:$0x1]
        %v2644 = vsel %vm2615, 0, %v2643
        %2645 = vst [vmem:[#allocation2 + $0x74] sm:$0x1] %v2644
        %v2646 = vld [vmem:[#allocation2 + $0x80] sm:$0x1]
        %v2647 = vsel %vm2615, 0, %v2646
        %2648 = vst [vmem:[#allocation2 + $0x80] sm:$0x1] %v2647
        %v2649 = vld [vmem:[#allocation2 + $0x8c] sm:$0x1]
        %v2650 = vsel %vm2615, 0, %v2649
        %2651 = vst [vmem:[#allocation2 + $0x8c] sm:$0x1] %v2650
        %v2652 = vld [vmem:[#allocation2 + $0x98] sm:$0x1]
        %v2653 = vsel %vm2615, 0, %v2652
        %2654 = vst [vmem:[#allocation2 + $0x98] sm:$0x1] %v2653
        %v2655 = vld [vmem:[#allocation2 + $0xa4] sm:$0x1]
        %v2656 = vsel %vm2615, 0, %v2655
        %2657 = vst [vmem:[#allocation2 + $0xa4] sm:$0x1] %v2656
        %v2658 = vld [vmem:[#allocation2 + $0xb0] sm:$0x1]
        %v2659 = vsel %vm2615, 0, %v2658
        %2660 = vst [vmem:[#allocation2 + $0xb0] sm:$0x1] %v2659
        %v2661 = vld [vmem:[#allocation2 + $0xbc] sm:$0x1]
        %v2662 = vsel %vm2615, 0, %v2661
        %2663 = vst [vmem:[#allocation2 + $0xbc] sm:$0x1] %v2662
        %v2664 = vld [vmem:[#allocation2 + $0xc8] sm:$0x1]
        %v2665 = vsel %vm2615, 0, %v2664
        %2666 = vst [vmem:[#allocation2 + $0xc8] sm:$0x1] %v2665
        %v2667 = vld [vmem:[#allocation2 + $0xd4] sm:$0x1]
        %v2668 = vsel %vm2615, 0, %v2667
        %2669 = vst [vmem:[#allocation2 + $0xd4] sm:$0x1] %v2668
        %v2686 = vunpack.c.l.b16 %v2534
        %v2687 = vunpack.c.h.b16 %v2534
        %v2688 = vunpack.c.l.b16 %v2535
        %v2689 = vunpack.c.h.b16 %v2535
        %v2690 = vunpack.c.l.b16 %v2536
        %v2691 = vunpack.c.h.b16 %v2536
        %v2692 = vunpack.c.l.b16 %v2537
        %v2693 = vunpack.c.h.b16 %v2537
        %v2694 = vunpack.c.l.b16 %v2538
        %v2695 = vunpack.c.h.b16 %v2538
        %v2696 = vunpack.c.l.b16 %v2539
        %v2697 = vunpack.c.h.b16 %v2539
        %v2698 = vunpack.c.l.b16 %v2540
        %v2699 = vunpack.c.h.b16 %v2540
        %v2700 = vunpack.c.l.b16 %v2541
        %v2701 = vunpack.c.h.b16 %v2541
        %v2702 = vunpack.c.l.b16 %v2542
        %v2703 = vunpack.c.h.b16 %v2542
        %v2704 = vunpack.c.l.b16 %v2543
        %v2705 = vunpack.c.h.b16 %v2543
        %v2706 = vunpack.c.l.b16 %v2544
        %v2707 = vunpack.c.h.b16 %v2544
        %v2708 = vunpack.c.l.b16 %v2545
        %v2709 = vunpack.c.h.b16 %v2545
        %v2710 = vunpack.c.l.b16 %v2546
        %v2711 = vunpack.c.h.b16 %v2546
        %v2712 = vunpack.c.l.b16 %v2547
        %v2713 = vunpack.c.h.b16 %v2547
        %v2714 = vunpack.c.l.b16 %v2548
        %v2715 = vunpack.c.h.b16 %v2548
        %v2716 = vunpack.c.l.b16 %v2549
        %v2717 = vunpack.c.h.b16 %v2549
        %v2718 = vpack.c.b16 %v2686, %v2686
        %v2719 = vpack.c.b16 %v2687, %v2687
        %v2720 = vpack.c.b16 %v2688, %v2688
        %v2721 = vpack.c.b16 %v2689, %v2689
        %v2722 = vpack.c.b16 %v2690, %v2690
        %v2723 = vpack.c.b16 %v2691, %v2691
        %v2724 = vpack.c.b16 %v2692, %v2692
        %v2725 = vpack.c.b16 %v2693, %v2693
        %v2726 = vpack.c.b16 %v2694, %v2694
        %v2727 = vpack.c.b16 %v2695, %v2695
        %v2728 = vpack.c.b16 %v2696, %v2696
        %v2729 = vpack.c.b16 %v2697, %v2697
        %v2730 = vpack.c.b16 %v2698, %v2698
        %v2731 = vpack.c.b16 %v2699, %v2699
        %v2732 = vpack.c.b16 %v2700, %v2700
        %v2733 = vpack.c.b16 %v2701, %v2701
        %v2734 = vpack.c.b16 %v2702, %v2702
        %v2735 = vpack.c.b16 %v2703, %v2703
        %v2736 = vpack.c.b16 %v2704, %v2704
        %v2737 = vpack.c.b16 %v2705, %v2705
        %v2738 = vpack.c.b16 %v2706, %v2706
        %v2739 = vpack.c.b16 %v2707, %v2707
        %v2740 = vpack.c.b16 %v2708, %v2708
        %v2741 = vpack.c.b16 %v2709, %v2709
        %v2742 = vpack.c.b16 %v2710, %v2710
        %v2743 = vpack.c.b16 %v2711, %v2711
        %v2744 = vpack.c.b16 %v2712, %v2712
        %v2745 = vpack.c.b16 %v2713, %v2713
        %v2746 = vpack.c.b16 %v2714, %v2714
        %v2747 = vpack.c.b16 %v2715, %v2715
        %v2748 = vpack.c.b16 %v2716, %v2716
        %v2749 = vpack.c.b16 %v2717, %v2717
        %vm2750 = vsmask.f32 4368
        %vm2751 = vmor %vm2558, %vm2750
        %v2753 = vshrl.u32 %v2718, 16
        %v2755 = vrot.slane %v2753, 7
        %v2756 = vshll.u32 %v2718, 16
        %v2758 = vor.u32 %v2755, %v2756
        %v2759 = vrot.slane %v2755, 4
        %v2761 = vshrl.u32 %v2719, 16
        %v2763 = vrot.slane %v2761, 7
        %v2764 = vshll.u32 %v2719, 16
        %v2766 = vor.u32 %v2763, %v2764
        %v2767 = vsel %vm2751, %v2759, %v2766
        %v2768 = vrot.slane %v2763, 4
        %v2770 = vshrl.u32 %v2720, 16
        %v2772 = vrot.slane %v2770, 7
        %v2773 = vshll.u32 %v2720, 16
        %v2775 = vor.u32 %v2772, %v2773
        %v2776 = vrot.slane %v2772, 4
        %v2778 = vshrl.u32 %v2721, 16
        %v2780 = vrot.slane %v2778, 7
        %v2781 = vshll.u32 %v2721, 16
        %v2783 = vor.u32 %v2780, %v2781
        %v2784 = vsel %vm2751, %v2776, %v2783
        %v2785 = vrot.slane %v2780, 4
        %v2787 = vshrl.u32 %v2722, 16
        %v2789 = vrot.slane %v2787, 7
        %v2790 = vshll.u32 %v2722, 16
        %v2792 = vor.u32 %v2789, %v2790
        %v2793 = vrot.slane %v2789, 4
        %v2795 = vshrl.u32 %v2723, 16
        %v2797 = vrot.slane %v2795, 7
        %v2798 = vshll.u32 %v2723, 16
        %v2800 = vor.u32 %v2797, %v2798
        %v2801 = vsel %vm2751, %v2793, %v2800
        %v2802 = vrot.slane %v2797, 4
        %v2804 = vshrl.u32 %v2724, 16
        %v2806 = vrot.slane %v2804, 7
        %v2807 = vshll.u32 %v2724, 16
        %v2809 = vor.u32 %v2806, %v2807
        %v2810 = vrot.slane %v2806, 4
        %v2812 = vshrl.u32 %v2725, 16
        %v2814 = vrot.slane %v2812, 7
        %v2815 = vshll.u32 %v2725, 16
        %v2817 = vor.u32 %v2814, %v2815
        %v2818 = vsel %vm2751, %v2810, %v2817
        %v2819 = vrot.slane %v2814, 4
        %v2821 = vshrl.u32 %v2726, 16
        %v2823 = vrot.slane %v2821, 7
        %v2824 = vshll.u32 %v2726, 16
        %v2826 = vor.u32 %v2823, %v2824
        %v2827 = vrot.slane %v2823, 4
        %v2829 = vshrl.u32 %v2727, 16
        %v2831 = vrot.slane %v2829, 7
        %v2832 = vshll.u32 %v2727, 16
        %v2834 = vor.u32 %v2831, %v2832
        %v2835 = vsel %vm2751, %v2827, %v2834
        %v2836 = vrot.slane %v2831, 4
        %v2838 = vshrl.u32 %v2728, 16
        %v2840 = vrot.slane %v2838, 7
        %v2841 = vshll.u32 %v2728, 16
        %v2843 = vor.u32 %v2840, %v2841
        %v2844 = vrot.slane %v2840, 4
        %v2846 = vshrl.u32 %v2729, 16
        %v2848 = vrot.slane %v2846, 7
        %v2849 = vshll.u32 %v2729, 16
        %v2851 = vor.u32 %v2848, %v2849
        %v2852 = vsel %vm2751, %v2844, %v2851
        %v2853 = vrot.slane %v2848, 4
        %v2855 = vshrl.u32 %v2730, 16
        %v2857 = vrot.slane %v2855, 7
        %v2858 = vshll.u32 %v2730, 16
        %v2860 = vor.u32 %v2857, %v2858
        %v2861 = vrot.slane %v2857, 4
        %v2863 = vshrl.u32 %v2731, 16
        %v2865 = vrot.slane %v2863, 7
        %v2866 = vshll.u32 %v2731, 16
        %v2868 = vor.u32 %v2865, %v2866
        %v2869 = vsel %vm2751, %v2861, %v2868
        %v2870 = vrot.slane %v2865, 4
        %v2872 = vshrl.u32 %v2732, 16
        %v2874 = vrot.slane %v2872, 7
        %v2875 = vshll.u32 %v2732, 16
        %v2877 = vor.u32 %v2874, %v2875
        %v2878 = vrot.slane %v2874, 4
        %v2880 = vshrl.u32 %v2733, 16
        %v2882 = vrot.slane %v2880, 7
        %v2883 = vshll.u32 %v2733, 16
        %v2885 = vor.u32 %v2882, %v2883
        %v2886 = vsel %vm2751, %v2878, %v2885
        %v2887 = vrot.slane %v2882, 4
        %v2889 = vshrl.u32 %v2734, 16
        %v2891 = vrot.slane %v2889, 7
        %v2892 = vshll.u32 %v2734, 16
        %v2894 = vor.u32 %v2891, %v2892
        %v2895 = vrot.slane %v2891, 4
        %v2897 = vshrl.u32 %v2735, 16
        %v2899 = vrot.slane %v2897, 7
        %v2900 = vshll.u32 %v2735, 16
        %v2902 = vor.u32 %v2899, %v2900
        %v2903 = vsel %vm2751, %v2895, %v2902
        %v2904 = vrot.slane %v2899, 4
        %v2906 = vshrl.u32 %v2736, 16
        %v2908 = vrot.slane %v2906, 7
        %v2909 = vshll.u32 %v2736, 16
        %v2911 = vor.u32 %v2908, %v2909
        %v2912 = vrot.slane %v2908, 4
        %v2914 = vshrl.u32 %v2737, 16
        %v2916 = vrot.slane %v2914, 7
        %v2917 = vshll.u32 %v2737, 16
        %v2919 = vor.u32 %v2916, %v2917
        %v2920 = vsel %vm2751, %v2912, %v2919
        %v2921 = vrot.slane %v2916, 4
        %v2923 = vshrl.u32 %v2738, 16
        %v2925 = vrot.slane %v2923, 7
        %v2926 = vshll.u32 %v2738, 16
        %v2928 = vor.u32 %v2925, %v2926
        %v2929 = vrot.slane %v2925, 4
        %v2931 = vshrl.u32 %v2739, 16
        %v2933 = vrot.slane %v2931, 7
        %v2934 = vshll.u32 %v2739, 16
        %v2936 = vor.u32 %v2933, %v2934
        %v2937 = vsel %vm2751, %v2929, %v2936
        %v2938 = vrot.slane %v2933, 4
        %v2940 = vshrl.u32 %v2740, 16
        %v2942 = vrot.slane %v2940, 7
        %v2943 = vshll.u32 %v2740, 16
        %v2945 = vor.u32 %v2942, %v2943
        %v2946 = vrot.slane %v2942, 4
        %v2948 = vshrl.u32 %v2741, 16
        %v2950 = vrot.slane %v2948, 7
        %v2951 = vshll.u32 %v2741, 16
        %v2953 = vor.u32 %v2950, %v2951
        %v2954 = vsel %vm2751, %v2946, %v2953
        %v2955 = vrot.slane %v2950, 4
        %v2957 = vshrl.u32 %v2742, 16
        %v2959 = vrot.slane %v2957, 7
        %v2960 = vshll.u32 %v2742, 16
        %v2962 = vor.u32 %v2959, %v2960
        %v2963 = vrot.slane %v2959, 4
        %v2965 = vshrl.u32 %v2743, 16
        %v2967 = vrot.slane %v2965, 7
        %v2968 = vshll.u32 %v2743, 16
        %v2970 = vor.u32 %v2967, %v2968
        %v2971 = vsel %vm2751, %v2963, %v2970
        %v2972 = vrot.slane %v2967, 4
        %v2974 = vshrl.u32 %v2744, 16
        %v2976 = vrot.slane %v2974, 7
        %v2977 = vshll.u32 %v2744, 16
        %v2979 = vor.u32 %v2976, %v2977
        %v2980 = vrot.slane %v2976, 4
        %v2982 = vshrl.u32 %v2745, 16
        %v2984 = vrot.slane %v2982, 7
        %v2985 = vshll.u32 %v2745, 16
        %v2987 = vor.u32 %v2984, %v2985
        %v2988 = vsel %vm2751, %v2980, %v2987
        %v2989 = vrot.slane %v2984, 4
        %v2991 = vshrl.u32 %v2746, 16
        %v2993 = vrot.slane %v2991, 7
        %v2994 = vshll.u32 %v2746, 16
        %v2996 = vor.u32 %v2993, %v2994
        %v2997 = vrot.slane %v2993, 4
        %v2999 = vshrl.u32 %v2747, 16
        %v3001 = vrot.slane %v2999, 7
        %v3002 = vshll.u32 %v2747, 16
        %v3004 = vor.u32 %v3001, %v3002
        %v3005 = vsel %vm2751, %v2997, %v3004
        %v3006 = vrot.slane %v3001, 4
        %v3008 = vshrl.u32 %v2748, 16
        %v3010 = vrot.slane %v3008, 7
        %v3011 = vshll.u32 %v2748, 16
        %v3013 = vor.u32 %v3010, %v3011
        %v3014 = vrot.slane %v3010, 4
        %v3016 = vshrl.u32 %v2749, 16
        %v3018 = vrot.slane %v3016, 7
        %v3019 = vshll.u32 %v2749, 16
        %v3021 = vor.u32 %v3018, %v3019
        %v3022 = vsel %vm2751, %v3014, %v3021
        %v3023 = vrot.slane %v3018, 4
        %s3072 = scalar_lea.vmem [#allocation2], 12
        %vm3073 = vcmask 1043456
        %vm3074 = vmand %vm3073, %vm2614
        %v3075 = vld [vmem:[%s3072] sm:$0xf]
        %v3076 = vsel %vm3074, %v2758, %v3075
        %3077 = vst [vmem:[%s3072] sm:$0xf] %v3076
        %3078 = vst [vmem:[%s3072 + $0x4] sm:$0xf] %v2767
        %v3079 = vld [vmem:[%s3072 + $0x8] sm:$0x1]
        %v3080 = vsel %vm2559, %v2768, %v3079
        %3081 = vst [vmem:[%s3072 + $0x8] sm:$0x1] %v3080
        %v3082 = vld [vmem:[%s3072 + $0xc] sm:$0xf]
        %v3083 = vsel %vm3074, %v2775, %v3082
        %3084 = vst [vmem:[%s3072 + $0xc] sm:$0xf] %v3083
        %3085 = vst [vmem:[%s3072 + $0x10] sm:$0xf] %v2784
        %v3086 = vld [vmem:[%s3072 + $0x14] sm:$0x1]
        %v3087 = vsel %vm2559, %v2785, %v3086
        %3088 = vst [vmem:[%s3072 + $0x14] sm:$0x1] %v3087
        %v3089 = vld [vmem:[%s3072 + $0x18] sm:$0xf]
        %v3090 = vsel %vm3074, %v2792, %v3089
        %3091 = vst [vmem:[%s3072 + $0x18] sm:$0xf] %v3090
        %3092 = vst [vmem:[%s3072 + $0x1c] sm:$0xf] %v2801
        %v3093 = vld [vmem:[%s3072 + $0x20] sm:$0x1]
        %v3094 = vsel %vm2559, %v2802, %v3093
        %3095 = vst [vmem:[%s3072 + $0x20] sm:$0x1] %v3094
        %v3096 = vld [vmem:[%s3072 + $0x24] sm:$0xf]
        %v3097 = vsel %vm3074, %v2809, %v3096
        %3098 = vst [vmem:[%s3072 + $0x24] sm:$0xf] %v3097
        %3099 = vst [vmem:[%s3072 + $0x28] sm:$0xf] %v2818
        %v3100 = vld [vmem:[%s3072 + $0x2c] sm:$0x1]
        %v3101 = vsel %vm2559, %v2819, %v3100
        %3102 = vst [vmem:[%s3072 + $0x2c] sm:$0x1] %v3101
        %v3103 = vld [vmem:[%s3072 + $0x30] sm:$0xf]
        %v3104 = vsel %vm3074, %v2826, %v3103
        %3105 = vst [vmem:[%s3072 + $0x30] sm:$0xf] %v3104
        %3106 = vst [vmem:[%s3072 + $0x34] sm:$0xf] %v2835
        %v3107 = vld [vmem:[%s3072 + $0x38] sm:$0x1]
        %v3108 = vsel %vm2559, %v2836, %v3107
        %3109 = vst [vmem:[%s3072 + $0x38] sm:$0x1] %v3108
        %v3110 = vld [vmem:[%s3072 + $0x3c] sm:$0xf]
        %v3111 = vsel %vm3074, %v2843, %v3110
        %3112 = vst [vmem:[%s3072 + $0x3c] sm:$0xf] %v3111
        %3113 = vst [vmem:[%s3072 + $0x40] sm:$0xf] %v2852
        %v3114 = vld [vmem:[%s3072 + $0x44] sm:$0x1]
        %v3115 = vsel %vm2559, %v2853, %v3114
        %3116 = vst [vmem:[%s3072 + $0x44] sm:$0x1] %v3115
        %v3117 = vld [vmem:[%s3072 + $0x48] sm:$0xf]
        %v3118 = vsel %vm3074, %v2860, %v3117
        %3119 = vst [vmem:[%s3072 + $0x48] sm:$0xf] %v3118
        %3120 = vst [vmem:[%s3072 + $0x4c] sm:$0xf] %v2869
        %v3121 = vld [vmem:[%s3072 + $0x50] sm:$0x1]
        %v3122 = vsel %vm2559, %v2870, %v3121
        %3123 = vst [vmem:[%s3072 + $0x50] sm:$0x1] %v3122
        %v3124 = vld [vmem:[%s3072 + $0x54] sm:$0xf]
        %v3125 = vsel %vm3074, %v2877, %v3124
        %3126 = vst [vmem:[%s3072 + $0x54] sm:$0xf] %v3125
        %3127 = vst [vmem:[%s3072 + $0x58] sm:$0xf] %v2886
        %v3128 = vld [vmem:[%s3072 + $0x5c] sm:$0x1]
        %v3129 = vsel %vm2559, %v2887, %v3128
        %3130 = vst [vmem:[%s3072 + $0x5c] sm:$0x1] %v3129
        %v3131 = vld [vmem:[%s3072 + $0x60] sm:$0xf]
        %v3132 = vsel %vm3074, %v2894, %v3131
        %3133 = vst [vmem:[%s3072 + $0x60] sm:$0xf] %v3132
        %3134 = vst [vmem:[%s3072 + $0x64] sm:$0xf] %v2903
        %v3135 = vld [vmem:[%s3072 + $0x68] sm:$0x1]
        %v3136 = vsel %vm2559, %v2904, %v3135
        %3137 = vst [vmem:[%s3072 + $0x68] sm:$0x1] %v3136
        %v3138 = vld [vmem:[%s3072 + $0x6c] sm:$0xf]
        %v3139 = vsel %vm3074, %v2911, %v3138
        %3140 = vst [vmem:[%s3072 + $0x6c] sm:$0xf] %v3139
        %3141 = vst [vmem:[%s3072 + $0x70] sm:$0xf] %v2920
        %v3142 = vld [vmem:[%s3072 + $0x74] sm:$0x1]
        %v3143 = vsel %vm2559, %v2921, %v3142
        %3144 = vst [vmem:[%s3072 + $0x74] sm:$0x1] %v3143
        %v3145 = vld [vmem:[%s3072 + $0x78] sm:$0xf]
        %v3146 = vsel %vm3074, %v2928, %v3145
        %3147 = vst [vmem:[%s3072 + $0x78] sm:$0xf] %v3146
        %3148 = vst [vmem:[%s3072 + $0x7c] sm:$0xf] %v2937
        %v3149 = vld [vmem:[%s3072 + $0x80] sm:$0x1]
        %v3150 = vsel %vm2559, %v2938, %v3149
        %3151 = vst [vmem:[%s3072 + $0x80] sm:$0x1] %v3150
        %v3152 = vld [vmem:[%s3072 + $0x84] sm:$0xf]
        %v3153 = vsel %vm3074, %v2945, %v3152
        %3154 = vst [vmem:[%s3072 + $0x84] sm:$0xf] %v3153
        %3155 = vst [vmem:[%s3072 + $0x88] sm:$0xf] %v2954
        %v3156 = vld [vmem:[%s3072 + $0x8c] sm:$0x1]
        %v3157 = vsel %vm2559, %v2955, %v3156
        %3158 = vst [vmem:[%s3072 + $0x8c] sm:$0x1] %v3157
        %v3159 = vld [vmem:[%s3072 + $0x90] sm:$0xf]
        %v3160 = vsel %vm3074, %v2962, %v3159
        %3161 = vst [vmem:[%s3072 + $0x90] sm:$0xf] %v3160
        %3162 = vst [vmem:[%s3072 + $0x94] sm:$0xf] %v2971
        %v3163 = vld [vmem:[%s3072 + $0x98] sm:$0x1]
        %v3164 = vsel %vm2559, %v2972, %v3163
        %3165 = vst [vmem:[%s3072 + $0x98] sm:$0x1] %v3164
        %v3166 = vld [vmem:[%s3072 + $0x9c] sm:$0xf]
        %v3167 = vsel %vm3074, %v2979, %v3166
        %3168 = vst [vmem:[%s3072 + $0x9c] sm:$0xf] %v3167
        %3169 = vst [vmem:[%s3072 + $0xa0] sm:$0xf] %v2988
        %v3170 = vld [vmem:[%s3072 + $0xa4] sm:$0x1]
        %v3171 = vsel %vm2559, %v2989, %v3170
        %3172 = vst [vmem:[%s3072 + $0xa4] sm:$0x1] %v3171
        %v3173 = vld [vmem:[%s3072 + $0xa8] sm:$0xf]
        %v3174 = vsel %vm3074, %v2996, %v3173
        %3175 = vst [vmem:[%s3072 + $0xa8] sm:$0xf] %v3174
        %3176 = vst [vmem:[%s3072 + $0xac] sm:$0xf] %v3005
        %v3177 = vld [vmem:[%s3072 + $0xb0] sm:$0x1]
        %v3178 = vsel %vm2559, %v3006, %v3177
        %3179 = vst [vmem:[%s3072 + $0xb0] sm:$0x1] %v3178
        %v3180 = vld [vmem:[%s3072 + $0xb4] sm:$0xf]
        %v3181 = vsel %vm3074, %v3013, %v3180
        %3182 = vst [vmem:[%s3072 + $0xb4] sm:$0xf] %v3181
        %3183 = vst [vmem:[%s3072 + $0xb8] sm:$0xf] %v3022
        %v3184 = vld [vmem:[%s3072 + $0xbc] sm:$0x1]
        %v3185 = vsel %vm2559, %v3023, %v3184
        %3186 = vst [vmem:[%s3072 + $0xbc] sm:$0x1] %v3185
        %v3187 = vld [vmem:[#allocation2] sm:$0xf]
        %v3188 = vld [vmem:[#allocation2 + $0x4] sm:$0xf]
        %v3189 = vld [vmem:[#allocation2 + $0x8] sm:$0x1]
        %v3190 = vld [vmem:[#allocation2 + $0xc] sm:$0xf]
        %v3191 = vld [vmem:[#allocation2 + $0x10] sm:$0xf]
        %v3192 = vld [vmem:[#allocation2 + $0x14] sm:$0x1]
        %v3193 = vld [vmem:[#allocation2 + $0x18] sm:$0xf]
        %v3194 = vld [vmem:[#allocation2 + $0x1c] sm:$0xf]
        %v3195 = vld [vmem:[#allocation2 + $0x20] sm:$0x1]
        %v3196 = vld [vmem:[#allocation2 + $0x24] sm:$0xf]
        %v3197 = vld [vmem:[#allocation2 + $0x28] sm:$0xf]
        %v3198 = vld [vmem:[#allocation2 + $0x2c] sm:$0x1]
        %v3199 = vld [vmem:[#allocation2 + $0x30] sm:$0xf]
        %v3200 = vld [vmem:[#allocation2 + $0x34] sm:$0xf]
        %v3201 = vld [vmem:[#allocation2 + $0x38] sm:$0x1]
        %v3202 = vld [vmem:[#allocation2 + $0x3c] sm:$0xf]
        %v3203 = vld [vmem:[#allocation2 + $0x40] sm:$0xf]
        %v3204 = vld [vmem:[#allocation2 + $0x44] sm:$0x1]
        %v3205 = vld [vmem:[#allocation2 + $0x48] sm:$0xf]
        %v3206 = vld [vmem:[#allocation2 + $0x4c] sm:$0xf]
        %v3207 = vld [vmem:[#allocation2 + $0x50] sm:$0x1]
        %v3208 = vld [vmem:[#allocation2 + $0x54] sm:$0xf]
        %v3209 = vld [vmem:[#allocation2 + $0x58] sm:$0xf]
        %v3210 = vld [vmem:[#allocation2 + $0x5c] sm:$0x1]
        %v3211 = vld [vmem:[#allocation2 + $0x60] sm:$0xf]
        %v3212 = vld [vmem:[#allocation2 + $0x64] sm:$0xf]
        %v3213 = vld [vmem:[#allocation2 + $0x68] sm:$0x1]
        %v3214 = vld [vmem:[#allocation2 + $0x6c] sm:$0xf]
        %v3215 = vld [vmem:[#allocation2 + $0x70] sm:$0xf]
        %v3216 = vld [vmem:[#allocation2 + $0x74] sm:$0x1]
        %v3217 = vld [vmem:[#allocation2 + $0x78] sm:$0xf]
        %v3218 = vld [vmem:[#allocation2 + $0x7c] sm:$0xf]
        %v3219 = vld [vmem:[#allocation2 + $0x80] sm:$0x1]
        %v3220 = vld [vmem:[#allocation2 + $0x84] sm:$0xf]
        %v3221 = vld [vmem:[#allocation2 + $0x88] sm:$0xf]
        %v3222 = vld [vmem:[#allocation2 + $0x8c] sm:$0x1]
        %v3223 = vld [vmem:[#allocation2 + $0x90] sm:$0xf]
        %v3224 = vld [vmem:[#allocation2 + $0x94] sm:$0xf]
        %v3225 = vld [vmem:[#allocation2 + $0x98] sm:$0x1]
        %v3226 = vld [vmem:[#allocation2 + $0x9c] sm:$0xf]
        %v3227 = vld [vmem:[#allocation2 + $0xa0] sm:$0xf]
        %v3228 = vld [vmem:[#allocation2 + $0xa4] sm:$0x1]
        %v3229 = vld [vmem:[#allocation2 + $0xa8] sm:$0xf]
        %v3230 = vld [vmem:[#allocation2 + $0xac] sm:$0xf]
        %v3231 = vld [vmem:[#allocation2 + $0xb0] sm:$0x1]
        %v3232 = vld [vmem:[#allocation2 + $0xb4] sm:$0xf]
        %v3233 = vld [vmem:[#allocation2 + $0xb8] sm:$0xf]
        %v3234 = vld [vmem:[#allocation2 + $0xbc] sm:$0x1]
        %v3235 = vld [vmem:[#allocation2 + $0xc0] sm:$0xf]
        %v3236 = vld [vmem:[#allocation2 + $0xc4] sm:$0xf]
        %v3237 = vld [vmem:[#allocation2 + $0xc8] sm:$0x1]
        %v3238 = vld [vmem:[#allocation2 + $0xcc] sm:$0xf]
        %v3239 = vld [vmem:[#allocation2 + $0xd0] sm:$0xf]
        %v3240 = vld [vmem:[#allocation2 + $0xd4] sm:$0x1]
        %v3273 = vunpack.c.l.b16 %v3187
        %v3274 = vunpack.c.l.b16 %v3188
        %v3275 = vunpack.c.l.b16 %v3190
        %v3276 = vunpack.c.l.b16 %v3191
        %v3277 = vunpack.c.l.b16 %v3193
        %v3278 = vunpack.c.l.b16 %v3194
        %v3279 = vunpack.c.l.b16 %v3196
        %v3280 = vunpack.c.l.b16 %v3197
        %v3281 = vunpack.c.l.b16 %v3199
        %v3282 = vunpack.c.l.b16 %v3200
        %v3283 = vunpack.c.l.b16 %v3202
        %v3284 = vunpack.c.l.b16 %v3203
        %v3285 = vunpack.c.l.b16 %v3205
        %v3286 = vunpack.c.l.b16 %v3206
        %v3287 = vunpack.c.l.b16 %v3208
        %v3288 = vunpack.c.l.b16 %v3209
        %v3289 = vunpack.c.l.b16 %v3211
        %v3290 = vunpack.c.l.b16 %v3212
        %v3291 = vunpack.c.l.b16 %v3214
        %v3292 = vunpack.c.l.b16 %v3215
        %v3293 = vunpack.c.l.b16 %v3217
        %v3294 = vunpack.c.l.b16 %v3218
        %v3295 = vunpack.c.l.b16 %v3220
        %v3296 = vunpack.c.l.b16 %v3221
        %v3297 = vunpack.c.l.b16 %v3223
        %v3298 = vunpack.c.l.b16 %v3224
        %v3299 = vunpack.c.l.b16 %v3226
        %v3300 = vunpack.c.l.b16 %v3227
        %v3301 = vunpack.c.l.b16 %v3229
        %v3302 = vunpack.c.l.b16 %v3230
        %v3303 = vunpack.c.l.b16 %v3232
        %v3304 = vunpack.c.l.b16 %v3233
        %v3305 = vpack.c.b16 %v3274, %v3273
        %v3306 = vpack.c.b16 %v3276, %v3275
        %v3307 = vpack.c.b16 %v3278, %v3277
        %v3308 = vpack.c.b16 %v3280, %v3279
        %v3309 = vpack.c.b16 %v3282, %v3281
        %v3310 = vpack.c.b16 %v3284, %v3283
        %v3311 = vpack.c.b16 %v3286, %v3285
        %v3312 = vpack.c.b16 %v3288, %v3287
        %v3313 = vpack.c.b16 %v3290, %v3289
        %v3314 = vpack.c.b16 %v3292, %v3291
        %v3315 = vpack.c.b16 %v3294, %v3293
        %v3316 = vpack.c.b16 %v3296, %v3295
        %v3317 = vpack.c.b16 %v3298, %v3297
        %v3318 = vpack.c.b16 %v3300, %v3299
        %v3319 = vpack.c.b16 %v3302, %v3301
        %v3320 = vpack.c.b16 %v3304, %v3303
        %v3353 = vunpack.c.l.b16 %v3189
        %v3354 = vunpack.c.l.b16 %v3192
        %v3355 = vunpack.c.l.b16 %v3195
        %v3356 = vunpack.c.l.b16 %v3198
        %v3357 = vunpack.c.l.b16 %v3201
        %v3358 = vunpack.c.l.b16 %v3204
        %v3359 = vunpack.c.l.b16 %v3207
        %v3360 = vunpack.c.l.b16 %v3210
        %v3361 = vunpack.c.l.b16 %v3213
        %v3362 = vunpack.c.l.b16 %v3216
        %v3363 = vunpack.c.l.b16 %v3219
        %v3364 = vunpack.c.l.b16 %v3222
        %v3365 = vunpack.c.l.b16 %v3225
        %v3366 = vunpack.c.l.b16 %v3228
        %v3367 = vunpack.c.l.b16 %v3231
        %v3368 = vunpack.c.l.b16 %v3234
        %v3369 = vpack.c.b16 %v3353, %v3353
        %v3370 = vpack.c.b16 %v3354, %v3354
        %v3371 = vpack.c.b16 %v3355, %v3355
        %v3372 = vpack.c.b16 %v3356, %v3356
        %v3373 = vpack.c.b16 %v3357, %v3357
        %v3374 = vpack.c.b16 %v3358, %v3358
        %v3375 = vpack.c.b16 %v3359, %v3359
        %v3376 = vpack.c.b16 %v3360, %v3360
        %v3377 = vpack.c.b16 %v3361, %v3361
        %v3378 = vpack.c.b16 %v3362, %v3362
        %v3379 = vpack.c.b16 %v3363, %v3363
        %v3380 = vpack.c.b16 %v3364, %v3364
        %v3381 = vpack.c.b16 %v3365, %v3365
        %v3382 = vpack.c.b16 %v3366, %v3366
        %v3383 = vpack.c.b16 %v3367, %v3367
        %v3384 = vpack.c.b16 %v3368, %v3368
        %v3386 = vshrl.u32 %v3305, 16
        %v3388 = vshll.u32 %v3305, 16
        %v3390 = vrot.slane %v3388, 1
        %v3391 = vor.u32 %v3386, %v3390
        %v3393 = vshll.u32 %v3369, 16
        %v3395 = vrot.slane %v3393, 1
        %v3396 = vsel %vm563, %v3391, %v3395
        %v3398 = vshrl.u32 %v3306, 16
        %v3400 = vshll.u32 %v3306, 16
        %v3402 = vrot.slane %v3400, 1
        %v3403 = vor.u32 %v3398, %v3402
        %v3405 = vshll.u32 %v3370, 16
        %v3407 = vrot.slane %v3405, 1
        %v3408 = vsel %vm563, %v3403, %v3407
        %v3410 = vshrl.u32 %v3307, 16
        %v3412 = vshll.u32 %v3307, 16
        %v3414 = vrot.slane %v3412, 1
        %v3415 = vor.u32 %v3410, %v3414
        %v3417 = vshll.u32 %v3371, 16
        %v3419 = vrot.slane %v3417, 1
        %v3420 = vsel %vm563, %v3415, %v3419
        %v3422 = vshrl.u32 %v3308, 16
        %v3424 = vshll.u32 %v3308, 16
        %v3426 = vrot.slane %v3424, 1
        %v3427 = vor.u32 %v3422, %v3426
        %v3429 = vshll.u32 %v3372, 16
        %v3431 = vrot.slane %v3429, 1
        %v3432 = vsel %vm563, %v3427, %v3431
        %v3434 = vshrl.u32 %v3309, 16
        %v3436 = vshll.u32 %v3309, 16
        %v3438 = vrot.slane %v3436, 1
        %v3439 = vor.u32 %v3434, %v3438
        %v3441 = vshll.u32 %v3373, 16
        %v3443 = vrot.slane %v3441, 1
        %v3444 = vsel %vm563, %v3439, %v3443
        %v3446 = vshrl.u32 %v3310, 16
        %v3448 = vshll.u32 %v3310, 16
        %v3450 = vrot.slane %v3448, 1
        %v3451 = vor.u32 %v3446, %v3450
        %v3453 = vshll.u32 %v3374, 16
        %v3455 = vrot.slane %v3453, 1
        %v3456 = vsel %vm563, %v3451, %v3455
        %v3458 = vshrl.u32 %v3311, 16
        %v3460 = vshll.u32 %v3311, 16
        %v3462 = vrot.slane %v3460, 1
        %v3463 = vor.u32 %v3458, %v3462
        %v3465 = vshll.u32 %v3375, 16
        %v3467 = vrot.slane %v3465, 1
        %v3468 = vsel %vm563, %v3463, %v3467
        %v3470 = vshrl.u32 %v3312, 16
        %v3472 = vshll.u32 %v3312, 16
        %v3474 = vrot.slane %v3472, 1
        %v3475 = vor.u32 %v3470, %v3474
        %v3477 = vshll.u32 %v3376, 16
        %v3479 = vrot.slane %v3477, 1
        %v3480 = vsel %vm563, %v3475, %v3479
        %v3482 = vshrl.u32 %v3313, 16
        %v3484 = vshll.u32 %v3313, 16
        %v3486 = vrot.slane %v3484, 1
        %v3487 = vor.u32 %v3482, %v3486
        %v3489 = vshll.u32 %v3377, 16
        %v3491 = vrot.slane %v3489, 1
        %v3492 = vsel %vm563, %v3487, %v3491
        %v3494 = vshrl.u32 %v3314, 16
        %v3496 = vshll.u32 %v3314, 16
        %v3498 = vrot.slane %v3496, 1
        %v3499 = vor.u32 %v3494, %v3498
        %v3501 = vshll.u32 %v3378, 16
        %v3503 = vrot.slane %v3501, 1
        %v3504 = vsel %vm563, %v3499, %v3503
        %v3506 = vshrl.u32 %v3315, 16
        %v3508 = vshll.u32 %v3315, 16
        %v3510 = vrot.slane %v3508, 1
        %v3511 = vor.u32 %v3506, %v3510
        %v3513 = vshll.u32 %v3379, 16
        %v3515 = vrot.slane %v3513, 1
        %v3516 = vsel %vm563, %v3511, %v3515
        %v3518 = vshrl.u32 %v3316, 16
        %v3520 = vshll.u32 %v3316, 16
        %v3522 = vrot.slane %v3520, 1
        %v3523 = vor.u32 %v3518, %v3522
        %v3525 = vshll.u32 %v3380, 16
        %v3527 = vrot.slane %v3525, 1
        %v3528 = vsel %vm563, %v3523, %v3527
        %v3530 = vshrl.u32 %v3317, 16
        %v3532 = vshll.u32 %v3317, 16
        %v3534 = vrot.slane %v3532, 1
        %v3535 = vor.u32 %v3530, %v3534
        %v3537 = vshll.u32 %v3381, 16
        %v3539 = vrot.slane %v3537, 1
        %v3540 = vsel %vm563, %v3535, %v3539
        %v3542 = vshrl.u32 %v3318, 16
        %v3544 = vshll.u32 %v3318, 16
        %v3546 = vrot.slane %v3544, 1
        %v3547 = vor.u32 %v3542, %v3546
        %v3549 = vshll.u32 %v3382, 16
        %v3551 = vrot.slane %v3549, 1
        %v3552 = vsel %vm563, %v3547, %v3551
        %v3554 = vshrl.u32 %v3319, 16
        %v3556 = vshll.u32 %v3319, 16
        %v3558 = vrot.slane %v3556, 1
        %v3559 = vor.u32 %v3554, %v3558
        %v3561 = vshll.u32 %v3383, 16
        %v3563 = vrot.slane %v3561, 1
        %v3564 = vsel %vm563, %v3559, %v3563
        %v3566 = vshrl.u32 %v3320, 16
        %v3568 = vshll.u32 %v3320, 16
        %v3570 = vrot.slane %v3568, 1
        %v3571 = vor.u32 %v3566, %v3570
        %v3573 = vshll.u32 %v3384, 16
        %v3575 = vrot.slane %v3573, 1
        %v3576 = vsel %vm563, %v3571, %v3575
        %v3593 = vrot.slane %v3305, 1
        %v3594 = vrot.slane %v3369, 1
        %v3595 = vsel %vm772, %v3593, %v3594
        %v3596 = vrot.slane %v3306, 1
        %v3597 = vrot.slane %v3370, 1
        %v3598 = vsel %vm772, %v3596, %v3597
        %v3599 = vrot.slane %v3307, 1
        %v3600 = vrot.slane %v3371, 1
        %v3601 = vsel %vm772, %v3599, %v3600
        %v3602 = vrot.slane %v3308, 1
        %v3603 = vrot.slane %v3372, 1
        %v3604 = vsel %vm772, %v3602, %v3603
        %v3605 = vrot.slane %v3309, 1
        %v3606 = vrot.slane %v3373, 1
        %v3607 = vsel %vm772, %v3605, %v3606
        %v3608 = vrot.slane %v3310, 1
        %v3609 = vrot.slane %v3374, 1
        %v3610 = vsel %vm772, %v3608, %v3609
        %v3611 = vrot.slane %v3311, 1
        %v3612 = vrot.slane %v3375, 1
        %v3613 = vsel %vm772, %v3611, %v3612
        %v3614 = vrot.slane %v3312, 1
        %v3615 = vrot.slane %v3376, 1
        %v3616 = vsel %vm772, %v3614, %v3615
        %v3617 = vrot.slane %v3313, 1
        %v3618 = vrot.slane %v3377, 1
        %v3619 = vsel %vm772, %v3617, %v3618
        %v3620 = vrot.slane %v3314, 1
        %v3621 = vrot.slane %v3378, 1
        %v3622 = vsel %vm772, %v3620, %v3621
        %v3623 = vrot.slane %v3315, 1
        %v3624 = vrot.slane %v3379, 1
        %v3625 = vsel %vm772, %v3623, %v3624
        %v3626 = vrot.slane %v3316, 1
        %v3627 = vrot.slane %v3380, 1
        %v3628 = vsel %vm772, %v3626, %v3627
        %v3629 = vrot.slane %v3317, 1
        %v3630 = vrot.slane %v3381, 1
        %v3631 = vsel %vm772, %v3629, %v3630
        %v3632 = vrot.slane %v3318, 1
        %v3633 = vrot.slane %v3382, 1
        %v3634 = vsel %vm772, %v3632, %v3633
        %v3635 = vrot.slane %v3319, 1
        %v3636 = vrot.slane %v3383, 1
        %v3637 = vsel %vm772, %v3635, %v3636
        %v3638 = vrot.slane %v3320, 1
        %v3639 = vrot.slane %v3384, 1
        %v3640 = vsel %vm772, %v3638, %v3639
        %v3657 = vld [vmem:[#allocation11] sm:$0xf]
        %v3658 = vld [vmem:[#allocation11 + $0x4] sm:$0xf]
        %v3659 = vld [vmem:[#allocation11 + $0x8] sm:$0xf]
        %v3660 = vld [vmem:[#allocation11 + $0xc] sm:$0xf]
        %v3661 = vld [vmem:[#allocation11 + $0x10] sm:$0xf]
        %v3662 = vld [vmem:[#allocation11 + $0x14] sm:$0xf]
        %v3663 = vld [vmem:[#allocation11 + $0x18] sm:$0xf]
        %v3664 = vld [vmem:[#allocation11 + $0x1c] sm:$0xf]
        %v3665 = vld [vmem:[#allocation11 + $0x20] sm:$0xf]
        %v3666 = vld [vmem:[#allocation11 + $0x24] sm:$0xf]
        %v3667 = vld [vmem:[#allocation11 + $0x28] sm:$0xf]
        %v3668 = vld [vmem:[#allocation11 + $0x2c] sm:$0xf]
        %v3669 = vld [vmem:[#allocation11 + $0x30] sm:$0xf]
        %v3670 = vld [vmem:[#allocation11 + $0x34] sm:$0xf]
        %v3671 = vld [vmem:[#allocation11 + $0x38] sm:$0xf]
        %v3672 = vld [vmem:[#allocation11 + $0x3c] sm:$0xf]
        %v3673 = vld [vmem:[#allocation11 + $0x40] sm:$0xf]
        %v3674 = vld [vmem:[#allocation11 + $0x44] sm:$0xf]
        %v3675 = vld [vmem:[#allocation11 + $0x48] sm:$0xf]
        %v3676 = vld [vmem:[#allocation11 + $0x4c] sm:$0xf]
        %v3677 = vld [vmem:[#allocation11 + $0x50] sm:$0xf]
        %v3678 = vld [vmem:[#allocation11 + $0x54] sm:$0xf]
        %v3679 = vld [vmem:[#allocation11 + $0x58] sm:$0xf]
        %v3680 = vld [vmem:[#allocation11 + $0x5c] sm:$0xf]
        %v3681 = vld [vmem:[#allocation11 + $0x60] sm:$0xf]
        %v3682 = vld [vmem:[#allocation11 + $0x64] sm:$0xf]
        %v3683 = vld [vmem:[#allocation11 + $0x68] sm:$0xf]
        %v3684 = vld [vmem:[#allocation11 + $0x6c] sm:$0xf]
        %v3685 = vld [vmem:[#allocation11 + $0x70] sm:$0xf]
        %v3686 = vld [vmem:[#allocation11 + $0x74] sm:$0xf]
        %v3687 = vld [vmem:[#allocation11 + $0x78] sm:$0xf]
        %v3688 = vld [vmem:[#allocation11 + $0x7c] sm:$0xf]
        %v3689 = vld [vmem:[#allocation11 + $0x80] sm:$0xf]
        %v3690 = vld [vmem:[#allocation11 + $0x84] sm:$0xf]
        %v3691 = vld [vmem:[#allocation11 + $0x88] sm:$0xf]
        %v3692 = vld [vmem:[#allocation11 + $0x8c] sm:$0xf]
        %v3693 = vld [vmem:[#allocation11 + $0x90] sm:$0xf]
        %v3694 = vld [vmem:[#allocation11 + $0x94] sm:$0xf]
        %v3695 = vld [vmem:[#allocation11 + $0x98] sm:$0xf]
        %v3696 = vld [vmem:[#allocation11 + $0x9c] sm:$0xf]
        %v3697 = vld [vmem:[#allocation11 + $0xa0] sm:$0xf]
        %v3698 = vld [vmem:[#allocation11 + $0xa4] sm:$0xf]
        %v3699 = vld [vmem:[#allocation11 + $0xa8] sm:$0xf]
        %v3700 = vld [vmem:[#allocation11 + $0xac] sm:$0xf]
        %v3701 = vld [vmem:[#allocation11 + $0xb0] sm:$0xf]
        %v3702 = vld [vmem:[#allocation11 + $0xb4] sm:$0xf]
        %v3703 = vld [vmem:[#allocation11 + $0xb8] sm:$0xf]
        %v3704 = vld [vmem:[#allocation11 + $0xbc] sm:$0xf]
        %v3707 = vunpack.c.l.b16 %v3235
        %v3708 = vunpack.c.l.b16 %v3236
        %v3709 = vpack.c.b16 %v3708, %v3707
        %v3712 = vunpack.c.l.b16 %v3237
        %v3713 = vpack.c.b16 %v3712, %v3712
        %v3715 = vshrl.u32 %v3709, 16
        %v3717 = vshll.u32 %v3709, 16
        %v3719 = vrot.slane %v3717, 1
        %v3720 = vor.u32 %v3715, %v3719
        %v3722 = vshll.u32 %v3713, 16
        %v3724 = vrot.slane %v3722, 1
        %v3725 = vsel %vm563, %v3720, %v3724
        %v3727 = vrot.slane %v3709, 1
        %v3728 = vrot.slane %v3713, 1
        %v3729 = vsel %vm772, %v3727, %v3728
        %v3731 = vld [vmem:[#allocation11 + $0xc0] sm:$0xf]
        %v3732 = vld [vmem:[#allocation11 + $0xc4] sm:$0xf]
        %v3733 = vld [vmem:[#allocation11 + $0xc8] sm:$0xf]
        %v3734 = vld [vmem:[#allocation11 + $0xcc] sm:$0xf]
        %v3735 = vld [vmem:[#allocation11 + $0xd0] sm:$0xf]
        %v3736 = vld [vmem:[#allocation11 + $0xd4] sm:$0xf]
        %v3737 = vld [vmem:[#allocation11 + $0xd8] sm:$0xf]
        %v3738 = vld [vmem:[#allocation11 + $0xdc] sm:$0xf]
        %v3739 = vld [vmem:[#allocation11 + $0xe0] sm:$0xf]
        %v3740 = vld [vmem:[#allocation11 + $0xe4] sm:$0xf]
        %v3741 = vld [vmem:[#allocation11 + $0xe8] sm:$0xf]
        %v3742 = vld [vmem:[#allocation11 + $0xec] sm:$0xf]
        %v3743 = vld [vmem:[#allocation11 + $0xf0] sm:$0xf]
        %v3744 = vld [vmem:[#allocation11 + $0xf4] sm:$0xf]
        %v3745 = vld [vmem:[#allocation11 + $0xf8] sm:$0xf]
        %v3746 = vld [vmem:[#allocation11 + $0xfc] sm:$0xf]
        %v3747 = vld [vmem:[#allocation11 + $0x100] sm:$0xf]
        %v3748 = vld [vmem:[#allocation11 + $0x104] sm:$0xf]
        %v3749 = vld [vmem:[#allocation11 + $0x108] sm:$0xf]
        %v3750 = vld [vmem:[#allocation11 + $0x10c] sm:$0xf]
        %v3751 = vld [vmem:[#allocation11 + $0x110] sm:$0xf]
        %v3752 = vld [vmem:[#allocation11 + $0x114] sm:$0xf]
        %v3753 = vld [vmem:[#allocation11 + $0x118] sm:$0xf]
        %v3754 = vld [vmem:[#allocation11 + $0x11c] sm:$0xf]
        %v3755 = vld [vmem:[#allocation11 + $0x120] sm:$0xf]
        %v3756 = vld [vmem:[#allocation11 + $0x124] sm:$0xf]
        %v3757 = vld [vmem:[#allocation11 + $0x128] sm:$0xf]
        %v3758 = vld [vmem:[#allocation11 + $0x12c] sm:$0xf]
        %v3759 = vld [vmem:[#allocation11 + $0x130] sm:$0xf]
        %v3760 = vld [vmem:[#allocation11 + $0x134] sm:$0xf]
        %v3761 = vld [vmem:[#allocation11 + $0x138] sm:$0xf]
        %v3762 = vld [vmem:[#allocation11 + $0x13c] sm:$0xf]
        %v3763 = vld [vmem:[#allocation11 + $0x140] sm:$0xf]
        %v3764 = vld [vmem:[#allocation11 + $0x144] sm:$0xf]
        %v3765 = vld [vmem:[#allocation11 + $0x148] sm:$0xf]
        %v3766 = vld [vmem:[#allocation11 + $0x14c] sm:$0xf]
        %v3767 = vld [vmem:[#allocation11 + $0x150] sm:$0xf]
        %v3768 = vld [vmem:[#allocation11 + $0x154] sm:$0xf]
        %v3769 = vld [vmem:[#allocation11 + $0x158] sm:$0xf]
        %v3770 = vld [vmem:[#allocation11 + $0x15c] sm:$0xf]
        %v3771 = vld [vmem:[#allocation11 + $0x160] sm:$0xf]
        %v3772 = vld [vmem:[#allocation11 + $0x164] sm:$0xf]
        %v3773 = vld [vmem:[#allocation11 + $0x168] sm:$0xf]
        %v3774 = vld [vmem:[#allocation11 + $0x16c] sm:$0xf]
        %v3775 = vld [vmem:[#allocation11 + $0x170] sm:$0xf]
        %v3776 = vld [vmem:[#allocation11 + $0x174] sm:$0xf]
        %v3777 = vld [vmem:[#allocation11 + $0x178] sm:$0xf]
        %v3778 = vld [vmem:[#allocation11 + $0x17c] sm:$0xf]
        %v3827 = vunpack.c.l.b16 %v3731
        %v3828 = vunpack.c.l.b16 %v3732
        %v3829 = vunpack.c.l.b16 %v3733
        %v3830 = vunpack.c.l.b16 %v3734
        %v3831 = vunpack.c.l.b16 %v3735
        %v3832 = vunpack.c.l.b16 %v3736
        %v3833 = vunpack.c.l.b16 %v3737
        %v3834 = vunpack.c.l.b16 %v3738
        %v3835 = vunpack.c.l.b16 %v3739
        %v3836 = vunpack.c.l.b16 %v3740
        %v3837 = vunpack.c.l.b16 %v3741
        %v3838 = vunpack.c.l.b16 %v3742
        %v3839 = vunpack.c.l.b16 %v3743
        %v3840 = vunpack.c.l.b16 %v3744
        %v3841 = vunpack.c.l.b16 %v3745
        %v3842 = vunpack.c.l.b16 %v3746
        %v3843 = vunpack.c.l.b16 %v3747
        %v3844 = vunpack.c.l.b16 %v3748
        %v3845 = vunpack.c.l.b16 %v3749
        %v3846 = vunpack.c.l.b16 %v3750
        %v3847 = vunpack.c.l.b16 %v3751
        %v3848 = vunpack.c.l.b16 %v3752
        %v3849 = vunpack.c.l.b16 %v3753
        %v3850 = vunpack.c.l.b16 %v3754
        %v3851 = vunpack.c.l.b16 %v3755
        %v3852 = vunpack.c.l.b16 %v3756
        %v3853 = vunpack.c.l.b16 %v3757
        %v3854 = vunpack.c.l.b16 %v3758
        %v3855 = vunpack.c.l.b16 %v3759
        %v3856 = vunpack.c.l.b16 %v3760
        %v3857 = vunpack.c.l.b16 %v3761
        %v3858 = vunpack.c.l.b16 %v3762
        %v3859 = vunpack.c.l.b16 %v3763
        %v3860 = vunpack.c.l.b16 %v3764
        %v3861 = vunpack.c.l.b16 %v3765
        %v3862 = vunpack.c.l.b16 %v3766
        %v3863 = vunpack.c.l.b16 %v3767
        %v3864 = vunpack.c.l.b16 %v3768
        %v3865 = vunpack.c.l.b16 %v3769
        %v3866 = vunpack.c.l.b16 %v3770
        %v3867 = vunpack.c.l.b16 %v3771
        %v3868 = vunpack.c.l.b16 %v3772
        %v3869 = vunpack.c.l.b16 %v3773
        %v3870 = vunpack.c.l.b16 %v3774
        %v3871 = vunpack.c.l.b16 %v3775
        %v3872 = vunpack.c.l.b16 %v3776
        %v3873 = vunpack.c.l.b16 %v3777
        %v3874 = vunpack.c.l.b16 %v3778
        %v3875 = vpack.c.b16 %v3828, %v3827
        %v3876 = vpack.c.b16 %v3830, %v3829
        %v3877 = vpack.c.b16 %v3832, %v3831
        %v3878 = vpack.c.b16 %v3834, %v3833
        %v3879 = vpack.c.b16 %v3836, %v3835
        %v3880 = vpack.c.b16 %v3838, %v3837
        %v3881 = vpack.c.b16 %v3840, %v3839
        %v3882 = vpack.c.b16 %v3842, %v3841
        %v3883 = vpack.c.b16 %v3844, %v3843
        %v3884 = vpack.c.b16 %v3846, %v3845
        %v3885 = vpack.c.b16 %v3848, %v3847
        %v3886 = vpack.c.b16 %v3850, %v3849
        %v3887 = vpack.c.b16 %v3852, %v3851
        %v3888 = vpack.c.b16 %v3854, %v3853
        %v3889 = vpack.c.b16 %v3856, %v3855
        %v3890 = vpack.c.b16 %v3858, %v3857
        %v3891 = vpack.c.b16 %v3860, %v3859
        %v3892 = vpack.c.b16 %v3862, %v3861
        %v3893 = vpack.c.b16 %v3864, %v3863
        %v3894 = vpack.c.b16 %v3866, %v3865
        %v3895 = vpack.c.b16 %v3868, %v3867
        %v3896 = vpack.c.b16 %v3870, %v3869
        %v3897 = vpack.c.b16 %v3872, %v3871
        %v3898 = vpack.c.b16 %v3874, %v3873
        %3923 = vmatprep.subr.bf16.mxu0 0
        %3924 = vmatpush1.bf16.msra.mxu0 %v3875
        %3925 = vmatprep.subr.bf16.mxu0 0
        %3926 = vmatpush1.bf16.msra.mxu0 %v3876
        %3927 = vmatprep.subr.bf16.mxu0 0
        %3928 = vmatpush1.bf16.msra.mxu0 %v3877
        %3929 = vmatprep.subr.bf16.mxu0 0
        %3930 = vmatpush1.bf16.msra.mxu0 %v3878
        %3931 = vmatprep.subr.bf16.mxu0 0
        %3932 = vmatpush1.bf16.msra.mxu0 %v3879
        %3933 = vmatprep.subr.bf16.mxu0 0
        %3934 = vmatpush1.bf16.msra.mxu0 %v3880
        %3935 = vmatprep.subr.bf16.mxu0 0
        %3936 = vmatpush1.bf16.msra.mxu0 %v3881
        %3937 = vmatprep.subr.bf16.mxu0 0
        %3938 = vmatpush1.bf16.msra.mxu0 %v3882
        %3939 = vmatprep.subr.bf16.mxu0 0
        %3940 = vmatpush1.bf16.msra.mxu0 %v3883
        %3941 = vmatprep.subr.bf16.mxu0 0
        %3942 = vmatpush1.bf16.msra.mxu0 %v3884
        %3943 = vmatprep.subr.bf16.mxu0 0
        %3944 = vmatpush1.bf16.msra.mxu0 %v3885
        %3945 = vmatprep.subr.bf16.mxu0 0
        %3946 = vmatpush1.bf16.msra.mxu0 %v3886
        %3947 = vmatprep.subr.bf16.mxu0 0
        %3948 = vmatpush1.bf16.msra.mxu0 %v3887
        %3949 = vmatprep.subr.bf16.mxu0 0
        %3950 = vmatpush1.bf16.msra.mxu0 %v3888
        %3951 = vmatprep.subr.bf16.mxu0 0
        %3952 = vmatpush1.bf16.msra.mxu0 %v3889
        %3953 = vmatprep.subr.bf16.mxu0 0
        %3954 = vmatpush1.bf16.msra.mxu0 %v3890
        %3955 = vmatprep.mubr.bf16.mxu0 %v3408
        %3956 = vmatmul.mubr.bf16.gmra.mrb[0].mxu0 %v3306
        %v3957 = vpop.f32.mrb[0].mxu0
        %v3958 = vadd.f32 0.0, %v3957
        %v3959 = vpop.f32.mrb[0].mxu0
        %v3960 = vpop.f32.mrb[0].mxu0
        %v3961 = vadd.f32 0.0, %v3960
        %v3962 = vpop.f32.mrb[0].mxu0
        %3963 = vmatprep.mubr.bf16.mxu0 %v3420
        %3964 = vmatmul.mubr.bf16.gmra.mrb[0].mxu0 %v3307
        %v3965 = vpop.f32.mrb[0].mxu0
        %v3966 = vadd.f32 0.0, %v3965
        %v3967 = vpop.f32.mrb[0].mxu0
        %v3968 = vpop.f32.mrb[0].mxu0
        %v3969 = vadd.f32 0.0, %v3968
        %v3970 = vpop.f32.mrb[0].mxu0
        %3971 = vmatprep.mubr.bf16.mxu0 %v3432
        %3972 = vmatmul.mubr.bf16.gmra.mrb[0].mxu0 %v3308
        %v3973 = vpop.f32.mrb[0].mxu0
        %v3974 = vadd.f32 0.0, %v3973
        %v3975 = vpop.f32.mrb[0].mxu0
        %v3976 = vpop.f32.mrb[0].mxu0
        %v3977 = vadd.f32 0.0, %v3976
        %v3978 = vpop.f32.mrb[0].mxu0
        %3979 = vmatprep.mubr.bf16.mxu0 %v3444
        %3980 = vmatmul.mubr.bf16.gmra.mrb[0].mxu0 %v3309
        %v3981 = vpop.f32.mrb[0].mxu0
        %v3982 = vadd.f32 0.0, %v3981
        %v3983 = vpop.f32.mrb[0].mxu0
        %v3984 = vpop.f32.mrb[0].mxu0
        %v3985 = vadd.f32 0.0, %v3984
        %v3986 = vpop.f32.mrb[0].mxu0
        %3987 = vmatprep.mubr.bf16.mxu0 %v3456
        %3988 = vmatmul.mubr.bf16.gmra.mrb[0].mxu0 %v3310
        %v3989 = vpop.f32.mrb[0].mxu0
        %v3990 = vadd.f32 0.0, %v3989
        %v3991 = vpop.f32.mrb[0].mxu0
        %v3992 = vpop.f32.mrb[0].mxu0
        %v3993 = vadd.f32 0.0, %v3992
        %v3994 = vpop.f32.mrb[0].mxu0
        %3995 = vmatprep.mubr.bf16.mxu0 %v3468
        %3996 = vmatmul.mubr.bf16.gmra.mrb[0].mxu0 %v3311
        %v3997 = vpop.f32.mrb[0].mxu0
        %v3998 = vadd.f32 0.0, %v3997
        %v3999 = vpop.f32.mrb[0].mxu0
        %v4000 = vpop.f32.mrb[0].mxu0
        %v4001 = vadd.f32 0.0, %v4000
        %v4002 = vpop.f32.mrb[0].mxu0
        %4003 = vmatprep.mubr.bf16.mxu0 %v3480
        %4004 = vmatmul.mubr.bf16.gmra.mrb[0].mxu0 %v3312
        %v4005 = vpop.f32.mrb[0].mxu0
        %v4006 = vadd.f32 0.0, %v4005
        %v4007 = vpop.f32.mrb[0].mxu0
        %v4008 = vpop.f32.mrb[0].mxu0
        %v4009 = vadd.f32 0.0, %v4008
        %v4010 = vpop.f32.mrb[0].mxu0
        %4011 = vmatprep.mubr.bf16.mxu0 %v3492
        %4012 = vmatmul.mubr.bf16.gmra.mrb[0].mxu0 %v3313
        %v4013 = vpop.f32.mrb[0].mxu0
        %v4014 = vadd.f32 0.0, %v4013
        %v4015 = vpop.f32.mrb[0].mxu0
        %v4016 = vpop.f32.mrb[0].mxu0
        %v4017 = vadd.f32 0.0, %v4016
        %v4018 = vpop.f32.mrb[0].mxu0
        %4019 = vmatprep.mubr.bf16.mxu0 %v3504
        %4020 = vmatmul.mubr.bf16.gmra.mrb[0].mxu0 %v3314
        %v4021 = vpop.f32.mrb[0].mxu0
        %v4022 = vadd.f32 0.0, %v4021
        %v4023 = vpop.f32.mrb[0].mxu0
        %v4024 = vpop.f32.mrb[0].mxu0
        %v4025 = vadd.f32 0.0, %v4024
        %v4026 = vpop.f32.mrb[0].mxu0
        %4027 = vmatprep.mubr.bf16.mxu0 %v3516
        %4028 = vmatmul.mubr.bf16.gmra.mrb[0].mxu0 %v3315
        %v4029 = vpop.f32.mrb[0].mxu0
        %v4030 = vadd.f32 0.0, %v4029
        %v4031 = vpop.f32.mrb[0].mxu0
        %v4032 = vpop.f32.mrb[0].mxu0
        %v4033 = vadd.f32 0.0, %v4032
        %v4034 = vpop.f32.mrb[0].mxu0
        %4035 = vmatprep.mubr.bf16.mxu0 %v3528
        %4036 = vmatmul.mubr.bf16.gmra.mrb[0].mxu0 %v3316
        %v4037 = vpop.f32.mrb[0].mxu0
        %v4038 = vadd.f32 0.0, %v4037
        %v4039 = vpop.f32.mrb[0].mxu0
        %v4040 = vpop.f32.mrb[0].mxu0
        %v4041 = vadd.f32 0.0, %v4040
        %v4042 = vpop.f32.mrb[0].mxu0
        %4043 = vmatprep.mubr.bf16.mxu0 %v3540
        %4044 = vmatmul.mubr.bf16.gmra.mrb[0].mxu0 %v3317
        %v4045 = vpop.f32.mrb[0].mxu0
        %v4046 = vadd.f32 0.0, %v4045
        %v4047 = vpop.f32.mrb[0].mxu0
        %v4048 = vpop.f32.mrb[0].mxu0
        %v4049 = vadd.f32 0.0, %v4048
        %v4050 = vpop.f32.mrb[0].mxu0
        %4051 = vmatprep.mubr.bf16.mxu0 %v3552
        %4052 = vmatmul.mubr.bf16.gmra.mrb[0].mxu0 %v3318
        %v4053 = vpop.f32.mrb[0].mxu0
        %v4054 = vadd.f32 0.0, %v4053
        %v4055 = vpop.f32.mrb[0].mxu0
        %v4056 = vpop.f32.mrb[0].mxu0
        %v4057 = vadd.f32 0.0, %v4056
        %v4058 = vpop.f32.mrb[0].mxu0
        %4059 = vmatprep.mubr.bf16.mxu0 %v3564
        %4060 = vmatmul.mubr.bf16.gmra.mrb[0].mxu0 %v3319
        %v4061 = vpop.f32.mrb[0].mxu0
        %v4062 = vadd.f32 0.0, %v4061
        %v4063 = vpop.f32.mrb[0].mxu0
        %v4064 = vpop.f32.mrb[0].mxu0
        %v4065 = vadd.f32 0.0, %v4064
        %v4066 = vpop.f32.mrb[0].mxu0
        %4067 = vmatprep.mubr.bf16.mxu0 %v3576
        %4068 = vmatmul.mubr.bf16.gmra.mrb[0].mxu0 %v3320
        %v4069 = vpop.f32.mrb[0].mxu0
        %v4070 = vadd.f32 0.0, %v4069
        %v4071 = vpop.f32.mrb[0].mxu0
        %v4072 = vpop.f32.mrb[0].mxu0
        %v4073 = vadd.f32 0.0, %v4072
        %v4074 = vpop.f32.mrb[0].mxu0
        %4075 = vmatprep.mubr.bf16.mxu0 %v3725
        %4076 = vmatmul.mubr.bf16.gmra.mrb[0].mxu0 %v3709
        %v4077 = vpop.f32.mrb[0].mxu0
        %v4078 = vadd.f32 0.0, %v4077
        %v4079 = vpop.f32.mrb[0].mxu0
        %v4080 = vpop.f32.mrb[0].mxu0
        %v4081 = vadd.f32 0.0, %v4080
        %v4082 = vpop.f32.mrb[0].mxu0
        %4083 = vdwg.mxu0
        %4084 = vmatprep.subr.bf16.mxu0 0
        %4085 = vmatpush1.bf16.msra.mxu0 %v3891
        %4086 = vmatprep.subr.bf16.mxu0 0
        %4087 = vmatpush1.bf16.msra.mxu0 %v3892
        %4088 = vmatprep.subr.bf16.mxu0 0
        %4089 = vmatpush1.bf16.msra.mxu0 %v3893
        %4090 = vmatprep.subr.bf16.mxu0 0
        %4091 = vmatpush1.bf16.msra.mxu0 %v3894
        %4092 = vmatprep.subr.bf16.mxu0 0
        %4093 = vmatpush1.bf16.msra.mxu0 %v3895
        %4094 = vmatprep.subr.bf16.mxu0 0
        %4095 = vmatpush1.bf16.msra.mxu0 %v3896
        %4096 = vmatprep.subr.bf16.mxu0 0
        %4097 = vmatpush1.bf16.msra.mxu0 %v3897
        %4098 = vmatprep.subr.bf16.mxu0 0
        %4099 = vmatpush1.bf16.msra.mxu0 %v3898
        %4100 = vmatprep.subr.bf16.mxu0 0
        %4101 = vmatpush1.bf16.msra.mxu0 0
        %4102 = vmatprep.subr.bf16.mxu0 0
        %4103 = vmatpush1.bf16.msra.mxu0 0
        %4104 = vmatprep.subr.bf16.mxu0 0
        %4105 = vmatpush1.bf16.msra.mxu0 0
        %4106 = vmatprep.subr.bf16.mxu0 0
        %4107 = vmatpush1.bf16.msra.mxu0 0
        %4108 = vmatprep.subr.bf16.mxu0 0
        %4109 = vmatpush1.bf16.msra.mxu0 0
        %4110 = vmatprep.subr.bf16.mxu0 0
        %4111 = vmatpush1.bf16.msra.mxu0 0
        %4112 = vmatprep.subr.bf16.mxu0 0
        %4113 = vmatpush1.bf16.msra.mxu0 0
        %4114 = vmatprep.subr.bf16.mxu0 0
        %4115 = vmatpush1.bf16.msra.mxu0 0
        %4116 = vmatprep.mubr.bf16.mxu0 0
        %4117 = vmatmul.mubr.bf16.gmra.mrb[0].mxu0 %v3598
        %v4118 = vpop.f32.mrb[0].mxu0
        %v4119 = vadd.f32 %v3958, %v4118
        %v4120 = vpop.f32.mrb[0].mxu0
        %v4121 = vpop.f32.mrb[0].mxu0
        %v4122 = vadd.f32 %v3961, %v4121
        %v4123 = vpop.f32.mrb[0].mxu0
        %4124 = vmatprep.mubr.bf16.mxu0 0
        %4125 = vmatmul.mubr.bf16.gmra.mrb[0].mxu0 %v3601
        %v4126 = vpop.f32.mrb[0].mxu0
        %v4127 = vadd.f32 %v3966, %v4126
        %v4128 = vpop.f32.mrb[0].mxu0
        %v4129 = vpop.f32.mrb[0].mxu0
        %v4130 = vadd.f32 %v3969, %v4129
        %v4131 = vpop.f32.mrb[0].mxu0
        %4132 = vmatprep.mubr.bf16.mxu0 0
        %4133 = vmatmul.mubr.bf16.gmra.mrb[0].mxu0 %v3604
        %v4134 = vpop.f32.mrb[0].mxu0
        %v4135 = vadd.f32 %v3974, %v4134
        %v4136 = vpop.f32.mrb[0].mxu0
        %v4137 = vpop.f32.mrb[0].mxu0
        %v4138 = vadd.f32 %v3977, %v4137
        %v4139 = vpop.f32.mrb[0].mxu0
        %4140 = vmatprep.mubr.bf16.mxu0 0
        %4141 = vmatmul.mubr.bf16.gmra.mrb[0].mxu0 %v3607
        %v4142 = vpop.f32.mrb[0].mxu0
        %v4143 = vadd.f32 %v3982, %v4142
        %v4144 = vpop.f32.mrb[0].mxu0
        %v4145 = vpop.f32.mrb[0].mxu0
        %v4146 = vadd.f32 %v3985, %v4145
        %v4147 = vpop.f32.mrb[0].mxu0
        %4148 = vmatprep.mubr.bf16.mxu0 0
        %4149 = vmatmul.mubr.bf16.gmra.mrb[0].mxu0 %v3610
        %v4150 = vpop.f32.mrb[0].mxu0
        %v4151 = vadd.f32 %v3990, %v4150
        %v4152 = vpop.f32.mrb[0].mxu0
        %v4153 = vpop.f32.mrb[0].mxu0
        %v4154 = vadd.f32 %v3993, %v4153
        %v4155 = vpop.f32.mrb[0].mxu0
        %4156 = vmatprep.mubr.bf16.mxu0 0
        %4157 = vmatmul.mubr.bf16.gmra.mrb[0].mxu0 %v3613
        %v4158 = vpop.f32.mrb[0].mxu0
        %v4159 = vadd.f32 %v3998, %v4158
        %v4160 = vpop.f32.mrb[0].mxu0
        %v4161 = vpop.f32.mrb[0].mxu0
        %v4162 = vadd.f32 %v4001, %v4161
        %v4163 = vpop.f32.mrb[0].mxu0
        %4164 = vmatprep.mubr.bf16.mxu0 0
        %4165 = vmatmul.mubr.bf16.gmra.mrb[0].mxu0 %v3616
        %v4166 = vpop.f32.mrb[0].mxu0
        %v4167 = vadd.f32 %v4006, %v4166
        %v4168 = vpop.f32.mrb[0].mxu0
        %v4169 = vpop.f32.mrb[0].mxu0
        %v4170 = vadd.f32 %v4009, %v4169
        %v4171 = vpop.f32.mrb[0].mxu0
        %4172 = vmatprep.mubr.bf16.mxu0 0
        %4173 = vmatmul.mubr.bf16.gmra.mrb[0].mxu0 %v3619
        %v4174 = vpop.f32.mrb[0].mxu0
        %v4175 = vadd.f32 %v4014, %v4174
        %v4176 = vpop.f32.mrb[0].mxu0
        %v4177 = vpop.f32.mrb[0].mxu0
        %v4178 = vadd.f32 %v4017, %v4177
        %v4179 = vpop.f32.mrb[0].mxu0
        %4180 = vmatprep.mubr.bf16.mxu0 0
        %4181 = vmatmul.mubr.bf16.gmra.mrb[0].mxu0 %v3622
        %v4182 = vpop.f32.mrb[0].mxu0
        %v4183 = vadd.f32 %v4022, %v4182
        %v4184 = vpop.f32.mrb[0].mxu0
        %v4185 = vpop.f32.mrb[0].mxu0
        %v4186 = vadd.f32 %v4025, %v4185
        %v4187 = vpop.f32.mrb[0].mxu0
        %4188 = vmatprep.mubr.bf16.mxu0 0
        %4189 = vmatmul.mubr.bf16.gmra.mrb[0].mxu0 %v3625
        %v4190 = vpop.f32.mrb[0].mxu0
        %v4191 = vadd.f32 %v4030, %v4190
        %v4192 = vpop.f32.mrb[0].mxu0
        %v4193 = vpop.f32.mrb[0].mxu0
        %v4194 = vadd.f32 %v4033, %v4193
        %v4195 = vpop.f32.mrb[0].mxu0
        %4196 = vmatprep.mubr.bf16.mxu0 0
        %4197 = vmatmul.mubr.bf16.gmra.mrb[0].mxu0 %v3628
        %v4198 = vpop.f32.mrb[0].mxu0
        %v4199 = vadd.f32 %v4038, %v4198
        %v4200 = vpop.f32.mrb[0].mxu0
        %v4201 = vpop.f32.mrb[0].mxu0
        %v4202 = vadd.f32 %v4041, %v4201
        %v4203 = vpop.f32.mrb[0].mxu0
        %4204 = vmatprep.mubr.bf16.mxu0 0
        %4205 = vmatmul.mubr.bf16.gmra.mrb[0].mxu0 %v3631
        %v4206 = vpop.f32.mrb[0].mxu0
        %v4207 = vadd.f32 %v4046, %v4206
        %v4208 = vpop.f32.mrb[0].mxu0
        %v4209 = vpop.f32.mrb[0].mxu0
        %v4210 = vadd.f32 %v4049, %v4209
        %v4211 = vpop.f32.mrb[0].mxu0
        %4212 = vmatprep.mubr.bf16.mxu0 0
        %4213 = vmatmul.mubr.bf16.gmra.mrb[0].mxu0 %v3634
        %v4214 = vpop.f32.mrb[0].mxu0
        %v4215 = vadd.f32 %v4054, %v4214
        %v4216 = vpop.f32.mrb[0].mxu0
        %v4217 = vpop.f32.mrb[0].mxu0
        %v4218 = vadd.f32 %v4057, %v4217
        %v4219 = vpop.f32.mrb[0].mxu0
        %4220 = vmatprep.mubr.bf16.mxu0 0
        %4221 = vmatmul.mubr.bf16.gmra.mrb[0].mxu0 %v3637
        %v4222 = vpop.f32.mrb[0].mxu0
        %v4223 = vadd.f32 %v4062, %v4222
        %v4224 = vpop.f32.mrb[0].mxu0
        %v4225 = vpop.f32.mrb[0].mxu0
        %v4226 = vadd.f32 %v4065, %v4225
        %v4227 = vpop.f32.mrb[0].mxu0
        %4228 = vmatprep.mubr.bf16.mxu0 0
        %4229 = vmatmul.mubr.bf16.gmra.mrb[0].mxu0 %v3640
        %v4230 = vpop.f32.mrb[0].mxu0
        %v4231 = vadd.f32 %v4070, %v4230
        %v4232 = vpop.f32.mrb[0].mxu0
        %v4233 = vpop.f32.mrb[0].mxu0
        %v4234 = vadd.f32 %v4073, %v4233
        %v4235 = vpop.f32.mrb[0].mxu0
        %4236 = vmatprep.mubr.bf16.mxu0 0
        %4237 = vmatmul.mubr.bf16.gmra.mrb[0].mxu0 %v3729
        %v4238 = vpop.f32.mrb[0].mxu0
        %v4239 = vadd.f32 %v4078, %v4238
        %v4240 = vpop.f32.mrb[0].mxu0
        %v4241 = vpop.f32.mrb[0].mxu0
        %v4242 = vadd.f32 %v4081, %v4241
        %v4243 = vpop.f32.mrb[0].mxu0
        %4244 = vdwg.mxu0
        %v4293 = vunpack.c.l.b16 %v3657
        %v4294 = vunpack.c.l.b16 %v3658
        %v4295 = vunpack.c.l.b16 %v3659
        %v4296 = vunpack.c.l.b16 %v3660
        %v4297 = vunpack.c.l.b16 %v3661
        %v4298 = vunpack.c.l.b16 %v3662
        %v4299 = vunpack.c.l.b16 %v3663
        %v4300 = vunpack.c.l.b16 %v3664
        %v4301 = vunpack.c.l.b16 %v3665
        %v4302 = vunpack.c.l.b16 %v3666
        %v4303 = vunpack.c.l.b16 %v3667
        %v4304 = vunpack.c.l.b16 %v3668
        %v4305 = vunpack.c.l.b16 %v3669
        %v4306 = vunpack.c.l.b16 %v3670
        %v4307 = vunpack.c.l.b16 %v3671
        %v4308 = vunpack.c.l.b16 %v3672
        %v4309 = vunpack.c.l.b16 %v3673
        %v4310 = vunpack.c.l.b16 %v3674
        %v4311 = vunpack.c.l.b16 %v3675
        %v4312 = vunpack.c.l.b16 %v3676
        %v4313 = vunpack.c.l.b16 %v3677
        %v4314 = vunpack.c.l.b16 %v3678
        %v4315 = vunpack.c.l.b16 %v3679
        %v4316 = vunpack.c.l.b16 %v3680
        %v4317 = vunpack.c.l.b16 %v3681
        %v4318 = vunpack.c.l.b16 %v3682
        %v4319 = vunpack.c.l.b16 %v3683
        %v4320 = vunpack.c.l.b16 %v3684
        %v4321 = vunpack.c.l.b16 %v3685
        %v4322 = vunpack.c.l.b16 %v3686
        %v4323 = vunpack.c.l.b16 %v3687
        %v4324 = vunpack.c.l.b16 %v3688
        %v4325 = vunpack.c.l.b16 %v3689
        %v4326 = vunpack.c.l.b16 %v3690
        %v4327 = vunpack.c.l.b16 %v3691
        %v4328 = vunpack.c.l.b16 %v3692
        %v4329 = vunpack.c.l.b16 %v3693
        %v4330 = vunpack.c.l.b16 %v3694
        %v4331 = vunpack.c.l.b16 %v3695
        %v4332 = vunpack.c.l.b16 %v3696
        %v4333 = vunpack.c.l.b16 %v3697
        %v4334 = vunpack.c.l.b16 %v3698
        %v4335 = vunpack.c.l.b16 %v3699
        %v4336 = vunpack.c.l.b16 %v3700
        %v4337 = vunpack.c.l.b16 %v3701
        %v4338 = vunpack.c.l.b16 %v3702
        %v4339 = vunpack.c.l.b16 %v3703
        %v4340 = vunpack.c.l.b16 %v3704
        %v4341 = vpack.c.b16 %v4294, %v4293
        %v4342 = vpack.c.b16 %v4296, %v4295
        %v4343 = vpack.c.b16 %v4298, %v4297
        %v4344 = vpack.c.b16 %v4300, %v4299
        %v4345 = vpack.c.b16 %v4302, %v4301
        %v4346 = vpack.c.b16 %v4304, %v4303
        %v4347 = vpack.c.b16 %v4306, %v4305
        %v4348 = vpack.c.b16 %v4308, %v4307
        %v4349 = vpack.c.b16 %v4310, %v4309
        %v4350 = vpack.c.b16 %v4312, %v4311
        %v4351 = vpack.c.b16 %v4314, %v4313
        %v4352 = vpack.c.b16 %v4316, %v4315
        %v4353 = vpack.c.b16 %v4318, %v4317
        %v4354 = vpack.c.b16 %v4320, %v4319
        %v4355 = vpack.c.b16 %v4322, %v4321
        %v4356 = vpack.c.b16 %v4324, %v4323
        %v4357 = vpack.c.b16 %v4326, %v4325
        %v4358 = vpack.c.b16 %v4328, %v4327
        %v4359 = vpack.c.b16 %v4330, %v4329
        %v4360 = vpack.c.b16 %v4332, %v4331
        %v4361 = vpack.c.b16 %v4334, %v4333
        %v4362 = vpack.c.b16 %v4336, %v4335
        %v4363 = vpack.c.b16 %v4338, %v4337
        %v4364 = vpack.c.b16 %v4340, %v4339
        %4389 = vmatprep.subr.bf16.mxu0 0
        %4390 = vmatpush1.bf16.msra.mxu0 %v4341
        %4391 = vmatprep.subr.bf16.mxu0 0
        %4392 = vmatpush1.bf16.msra.mxu0 %v4342
        %4393 = vmatprep.subr.bf16.mxu0 0
        %4394 = vmatpush1.bf16.msra.mxu0 %v4343
        %4395 = vmatprep.subr.bf16.mxu0 0
        %4396 = vmatpush1.bf16.msra.mxu0 %v4344
        %4397 = vmatprep.subr.bf16.mxu0 0
        %4398 = vmatpush1.bf16.msra.mxu0 %v4345
        %4399 = vmatprep.subr.bf16.mxu0 0
        %4400 = vmatpush1.bf16.msra.mxu0 %v4346
        %4401 = vmatprep.subr.bf16.mxu0 0
        %4402 = vmatpush1.bf16.msra.mxu0 %v4347
        %4403 = vmatprep.subr.bf16.mxu0 0
        %4404 = vmatpush1.bf16.msra.mxu0 %v4348
        %4405 = vmatprep.subr.bf16.mxu0 0
        %4406 = vmatpush1.bf16.msra.mxu0 %v4349
        %4407 = vmatprep.subr.bf16.mxu0 0
        %4408 = vmatpush1.bf16.msra.mxu0 %v4350
        %4409 = vmatprep.subr.bf16.mxu0 0
        %4410 = vmatpush1.bf16.msra.mxu0 %v4351
        %4411 = vmatprep.subr.bf16.mxu0 0
        %4412 = vmatpush1.bf16.msra.mxu0 %v4352
        %4413 = vmatprep.subr.bf16.mxu0 0
        %4414 = vmatpush1.bf16.msra.mxu0 %v4353
        %4415 = vmatprep.subr.bf16.mxu0 0
        %4416 = vmatpush1.bf16.msra.mxu0 %v4354
        %4417 = vmatprep.subr.bf16.mxu0 0
        %4418 = vmatpush1.bf16.msra.mxu0 %v4355
        %4419 = vmatprep.subr.bf16.mxu0 0
        %4420 = vmatpush1.bf16.msra.mxu0 %v4356
        %4421 = vmatprep.mubr.bf16.mxu0 %v3396
        %4422 = vmatmul.mubr.bf16.gmra.mrb[0].mxu0 %v3305
        %v4423 = vpop.f32.mrb[0].mxu0
        %v4424 = vadd.f32 %v4119, %v4423
        %v4425 = vpop.f32.mrb[0].mxu0
        %v4426 = vpop.f32.mrb[0].mxu0
        %v4427 = vadd.f32 %v4122, %v4426
        %v4428 = vpop.f32.mrb[0].mxu0
        %4429 = vmatprep.mubr.bf16.mxu0 %v3408
        %4430 = vmatmul.mubr.bf16.gmra.mrb[0].mxu0 %v3306
        %v4431 = vpop.f32.mrb[0].mxu0
        %v4432 = vadd.f32 %v4127, %v4431
        %v4433 = vpop.f32.mrb[0].mxu0
        %v4434 = vpop.f32.mrb[0].mxu0
        %v4435 = vadd.f32 %v4130, %v4434
        %v4436 = vpop.f32.mrb[0].mxu0
        %4437 = vmatprep.mubr.bf16.mxu0 %v3420
        %4438 = vmatmul.mubr.bf16.gmra.mrb[0].mxu0 %v3307
        %v4439 = vpop.f32.mrb[0].mxu0
        %v4440 = vadd.f32 %v4135, %v4439
        %v4441 = vpop.f32.mrb[0].mxu0
        %v4442 = vpop.f32.mrb[0].mxu0
        %v4443 = vadd.f32 %v4138, %v4442
        %v4444 = vpop.f32.mrb[0].mxu0
        %4445 = vmatprep.mubr.bf16.mxu0 %v3432
        %4446 = vmatmul.mubr.bf16.gmra.mrb[0].mxu0 %v3308
        %v4447 = vpop.f32.mrb[0].mxu0
        %v4448 = vadd.f32 %v4143, %v4447
        %v4449 = vpop.f32.mrb[0].mxu0
        %v4450 = vpop.f32.mrb[0].mxu0
        %v4451 = vadd.f32 %v4146, %v4450
        %v4452 = vpop.f32.mrb[0].mxu0
        %4453 = vmatprep.mubr.bf16.mxu0 %v3444
        %4454 = vmatmul.mubr.bf16.gmra.mrb[0].mxu0 %v3309
        %v4455 = vpop.f32.mrb[0].mxu0
        %v4456 = vadd.f32 %v4151, %v4455
        %v4457 = vpop.f32.mrb[0].mxu0
        %v4458 = vpop.f32.mrb[0].mxu0
        %v4459 = vadd.f32 %v4154, %v4458
        %v4460 = vpop.f32.mrb[0].mxu0
        %4461 = vmatprep.mubr.bf16.mxu0 %v3456
        %4462 = vmatmul.mubr.bf16.gmra.mrb[0].mxu0 %v3310
        %v4463 = vpop.f32.mrb[0].mxu0
        %v4464 = vadd.f32 %v4159, %v4463
        %v4465 = vpop.f32.mrb[0].mxu0
        %v4466 = vpop.f32.mrb[0].mxu0
        %v4467 = vadd.f32 %v4162, %v4466
        %v4468 = vpop.f32.mrb[0].mxu0
        %4469 = vmatprep.mubr.bf16.mxu0 %v3468
        %4470 = vmatmul.mubr.bf16.gmra.mrb[0].mxu0 %v3311
        %v4471 = vpop.f32.mrb[0].mxu0
        %v4472 = vadd.f32 %v4167, %v4471
        %v4473 = vpop.f32.mrb[0].mxu0
        %v4474 = vpop.f32.mrb[0].mxu0
        %v4475 = vadd.f32 %v4170, %v4474
        %v4476 = vpop.f32.mrb[0].mxu0
        %4477 = vmatprep.mubr.bf16.mxu0 %v3480
        %4478 = vmatmul.mubr.bf16.gmra.mrb[0].mxu0 %v3312
        %v4479 = vpop.f32.mrb[0].mxu0
        %v4480 = vadd.f32 %v4175, %v4479
        %v4481 = vpop.f32.mrb[0].mxu0
        %v4482 = vpop.f32.mrb[0].mxu0
        %v4483 = vadd.f32 %v4178, %v4482
        %v4484 = vpop.f32.mrb[0].mxu0
        %4485 = vmatprep.mubr.bf16.mxu0 %v3492
        %4486 = vmatmul.mubr.bf16.gmra.mrb[0].mxu0 %v3313
        %v4487 = vpop.f32.mrb[0].mxu0
        %v4488 = vadd.f32 %v4183, %v4487
        %v4489 = vpop.f32.mrb[0].mxu0
        %v4490 = vpop.f32.mrb[0].mxu0
        %v4491 = vadd.f32 %v4186, %v4490
        %v4492 = vpop.f32.mrb[0].mxu0
        %4493 = vmatprep.mubr.bf16.mxu0 %v3504
        %4494 = vmatmul.mubr.bf16.gmra.mrb[0].mxu0 %v3314
        %v4495 = vpop.f32.mrb[0].mxu0
        %v4496 = vadd.f32 %v4191, %v4495
        %v4497 = vpop.f32.mrb[0].mxu0
        %v4498 = vpop.f32.mrb[0].mxu0
        %v4499 = vadd.f32 %v4194, %v4498
        %v4500 = vpop.f32.mrb[0].mxu0
        %4501 = vmatprep.mubr.bf16.mxu0 %v3516
        %4502 = vmatmul.mubr.bf16.gmra.mrb[0].mxu0 %v3315
        %v4503 = vpop.f32.mrb[0].mxu0
        %v4504 = vadd.f32 %v4199, %v4503
        %v4505 = vpop.f32.mrb[0].mxu0
        %v4506 = vpop.f32.mrb[0].mxu0
        %v4507 = vadd.f32 %v4202, %v4506
        %v4508 = vpop.f32.mrb[0].mxu0
        %4509 = vmatprep.mubr.bf16.mxu0 %v3528
        %4510 = vmatmul.mubr.bf16.gmra.mrb[0].mxu0 %v3316
        %v4511 = vpop.f32.mrb[0].mxu0
        %v4512 = vadd.f32 %v4207, %v4511
        %v4513 = vpop.f32.mrb[0].mxu0
        %v4514 = vpop.f32.mrb[0].mxu0
        %v4515 = vadd.f32 %v4210, %v4514
        %v4516 = vpop.f32.mrb[0].mxu0
        %4517 = vmatprep.mubr.bf16.mxu0 %v3540
        %4518 = vmatmul.mubr.bf16.gmra.mrb[0].mxu0 %v3317
        %v4519 = vpop.f32.mrb[0].mxu0
        %v4520 = vadd.f32 %v4215, %v4519
        %v4521 = vpop.f32.mrb[0].mxu0
        %v4522 = vpop.f32.mrb[0].mxu0
        %v4523 = vadd.f32 %v4218, %v4522
        %v4524 = vpop.f32.mrb[0].mxu0
        %4525 = vmatprep.mubr.bf16.mxu0 %v3552
        %4526 = vmatmul.mubr.bf16.gmra.mrb[0].mxu0 %v3318
        %v4527 = vpop.f32.mrb[0].mxu0
        %v4528 = vadd.f32 %v4223, %v4527
        %v4529 = vpop.f32.mrb[0].mxu0
        %v4530 = vpop.f32.mrb[0].mxu0
        %v4531 = vadd.f32 %v4226, %v4530
        %v4532 = vpop.f32.mrb[0].mxu0
        %4533 = vmatprep.mubr.bf16.mxu0 %v3564
        %4534 = vmatmul.mubr.bf16.gmra.mrb[0].mxu0 %v3319
        %v4535 = vpop.f32.mrb[0].mxu0
        %v4536 = vadd.f32 %v4231, %v4535
        %v4537 = vpop.f32.mrb[0].mxu0
        %v4538 = vpop.f32.mrb[0].mxu0
        %v4539 = vadd.f32 %v4234, %v4538
        %v4540 = vpop.f32.mrb[0].mxu0
        %4541 = vmatprep.mubr.bf16.mxu0 %v3576
        %4542 = vmatmul.mubr.bf16.gmra.mrb[0].mxu0 %v3320
        %v4543 = vpop.f32.mrb[0].mxu0
        %v4544 = vadd.f32 %v4239, %v4543
        %v4545 = vpop.f32.mrb[0].mxu0
        %v4546 = vpop.f32.mrb[0].mxu0
        %v4547 = vadd.f32 %v4242, %v4546
        %v4548 = vpop.f32.mrb[0].mxu0
        %4549 = vdwg.mxu0
        %4550 = vmatprep.subr.bf16.mxu0 0
        %4551 = vmatpush1.bf16.msra.mxu0 %v4357
        %4552 = vmatprep.subr.bf16.mxu0 0
        %4553 = vmatpush1.bf16.msra.mxu0 %v4358
        %4554 = vmatprep.subr.bf16.mxu0 0
        %4555 = vmatpush1.bf16.msra.mxu0 %v4359
        %4556 = vmatprep.subr.bf16.mxu0 0
        %4557 = vmatpush1.bf16.msra.mxu0 %v4360
        %4558 = vmatprep.subr.bf16.mxu0 0
        %4559 = vmatpush1.bf16.msra.mxu0 %v4361
        %4560 = vmatprep.subr.bf16.mxu0 0
        %4561 = vmatpush1.bf16.msra.mxu0 %v4362
        %4562 = vmatprep.subr.bf16.mxu0 0
        %4563 = vmatpush1.bf16.msra.mxu0 %v4363
        %4564 = vmatprep.subr.bf16.mxu0 0
        %4565 = vmatpush1.bf16.msra.mxu0 %v4364
        %4566 = vmatprep.subr.bf16.mxu0 0
        %4567 = vmatpush1.bf16.msra.mxu0 0
        %4568 = vmatprep.subr.bf16.mxu0 0
        %4569 = vmatpush1.bf16.msra.mxu0 0
        %4570 = vmatprep.subr.bf16.mxu0 0
        %4571 = vmatpush1.bf16.msra.mxu0 0
        %4572 = vmatprep.subr.bf16.mxu0 0
        %4573 = vmatpush1.bf16.msra.mxu0 0
        %4574 = vmatprep.subr.bf16.mxu0 0
        %4575 = vmatpush1.bf16.msra.mxu0 0
        %4576 = vmatprep.subr.bf16.mxu0 0
        %4577 = vmatpush1.bf16.msra.mxu0 0
        %4578 = vmatprep.subr.bf16.mxu0 0
        %4579 = vmatpush1.bf16.msra.mxu0 0
        %4580 = vmatprep.subr.bf16.mxu0 0
        %4581 = vmatpush1.bf16.msra.mxu0 0
        %4582 = vmatprep.mubr.bf16.mxu0 0
        %4583 = vmatmul.mubr.bf16.gmra.mrb[0].mxu0 %v3595
        %v4584 = vpop.f32.mrb[0].mxu0
        %v4585 = vadd.f32 %v4424, %v4584
        %v4586 = vpop.f32.mrb[0].mxu0
        %v4587 = vpop.f32.mrb[0].mxu0
        %v4588 = vadd.f32 %v4427, %v4587
        %v4589 = vpop.f32.mrb[0].mxu0
        %4590 = vmatprep.mubr.bf16.mxu0 0
        %4591 = vmatmul.mubr.bf16.gmra.mrb[0].mxu0 %v3598
        %v4592 = vpop.f32.mrb[0].mxu0
        %v4593 = vadd.f32 %v4432, %v4592
        %v4594 = vpop.f32.mrb[0].mxu0
        %v4595 = vpop.f32.mrb[0].mxu0
        %v4596 = vadd.f32 %v4435, %v4595
        %v4597 = vpop.f32.mrb[0].mxu0
        %4598 = vmatprep.mubr.bf16.mxu0 0
        %4599 = vmatmul.mubr.bf16.gmra.mrb[0].mxu0 %v3601
        %v4600 = vpop.f32.mrb[0].mxu0
        %v4601 = vadd.f32 %v4440, %v4600
        %v4602 = vpop.f32.mrb[0].mxu0
        %v4603 = vpop.f32.mrb[0].mxu0
        %v4604 = vadd.f32 %v4443, %v4603
        %v4605 = vpop.f32.mrb[0].mxu0
        %4606 = vmatprep.mubr.bf16.mxu0 0
        %4607 = vmatmul.mubr.bf16.gmra.mrb[0].mxu0 %v3604
        %v4608 = vpop.f32.mrb[0].mxu0
        %v4609 = vadd.f32 %v4448, %v4608
        %v4610 = vpop.f32.mrb[0].mxu0
        %v4611 = vpop.f32.mrb[0].mxu0
        %v4612 = vadd.f32 %v4451, %v4611
        %v4613 = vpop.f32.mrb[0].mxu0
        %4614 = vmatprep.mubr.bf16.mxu0 0
        %4615 = vmatmul.mubr.bf16.gmra.mrb[0].mxu0 %v3607
        %v4616 = vpop.f32.mrb[0].mxu0
        %v4617 = vadd.f32 %v4456, %v4616
        %v4618 = vpop.f32.mrb[0].mxu0
        %v4619 = vpop.f32.mrb[0].mxu0
        %v4620 = vadd.f32 %v4459, %v4619
        %v4621 = vpop.f32.mrb[0].mxu0
        %4622 = vmatprep.mubr.bf16.mxu0 0
        %4623 = vmatmul.mubr.bf16.gmra.mrb[0].mxu0 %v3610
        %v4624 = vpop.f32.mrb[0].mxu0
        %v4625 = vadd.f32 %v4464, %v4624
        %v4626 = vpop.f32.mrb[0].mxu0
        %v4627 = vpop.f32.mrb[0].mxu0
        %v4628 = vadd.f32 %v4467, %v4627
        %v4629 = vpop.f32.mrb[0].mxu0
        %4630 = vmatprep.mubr.bf16.mxu0 0
        %4631 = vmatmul.mubr.bf16.gmra.mrb[0].mxu0 %v3613
        %v4632 = vpop.f32.mrb[0].mxu0
        %v4633 = vadd.f32 %v4472, %v4632
        %v4634 = vpop.f32.mrb[0].mxu0
        %v4635 = vpop.f32.mrb[0].mxu0
        %v4636 = vadd.f32 %v4475, %v4635
        %v4637 = vpop.f32.mrb[0].mxu0
        %4638 = vmatprep.mubr.bf16.mxu0 0
        %4639 = vmatmul.mubr.bf16.gmra.mrb[0].mxu0 %v3616
        %v4640 = vpop.f32.mrb[0].mxu0
        %v4641 = vadd.f32 %v4480, %v4640
        %v4642 = vpop.f32.mrb[0].mxu0
        %v4643 = vpop.f32.mrb[0].mxu0
        %v4644 = vadd.f32 %v4483, %v4643
        %v4645 = vpop.f32.mrb[0].mxu0
        %4646 = vmatprep.mubr.bf16.mxu0 0
        %4647 = vmatmul.mubr.bf16.gmra.mrb[0].mxu0 %v3619
        %v4648 = vpop.f32.mrb[0].mxu0
        %v4649 = vadd.f32 %v4488, %v4648
        %v4650 = vpop.f32.mrb[0].mxu0
        %v4651 = vpop.f32.mrb[0].mxu0
        %v4652 = vadd.f32 %v4491, %v4651
        %v4653 = vpop.f32.mrb[0].mxu0
        %4654 = vmatprep.mubr.bf16.mxu0 0
        %4655 = vmatmul.mubr.bf16.gmra.mrb[0].mxu0 %v3622
        %v4656 = vpop.f32.mrb[0].mxu0
        %v4657 = vadd.f32 %v4496, %v4656
        %v4658 = vpop.f32.mrb[0].mxu0
        %v4659 = vpop.f32.mrb[0].mxu0
        %v4660 = vadd.f32 %v4499, %v4659
        %v4661 = vpop.f32.mrb[0].mxu0
        %4662 = vmatprep.mubr.bf16.mxu0 0
        %4663 = vmatmul.mubr.bf16.gmra.mrb[0].mxu0 %v3625
        %v4664 = vpop.f32.mrb[0].mxu0
        %v4665 = vadd.f32 %v4504, %v4664
        %v4666 = vpop.f32.mrb[0].mxu0
        %v4667 = vpop.f32.mrb[0].mxu0
        %v4668 = vadd.f32 %v4507, %v4667
        %v4669 = vpop.f32.mrb[0].mxu0
        %4670 = vmatprep.mubr.bf16.mxu0 0
        %4671 = vmatmul.mubr.bf16.gmra.mrb[0].mxu0 %v3628
        %v4672 = vpop.f32.mrb[0].mxu0
        %v4673 = vadd.f32 %v4512, %v4672
        %v4674 = vpop.f32.mrb[0].mxu0
        %v4675 = vpop.f32.mrb[0].mxu0
        %v4676 = vadd.f32 %v4515, %v4675
        %v4677 = vpop.f32.mrb[0].mxu0
        %4678 = vmatprep.mubr.bf16.mxu0 0
        %4679 = vmatmul.mubr.bf16.gmra.mrb[0].mxu0 %v3631
        %v4680 = vpop.f32.mrb[0].mxu0
        %v4681 = vadd.f32 %v4520, %v4680
        %v4682 = vpop.f32.mrb[0].mxu0
        %v4683 = vpop.f32.mrb[0].mxu0
        %v4684 = vadd.f32 %v4523, %v4683
        %v4685 = vpop.f32.mrb[0].mxu0
        %4686 = vmatprep.mubr.bf16.mxu0 0
        %4687 = vmatmul.mubr.bf16.gmra.mrb[0].mxu0 %v3634
        %v4688 = vpop.f32.mrb[0].mxu0
        %v4689 = vadd.f32 %v4528, %v4688
        %v4690 = vpop.f32.mrb[0].mxu0
        %v4691 = vpop.f32.mrb[0].mxu0
        %v4692 = vadd.f32 %v4531, %v4691
        %v4693 = vpop.f32.mrb[0].mxu0
        %4694 = vmatprep.mubr.bf16.mxu0 0
        %4695 = vmatmul.mubr.bf16.gmra.mrb[0].mxu0 %v3637
        %v4696 = vpop.f32.mrb[0].mxu0
        %v4697 = vadd.f32 %v4536, %v4696
        %v4698 = vpop.f32.mrb[0].mxu0
        %v4699 = vpop.f32.mrb[0].mxu0
        %v4700 = vadd.f32 %v4539, %v4699
        %v4701 = vpop.f32.mrb[0].mxu0
        %4702 = vmatprep.mubr.bf16.mxu0 0
        %4703 = vmatmul.mubr.bf16.gmra.mrb[0].mxu0 %v3640
        %v4704 = vpop.f32.mrb[0].mxu0
        %v4705 = vadd.f32 %v4544, %v4704
        %v4706 = vpop.f32.mrb[0].mxu0
        %v4707 = vpop.f32.mrb[0].mxu0
        %v4708 = vadd.f32 %v4547, %v4707
        %v4709 = vpop.f32.mrb[0].mxu0
        %4710 = vdwg.mxu0
        %v4713 = vunpack.c.l.b16 %v3238
        %v4714 = vunpack.c.l.b16 %v3239
        %v4715 = vpack.c.b16 %v4714, %v4713
        %v4718 = vunpack.c.l.b16 %v3240
        %v4719 = vpack.c.b16 %v4718, %v4718
        %v4721 = vshrl.u32 %v4715, 16
        %v4723 = vshll.u32 %v4715, 16
        %v4725 = vrot.slane %v4723, 1
        %v4726 = vor.u32 %v4721, %v4725
        %v4728 = vshll.u32 %v4719, 16
        %v4730 = vrot.slane %v4728, 1
        %v4731 = vsel %vm563, %v4726, %v4730
        %v4733 = vrot.slane %v4715, 1
        %v4734 = vrot.slane %v4719, 1
        %v4735 = vsel %vm772, %v4733, %v4734
        %v4737 = vld [vmem:[#allocation11 + $0x180] sm:$0xf]
        %v4738 = vld [vmem:[#allocation11 + $0x184] sm:$0xf]
        %v4739 = vld [vmem:[#allocation11 + $0x188] sm:$0xf]
        %v4740 = vld [vmem:[#allocation11 + $0x18c] sm:$0xf]
        %v4741 = vld [vmem:[#allocation11 + $0x190] sm:$0xf]
        %v4742 = vld [vmem:[#allocation11 + $0x194] sm:$0xf]
        %v4743 = vld [vmem:[#allocation11 + $0x198] sm:$0xf]
        %v4744 = vld [vmem:[#allocation11 + $0x19c] sm:$0xf]
        %v4745 = vld [vmem:[#allocation11 + $0x1a0] sm:$0xf]
        %v4746 = vld [vmem:[#allocation11 + $0x1a4] sm:$0xf]
        %v4747 = vld [vmem:[#allocation11 + $0x1a8] sm:$0xf]
        %v4748 = vld [vmem:[#allocation11 + $0x1ac] sm:$0xf]
        %v4749 = vld [vmem:[#allocation11 + $0x1b0] sm:$0xf]
        %v4750 = vld [vmem:[#allocation11 + $0x1b4] sm:$0xf]
        %v4751 = vld [vmem:[#allocation11 + $0x1b8] sm:$0xf]
        %v4752 = vld [vmem:[#allocation11 + $0x1bc] sm:$0xf]
        %v4753 = vld [vmem:[#allocation11 + $0x1c0] sm:$0xf]
        %v4754 = vld [vmem:[#allocation11 + $0x1c4] sm:$0xf]
        %v4755 = vld [vmem:[#allocation11 + $0x1c8] sm:$0xf]
        %v4756 = vld [vmem:[#allocation11 + $0x1cc] sm:$0xf]
        %v4757 = vld [vmem:[#allocation11 + $0x1d0] sm:$0xf]
        %v4758 = vld [vmem:[#allocation11 + $0x1d4] sm:$0xf]
        %v4759 = vld [vmem:[#allocation11 + $0x1d8] sm:$0xf]
        %v4760 = vld [vmem:[#allocation11 + $0x1dc] sm:$0xf]
        %v4761 = vld [vmem:[#allocation11 + $0x1e0] sm:$0xf]
        %v4762 = vld [vmem:[#allocation11 + $0x1e4] sm:$0xf]
        %v4763 = vld [vmem:[#allocation11 + $0x1e8] sm:$0xf]
        %v4764 = vld [vmem:[#allocation11 + $0x1ec] sm:$0xf]
        %v4765 = vld [vmem:[#allocation11 + $0x1f0] sm:$0xf]
        %v4766 = vld [vmem:[#allocation11 + $0x1f4] sm:$0xf]
        %v4767 = vld [vmem:[#allocation11 + $0x1f8] sm:$0xf]
        %v4768 = vld [vmem:[#allocation11 + $0x1fc] sm:$0xf]
        %v4769 = vld [vmem:[#allocation11 + $0x200] sm:$0xf]
        %v4770 = vld [vmem:[#allocation11 + $0x204] sm:$0xf]
        %v4771 = vld [vmem:[#allocation11 + $0x208] sm:$0xf]
        %v4772 = vld [vmem:[#allocation11 + $0x20c] sm:$0xf]
        %v4773 = vld [vmem:[#allocation11 + $0x210] sm:$0xf]
        %v4774 = vld [vmem:[#allocation11 + $0x214] sm:$0xf]
        %v4775 = vld [vmem:[#allocation11 + $0x218] sm:$0xf]
        %v4776 = vld [vmem:[#allocation11 + $0x21c] sm:$0xf]
        %v4777 = vld [vmem:[#allocation11 + $0x220] sm:$0xf]
        %v4778 = vld [vmem:[#allocation11 + $0x224] sm:$0xf]
        %v4779 = vld [vmem:[#allocation11 + $0x228] sm:$0xf]
        %v4780 = vld [vmem:[#allocation11 + $0x22c] sm:$0xf]
        %v4781 = vld [vmem:[#allocation11 + $0x230] sm:$0xf]
        %v4782 = vld [vmem:[#allocation11 + $0x234] sm:$0xf]
        %v4783 = vld [vmem:[#allocation11 + $0x238] sm:$0xf]
        %v4784 = vld [vmem:[#allocation11 + $0x23c] sm:$0xf]
        %v4833 = vunpack.c.l.b16 %v4737
        %v4834 = vunpack.c.l.b16 %v4738
        %v4835 = vunpack.c.l.b16 %v4739
        %v4836 = vunpack.c.l.b16 %v4740
        %v4837 = vunpack.c.l.b16 %v4741
        %v4838 = vunpack.c.l.b16 %v4742
        %v4839 = vunpack.c.l.b16 %v4743
        %v4840 = vunpack.c.l.b16 %v4744
        %v4841 = vunpack.c.l.b16 %v4745
        %v4842 = vunpack.c.l.b16 %v4746
        %v4843 = vunpack.c.l.b16 %v4747
        %v4844 = vunpack.c.l.b16 %v4748
        %v4845 = vunpack.c.l.b16 %v4749
        %v4846 = vunpack.c.l.b16 %v4750
        %v4847 = vunpack.c.l.b16 %v4751
        %v4848 = vunpack.c.l.b16 %v4752
        %v4849 = vunpack.c.l.b16 %v4753
        %v4850 = vunpack.c.l.b16 %v4754
        %v4851 = vunpack.c.l.b16 %v4755
        %v4852 = vunpack.c.l.b16 %v4756
        %v4853 = vunpack.c.l.b16 %v4757
        %v4854 = vunpack.c.l.b16 %v4758
        %v4855 = vunpack.c.l.b16 %v4759
        %v4856 = vunpack.c.l.b16 %v4760
        %v4857 = vunpack.c.l.b16 %v4761
        %v4858 = vunpack.c.l.b16 %v4762
        %v4859 = vunpack.c.l.b16 %v4763
        %v4860 = vunpack.c.l.b16 %v4764
        %v4861 = vunpack.c.l.b16 %v4765
        %v4862 = vunpack.c.l.b16 %v4766
        %v4863 = vunpack.c.l.b16 %v4767
        %v4864 = vunpack.c.l.b16 %v4768
        %v4865 = vunpack.c.l.b16 %v4769
        %v4866 = vunpack.c.l.b16 %v4770
        %v4867 = vunpack.c.l.b16 %v4771
        %v4868 = vunpack.c.l.b16 %v4772
        %v4869 = vunpack.c.l.b16 %v4773
        %v4870 = vunpack.c.l.b16 %v4774
        %v4871 = vunpack.c.l.b16 %v4775
        %v4872 = vunpack.c.l.b16 %v4776
        %v4873 = vunpack.c.l.b16 %v4777
        %v4874 = vunpack.c.l.b16 %v4778
        %v4875 = vunpack.c.l.b16 %v4779
        %v4876 = vunpack.c.l.b16 %v4780
        %v4877 = vunpack.c.l.b16 %v4781
        %v4878 = vunpack.c.l.b16 %v4782
        %v4879 = vunpack.c.l.b16 %v4783
        %v4880 = vunpack.c.l.b16 %v4784
        %v4881 = vpack.c.b16 %v4834, %v4833
        %v4882 = vpack.c.b16 %v4836, %v4835
        %v4883 = vpack.c.b16 %v4838, %v4837
        %v4884 = vpack.c.b16 %v4840, %v4839
        %v4885 = vpack.c.b16 %v4842, %v4841
        %v4886 = vpack.c.b16 %v4844, %v4843
        %v4887 = vpack.c.b16 %v4846, %v4845
        %v4888 = vpack.c.b16 %v4848, %v4847
        %v4889 = vpack.c.b16 %v4850, %v4849
        %v4890 = vpack.c.b16 %v4852, %v4851
        %v4891 = vpack.c.b16 %v4854, %v4853
        %v4892 = vpack.c.b16 %v4856, %v4855
        %v4893 = vpack.c.b16 %v4858, %v4857
        %v4894 = vpack.c.b16 %v4860, %v4859
        %v4895 = vpack.c.b16 %v4862, %v4861
        %v4896 = vpack.c.b16 %v4864, %v4863
        %v4897 = vpack.c.b16 %v4866, %v4865
        %v4898 = vpack.c.b16 %v4868, %v4867
        %v4899 = vpack.c.b16 %v4870, %v4869
        %v4900 = vpack.c.b16 %v4872, %v4871
        %v4901 = vpack.c.b16 %v4874, %v4873
        %v4902 = vpack.c.b16 %v4876, %v4875
        %v4903 = vpack.c.b16 %v4878, %v4877
        %v4904 = vpack.c.b16 %v4880, %v4879
        %4929 = vmatprep.subr.bf16.mxu0 0
        %4930 = vmatpush1.bf16.msra.mxu0 %v4881
        %4931 = vmatprep.subr.bf16.mxu0 0
        %4932 = vmatpush1.bf16.msra.mxu0 %v4882
        %4933 = vmatprep.subr.bf16.mxu0 0
        %4934 = vmatpush1.bf16.msra.mxu0 %v4883
        %4935 = vmatprep.subr.bf16.mxu0 0
        %4936 = vmatpush1.bf16.msra.mxu0 %v4884
        %4937 = vmatprep.subr.bf16.mxu0 0
        %4938 = vmatpush1.bf16.msra.mxu0 %v4885
        %4939 = vmatprep.subr.bf16.mxu0 0
        %4940 = vmatpush1.bf16.msra.mxu0 %v4886
        %4941 = vmatprep.subr.bf16.mxu0 0
        %4942 = vmatpush1.bf16.msra.mxu0 %v4887
        %4943 = vmatprep.subr.bf16.mxu0 0
        %4944 = vmatpush1.bf16.msra.mxu0 %v4888
        %4945 = vmatprep.subr.bf16.mxu0 0
        %4946 = vmatpush1.bf16.msra.mxu0 %v4889
        %4947 = vmatprep.subr.bf16.mxu0 0
        %4948 = vmatpush1.bf16.msra.mxu0 %v4890
        %4949 = vmatprep.subr.bf16.mxu0 0
        %4950 = vmatpush1.bf16.msra.mxu0 %v4891
        %4951 = vmatprep.subr.bf16.mxu0 0
        %4952 = vmatpush1.bf16.msra.mxu0 %v4892
        %4953 = vmatprep.subr.bf16.mxu0 0
        %4954 = vmatpush1.bf16.msra.mxu0 %v4893
        %4955 = vmatprep.subr.bf16.mxu0 0
        %4956 = vmatpush1.bf16.msra.mxu0 %v4894
        %4957 = vmatprep.subr.bf16.mxu0 0
        %4958 = vmatpush1.bf16.msra.mxu0 %v4895
        %4959 = vmatprep.subr.bf16.mxu0 0
        %4960 = vmatpush1.bf16.msra.mxu0 %v4896
        %4961 = vmatprep.mubr.bf16.mxu0 %v3420
        %4962 = vmatmul.mubr.bf16.gmra.mrb[0].mxu0 %v3307
        %v4963 = vpop.f32.mrb[0].mxu0
        %v4964 = vadd.f32 0.0, %v4963
        %v4965 = vpop.f32.mrb[0].mxu0
        %v4966 = vpop.f32.mrb[0].mxu0
        %v4967 = vadd.f32 0.0, %v4966
        %v4968 = vpop.f32.mrb[0].mxu0
        %4969 = vmatprep.mubr.bf16.mxu0 %v3432
        %4970 = vmatmul.mubr.bf16.gmra.mrb[0].mxu0 %v3308
        %v4971 = vpop.f32.mrb[0].mxu0
        %v4972 = vadd.f32 0.0, %v4971
        %v4973 = vpop.f32.mrb[0].mxu0
        %v4974 = vpop.f32.mrb[0].mxu0
        %v4975 = vadd.f32 0.0, %v4974
        %v4976 = vpop.f32.mrb[0].mxu0
        %4977 = vmatprep.mubr.bf16.mxu0 %v3444
        %4978 = vmatmul.mubr.bf16.gmra.mrb[0].mxu0 %v3309
        %v4979 = vpop.f32.mrb[0].mxu0
        %v4980 = vadd.f32 0.0, %v4979
        %v4981 = vpop.f32.mrb[0].mxu0
        %v4982 = vpop.f32.mrb[0].mxu0
        %v4983 = vadd.f32 0.0, %v4982
        %v4984 = vpop.f32.mrb[0].mxu0
        %4985 = vmatprep.mubr.bf16.mxu0 %v3456
        %4986 = vmatmul.mubr.bf16.gmra.mrb[0].mxu0 %v3310
        %v4987 = vpop.f32.mrb[0].mxu0
        %v4988 = vadd.f32 0.0, %v4987
        %v4989 = vpop.f32.mrb[0].mxu0
        %v4990 = vpop.f32.mrb[0].mxu0
        %v4991 = vadd.f32 0.0, %v4990
        %v4992 = vpop.f32.mrb[0].mxu0
        %4993 = vmatprep.mubr.bf16.mxu0 %v3468
        %4994 = vmatmul.mubr.bf16.gmra.mrb[0].mxu0 %v3311
        %v4995 = vpop.f32.mrb[0].mxu0
        %v4996 = vadd.f32 0.0, %v4995
        %v4997 = vpop.f32.mrb[0].mxu0
        %v4998 = vpop.f32.mrb[0].mxu0
        %v4999 = vadd.f32 0.0, %v4998
        %v5000 = vpop.f32.mrb[0].mxu0
        %5001 = vmatprep.mubr.bf16.mxu0 %v3480
        %5002 = vmatmul.mubr.bf16.gmra.mrb[0].mxu0 %v3312
        %v5003 = vpop.f32.mrb[0].mxu0
        %v5004 = vadd.f32 0.0, %v5003
        %v5005 = vpop.f32.mrb[0].mxu0
        %v5006 = vpop.f32.mrb[0].mxu0
        %v5007 = vadd.f32 0.0, %v5006
        %v5008 = vpop.f32.mrb[0].mxu0
        %5009 = vmatprep.mubr.bf16.mxu0 %v3492
        %5010 = vmatmul.mubr.bf16.gmra.mrb[0].mxu0 %v3313
        %v5011 = vpop.f32.mrb[0].mxu0
        %v5012 = vadd.f32 0.0, %v5011
        %v5013 = vpop.f32.mrb[0].mxu0
        %v5014 = vpop.f32.mrb[0].mxu0
        %v5015 = vadd.f32 0.0, %v5014
        %v5016 = vpop.f32.mrb[0].mxu0
        %5017 = vmatprep.mubr.bf16.mxu0 %v3504
        %5018 = vmatmul.mubr.bf16.gmra.mrb[0].mxu0 %v3314
        %v5019 = vpop.f32.mrb[0].mxu0
        %v5020 = vadd.f32 0.0, %v5019
        %v5021 = vpop.f32.mrb[0].mxu0
        %v5022 = vpop.f32.mrb[0].mxu0
        %v5023 = vadd.f32 0.0, %v5022
        %v5024 = vpop.f32.mrb[0].mxu0
        %5025 = vmatprep.mubr.bf16.mxu0 %v3516
        %5026 = vmatmul.mubr.bf16.gmra.mrb[0].mxu0 %v3315
        %v5027 = vpop.f32.mrb[0].mxu0
        %v5028 = vadd.f32 0.0, %v5027
        %v5029 = vpop.f32.mrb[0].mxu0
        %v5030 = vpop.f32.mrb[0].mxu0
        %v5031 = vadd.f32 0.0, %v5030
        %v5032 = vpop.f32.mrb[0].mxu0
        %5033 = vmatprep.mubr.bf16.mxu0 %v3528
        %5034 = vmatmul.mubr.bf16.gmra.mrb[0].mxu0 %v3316
        %v5035 = vpop.f32.mrb[0].mxu0
        %v5036 = vadd.f32 0.0, %v5035
        %v5037 = vpop.f32.mrb[0].mxu0
        %v5038 = vpop.f32.mrb[0].mxu0
        %v5039 = vadd.f32 0.0, %v5038
        %v5040 = vpop.f32.mrb[0].mxu0
        %5041 = vmatprep.mubr.bf16.mxu0 %v3540
        %5042 = vmatmul.mubr.bf16.gmra.mrb[0].mxu0 %v3317
        %v5043 = vpop.f32.mrb[0].mxu0
        %v5044 = vadd.f32 0.0, %v5043
        %v5045 = vpop.f32.mrb[0].mxu0
        %v5046 = vpop.f32.mrb[0].mxu0
        %v5047 = vadd.f32 0.0, %v5046
        %v5048 = vpop.f32.mrb[0].mxu0
        %5049 = vmatprep.mubr.bf16.mxu0 %v3552
        %5050 = vmatmul.mubr.bf16.gmra.mrb[0].mxu0 %v3318
        %v5051 = vpop.f32.mrb[0].mxu0
        %v5052 = vadd.f32 0.0, %v5051
        %v5053 = vpop.f32.mrb[0].mxu0
        %v5054 = vpop.f32.mrb[0].mxu0
        %v5055 = vadd.f32 0.0, %v5054
        %v5056 = vpop.f32.mrb[0].mxu0
        %5057 = vmatprep.mubr.bf16.mxu0 %v3564
        %5058 = vmatmul.mubr.bf16.gmra.mrb[0].mxu0 %v3319
        %v5059 = vpop.f32.mrb[0].mxu0
        %v5060 = vadd.f32 0.0, %v5059
        %v5061 = vpop.f32.mrb[0].mxu0
        %v5062 = vpop.f32.mrb[0].mxu0
        %v5063 = vadd.f32 0.0, %v5062
        %v5064 = vpop.f32.mrb[0].mxu0
        %5065 = vmatprep.mubr.bf16.mxu0 %v3576
        %5066 = vmatmul.mubr.bf16.gmra.mrb[0].mxu0 %v3320
        %v5067 = vpop.f32.mrb[0].mxu0
        %v5068 = vadd.f32 0.0, %v5067
        %v5069 = vpop.f32.mrb[0].mxu0
        %v5070 = vpop.f32.mrb[0].mxu0
        %v5071 = vadd.f32 0.0, %v5070
        %v5072 = vpop.f32.mrb[0].mxu0
        %5073 = vmatprep.mubr.bf16.mxu0 %v3725
        %5074 = vmatmul.mubr.bf16.gmra.mrb[0].mxu0 %v3709
        %v5075 = vpop.f32.mrb[0].mxu0
        %v5076 = vadd.f32 0.0, %v5075
        %v5077 = vpop.f32.mrb[0].mxu0
        %v5078 = vpop.f32.mrb[0].mxu0
        %v5079 = vadd.f32 0.0, %v5078
        %v5080 = vpop.f32.mrb[0].mxu0
        %5081 = vmatprep.mubr.bf16.mxu0 %v4731
        %5082 = vmatmul.mubr.bf16.gmra.mrb[0].mxu0 %v4715
        %v5083 = vpop.f32.mrb[0].mxu0
        %v5084 = vadd.f32 0.0, %v5083
        %v5085 = vpop.f32.mrb[0].mxu0
        %v5086 = vpop.f32.mrb[0].mxu0
        %v5087 = vadd.f32 0.0, %v5086
        %v5088 = vpop.f32.mrb[0].mxu0
        %5089 = vdwg.mxu0
        %5090 = vmatprep.subr.bf16.mxu0 0
        %5091 = vmatpush1.bf16.msra.mxu0 %v4897
        %5092 = vmatprep.subr.bf16.mxu0 0
        %5093 = vmatpush1.bf16.msra.mxu0 %v4898
        %5094 = vmatprep.subr.bf16.mxu0 0
        %5095 = vmatpush1.bf16.msra.mxu0 %v4899
        %5096 = vmatprep.subr.bf16.mxu0 0
        %5097 = vmatpush1.bf16.msra.mxu0 %v4900
        %5098 = vmatprep.subr.bf16.mxu0 0
        %5099 = vmatpush1.bf16.msra.mxu0 %v4901
        %5100 = vmatprep.subr.bf16.mxu0 0
        %5101 = vmatpush1.bf16.msra.mxu0 %v4902
        %5102 = vmatprep.subr.bf16.mxu0 0
        %5103 = vmatpush1.bf16.msra.mxu0 %v4903
        %5104 = vmatprep.subr.bf16.mxu0 0
        %5105 = vmatpush1.bf16.msra.mxu0 %v4904
        %5106 = vmatprep.subr.bf16.mxu0 0
        %5107 = vmatpush1.bf16.msra.mxu0 0
        %5108 = vmatprep.subr.bf16.mxu0 0
        %5109 = vmatpush1.bf16.msra.mxu0 0
        %5110 = vmatprep.subr.bf16.mxu0 0
        %5111 = vmatpush1.bf16.msra.mxu0 0
        %5112 = vmatprep.subr.bf16.mxu0 0
        %5113 = vmatpush1.bf16.msra.mxu0 0
        %5114 = vmatprep.subr.bf16.mxu0 0
        %5115 = vmatpush1.bf16.msra.mxu0 0
        %5116 = vmatprep.subr.bf16.mxu0 0
        %5117 = vmatpush1.bf16.msra.mxu0 0
        %5118 = vmatprep.subr.bf16.mxu0 0
        %5119 = vmatpush1.bf16.msra.mxu0 0
        %5120 = vmatprep.subr.bf16.mxu0 0
        %5121 = vmatpush1.bf16.msra.mxu0 0
        %5122 = vmatprep.mubr.bf16.mxu0 0
        %5123 = vmatmul.mubr.bf16.gmra.mrb[0].mxu0 %v3601
        %v5124 = vpop.f32.mrb[0].mxu0
        %v5125 = vadd.f32 %v4964, %v5124
        %v5126 = vpop.f32.mrb[0].mxu0
        %v5127 = vpop.f32.mrb[0].mxu0
        %v5128 = vadd.f32 %v4967, %v5127
        %v5129 = vpop.f32.mrb[0].mxu0
        %5130 = vmatprep.mubr.bf16.mxu0 0
        %5131 = vmatmul.mubr.bf16.gmra.mrb[0].mxu0 %v3604
        %v5132 = vpop.f32.mrb[0].mxu0
        %v5133 = vadd.f32 %v4972, %v5132
        %v5134 = vpop.f32.mrb[0].mxu0
        %v5135 = vpop.f32.mrb[0].mxu0
        %v5136 = vadd.f32 %v4975, %v5135
        %v5137 = vpop.f32.mrb[0].mxu0
        %5138 = vmatprep.mubr.bf16.mxu0 0
        %5139 = vmatmul.mubr.bf16.gmra.mrb[0].mxu0 %v3607
        %v5140 = vpop.f32.mrb[0].mxu0
        %v5141 = vadd.f32 %v4980, %v5140
        %v5142 = vpop.f32.mrb[0].mxu0
        %v5143 = vpop.f32.mrb[0].mxu0
        %v5144 = vadd.f32 %v4983, %v5143
        %v5145 = vpop.f32.mrb[0].mxu0
        %5146 = vmatprep.mubr.bf16.mxu0 0
        %5147 = vmatmul.mubr.bf16.gmra.mrb[0].mxu0 %v3610
        %v5148 = vpop.f32.mrb[0].mxu0
        %v5149 = vadd.f32 %v4988, %v5148
        %v5150 = vpop.f32.mrb[0].mxu0
        %v5151 = vpop.f32.mrb[0].mxu0
        %v5152 = vadd.f32 %v4991, %v5151
        %v5153 = vpop.f32.mrb[0].mxu0
        %5154 = vmatprep.mubr.bf16.mxu0 0
        %5155 = vmatmul.mubr.bf16.gmra.mrb[0].mxu0 %v3613
        %v5156 = vpop.f32.mrb[0].mxu0
        %v5157 = vadd.f32 %v4996, %v5156
        %v5158 = vpop.f32.mrb[0].mxu0
        %v5159 = vpop.f32.mrb[0].mxu0
        %v5160 = vadd.f32 %v4999, %v5159
        %v5161 = vpop.f32.mrb[0].mxu0
        %5162 = vmatprep.mubr.bf16.mxu0 0
        %5163 = vmatmul.mubr.bf16.gmra.mrb[0].mxu0 %v3616
        %v5164 = vpop.f32.mrb[0].mxu0
        %v5165 = vadd.f32 %v5004, %v5164
        %v5166 = vpop.f32.mrb[0].mxu0
        %v5167 = vpop.f32.mrb[0].mxu0
        %v5168 = vadd.f32 %v5007, %v5167
        %v5169 = vpop.f32.mrb[0].mxu0
        %5170 = vmatprep.mubr.bf16.mxu0 0
        %5171 = vmatmul.mubr.bf16.gmra.mrb[0].mxu0 %v3619
        %v5172 = vpop.f32.mrb[0].mxu0
        %v5173 = vadd.f32 %v5012, %v5172
        %v5174 = vpop.f32.mrb[0].mxu0
        %v5175 = vpop.f32.mrb[0].mxu0
        %v5176 = vadd.f32 %v5015, %v5175
        %v5177 = vpop.f32.mrb[0].mxu0
        %5178 = vmatprep.mubr.bf16.mxu0 0
        %5179 = vmatmul.mubr.bf16.gmra.mrb[0].mxu0 %v3622
        %v5180 = vpop.f32.mrb[0].mxu0
        %v5181 = vadd.f32 %v5020, %v5180
        %v5182 = vpop.f32.mrb[0].mxu0
        %v5183 = vpop.f32.mrb[0].mxu0
        %v5184 = vadd.f32 %v5023, %v5183
        %v5185 = vpop.f32.mrb[0].mxu0
        %5186 = vmatprep.mubr.bf16.mxu0 0
        %5187 = vmatmul.mubr.bf16.gmra.mrb[0].mxu0 %v3625
        %v5188 = vpop.f32.mrb[0].mxu0
        %v5189 = vadd.f32 %v5028, %v5188
        %v5190 = vpop.f32.mrb[0].mxu0
        %v5191 = vpop.f32.mrb[0].mxu0
        %v5192 = vadd.f32 %v5031, %v5191
        %v5193 = vpop.f32.mrb[0].mxu0
        %5194 = vmatprep.mubr.bf16.mxu0 0
        %5195 = vmatmul.mubr.bf16.gmra.mrb[0].mxu0 %v3628
        %v5196 = vpop.f32.mrb[0].mxu0
        %v5197 = vadd.f32 %v5036, %v5196
        %v5198 = vpop.f32.mrb[0].mxu0
        %v5199 = vpop.f32.mrb[0].mxu0
        %v5200 = vadd.f32 %v5039, %v5199
        %v5201 = vpop.f32.mrb[0].mxu0
        %5202 = vmatprep.mubr.bf16.mxu0 0
        %5203 = vmatmul.mubr.bf16.gmra.mrb[0].mxu0 %v3631
        %v5204 = vpop.f32.mrb[0].mxu0
        %v5205 = vadd.f32 %v5044, %v5204
        %v5206 = vpop.f32.mrb[0].mxu0
        %v5207 = vpop.f32.mrb[0].mxu0
        %v5208 = vadd.f32 %v5047, %v5207
        %v5209 = vpop.f32.mrb[0].mxu0
        %5210 = vmatprep.mubr.bf16.mxu0 0
        %5211 = vmatmul.mubr.bf16.gmra.mrb[0].mxu0 %v3634
        %v5212 = vpop.f32.mrb[0].mxu0
        %v5213 = vadd.f32 %v5052, %v5212
        %v5214 = vpop.f32.mrb[0].mxu0
        %v5215 = vpop.f32.mrb[0].mxu0
        %v5216 = vadd.f32 %v5055, %v5215
        %v5217 = vpop.f32.mrb[0].mxu0
        %5218 = vmatprep.mubr.bf16.mxu0 0
        %5219 = vmatmul.mubr.bf16.gmra.mrb[0].mxu0 %v3637
        %v5220 = vpop.f32.mrb[0].mxu0
        %v5221 = vadd.f32 %v5060, %v5220
        %v5222 = vpop.f32.mrb[0].mxu0
        %v5223 = vpop.f32.mrb[0].mxu0
        %v5224 = vadd.f32 %v5063, %v5223
        %v5225 = vpop.f32.mrb[0].mxu0
        %5226 = vmatprep.mubr.bf16.mxu0 0
        %5227 = vmatmul.mubr.bf16.gmra.mrb[0].mxu0 %v3640
        %v5228 = vpop.f32.mrb[0].mxu0
        %v5229 = vadd.f32 %v5068, %v5228
        %v5230 = vpop.f32.mrb[0].mxu0
        %v5231 = vpop.f32.mrb[0].mxu0
        %v5232 = vadd.f32 %v5071, %v5231
        %v5233 = vpop.f32.mrb[0].mxu0
        %5234 = vmatprep.mubr.bf16.mxu0 0
        %5235 = vmatmul.mubr.bf16.gmra.mrb[0].mxu0 %v3729
        %v5236 = vpop.f32.mrb[0].mxu0
        %v5237 = vadd.f32 %v5076, %v5236
        %v5238 = vpop.f32.mrb[0].mxu0
        %v5239 = vpop.f32.mrb[0].mxu0
        %v5240 = vadd.f32 %v5079, %v5239
        %v5241 = vpop.f32.mrb[0].mxu0
        %5242 = vmatprep.mubr.bf16.mxu0 0
        %5243 = vmatmul.mubr.bf16.gmra.mrb[0].mxu0 %v4735
        %v5244 = vpop.f32.mrb[0].mxu0
        %v5245 = vadd.f32 %v5084, %v5244
        %v5246 = vpop.f32.mrb[0].mxu0
        %v5247 = vpop.f32.mrb[0].mxu0
        %v5248 = vadd.f32 %v5087, %v5247
        %v5249 = vpop.f32.mrb[0].mxu0
        %5250 = vdwg.mxu0
        %v5251 = vadd.f32 %v4585, %v5125
        %v5252 = vadd.f32 %v4588, %v5128
        %v5253 = vadd.f32 %v4593, %v5133
        %v5254 = vadd.f32 %v4596, %v5136
        %v5255 = vadd.f32 %v4601, %v5141
        %v5256 = vadd.f32 %v4604, %v5144
        %v5257 = vadd.f32 %v4609, %v5149
        %v5258 = vadd.f32 %v4612, %v5152
        %v5259 = vadd.f32 %v4617, %v5157
        %v5260 = vadd.f32 %v4620, %v5160
        %v5261 = vadd.f32 %v4625, %v5165
        %v5262 = vadd.f32 %v4628, %v5168
        %v5263 = vadd.f32 %v4633, %v5173
        %v5264 = vadd.f32 %v4636, %v5176
        %v5265 = vadd.f32 %v4641, %v5181
        %v5266 = vadd.f32 %v4644, %v5184
        %v5267 = vadd.f32 %v4649, %v5189
        %v5268 = vadd.f32 %v4652, %v5192
        %v5269 = vadd.f32 %v4657, %v5197
        %v5270 = vadd.f32 %v4660, %v5200
        %v5271 = vadd.f32 %v4665, %v5205
        %v5272 = vadd.f32 %v4668, %v5208
        %v5273 = vadd.f32 %v4673, %v5213
        %v5274 = vadd.f32 %v4676, %v5216
        %v5275 = vadd.f32 %v4681, %v5221
        %v5276 = vadd.f32 %v4684, %v5224
        %v5277 = vadd.f32 %v4689, %v5229
        %v5278 = vadd.f32 %v4692, %v5232
        %v5279 = vadd.f32 %v4697, %v5237
        %v5280 = vadd.f32 %v4700, %v5240
        %v5281 = vadd.f32 %v4705, %v5245
        %v5282 = vadd.f32 %v4708, %v5248
        %v5283 = vld [vmem:[#allocation12] sm:$0x1]
        %v5285 = vlaneseq
        %v5286 = vshrl.u32 %v5285, 7
        %v5287 = vsub.s32 0, %v5286
        %v5288 = vrot.slane %v5283, %v5287
        %v5290 = vadd.f32 %v5251, %v5288
        %v5291 = vadd.f32 %v5252, %v5288
        %v5292 = vadd.f32 %v5253, %v5288
        %v5293 = vadd.f32 %v5254, %v5288
        %v5294 = vadd.f32 %v5255, %v5288
        %v5295 = vadd.f32 %v5256, %v5288
        %v5296 = vadd.f32 %v5257, %v5288
        %v5297 = vadd.f32 %v5258, %v5288
        %v5298 = vadd.f32 %v5259, %v5288
        %v5299 = vadd.f32 %v5260, %v5288
        %v5300 = vadd.f32 %v5261, %v5288
        %v5301 = vadd.f32 %v5262, %v5288
        %v5302 = vadd.f32 %v5263, %v5288
        %v5303 = vadd.f32 %v5264, %v5288
        %v5304 = vadd.f32 %v5265, %v5288
        %v5305 = vadd.f32 %v5266, %v5288
        %v5306 = vadd.f32 %v5267, %v5288
        %v5307 = vadd.f32 %v5268, %v5288
        %v5308 = vadd.f32 %v5269, %v5288
        %v5309 = vadd.f32 %v5270, %v5288
        %v5310 = vadd.f32 %v5271, %v5288
        %v5311 = vadd.f32 %v5272, %v5288
        %v5312 = vadd.f32 %v5273, %v5288
        %v5313 = vadd.f32 %v5274, %v5288
        %v5314 = vadd.f32 %v5275, %v5288
        %v5315 = vadd.f32 %v5276, %v5288
        %v5316 = vadd.f32 %v5277, %v5288
        %v5317 = vadd.f32 %v5278, %v5288
        %v5318 = vadd.f32 %v5279, %v5288
        %v5319 = vadd.f32 %v5280, %v5288
        %v5320 = vadd.f32 %v5281, %v5288
        %v5321 = vadd.f32 %v5282, %v5288
        %v5322 = vld [vmem:[%s314] sm:$0xff]
        %v5323 = vld [vmem:[%s314 + $0x8] sm:$0xff]
        %v5324 = vld [vmem:[%s314 + $0x10] sm:$0xff]
        %v5325 = vld [vmem:[%s314 + $0x18] sm:$0xff]
        %v5326 = vld [vmem:[%s314 + $0x20] sm:$0xff]
        %v5327 = vld [vmem:[%s314 + $0x28] sm:$0xff]
        %v5328 = vld [vmem:[%s314 + $0x30] sm:$0xff]
        %v5329 = vld [vmem:[%s314 + $0x38] sm:$0xff]
        %v5330 = vld [vmem:[%s314 + $0x40] sm:$0xff]
        %v5331 = vld [vmem:[%s314 + $0x48] sm:$0xff]
        %v5332 = vld [vmem:[%s314 + $0x50] sm:$0xff]
        %v5333 = vld [vmem:[%s314 + $0x58] sm:$0xff]
        %v5334 = vld [vmem:[%s314 + $0x60] sm:$0xff]
        %v5335 = vld [vmem:[%s314 + $0x68] sm:$0xff]
        %v5336 = vld [vmem:[%s314 + $0x70] sm:$0xff]
        %v5337 = vld [vmem:[%s314 + $0x78] sm:$0xff]
        %v5338 = vld [vmem:[%s314 + $0x80] sm:$0xff]
        %v5339 = vld [vmem:[%s314 + $0x88] sm:$0xff]
        %v5340 = vld [vmem:[%s314 + $0x90] sm:$0xff]
        %v5341 = vld [vmem:[%s314 + $0x98] sm:$0xff]
        %v5342 = vld [vmem:[%s314 + $0xa0] sm:$0xff]
        %v5343 = vld [vmem:[%s314 + $0xa8] sm:$0xff]
        %v5344 = vld [vmem:[%s314 + $0xb0] sm:$0xff]
        %v5345 = vld [vmem:[%s314 + $0xb8] sm:$0xff]
        %v5346 = vld [vmem:[%s314 + $0xc0] sm:$0xff]
        %v5347 = vld [vmem:[%s314 + $0xc8] sm:$0xff]
        %v5348 = vld [vmem:[%s314 + $0xd0] sm:$0xff]
        %v5349 = vld [vmem:[%s314 + $0xd8] sm:$0xff]
        %v5350 = vld [vmem:[%s314 + $0xe0] sm:$0xff]
        %v5351 = vld [vmem:[%s314 + $0xe8] sm:$0xff]
        %v5352 = vld [vmem:[%s314 + $0xf0] sm:$0xff]
        %v5353 = vld [vmem:[%s314 + $0xf8] sm:$0xff]
        %v5354 = vadd.f32 %v5290, %v5322
        %v5355 = vadd.f32 %v5291, %v5323
        %v5356 = vadd.f32 %v5292, %v5324
        %v5357 = vadd.f32 %v5293, %v5325
        %v5358 = vadd.f32 %v5294, %v5326
        %v5359 = vadd.f32 %v5295, %v5327
        %v5360 = vadd.f32 %v5296, %v5328
        %v5361 = vadd.f32 %v5297, %v5329
        %v5362 = vadd.f32 %v5298, %v5330
        %v5363 = vadd.f32 %v5299, %v5331
        %v5364 = vadd.f32 %v5300, %v5332
        %v5365 = vadd.f32 %v5301, %v5333
        %v5366 = vadd.f32 %v5302, %v5334
        %v5367 = vadd.f32 %v5303, %v5335
        %v5368 = vadd.f32 %v5304, %v5336
        %v5369 = vadd.f32 %v5305, %v5337
        %v5370 = vadd.f32 %v5306, %v5338
        %v5371 = vadd.f32 %v5307, %v5339
        %v5372 = vadd.f32 %v5308, %v5340
        %v5373 = vadd.f32 %v5309, %v5341
        %v5374 = vadd.f32 %v5310, %v5342
        %v5375 = vadd.f32 %v5311, %v5343
        %v5376 = vadd.f32 %v5312, %v5344
        %v5377 = vadd.f32 %v5313, %v5345
        %v5378 = vadd.f32 %v5314, %v5346
        %v5379 = vadd.f32 %v5315, %v5347
        %v5380 = vadd.f32 %v5316, %v5348
        %v5381 = vadd.f32 %v5317, %v5349
        %v5382 = vadd.f32 %v5318, %v5350
        %v5383 = vadd.f32 %v5319, %v5351
        %v5384 = vadd.f32 %v5320, %v5352
        %v5385 = vadd.f32 %v5321, %v5353
        %v5386 = vmax.f32 %v5354, 0.0
        %v5387 = vmax.f32 %v5355, 0.0
        %v5388 = vmax.f32 %v5356, 0.0
        %v5389 = vmax.f32 %v5357, 0.0
        %v5390 = vmax.f32 %v5358, 0.0
        %v5391 = vmax.f32 %v5359, 0.0
        %v5392 = vmax.f32 %v5360, 0.0
        %v5393 = vmax.f32 %v5361, 0.0
        %v5394 = vmax.f32 %v5362, 0.0
        %v5395 = vmax.f32 %v5363, 0.0
        %v5396 = vmax.f32 %v5364, 0.0
        %v5397 = vmax.f32 %v5365, 0.0
        %v5398 = vmax.f32 %v5366, 0.0
        %v5399 = vmax.f32 %v5367, 0.0
        %v5400 = vmax.f32 %v5368, 0.0
        %v5401 = vmax.f32 %v5369, 0.0
        %v5402 = vmax.f32 %v5370, 0.0
        %v5403 = vmax.f32 %v5371, 0.0
        %v5404 = vmax.f32 %v5372, 0.0
        %v5405 = vmax.f32 %v5373, 0.0
        %v5406 = vmax.f32 %v5374, 0.0
        %v5407 = vmax.f32 %v5375, 0.0
        %v5408 = vmax.f32 %v5376, 0.0
        %v5409 = vmax.f32 %v5377, 0.0
        %v5410 = vmax.f32 %v5378, 0.0
        %v5411 = vmax.f32 %v5379, 0.0
        %v5412 = vmax.f32 %v5380, 0.0
        %v5413 = vmax.f32 %v5381, 0.0
        %v5414 = vmax.f32 %v5382, 0.0
        %v5415 = vmax.f32 %v5383, 0.0
        %v5416 = vmax.f32 %v5384, 0.0
        %v5417 = vmax.f32 %v5385, 0.0
        %5418 = vst [vmem:[%s363] sm:$0xff] %v5386
        %5419 = vst [vmem:[%s363 + $0x8] sm:$0xff] %v5387
        %5420 = vst [vmem:[%s363 + $0x10] sm:$0xff] %v5388
        %5421 = vst [vmem:[%s363 + $0x18] sm:$0xff] %v5389
        %5422 = vst [vmem:[%s363 + $0x20] sm:$0xff] %v5390
        %5423 = vst [vmem:[%s363 + $0x28] sm:$0xff] %v5391
        %5424 = vst [vmem:[%s363 + $0x30] sm:$0xff] %v5392
        %5425 = vst [vmem:[%s363 + $0x38] sm:$0xff] %v5393
        %5426 = vst [vmem:[%s363 + $0x40] sm:$0xff] %v5394
        %5427 = vst [vmem:[%s363 + $0x48] sm:$0xff] %v5395
        %5428 = vst [vmem:[%s363 + $0x50] sm:$0xff] %v5396
        %5429 = vst [vmem:[%s363 + $0x58] sm:$0xff] %v5397
        %5430 = vst [vmem:[%s363 + $0x60] sm:$0xff] %v5398
        %5431 = vst [vmem:[%s363 + $0x68] sm:$0xff] %v5399
        %5432 = vst [vmem:[%s363 + $0x70] sm:$0xff] %v5400
        %5433 = vst [vmem:[%s363 + $0x78] sm:$0xff] %v5401
        %5434 = vst [vmem:[%s363 + $0x80] sm:$0xff] %v5402
        %5435 = vst [vmem:[%s363 + $0x88] sm:$0xff] %v5403
        %5436 = vst [vmem:[%s363 + $0x90] sm:$0xff] %v5404
        %5437 = vst [vmem:[%s363 + $0x98] sm:$0xff] %v5405
        %5438 = vst [vmem:[%s363 + $0xa0] sm:$0xff] %v5406
        %5439 = vst [vmem:[%s363 + $0xa8] sm:$0xff] %v5407
        %5440 = vst [vmem:[%s363 + $0xb0] sm:$0xff] %v5408
        %5441 = vst [vmem:[%s363 + $0xb8] sm:$0xff] %v5409
        %5442 = vst [vmem:[%s363 + $0xc0] sm:$0xff] %v5410
        %5443 = vst [vmem:[%s363 + $0xc8] sm:$0xff] %v5411
        %5444 = vst [vmem:[%s363 + $0xd0] sm:$0xff] %v5412
        %5445 = vst [vmem:[%s363 + $0xd8] sm:$0xff] %v5413
        %5446 = vst [vmem:[%s363 + $0xe0] sm:$0xff] %v5414
        %5447 = vst [vmem:[%s363 + $0xe8] sm:$0xff] %v5415
        %5448 = vst [vmem:[%s363 + $0xf0] sm:$0xff] %v5416
        %5449 = vst [vmem:[%s363 + $0xf8] sm:$0xff] %v5417
        %s5450 = sand.u32 %s172, 1
        %s5451 = scalar_lea.sflag [#allocation5], %s5450
        %s5452 = sand.u32 %s172, 1
        %s5453 = smul.addr %s5452, 256
        %s5454 = scalar_lea.vmem [#allocation14], %s5453
        // Predicated region
        $region69: #{tpu_custom_call.1} parent=43 // pred_check
          %p5455 = pneg %p182
        $region70: #{tpu_custom_call.1} parent=43 // pred_check_branch
          %5457 = sbr.rel (%p5455) target = $region72
        $region71: #{tpu_custom_call.1} parent=43 // pred_region
          %s5459 = ssub.s32 4096, 4096
          %5460 = vsyncadd %s5451, %s5459
          %s5461 = smul.addr %s28, 32
          %s5462 = smul.addr %s5461, 128
          %s5463 = scalar_lea.hbm %s6, %s5462
          %s5464 = sshll.u32 %s5454, 4
          %s5465 = int_to_ptr.vmem [resolvable:$true] %s5464
          %5470 = dma.vmem_to_hbm [thread:$0]  %s5465, 4096, %s5463, %s5451, 128, 128, 8
        $region72: #{tpu_custom_call.1} parent=43 // pred_fallthru
          _
      $region44: #{tpu_custom_call.1} parent=5 // pred_fallthru
        _
      %p5471 = scmp.le.s32.totalorder 2, %s23
      // Predicated region
      $region73: #{tpu_custom_call.1} parent=5 // pred_check
        %p5472 = pneg %p5471
      $region74: #{tpu_custom_call.1} parent=5 // pred_check_branch
        %5474 = sbr.rel (%p5472) target = $region76
      $region75: #{tpu_custom_call.1} parent=5 // pred_region
        %s5475 = ssub.s32 %s23, 2
        // Predicated region
        $region77: #{tpu_custom_call.1} parent=75 // pred_check
          %p5476 = pneg %p188
        $region78: #{tpu_custom_call.1} parent=75 // pred_check_branch
          %5478 = sbr.rel (%p5476) target = $region80
        $region79: #{tpu_custom_call.1} parent=75 // pred_region
          %s5479 = sand.u32 %s173, 1
          %s5480 = scalar_lea.sflag [#allocation5], %s5479
          %s5481 = sand.u32 %s173, 1
          %s5482 = smul.addr %s5481, 256
          %s5483 = scalar_lea.vmem [#allocation14], %s5482
          %5484 = dma.done %s5480, 4096
        $region80: #{tpu_custom_call.1} parent=75 // pred_fallthru
          _
      $region76: #{tpu_custom_call.1} parent=5 // pred_fallthru
        _
    $region6: #{tpu_custom_call.1} parent=1 // loop_footer
      %s27 = sadd.s32 1, %s23
    $region7: #{tpu_custom_call.1} parent=1 // loop_footer_branch
      %22 = sbr.rel target = $region3
    $region8: #{tpu_custom_call.1} parent=1 // loop_exit
      _
    %5485 = vsyncpa [#allocation4], 1
    %s5486 = scalar_lea.sflag [#allocation4], 1
    %5487 = vsyncpa %s5486, 1
    %5488 = vsyncpa [#allocation7], 1
    %s5489 = scalar_lea.sflag [#allocation7], 1
    %5490 = vsyncpa %s5489, 1
    %5491 = vsyncpa [#allocation10], 1
    %5492 = vsyncpa [#allocation13], 1
    %5493 = vsyncpa [#allocation5], 1
    %s5494 = scalar_lea.sflag [#allocation5], 1
    %5495 = vsyncpa %s5494, 1

// kernel: tpu_custom_call.1
$region0: #{tpu_custom_call.1}
  #allocation0 [shape = 'u32[]', space=smem, size = 0x4, offset = 0x4, fixed_abs, tag = 'smem constant byte address 0x4 - core index']
  #allocation1 [shape = 'u32[144,128]{1,0:T(1,128)}', space=vmem, size = 0x12000, scoped, tag = 'internal scratch']
  #allocation2 [shape = 'bf16[1,18,18,128]{3,2,1,0:T(8,128)(2,1)}', space=vmem, size = 0x1b000, scoped, tag = 'scratch operand']
  %s0 = inlined_call_operand.hbm [shape: bf16[2,18,18,128], index: 0, kind: input, shape index: {}]
  %s1 = inlined_call_operand.hbm [shape: f32[2,16,16,128], index: 1, kind: input, shape index: {}]
  %s2 = inlined_call_operand.hbm [shape: bf16[1152,128], index: 2, kind: input, shape index: {}]
  %s3 = inlined_call_operand.hbm [shape: f32[1,128], index: 3, kind: input, shape index: {}]
  %s4 = inlined_call_operand.hbm [shape: bf16[1152,128], index: 4, kind: input, shape index: {}]
  %s5 = inlined_call_operand.hbm [shape: f32[1,128], index: 5, kind: input, shape index: {}]
  %s6 = inlined_call_operand.hbm [shape: f32[2,16,16,128], index: 6, kind: output, shape index: {}]
  %s7 = sld [smem:[#allocation0]]
  $region81: #{tpu_custom_call.1} parent=0
    _
  %s9 = ssub.s32 1, %s7
  %s10 = scalar_select 0, %s9, %s7
  $region1: #{tpu_custom_call.1} parent=0
    #allocation3 [shape = 'u8[221184]{0}', space=vmem, size = 0x36000, scoped, tag = 'input window, operand 0']
    #allocation4 [shape = 's32[2]{0}', space=sflag, size = 0x8, scoped, tag = 'scoped memory for tpu_custom_call.1']
    #allocation5 [shape = 's32[2]{0}', space=sflag, size = 0x8, scoped, tag = 'scoped memory for tpu_custom_call.1']
    #allocation6 [shape = 'u8[262144]{0}', space=vmem, size = 0x40000, scoped, tag = 'input window, operand 1']
    #allocation7 [shape = 's32[2]{0}', space=sflag, size = 0x8, scoped, tag = 'scoped memory for tpu_custom_call.1']
    #allocation8 [shape = 'u8[294912]{0}', space=vmem, size = 0x48000, scoped, tag = 'input window, operand 2, single buffered']
    #allocation9 [shape = 'u8[512]{0}', space=vmem, size = 0x400, scoped, tag = 'input window, operand 3, single buffered']
    #allocation10 [shape = 's32[1]{0}', space=sflag, size = 0x4, scoped, tag = 'scoped memory for tpu_custom_call.1']
    #allocation11 [shape = 'u8[294912]{0}', space=vmem, size = 0x48000, scoped, tag = 'input window, operand 4, single buffered']
    #allocation12 [shape = 'u8[512]{0}', space=vmem, size = 0x400, scoped, tag = 'input window, operand 5, single buffered']
    #allocation13 [shape = 's32[1]{0}', space=sflag, size = 0x4, scoped, tag = 'scoped memory for tpu_custom_call.1']
    #allocation14 [shape = 'u8[262144]{0}', space=vmem, size = 0x40000, scoped, tag = 'output window, operand 0']
    %11 = vsyncpa [#allocation4], 0
    %s12 = scalar_lea.sflag [#allocation4], 1
    %13 = vsyncpa %s12, 0
    %14 = vsyncpa [#allocation7], 0
    %s15 = scalar_lea.sflag [#allocation7], 1
    %16 = vsyncpa %s15, 0
    %17 = vsyncpa [#allocation10], 0
    %18 = vsyncpa [#allocation13], 0
    %19 = vsyncpa [#allocation5], 0
    %s20 = scalar_lea.sflag [#allocation5], 1
    %21 = vsyncpa %s20, 0
    loop: start=0, step=1, limit=4
    $region2: #{tpu_custom_call.1} parent=1 // loop_pre_header
      _
    $region3: #{tpu_custom_call.1} parent=1 // loop_header
      %s23 = sphi 0, %s27
      %p24 = scmp.ge.s32.totalorder %s23, 4
      %s33 = sphi 0, %s35
      %s36 = sphi 0, %s33
      %s37 = sphi 0, %s36
      %s53 = sphi 0, %s37
      %s59 = sphi 0, %s61
      %s62 = sphi 0, %s59
      %s63 = sphi 0, %s62
      %s79 = sphi 0, %s63
      %s83 = sphi 0, %s83
      %s85 = sphi 0, %s83
      %s86 = sphi 0, %s85
      %s100 = sphi 0, %s86
      %s104 = sphi 0, %s104
      %s106 = sphi 0, %s104
      %s107 = sphi 0, %s106
      %s121 = sphi 0, %s107
      %s125 = sphi 0, %s125
      %s127 = sphi 0, %s125
      %s128 = sphi 0, %s127
      %s142 = sphi 0, %s128
      %s146 = sphi 0, %s146
      %s148 = sphi 0, %s146
      %s149 = sphi 0, %s148
      %s163 = sphi 0, %s149
      %s169 = sphi 0, %s171
      %s172 = sphi 0, %s169
      %s173 = sphi 0, %s172
      %s189 = sphi 0, %s173
    $region4: #{tpu_custom_call.1} parent=1 // loop_header_branch
      %26 = sbr.rel (%p24) target = $region8
    $region5: #{tpu_custom_call.1} parent=1 // loop_body
      %s28 = ssub.s32 %s23, 1
      %s29 = ssub.s32 %s23, 2
      %s30 = sadd.s32 %s23, 1
      %s31 = ssub.s32 %s23, %s30
      %p32 = scmp.eq.s32.totalorder %s31, 0
      %s34 = sadd.s32 %s33, 1
      %s35 = scalar_select %p32, %s33, %s34
      %p38 = pneg %p32
      %p39 = scmp.eq.s32.totalorder %s23, 1
      %p40 = por %p38, %p39
      %p41 = scmp.ne.s32.totalorder %s33, %s36
      %p42 = scmp.eq.s32.totalorder %s23, 0
      %p43 = por %p41, %p42
      %p44 = scmp.ne.s32.totalorder %s33, %s36
      %p45 = scmp.eq.s32.totalorder %s28, 1
      %p46 = por %p44, %p45
      %p47 = scmp.ne.s32.totalorder %s36, %s37
      %p48 = scmp.eq.s32.totalorder %s28, 0
      %p49 = por %p47, %p48
      %p50 = scmp.ne.s32.totalorder %s36, %s37
      %p51 = scmp.eq.s32.totalorder %s29, 1
      %p52 = por %p50, %p51
      %p54 = scmp.ne.s32.totalorder %s37, %s53
      %p55 = scmp.eq.s32.totalorder %s29, 0
      %p56 = por %p54, %p55
      %s57 = ssub.s32 %s23, %s30
      %p58 = scmp.eq.s32.totalorder %s57, 0
      %s60 = sadd.s32 %s59, 1
      %s61 = scalar_select %p58, %s59, %s60
      %p64 = pneg %p58
      %p65 = scmp.eq.s32.totalorder %s23, 1
      %p66 = por %p64, %p65
      %p67 = scmp.ne.s32.totalorder %s59, %s62
      %p68 = scmp.eq.s32.totalorder %s23, 0
      %p69 = por %p67, %p68
      %p70 = scmp.ne.s32.totalorder %s59, %s62
      %p71 = scmp.eq.s32.totalorder %s28, 1
      %p72 = por %p70, %p71
      %p73 = scmp.ne.s32.totalorder %s62, %s63
      %p74 = scmp.eq.s32.totalorder %s28, 0
      %p75 = por %p73, %p74
      %p76 = scmp.ne.s32.totalorder %s62, %s63
      %p77 = scmp.eq.s32.totalorder %s29, 1
      %p78 = por %p76, %p77
      %p80 = scmp.ne.s32.totalorder %s63, %s79
      %p81 = scmp.eq.s32.totalorder %s29, 0
      %p82 = por %p80, %p81
      %s84 = sadd.s32 %s83, 1
      %p87 = scmp.eq.s32.totalorder %s23, 1
      %p88 = scmp.ne.s32.totalorder %s83, %s85
      %p89 = scmp.eq.s32.totalorder %s23, 0
      %p90 = por %p88, %p89
      %p91 = scmp.ne.s32.totalorder %s83, %s85
      %p92 = scmp.eq.s32.totalorder %s28, 1
      %p93 = por %p91, %p92
      %p94 = scmp.ne.s32.totalorder %s85, %s86
      %p95 = scmp.eq.s32.totalorder %s28, 0
      %p96 = por %p94, %p95
      %p97 = scmp.ne.s32.totalorder %s85, %s86
      %p98 = scmp.eq.s32.totalorder %s29, 1
      %p99 = por %p97, %p98
      %p101 = scmp.ne.s32.totalorder %s86, %s100
      %p102 = scmp.eq.s32.totalorder %s29, 0
      %p103 = por %p101, %p102
      %s105 = sadd.s32 %s104, 1
      %p108 = scmp.eq.s32.totalorder %s23, 1
      %p109 = scmp.ne.s32.totalorder %s104, %s106
      %p110 = scmp.eq.s32.totalorder %s23, 0
      %p111 = por %p109, %p110
      %p112 = scmp.ne.s32.totalorder %s104, %s106
      %p113 = scmp.eq.s32.totalorder %s28, 1
      %p114 = por %p112, %p113
      %p115 = scmp.ne.s32.totalorder %s106, %s107
      %p116 = scmp.eq.s32.totalorder %s28, 0
      %p117 = por %p115, %p116
      %p118 = scmp.ne.s32.totalorder %s106, %s107
      %p119 = scmp.eq.s32.totalorder %s29, 1
      %p120 = por %p118, %p119
      %p122 = scmp.ne.s32.totalorder %s107, %s121
      %p123 = scmp.eq.s32.totalorder %s29, 0
      %p124 = por %p122, %p123
      %s126 = sadd.s32 %s125, 1
      %p129 = scmp.eq.s32.totalorder %s23, 1
      %p130 = scmp.ne.s32.totalorder %s125, %s127
      %p131 = scmp.eq.s32.totalorder %s23, 0
      %p132 = por %p130, %p131
      %p133 = scmp.ne.s32.totalorder %s125, %s127
      %p134 = scmp.eq.s32.totalorder %s28, 1
      %p135 = por %p133, %p134
      %p136 = scmp.ne.s32.totalorder %s127, %s128
      %p137 = scmp.eq.s32.totalorder %s28, 0
      %p138 = por %p136, %p137
      %p139 = scmp.ne.s32.totalorder %s127, %s128
      %p140 = scmp.eq.s32.totalorder %s29, 1
      %p141 = por %p139, %p140
      %p143 = scmp.ne.s32.totalorder %s128, %s142
      %p144 = scmp.eq.s32.totalorder %s29, 0
      %p145 = por %p143, %p144
      %s147 = sadd.s32 %s146, 1
      %p150 = scmp.eq.s32.totalorder %s23, 1
      %p151 = scmp.ne.s32.totalorder %s146, %s148
      %p152 = scmp.eq.s32.totalorder %s23, 0
      %p153 = por %p151, %p152
      %p154 = scmp.ne.s32.totalorder %s146, %s148
      %p155 = scmp.eq.s32.totalorder %s28, 1
      %p156 = por %p154, %p155
      %p157 = scmp.ne.s32.totalorder %s148, %s149
      %p158 = scmp.eq.s32.totalorder %s28, 0
      %p159 = por %p157, %p158
      %p160 = scmp.ne.s32.totalorder %s148, %s149
      %p161 = scmp.eq.s32.totalorder %s29, 1
      %p162 = por %p160, %p161
      %p164 = scmp.ne.s32.totalorder %s149, %s163
      %p165 = scmp.eq.s32.totalorder %s29, 0
      %p166 = por %p164, %p165
      %s167 = ssub.s32 %s23, %s30
      %p168 = scmp.eq.s32.totalorder %s167, 0
      %s170 = sadd.s32 %s169, 1
      %s171 = scalar_select %p168, %s169, %s170
      %p174 = pneg %p168
      %p175 = scmp.eq.s32.totalorder %s23, 1
      %p176 = por %p174, %p175
      %p177 = scmp.ne.s32.totalorder %s169, %s172
      %p178 = scmp.eq.s32.totalorder %s23, 0
      %p179 = por %p177, %p178
      %p180 = scmp.ne.s32.totalorder %s169, %s172
      %p181 = scmp.eq.s32.totalorder %s28, 1
      %p182 = por %p180, %p181
      %p183 = scmp.ne.s32.totalorder %s172, %s173
      %p184 = scmp.eq.s32.totalorder %s28, 0
      %p185 = por %p183, %p184
      %p186 = scmp.ne.s32.totalorder %s172, %s173
      %p187 = scmp.eq.s32.totalorder %s29, 1
      %p188 = por %p186, %p187
      %p190 = scmp.ne.s32.totalorder %s173, %s189
      %p191 = scmp.eq.s32.totalorder %s29, 0
      %p192 = por %p190, %p191
      %p193 = scmp.le.s32.totalorder 1, %s23
      %p194 = scmp.lt.s32.totalorder %s23, 3
      %p195 = pnand %p193, %p194
      %p196 = pneg %p195
      // Predicated region
      $region9: #{tpu_custom_call.1} parent=5 // pred_check
        _
      $region10: #{tpu_custom_call.1} parent=5 // pred_check_branch
        %198 = sbr.rel (%p195) target = $region12
      $region11: #{tpu_custom_call.1} parent=5 // pred_region
        %s199 = ssub.s32 %s23, 1
        // Predicated region
        $region13: #{tpu_custom_call.1} parent=11 // pred_check
          %p200 = pneg %p96
        $region14: #{tpu_custom_call.1} parent=11 // pred_check_branch
          %202 = sbr.rel (%p200) target = $region16
        $region15: #{tpu_custom_call.1} parent=11 // pred_region
          %s204 = ssub.s32 9216, 9216
          %205 = vsyncadd [#allocation7], %s204
          %s206 = sshll.u32 [#allocation8], 4
          %s207 = int_to_ptr.vmem [resolvable:$true] %s206
          %212 = dma.hbm_to_vmem [thread:$0]  %s2, 9216, %s207, [#allocation7], 64, 64, 4
        $region16: #{tpu_custom_call.1} parent=11 // pred_fallthru
          _
        // Predicated region
        $region17: #{tpu_custom_call.1} parent=11 // pred_check
          %p213 = pneg %p117
        $region18: #{tpu_custom_call.1} parent=11 // pred_check_branch
          %215 = sbr.rel (%p213) target = $region20
        $region19: #{tpu_custom_call.1} parent=11 // pred_region
          %s217 = ssub.s32 16, 16
          %218 = vsyncadd [#allocation10], %s217
          %s220 = sshll.u32 [#allocation9], 4
          %s221 = int_to_ptr.vmem [resolvable:$true] %s220
          %223 = dma.hbm_to_vmem [thread:$0]  %s3, 16, %s221, [#allocation10]
        $region20: #{tpu_custom_call.1} parent=11 // pred_fallthru
          _
        // Predicated region
        $region21: #{tpu_custom_call.1} parent=11 // pred_check
          %p224 = pneg %p138
        $region22: #{tpu_custom_call.1} parent=11 // pred_check_branch
          %226 = sbr.rel (%p224) target = $region24
        $region23: #{tpu_custom_call.1} parent=11 // pred_region
          %s228 = ssub.s32 9216, 9216
          %229 = vsyncadd [#allocation10], %s228
          %s230 = sshll.u32 [#allocation11], 4
          %s231 = int_to_ptr.vmem [resolvable:$true] %s230
          %236 = dma.hbm_to_vmem [thread:$0]  %s4, 9216, %s231, [#allocation10], 64, 64, 4
        $region24: #{tpu_custom_call.1} parent=11 // pred_fallthru
          _
        // Predicated region
        $region25: #{tpu_custom_call.1} parent=11 // pred_check
          %p237 = pneg %p159
        $region26: #{tpu_custom_call.1} parent=11 // pred_check_branch
          %239 = sbr.rel (%p237) target = $region28
        $region27: #{tpu_custom_call.1} parent=11 // pred_region
          %s241 = ssub.s32 16, 16
          %242 = vsyncadd [#allocation13], %s241
          %s244 = sshll.u32 [#allocation12], 4
          %s245 = int_to_ptr.vmem [resolvable:$true] %s244
          %247 = dma.hbm_to_vmem [thread:$0]  %s5, 16, %s245, [#allocation13]
        $region28: #{tpu_custom_call.1} parent=11 // pred_fallthru
          _
      $region12: #{tpu_custom_call.1} parent=5 // pred_fallthru
        _
      %p248 = scmp.lt.s32.totalorder %s23, 2
      // Predicated region
      $region29: #{tpu_custom_call.1} parent=5 // pred_check
        %p249 = pneg %p248
      $region30: #{tpu_custom_call.1} parent=5 // pred_check_branch
        %251 = sbr.rel (%p249) target = $region32
      $region31: #{tpu_custom_call.1} parent=5 // pred_region
        // Predicated region
        $region33: #{tpu_custom_call.1} parent=31 // pred_check
          %p252 = pneg %p43
        $region34: #{tpu_custom_call.1} parent=31 // pred_check_branch
          %254 = sbr.rel (%p252) target = $region36
        $region35: #{tpu_custom_call.1} parent=31 // pred_region
          %s255 = sand.u32 %s33, 1
          %s256 = scalar_lea.sflag [#allocation4], %s255
          %s257 = sand.u32 %s33, 1
          %s258 = smul.addr %s257, 216
          %s259 = scalar_lea.vmem [#allocation3], %s258
          %s261 = ssub.s32 3456, 3456
          %262 = vsyncadd %s256, %s261
          %s263 = smul.addr %s23, 54
          %s264 = smul.addr %s263, 64
          %s265 = scalar_lea.hbm %s0, %s264
          %s266 = sshll.u32 %s259, 4
          %s267 = int_to_ptr.vmem [resolvable:$true] %s266
          %272 = dma.hbm_to_vmem [thread:$0]  %s265, 3456, %s267, %s256, 64, 64, 4
        $region36: #{tpu_custom_call.1} parent=31 // pred_fallthru
          _
        // Predicated region
        $region37: #{tpu_custom_call.1} parent=31 // pred_check
          %p273 = pneg %p69
        $region38: #{tpu_custom_call.1} parent=31 // pred_check_branch
          %275 = sbr.rel (%p273) target = $region40
        $region39: #{tpu_custom_call.1} parent=31 // pred_region
          %s276 = sand.u32 %s23, 1
          %s277 = scalar_lea.sflag [#allocation7], %s276
          %s278 = sand.u32 %s59, 1
          %s279 = smul.addr %s278, 256
          %s280 = scalar_lea.vmem [#allocation6], %s279
          %s282 = ssub.s32 4096, 4096
          %283 = vsyncadd %s277, %s282
          %s284 = smul.addr %s23, 32
          %s285 = smul.addr %s284, 128
          %s286 = scalar_lea.hbm %s1, %s285
          %s287 = sshll.u32 %s280, 4
          %s288 = int_to_ptr.vmem [resolvable:$true] %s287
          %293 = dma.hbm_to_vmem [thread:$0]  %s286, 4096, %s288, %s277, 128, 128, 8
        $region40: #{tpu_custom_call.1} parent=31 // pred_fallthru
          _
      $region32: #{tpu_custom_call.1} parent=5 // pred_fallthru
        _
      %p294 = scmp.le.s32.totalorder 1, %s23
      %p295 = scmp.lt.s32.totalorder %s23, 3
      %p296 = pnand %p294, %p295
      %p297 = pneg %p296
      // Predicated region
      $region41: #{tpu_custom_call.1} parent=5 // pred_check
        _
      $region42: #{tpu_custom_call.1} parent=5 // pred_check_branch
        %299 = sbr.rel (%p296) target = $region44
      $region43: #{tpu_custom_call.1} parent=5 // pred_region
        %s300 = ssub.s32 %s23, 1
        %s301 = sand.u32 %s36, 1
        %s302 = scalar_lea.sflag [#allocation4], %s301
        %s303 = sand.u32 %s36, 1
        %s304 = smul.addr %s303, 216
        %s305 = scalar_lea.vmem [#allocation3], %s304
        // Predicated region
        $region45: #{tpu_custom_call.1} parent=43 // pred_check
          %p306 = pneg %p49
        $region46: #{tpu_custom_call.1} parent=43 // pred_check_branch
          %308 = sbr.rel (%p306) target = $region48
        $region47: #{tpu_custom_call.1} parent=43 // pred_region
          %309 = dma.done %s302, 3456
        $region48: #{tpu_custom_call.1} parent=43 // pred_fallthru
          _
        %s310 = sand.u32 %s28, 1
        %s311 = scalar_lea.sflag [#allocation7], %s310
        %s312 = sand.u32 %s62, 1
        %s313 = smul.addr %s312, 256
        %s314 = scalar_lea.vmem [#allocation6], %s313
        // Predicated region
        $region49: #{tpu_custom_call.1} parent=43 // pred_check
          %p315 = pneg %p75
        $region50: #{tpu_custom_call.1} parent=43 // pred_check_branch
          %317 = sbr.rel (%p315) target = $region52
        $region51: #{tpu_custom_call.1} parent=43 // pred_region
          %318 = dma.done %s311, 4096
        $region52: #{tpu_custom_call.1} parent=43 // pred_fallthru
          _
        // Predicated region
        $region53: #{tpu_custom_call.1} parent=43 // pred_check
          %p319 = pneg %p96
        $region54: #{tpu_custom_call.1} parent=43 // pred_check_branch
          %321 = sbr.rel (%p319) target = $region56
        $region55: #{tpu_custom_call.1} parent=43 // pred_region
          %322 = dma.done [#allocation7], 9216
        $region56: #{tpu_custom_call.1} parent=43 // pred_fallthru
          _
        // Predicated region
        $region57: #{tpu_custom_call.1} parent=43 // pred_check
          %p323 = pneg %p117
        $region58: #{tpu_custom_call.1} parent=43 // pred_check_branch
          %325 = sbr.rel (%p323) target = $region60
        $region59: #{tpu_custom_call.1} parent=43 // pred_region
          %326 = dma.done [#allocation10], 16
        $region60: #{tpu_custom_call.1} parent=43 // pred_fallthru
          _
        // Predicated region
        $region61: #{tpu_custom_call.1} parent=43 // pred_check
          %p327 = pneg %p138
        $region62: #{tpu_custom_call.1} parent=43 // pred_check_branch
          %329 = sbr.rel (%p327) target = $region64
        $region63: #{tpu_custom_call.1} parent=43 // pred_region
          %330 = dma.done [#allocation10], 9216
        $region64: #{tpu_custom_call.1} parent=43 // pred_fallthru
          _
        // Predicated region
        $region65: #{tpu_custom_call.1} parent=43 // pred_check
          %p331 = pneg %p159
        $region66: #{tpu_custom_call.1} parent=43 // pred_check_branch
          %333 = sbr.rel (%p331) target = $region68
        $region67: #{tpu_custom_call.1} parent=43 // pred_region
          %334 = dma.done [#allocation13], 16
        $region68: #{tpu_custom_call.1} parent=43 // pred_fallthru
          _
        %s335 = sand.u32 %s36, 1
        %s336 = scalar_lea.sflag [#allocation4], %s335
        %s337 = sand.u32 %s36, 1
        %s338 = smul.addr %s337, 216
        %s339 = scalar_lea.vmem [#allocation3], %s338
        %p340 = pneg %p49
        %p341 = pneg %p46
        %s342 = sand.u32 %s28, 1
        %s343 = scalar_lea.sflag [#allocation7], %s342
        %s344 = sand.u32 %s62, 1
        %s345 = smul.addr %s344, 256
        %s346 = scalar_lea.vmem [#allocation6], %s345
        %p347 = pneg %p75
        %p348 = pneg %p72
        %p349 = pneg %p96
        %p350 = pneg %p93
        %p351 = pneg %p117
        %p352 = pneg %p114
        %p353 = pneg %p138
        %p354 = pneg %p135
        %p355 = pneg %p159
        %p356 = pneg %p156
        %p357 = pneg %p185
        %p358 = pneg %p182
        %s359 = sand.u32 %s172, 1
        %s360 = scalar_lea.sflag [#allocation5], %s359
        %s361 = sand.u32 %s172, 1
        %s362 = smul.addr %s361, 256
        %s363 = scalar_lea.vmem [#allocation14], %s362
        %v365 = vld [vmem:[%s305] sm:$0xf]
        %v366 = vld [vmem:[%s305 + $0x4] sm:$0xf]
        %v367 = vld [vmem:[%s305 + $0x8] sm:$0x1]
        %v368 = vld [vmem:[%s305 + $0xc] sm:$0xf]
        %v369 = vld [vmem:[%s305 + $0x10] sm:$0xf]
        %v370 = vld [vmem:[%s305 + $0x14] sm:$0x1]
        %v371 = vld [vmem:[%s305 + $0x18] sm:$0xf]
        %v372 = vld [vmem:[%s305 + $0x1c] sm:$0xf]
        %v373 = vld [vmem:[%s305 + $0x20] sm:$0x1]
        %v374 = vld [vmem:[%s305 + $0x24] sm:$0xf]
        %v375 = vld [vmem:[%s305 + $0x28] sm:$0xf]
        %v376 = vld [vmem:[%s305 + $0x2c] sm:$0x1]
        %v377 = vld [vmem:[%s305 + $0x30] sm:$0xf]
        %v378 = vld [vmem:[%s305 + $0x34] sm:$0xf]
        %v379 = vld [vmem:[%s305 + $0x38] sm:$0x1]
        %v380 = vld [vmem:[%s305 + $0x3c] sm:$0xf]
        %v381 = vld [vmem:[%s305 + $0x40] sm:$0xf]
        %v382 = vld [vmem:[%s305 + $0x44] sm:$0x1]
        %v383 = vld [vmem:[%s305 + $0x48] sm:$0xf]
        %v384 = vld [vmem:[%s305 + $0x4c] sm:$0xf]
        %v385 = vld [vmem:[%s305 + $0x50] sm:$0x1]
        %v386 = vld [vmem:[%s305 + $0x54] sm:$0xf]
        %v387 = vld [vmem:[%s305 + $0x58] sm:$0xf]
        %v388 = vld [vmem:[%s305 + $0x5c] sm:$0x1]
        %v389 = vld [vmem:[%s305 + $0x60] sm:$0xf]
        %v390 = vld [vmem:[%s305 + $0x64] sm:$0xf]
        %v391 = vld [vmem:[%s305 + $0x68] sm:$0x1]
        %v392 = vld [vmem:[%s305 + $0x6c] sm:$0xf]
        %v393 = vld [vmem:[%s305 + $0x70] sm:$0xf]
        %v394 = vld [vmem:[%s305 + $0x74] sm:$0x1]
        %v395 = vld [vmem:[%s305 + $0x78] sm:$0xf]
        %v396 = vld [vmem:[%s305 + $0x7c] sm:$0xf]
        %v397 = vld [vmem:[%s305 + $0x80] sm:$0x1]
        %v398 = vld [vmem:[%s305 + $0x84] sm:$0xf]
        %v399 = vld [vmem:[%s305 + $0x88] sm:$0xf]
        %v400 = vld [vmem:[%s305 + $0x8c] sm:$0x1]
        %v401 = vld [vmem:[%s305 + $0x90] sm:$0xf]
        %v402 = vld [vmem:[%s305 + $0x94] sm:$0xf]
        %v403 = vld [vmem:[%s305 + $0x98] sm:$0x1]
        %v404 = vld [vmem:[%s305 + $0x9c] sm:$0xf]
        %v405 = vld [vmem:[%s305 + $0xa0] sm:$0xf]
        %v406 = vld [vmem:[%s305 + $0xa4] sm:$0x1]
        %v407 = vld [vmem:[%s305 + $0xa8] sm:$0xf]
        %v408 = vld [vmem:[%s305 + $0xac] sm:$0xf]
        %v409 = vld [vmem:[%s305 + $0xb0] sm:$0x1]
        %v410 = vld [vmem:[%s305 + $0xb4] sm:$0xf]
        %v411 = vld [vmem:[%s305 + $0xb8] sm:$0xf]
        %v412 = vld [vmem:[%s305 + $0xbc] sm:$0x1]
        %v413 = vld [vmem:[%s305 + $0xc0] sm:$0xf]
        %v414 = vld [vmem:[%s305 + $0xc4] sm:$0xf]
        %v415 = vld [vmem:[%s305 + $0xc8] sm:$0x1]
        %v416 = vld [vmem:[%s305 + $0xcc] sm:$0xf]
        %v417 = vld [vmem:[%s305 + $0xd0] sm:$0xf]
        %v418 = vld [vmem:[%s305 + $0xd4] sm:$0x1]
        %v451 = vunpack.c.l.b16 %v365
        %v452 = vunpack.c.l.b16 %v366
        %v453 = vunpack.c.l.b16 %v368
        %v454 = vunpack.c.l.b16 %v369
        %v455 = vunpack.c.l.b16 %v371
        %v456 = vunpack.c.l.b16 %v372
        %v457 = vunpack.c.l.b16 %v374
        %v458 = vunpack.c.l.b16 %v375
        %v459 = vunpack.c.l.b16 %v377
        %v460 = vunpack.c.l.b16 %v378
        %v461 = vunpack.c.l.b16 %v380
        %v462 = vunpack.c.l.b16 %v381
        %v463 = vunpack.c.l.b16 %v383
        %v464 = vunpack.c.l.b16 %v384
        %v465 = vunpack.c.l.b16 %v386
        %v466 = vunpack.c.l.b16 %v387
        %v467 = vunpack.c.l.b16 %v389
        %v468 = vunpack.c.l.b16 %v390
        %v469 = vunpack.c.l.b16 %v392
        %v470 = vunpack.c.l.b16 %v393
        %v471 = vunpack.c.l.b16 %v395
        %v472 = vunpack.c.l.b16 %v396
        %v473 = vunpack.c.l.b16 %v398
        %v474 = vunpack.c.l.b16 %v399
        %v475 = vunpack.c.l.b16 %v401
        %v476 = vunpack.c.l.b16 %v402
        %v477 = vunpack.c.l.b16 %v404
        %v478 = vunpack.c.l.b16 %v405
        %v479 = vunpack.c.l.b16 %v407
        %v480 = vunpack.c.l.b16 %v408
        %v481 = vunpack.c.l.b16 %v410
        %v482 = vunpack.c.l.b16 %v411
        %v483 = vpack.c.b16 %v452, %v451
        %v484 = vpack.c.b16 %v454, %v453
        %v485 = vpack.c.b16 %v456, %v455
        %v486 = vpack.c.b16 %v458, %v457
        %v487 = vpack.c.b16 %v460, %v459
        %v488 = vpack.c.b16 %v462, %v461
        %v489 = vpack.c.b16 %v464, %v463
        %v490 = vpack.c.b16 %v466, %v465
        %v491 = vpack.c.b16 %v468, %v467
        %v492 = vpack.c.b16 %v470, %v469
        %v493 = vpack.c.b16 %v472, %v471
        %v494 = vpack.c.b16 %v474, %v473
        %v495 = vpack.c.b16 %v476, %v475
        %v496 = vpack.c.b16 %v478, %v477
        %v497 = vpack.c.b16 %v480, %v479
        %v498 = vpack.c.b16 %v482, %v481
        %v531 = vunpack.c.l.b16 %v367
        %v532 = vunpack.c.l.b16 %v370
        %v533 = vunpack.c.l.b16 %v373
        %v534 = vunpack.c.l.b16 %v376
        %v535 = vunpack.c.l.b16 %v379
        %v536 = vunpack.c.l.b16 %v382
        %v537 = vunpack.c.l.b16 %v385
        %v538 = vunpack.c.l.b16 %v388
        %v539 = vunpack.c.l.b16 %v391
        %v540 = vunpack.c.l.b16 %v394
        %v541 = vunpack.c.l.b16 %v397
        %v542 = vunpack.c.l.b16 %v400
        %v543 = vunpack.c.l.b16 %v403
        %v544 = vunpack.c.l.b16 %v406
        %v545 = vunpack.c.l.b16 %v409
        %v546 = vunpack.c.l.b16 %v412
        %v547 = vpack.c.b16 %v531, %v531
        %v548 = vpack.c.b16 %v532, %v532
        %v549 = vpack.c.b16 %v533, %v533
        %v550 = vpack.c.b16 %v534, %v534
        %v551 = vpack.c.b16 %v535, %v535
        %v552 = vpack.c.b16 %v536, %v536
        %v553 = vpack.c.b16 %v537, %v537
        %v554 = vpack.c.b16 %v538, %v538
        %v555 = vpack.c.b16 %v539, %v539
        %v556 = vpack.c.b16 %v540, %v540
        %v557 = vpack.c.b16 %v541, %v541
        %v558 = vpack.c.b16 %v542, %v542
        %v559 = vpack.c.b16 %v543, %v543
        %v560 = vpack.c.b16 %v544, %v544
        %v561 = vpack.c.b16 %v545, %v545
        %v562 = vpack.c.b16 %v546, %v546
        %vm563 = vsmask.f32 7424
        %v565 = vshrl.u32 %v483, 16
        %v567 = vshll.u32 %v483, 16
        %v569 = vrot.slane %v567, 1
        %v570 = vor.u32 %v565, %v569
        %v572 = vshll.u32 %v547, 16
        %v574 = vrot.slane %v572, 1
        %v575 = vsel %vm563, %v570, %v574
        %v577 = vshrl.u32 %v484, 16
        %v579 = vshll.u32 %v484, 16
        %v581 = vrot.slane %v579, 1
        %v582 = vor.u32 %v577, %v581
        %v584 = vshll.u32 %v548, 16
        %v586 = vrot.slane %v584, 1
        %v587 = vsel %vm563, %v582, %v586
        %v589 = vshrl.u32 %v485, 16
        %v591 = vshll.u32 %v485, 16
        %v593 = vrot.slane %v591, 1
        %v594 = vor.u32 %v589, %v593
        %v596 = vshll.u32 %v549, 16
        %v598 = vrot.slane %v596, 1
        %v599 = vsel %vm563, %v594, %v598
        %v601 = vshrl.u32 %v486, 16
        %v603 = vshll.u32 %v486, 16
        %v605 = vrot.slane %v603, 1
        %v606 = vor.u32 %v601, %v605
        %v608 = vshll.u32 %v550, 16
        %v610 = vrot.slane %v608, 1
        %v611 = vsel %vm563, %v606, %v610
        %v613 = vshrl.u32 %v487, 16
        %v615 = vshll.u32 %v487, 16
        %v617 = vrot.slane %v615, 1
        %v618 = vor.u32 %v613, %v617
        %v620 = vshll.u32 %v551, 16
        %v622 = vrot.slane %v620, 1
        %v623 = vsel %vm563, %v618, %v622
        %v625 = vshrl.u32 %v488, 16
        %v627 = vshll.u32 %v488, 16
        %v629 = vrot.slane %v627, 1
        %v630 = vor.u32 %v625, %v629
        %v632 = vshll.u32 %v552, 16
        %v634 = vrot.slane %v632, 1
        %v635 = vsel %vm563, %v630, %v634
        %v637 = vshrl.u32 %v489, 16
        %v639 = vshll.u32 %v489, 16
        %v641 = vrot.slane %v639, 1
        %v642 = vor.u32 %v637, %v641
        %v644 = vshll.u32 %v553, 16
        %v646 = vrot.slane %v644, 1
        %v647 = vsel %vm563, %v642, %v646
        %v649 = vshrl.u32 %v490, 16
        %v651 = vshll.u32 %v490, 16
        %v653 = vrot.slane %v651, 1
        %v654 = vor.u32 %v649, %v653
        %v656 = vshll.u32 %v554, 16
        %v658 = vrot.slane %v656, 1
        %v659 = vsel %vm563, %v654, %v658
        %v661 = vshrl.u32 %v491, 16
        %v663 = vshll.u32 %v491, 16
        %v665 = vrot.slane %v663, 1
        %v666 = vor.u32 %v661, %v665
        %v668 = vshll.u32 %v555, 16
        %v670 = vrot.slane %v668, 1
        %v671 = vsel %vm563, %v666, %v670
        %v673 = vshrl.u32 %v492, 16
        %v675 = vshll.u32 %v492, 16
        %v677 = vrot.slane %v675, 1
        %v678 = vor.u32 %v673, %v677
        %v680 = vshll.u32 %v556, 16
        %v682 = vrot.slane %v680, 1
        %v683 = vsel %vm563, %v678, %v682
        %v685 = vshrl.u32 %v493, 16
        %v687 = vshll.u32 %v493, 16
        %v689 = vrot.slane %v687, 1
        %v690 = vor.u32 %v685, %v689
        %v692 = vshll.u32 %v557, 16
        %v694 = vrot.slane %v692, 1
        %v695 = vsel %vm563, %v690, %v694
        %v697 = vshrl.u32 %v494, 16
        %v699 = vshll.u32 %v494, 16
        %v701 = vrot.slane %v699, 1
        %v702 = vor.u32 %v697, %v701
        %v704 = vshll.u32 %v558, 16
        %v706 = vrot.slane %v704, 1
        %v707 = vsel %vm563, %v702, %v706
        %v709 = vshrl.u32 %v495, 16
        %v711 = vshll.u32 %v495, 16
        %v713 = vrot.slane %v711, 1
        %v714 = vor.u32 %v709, %v713
        %v716 = vshll.u32 %v559, 16
        %v718 = vrot.slane %v716, 1
        %v719 = vsel %vm563, %v714, %v718
        %v721 = vshrl.u32 %v496, 16
        %v723 = vshll.u32 %v496, 16
        %v725 = vrot.slane %v723, 1
        %v726 = vor.u32 %v721, %v725
        %v728 = vshll.u32 %v560, 16
        %v730 = vrot.slane %v728, 1
        %v731 = vsel %vm563, %v726, %v730
        %v733 = vshrl.u32 %v497, 16
        %v735 = vshll.u32 %v497, 16
        %v737 = vrot.slane %v735, 1
        %v738 = vor.u32 %v733, %v737
        %v740 = vshll.u32 %v561, 16
        %v742 = vrot.slane %v740, 1
        %v743 = vsel %vm563, %v738, %v742
        %v745 = vshrl.u32 %v498, 16
        %v747 = vshll.u32 %v498, 16
        %v749 = vrot.slane %v747, 1
        %v750 = vor.u32 %v745, %v749
        %v752 = vshll.u32 %v562, 16
        %v754 = vrot.slane %v752, 1
        %v755 = vsel %vm563, %v750, %v754
        %vm772 = vcmask 1046528
        %v773 = vrot.slane %v483, 1
        %v774 = vrot.slane %v547, 1
        %v775 = vsel %vm772, %v773, %v774
        %v776 = vrot.slane %v484, 1
        %v777 = vrot.slane %v548, 1
        %v778 = vsel %vm772, %v776, %v777
        %v779 = vrot.slane %v485, 1
        %v780 = vrot.slane %v549, 1
        %v781 = vsel %vm772, %v779, %v780
        %v782 = vrot.slane %v486, 1
        %v783 = vrot.slane %v550, 1
        %v784 = vsel %vm772, %v782, %v783
        %v785 = vrot.slane %v487, 1
        %v786 = vrot.slane %v551, 1
        %v787 = vsel %vm772, %v785, %v786
        %v788 = vrot.slane %v488, 1
        %v789 = vrot.slane %v552, 1
        %v790 = vsel %vm772, %v788, %v789
        %v791 = vrot.slane %v489, 1
        %v792 = vrot.slane %v553, 1
        %v793 = vsel %vm772, %v791, %v792
        %v794 = vrot.slane %v490, 1
        %v795 = vrot.slane %v554, 1
        %v796 = vsel %vm772, %v794, %v795
        %v797 = vrot.slane %v491, 1
        %v798 = vrot.slane %v555, 1
        %v799 = vsel %vm772, %v797, %v798
        %v800 = vrot.slane %v492, 1
        %v801 = vrot.slane %v556, 1
        %v802 = vsel %vm772, %v800, %v801
        %v803 = vrot.slane %v493, 1
        %v804 = vrot.slane %v557, 1
        %v805 = vsel %vm772, %v803, %v804
        %v806 = vrot.slane %v494, 1
        %v807 = vrot.slane %v558, 1
        %v808 = vsel %vm772, %v806, %v807
        %v809 = vrot.slane %v495, 1
        %v810 = vrot.slane %v559, 1
        %v811 = vsel %vm772, %v809, %v810
        %v812 = vrot.slane %v496, 1
        %v813 = vrot.slane %v560, 1
        %v814 = vsel %vm772, %v812, %v813
        %v815 = vrot.slane %v497, 1
        %v816 = vrot.slane %v561, 1
        %v817 = vsel %vm772, %v815, %v816
        %v818 = vrot.slane %v498, 1
        %v819 = vrot.slane %v562, 1
        %v820 = vsel %vm772, %v818, %v819
        %v837 = vld [vmem:[#allocation8] sm:$0xf]
        %v838 = vld [vmem:[#allocation8 + $0x4] sm:$0xf]
        %v839 = vld [vmem:[#allocation8 + $0x8] sm:$0xf]
        %v840 = vld [vmem:[#allocation8 + $0xc] sm:$0xf]
        %v841 = vld [vmem:[#allocation8 + $0x10] sm:$0xf]
        %v842 = vld [vmem:[#allocation8 + $0x14] sm:$0xf]
        %v843 = vld [vmem:[#allocation8 + $0x18] sm:$0xf]
        %v844 = vld [vmem:[#allocation8 + $0x1c] sm:$0xf]
        %v845 = vld [vmem:[#allocation8 + $0x20] sm:$0xf]
        %v846 = vld [vmem:[#allocation8 + $0x24] sm:$0xf]
        %v847 = vld [vmem:[#allocation8 + $0x28] sm:$0xf]
        %v848 = vld [vmem:[#allocation8 + $0x2c] sm:$0xf]
        %v849 = vld [vmem:[#allocation8 + $0x30] sm:$0xf]
        %v850 = vld [vmem:[#allocation8 + $0x34] sm:$0xf]
        %v851 = vld [vmem:[#allocation8 + $0x38] sm:$0xf]
        %v852 = vld [vmem:[#allocation8 + $0x3c] sm:$0xf]
        %v853 = vld [vmem:[#allocation8 + $0x40] sm:$0xf]
        %v854 = vld [vmem:[#allocation8 + $0x44] sm:$0xf]
        %v855 = vld [vmem:[#allocation8 + $0x48] sm:$0xf]
        %v856 = vld [vmem:[#allocation8 + $0x4c] sm:$0xf]
        %v857 = vld [vmem:[#allocation8 + $0x50] sm:$0xf]
        %v858 = vld [vmem:[#allocation8 + $0x54] sm:$0xf]
        %v859 = vld [vmem:[#allocation8 + $0x58] sm:$0xf]
        %v860 = vld [vmem:[#allocation8 + $0x5c] sm:$0xf]
        %v861 = vld [vmem:[#allocation8 + $0x60] sm:$0xf]
        %v862 = vld [vmem:[#allocation8 + $0x64] sm:$0xf]
        %v863 = vld [vmem:[#allocation8 + $0x68] sm:$0xf]
        %v864 = vld [vmem:[#allocation8 + $0x6c] sm:$0xf]
        %v865 = vld [vmem:[#allocation8 + $0x70] sm:$0xf]
        %v866 = vld [vmem:[#allocation8 + $0x74] sm:$0xf]
        %v867 = vld [vmem:[#allocation8 + $0x78] sm:$0xf]
        %v868 = vld [vmem:[#allocation8 + $0x7c] sm:$0xf]
        %v869 = vld [vmem:[#allocation8 + $0x80] sm:$0xf]
        %v870 = vld [vmem:[#allocation8 + $0x84] sm:$0xf]
        %v871 = vld [vmem:[#allocation8 + $0x88] sm:$0xf]
        %v872 = vld [vmem:[#allocation8 + $0x8c] sm:$0xf]
        %v873 = vld [vmem:[#allocation8 + $0x90] sm:$0xf]
        %v874 = vld [vmem:[#allocation8 + $0x94] sm:$0xf]
        %v875 = vld [vmem:[#allocation8 + $0x98] sm:$0xf]
        %v876 = vld [vmem:[#allocation8 + $0x9c] sm:$0xf]
        %v877 = vld [vmem:[#allocation8 + $0xa0] sm:$0xf]
        %v878 = vld [vmem:[#allocation8 + $0xa4] sm:$0xf]
        %v879 = vld [vmem:[#allocation8 + $0xa8] sm:$0xf]
        %v880 = vld [vmem:[#allocation8 + $0xac] sm:$0xf]
        %v881 = vld [vmem:[#allocation8 + $0xb0] sm:$0xf]
        %v882 = vld [vmem:[#allocation8 + $0xb4] sm:$0xf]
        %v883 = vld [vmem:[#allocation8 + $0xb8] sm:$0xf]
        %v884 = vld [vmem:[#allocation8 + $0xbc] sm:$0xf]
        %v887 = vunpack.c.l.b16 %v413
        %v888 = vunpack.c.l.b16 %v414
        %v889 = vpack.c.b16 %v888, %v887
        %v892 = vunpack.c.l.b16 %v415
        %v893 = vpack.c.b16 %v892, %v892
        %v895 = vshrl.u32 %v889, 16
        %v897 = vshll.u32 %v889, 16
        %v899 = vrot.slane %v897, 1
        %v900 = vor.u32 %v895, %v899
        %v902 = vshll.u32 %v893, 16
        %v904 = vrot.slane %v902, 1
        %v905 = vsel %vm563, %v900, %v904
        %v907 = vrot.slane %v889, 1
        %v908 = vrot.slane %v893, 1
        %v909 = vsel %vm772, %v907, %v908
        %v911 = vld [vmem:[#allocation8 + $0xc0] sm:$0xf]
        %v912 = vld [vmem:[#allocation8 + $0xc4] sm:$0xf]
        %v913 = vld [vmem:[#allocation8 + $0xc8] sm:$0xf]
        %v914 = vld [vmem:[#allocation8 + $0xcc] sm:$0xf]
        %v915 = vld [vmem:[#allocation8 + $0xd0] sm:$0xf]
        %v916 = vld [vmem:[#allocation8 + $0xd4] sm:$0xf]
        %v917 = vld [vmem:[#allocation8 + $0xd8] sm:$0xf]
        %v918 = vld [vmem:[#allocation8 + $0xdc] sm:$0xf]
        %v919 = vld [vmem:[#allocation8 + $0xe0] sm:$0xf]
        %v920 = vld [vmem:[#allocation8 + $0xe4] sm:$0xf]
        %v921 = vld [vmem:[#allocation8 + $0xe8] sm:$0xf]
        %v922 = vld [vmem:[#allocation8 + $0xec] sm:$0xf]
        %v923 = vld [vmem:[#allocation8 + $0xf0] sm:$0xf]
        %v924 = vld [vmem:[#allocation8 + $0xf4] sm:$0xf]
        %v925 = vld [vmem:[#allocation8 + $0xf8] sm:$0xf]
        %v926 = vld [vmem:[#allocation8 + $0xfc] sm:$0xf]
        %v927 = vld [vmem:[#allocation8 + $0x100] sm:$0xf]
        %v928 = vld [vmem:[#allocation8 + $0x104] sm:$0xf]
        %v929 = vld [vmem:[#allocation8 + $0x108] sm:$0xf]
        %v930 = vld [vmem:[#allocation8 + $0x10c] sm:$0xf]
        %v931 = vld [vmem:[#allocation8 + $0x110] sm:$0xf]
        %v932 = vld [vmem:[#allocation8 + $0x114] sm:$0xf]
        %v933 = vld [vmem:[#allocation8 + $0x118] sm:$0xf]
        %v934 = vld [vmem:[#allocation8 + $0x11c] sm:$0xf]
        %v935 = vld [vmem:[#allocation8 + $0x120] sm:$0xf]
        %v936 = vld [vmem:[#allocation8 + $0x124] sm:$0xf]
        %v937 = vld [vmem:[#allocation8 + $0x128] sm:$0xf]
        %v938 = vld [vmem:[#allocation8 + $0x12c] sm:$0xf]
        %v939 = vld [vmem:[#allocation8 + $0x130] sm:$0xf]
        %v940 = vld [vmem:[#allocation8 + $0x134] sm:$0xf]
        %v941 = vld [vmem:[#allocation8 + $0x138] sm:$0xf]
        %v942 = vld [vmem:[#allocation8 + $0x13c] sm:$0xf]
        %v943 = vld [vmem:[#allocation8 + $0x140] sm:$0xf]
        %v944 = vld [vmem:[#allocation8 + $0x144] sm:$0xf]
        %v945 = vld [vmem:[#allocation8 + $0x148] sm:$0xf]
        %v946 = vld [vmem:[#allocation8 + $0x14c] sm:$0xf]
        %v947 = vld [vmem:[#allocation8 + $0x150] sm:$0xf]
        %v948 = vld [vmem:[#allocation8 + $0x154] sm:$0xf]
        %v949 = vld [vmem:[#allocation8 + $0x158] sm:$0xf]
        %v950 = vld [vmem:[#allocation8 + $0x15c] sm:$0xf]
        %v951 = vld [vmem:[#allocation8 + $0x160] sm:$0xf]
        %v952 = vld [vmem:[#allocation8 + $0x164] sm:$0xf]
        %v953 = vld [vmem:[#allocation8 + $0x168] sm:$0xf]
        %v954 = vld [vmem:[#allocation8 + $0x16c] sm:$0xf]
        %v955 = vld [vmem:[#allocation8 + $0x170] sm:$0xf]
        %v956 = vld [vmem:[#allocation8 + $0x174] sm:$0xf]
        %v957 = vld [vmem:[#allocation8 + $0x178] sm:$0xf]
        %v958 = vld [vmem:[#allocation8 + $0x17c] sm:$0xf]
        %v1007 = vunpack.c.l.b16 %v911
        %v1008 = vunpack.c.l.b16 %v912
        %v1009 = vunpack.c.l.b16 %v913
        %v1010 = vunpack.c.l.b16 %v914
        %v1011 = vunpack.c.l.b16 %v915
        %v1012 = vunpack.c.l.b16 %v916
        %v1013 = vunpack.c.l.b16 %v917
        %v1014 = vunpack.c.l.b16 %v918
        %v1015 = vunpack.c.l.b16 %v919
        %v1016 = vunpack.c.l.b16 %v920
        %v1017 = vunpack.c.l.b16 %v921
        %v1018 = vunpack.c.l.b16 %v922
        %v1019 = vunpack.c.l.b16 %v923
        %v1020 = vunpack.c.l.b16 %v924
        %v1021 = vunpack.c.l.b16 %v925
        %v1022 = vunpack.c.l.b16 %v926
        %v1023 = vunpack.c.l.b16 %v927
        %v1024 = vunpack.c.l.b16 %v928
        %v1025 = vunpack.c.l.b16 %v929
        %v1026 = vunpack.c.l.b16 %v930
        %v1027 = vunpack.c.l.b16 %v931
        %v1028 = vunpack.c.l.b16 %v932
        %v1029 = vunpack.c.l.b16 %v933
        %v1030 = vunpack.c.l.b16 %v934
        %v1031 = vunpack.c.l.b16 %v935
        %v1032 = vunpack.c.l.b16 %v936
        %v1033 = vunpack.c.l.b16 %v937
        %v1034 = vunpack.c.l.b16 %v938
        %v1035 = vunpack.c.l.b16 %v939
        %v1036 = vunpack.c.l.b16 %v940
        %v1037 = vunpack.c.l.b16 %v941
        %v1038 = vunpack.c.l.b16 %v942
        %v1039 = vunpack.c.l.b16 %v943
        %v1040 = vunpack.c.l.b16 %v944
        %v1041 = vunpack.c.l.b16 %v945
        %v1042 = vunpack.c.l.b16 %v946
        %v1043 = vunpack.c.l.b16 %v947
        %v1044 = vunpack.c.l.b16 %v948
        %v1045 = vunpack.c.l.b16 %v949
        %v1046 = vunpack.c.l.b16 %v950
        %v1047 = vunpack.c.l.b16 %v951
        %v1048 = vunpack.c.l.b16 %v952
        %v1049 = vunpack.c.l.b16 %v953
        %v1050 = vunpack.c.l.b16 %v954
        %v1051 = vunpack.c.l.b16 %v955
        %v1052 = vunpack.c.l.b16 %v956
        %v1053 = vunpack.c.l.b16 %v957
        %v1054 = vunpack.c.l.b16 %v958
        %v1055 = vpack.c.b16 %v1008, %v1007
        %v1056 = vpack.c.b16 %v1010, %v1009
        %v1057 = vpack.c.b16 %v1012, %v1011
        %v1058 = vpack.c.b16 %v1014, %v1013
        %v1059 = vpack.c.b16 %v1016, %v1015
        %v1060 = vpack.c.b16 %v1018, %v1017
        %v1061 = vpack.c.b16 %v1020, %v1019
        %v1062 = vpack.c.b16 %v1022, %v1021
        %v1063 = vpack.c.b16 %v1024, %v1023
        %v1064 = vpack.c.b16 %v1026, %v1025
        %v1065 = vpack.c.b16 %v1028, %v1027
        %v1066 = vpack.c.b16 %v1030, %v1029
        %v1067 = vpack.c.b16 %v1032, %v1031
        %v1068 = vpack.c.b16 %v1034, %v1033
        %v1069 = vpack.c.b16 %v1036, %v1035
        %v1070 = vpack.c.b16 %v1038, %v1037
        %v1071 = vpack.c.b16 %v1040, %v1039
        %v1072 = vpack.c.b16 %v1042, %v1041
        %v1073 = vpack.c.b16 %v1044, %v1043
        %v1074 = vpack.c.b16 %v1046, %v1045
        %v1075 = vpack.c.b16 %v1048, %v1047
        %v1076 = vpack.c.b16 %v1050, %v1049
        %v1077 = vpack.c.b16 %v1052, %v1051
        %v1078 = vpack.c.b16 %v1054, %v1053
        %1103 = vmatprep.subr.bf16.mxu0 0
        %1104 = vmatpush1.bf16.msra.mxu0 %v1055
        %1105 = vmatprep.subr.bf16.mxu0 0
        %1106 = vmatpush1.bf16.msra.mxu0 %v1056
        %1107 = vmatprep.subr.bf16.mxu0 0
        %1108 = vmatpush1.bf16.msra.mxu0 %v1057
        %1109 = vmatprep.subr.bf16.mxu0 0
        %1110 = vmatpush1.bf16.msra.mxu0 %v1058
        %1111 = vmatprep.subr.bf16.mxu0 0
        %1112 = vmatpush1.bf16.msra.mxu0 %v1059
        %1113 = vmatprep.subr.bf16.mxu0 0
        %1114 = vmatpush1.bf16.msra.mxu0 %v1060
        %1115 = vmatprep.subr.bf16.mxu0 0
        %1116 = vmatpush1.bf16.msra.mxu0 %v1061
        %1117 = vmatprep.subr.bf16.mxu0 0
        %1118 = vmatpush1.bf16.msra.mxu0 %v1062
        %1119 = vmatprep.subr.bf16.mxu0 0
        %1120 = vmatpush1.bf16.msra.mxu0 %v1063
        %1121 = vmatprep.subr.bf16.mxu0 0
        %1122 = vmatpush1.bf16.msra.mxu0 %v1064
        %1123 = vmatprep.subr.bf16.mxu0 0
        %1124 = vmatpush1.bf16.msra.mxu0 %v1065
        %1125 = vmatprep.subr.bf16.mxu0 0
        %1126 = vmatpush1.bf16.msra.mxu0 %v1066
        %1127 = vmatprep.subr.bf16.mxu0 0
        %1128 = vmatpush1.bf16.msra.mxu0 %v1067
        %1129 = vmatprep.subr.bf16.mxu0 0
        %1130 = vmatpush1.bf16.msra.mxu0 %v1068
        %1131 = vmatprep.subr.bf16.mxu0 0
        %1132 = vmatpush1.bf16.msra.mxu0 %v1069
        %1133 = vmatprep.subr.bf16.mxu0 0
        %1134 = vmatpush1.bf16.msra.mxu0 %v1070
        %1135 = vmatprep.mubr.bf16.mxu0 %v587
        %1136 = vmatmul.mubr.bf16.gmra.mrb[0].mxu0 %v484
        %v1137 = vpop.f32.mrb[0].mxu0
        %v1138 = vadd.f32 0.0, %v1137
        %v1139 = vpop.f32.mrb[0].mxu0
        %v1140 = vpop.f32.mrb[0].mxu0
        %v1141 = vadd.f32 0.0, %v1140
        %v1142 = vpop.f32.mrb[0].mxu0
        %1143 = vmatprep.mubr.bf16.mxu0 %v599
        %1144 = vmatmul.mubr.bf16.gmra.mrb[0].mxu0 %v485
        %v1145 = vpop.f32.mrb[0].mxu0
        %v1146 = vadd.f32 0.0, %v1145
        %v1147 = vpop.f32.mrb[0].mxu0
        %v1148 = vpop.f32.mrb[0].mxu0
        %v1149 = vadd.f32 0.0, %v1148
        %v1150 = vpop.f32.mrb[0].mxu0
        %1151 = vmatprep.mubr.bf16.mxu0 %v611
        %1152 = vmatmul.mubr.bf16.gmra.mrb[0].mxu0 %v486
        %v1153 = vpop.f32.mrb[0].mxu0
        %v1154 = vadd.f32 0.0, %v1153
        %v1155 = vpop.f32.mrb[0].mxu0
        %v1156 = vpop.f32.mrb[0].mxu0
        %v1157 = vadd.f32 0.0, %v1156
        %v1158 = vpop.f32.mrb[0].mxu0
        %1159 = vmatprep.mubr.bf16.mxu0 %v623
        %1160 = vmatmul.mubr.bf16.gmra.mrb[0].mxu0 %v487
        %v1161 = vpop.f32.mrb[0].mxu0
        %v1162 = vadd.f32 0.0, %v1161
        %v1163 = vpop.f32.mrb[0].mxu0
        %v1164 = vpop.f32.mrb[0].mxu0
        %v1165 = vadd.f32 0.0, %v1164
        %v1166 = vpop.f32.mrb[0].mxu0
        %1167 = vmatprep.mubr.bf16.mxu0 %v635
        %1168 = vmatmul.mubr.bf16.gmra.mrb[0].mxu0 %v488
        %v1169 = vpop.f32.mrb[0].mxu0
        %v1170 = vadd.f32 0.0, %v1169
        %v1171 = vpop.f32.mrb[0].mxu0
        %v1172 = vpop.f32.mrb[0].mxu0
        %v1173 = vadd.f32 0.0, %v1172
        %v1174 = vpop.f32.mrb[0].mxu0
        %1175 = vmatprep.mubr.bf16.mxu0 %v647
        %1176 = vmatmul.mubr.bf16.gmra.mrb[0].mxu0 %v489
        %v1177 = vpop.f32.mrb[0].mxu0
        %v1178 = vadd.f32 0.0, %v1177
        %v1179 = vpop.f32.mrb[0].mxu0
        %v1180 = vpop.f32.mrb[0].mxu0
        %v1181 = vadd.f32 0.0, %v1180
        %v1182 = vpop.f32.mrb[0].mxu0
        %1183 = vmatprep.mubr.bf16.mxu0 %v659
        %1184 = vmatmul.mubr.bf16.gmra.mrb[0].mxu0 %v490
        %v1185 = vpop.f32.mrb[0].mxu0
        %v1186 = vadd.f32 0.0, %v1185
        %v1187 = vpop.f32.mrb[0].mxu0
        %v1188 = vpop.f32.mrb[0].mxu0
        %v1189 = vadd.f32 0.0, %v1188
        %v1190 = vpop.f32.mrb[0].mxu0
        %1191 = vmatprep.mubr.bf16.mxu0 %v671
        %1192 = vmatmul.mubr.bf16.gmra.mrb[0].mxu0 %v491
        %v1193 = vpop.f32.mrb[0].mxu0
        %v1194 = vadd.f32 0.0, %v1193
        %v1195 = vpop.f32.mrb[0].mxu0
        %v1196 = vpop.f32.mrb[0].mxu0
        %v1197 = vadd.f32 0.0, %v1196
        %v1198 = vpop.f32.mrb[0].mxu0
        %1199 = vmatprep.mubr.bf16.mxu0 %v683
        %1200 = vmatmul.mubr.bf16.gmra.mrb[0].mxu0 %v492
        %v1201 = vpop.f32.mrb[0].mxu0
        %v1202 = vadd.f32 0.0, %v1201
        %v1203 = vpop.f32.mrb[0].mxu0
        %v1204 = vpop.f32.mrb[0].mxu0
        %v1205 = vadd.f32 0.0, %v1204
        %v1206 = vpop.f32.mrb[0].mxu0
        %1207 = vmatprep.mubr.bf16.mxu0 %v695
        %1208 = vmatmul.mubr.bf16.gmra.mrb[0].mxu0 %v493
        %v1209 = vpop.f32.mrb[0].mxu0
        %v1210 = vadd.f32 0.0, %v1209
        %v1211 = vpop.f32.mrb[0].mxu0
        %v1212 = vpop.f32.mrb[0].mxu0
        %v1213 = vadd.f32 0.0, %v1212
        %v1214 = vpop.f32.mrb[0].mxu0
        %1215 = vmatprep.mubr.bf16.mxu0 %v707
        %1216 = vmatmul.mubr.bf16.gmra.mrb[0].mxu0 %v494
        %v1217 = vpop.f32.mrb[0].mxu0
        %v1218 = vadd.f32 0.0, %v1217
        %v1219 = vpop.f32.mrb[0].mxu0
        %v1220 = vpop.f32.mrb[0].mxu0
        %v1221 = vadd.f32 0.0, %v1220
        %v1222 = vpop.f32.mrb[0].mxu0
        %1223 = vmatprep.mubr.bf16.mxu0 %v719
        %1224 = vmatmul.mubr.bf16.gmra.mrb[0].mxu0 %v495
        %v1225 = vpop.f32.mrb[0].mxu0
        %v1226 = vadd.f32 0.0, %v1225
        %v1227 = vpop.f32.mrb[0].mxu0
        %v1228 = vpop.f32.mrb[0].mxu0
        %v1229 = vadd.f32 0.0, %v1228
        %v1230 = vpop.f32.mrb[0].mxu0
        %1231 = vmatprep.mubr.bf16.mxu0 %v731
        %1232 = vmatmul.mubr.bf16.gmra.mrb[0].mxu0 %v496
        %v1233 = vpop.f32.mrb[0].mxu0
        %v1234 = vadd.f32 0.0, %v1233
        %v1235 = vpop.f32.mrb[0].mxu0
        %v1236 = vpop.f32.mrb[0].mxu0
        %v1237 = vadd.f32 0.0, %v1236
        %v1238 = vpop.f32.mrb[0].mxu0
        %1239 = vmatprep.mubr.bf16.mxu0 %v743
        %1240 = vmatmul.mubr.bf16.gmra.mrb[0].mxu0 %v497
        %v1241 = vpop.f32.mrb[0].mxu0
        %v1242 = vadd.f32 0.0, %v1241
        %v1243 = vpop.f32.mrb[0].mxu0
        %v1244 = vpop.f32.mrb[0].mxu0
        %v1245 = vadd.f32 0.0, %v1244
        %v1246 = vpop.f32.mrb[0].mxu0
        %1247 = vmatprep.mubr.bf16.mxu0 %v755
        %1248 = vmatmul.mubr.bf16.gmra.mrb[0].mxu0 %v498
        %v1249 = vpop.f32.mrb[0].mxu0
        %v1250 = vadd.f32 0.0, %v1249
        %v1251 = vpop.f32.mrb[0].mxu0
        %v1252 = vpop.f32.mrb[0].mxu0
        %v1253 = vadd.f32 0.0, %v1252
        %v1254 = vpop.f32.mrb[0].mxu0
        %1255 = vmatprep.mubr.bf16.mxu0 %v905
        %1256 = vmatmul.mubr.bf16.gmra.mrb[0].mxu0 %v889
        %v1257 = vpop.f32.mrb[0].mxu0
        %v1258 = vadd.f32 0.0, %v1257
        %v1259 = vpop.f32.mrb[0].mxu0
        %v1260 = vpop.f32.mrb[0].mxu0
        %v1261 = vadd.f32 0.0, %v1260
        %v1262 = vpop.f32.mrb[0].mxu0
        %1263 = vdwg.mxu0
        %1264 = vmatprep.subr.bf16.mxu0 0
        %1265 = vmatpush1.bf16.msra.mxu0 %v1071
        %1266 = vmatprep.subr.bf16.mxu0 0
        %1267 = vmatpush1.bf16.msra.mxu0 %v1072
        %1268 = vmatprep.subr.bf16.mxu0 0
        %1269 = vmatpush1.bf16.msra.mxu0 %v1073
        %1270 = vmatprep.subr.bf16.mxu0 0
        %1271 = vmatpush1.bf16.msra.mxu0 %v1074
        %1272 = vmatprep.subr.bf16.mxu0 0
        %1273 = vmatpush1.bf16.msra.mxu0 %v1075
        %1274 = vmatprep.subr.bf16.mxu0 0
        %1275 = vmatpush1.bf16.msra.mxu0 %v1076
        %1276 = vmatprep.subr.bf16.mxu0 0
        %1277 = vmatpush1.bf16.msra.mxu0 %v1077
        %1278 = vmatprep.subr.bf16.mxu0 0
        %1279 = vmatpush1.bf16.msra.mxu0 %v1078
        %1280 = vmatprep.subr.bf16.mxu0 0
        %1281 = vmatpush1.bf16.msra.mxu0 0
        %1282 = vmatprep.subr.bf16.mxu0 0
        %1283 = vmatpush1.bf16.msra.mxu0 0
        %1284 = vmatprep.subr.bf16.mxu0 0
        %1285 = vmatpush1.bf16.msra.mxu0 0
        %1286 = vmatprep.subr.bf16.mxu0 0
        %1287 = vmatpush1.bf16.msra.mxu0 0
        %1288 = vmatprep.subr.bf16.mxu0 0
        %1289 = vmatpush1.bf16.msra.mxu0 0
        %1290 = vmatprep.subr.bf16.mxu0 0
        %1291 = vmatpush1.bf16.msra.mxu0 0
        %1292 = vmatprep.subr.bf16.mxu0 0
        %1293 = vmatpush1.bf16.msra.mxu0 0
        %1294 = vmatprep.subr.bf16.mxu0 0
        %1295 = vmatpush1.bf16.msra.mxu0 0
        %1296 = vmatprep.mubr.bf16.mxu0 0
        %1297 = vmatmul.mubr.bf16.gmra.mrb[0].mxu0 %v778
        %v1298 = vpop.f32.mrb[0].mxu0
        %v1299 = vadd.f32 %v1138, %v1298
        %v1300 = vpop.f32.mrb[0].mxu0
        %v1301 = vpop.f32.mrb[0].mxu0
        %v1302 = vadd.f32 %v1141, %v1301
        %v1303 = vpop.f32.mrb[0].mxu0
        %1304 = vmatprep.mubr.bf16.mxu0 0
        %1305 = vmatmul.mubr.bf16.gmra.mrb[0].mxu0 %v781
        %v1306 = vpop.f32.mrb[0].mxu0
        %v1307 = vadd.f32 %v1146, %v1306
        %v1308 = vpop.f32.mrb[0].mxu0
        %v1309 = vpop.f32.mrb[0].mxu0
        %v1310 = vadd.f32 %v1149, %v1309
        %v1311 = vpop.f32.mrb[0].mxu0
        %1312 = vmatprep.mubr.bf16.mxu0 0
        %1313 = vmatmul.mubr.bf16.gmra.mrb[0].mxu0 %v784
        %v1314 = vpop.f32.mrb[0].mxu0
        %v1315 = vadd.f32 %v1154, %v1314
        %v1316 = vpop.f32.mrb[0].mxu0
        %v1317 = vpop.f32.mrb[0].mxu0
        %v1318 = vadd.f32 %v1157, %v1317
        %v1319 = vpop.f32.mrb[0].mxu0
        %1320 = vmatprep.mubr.bf16.mxu0 0
        %1321 = vmatmul.mubr.bf16.gmra.mrb[0].mxu0 %v787
        %v1322 = vpop.f32.mrb[0].mxu0
        %v1323 = vadd.f32 %v1162, %v1322
        %v1324 = vpop.f32.mrb[0].mxu0
        %v1325 = vpop.f32.mrb[0].mxu0
        %v1326 = vadd.f32 %v1165, %v1325
        %v1327 = vpop.f32.mrb[0].mxu0
        %1328 = vmatprep.mubr.bf16.mxu0 0
        %1329 = vmatmul.mubr.bf16.gmra.mrb[0].mxu0 %v790
        %v1330 = vpop.f32.mrb[0].mxu0
        %v1331 = vadd.f32 %v1170, %v1330
        %v1332 = vpop.f32.mrb[0].mxu0
        %v1333 = vpop.f32.mrb[0].mxu0
        %v1334 = vadd.f32 %v1173, %v1333
        %v1335 = vpop.f32.mrb[0].mxu0
        %1336 = vmatprep.mubr.bf16.mxu0 0
        %1337 = vmatmul.mubr.bf16.gmra.mrb[0].mxu0 %v793
        %v1338 = vpop.f32.mrb[0].mxu0
        %v1339 = vadd.f32 %v1178, %v1338
        %v1340 = vpop.f32.mrb[0].mxu0
        %v1341 = vpop.f32.mrb[0].mxu0
        %v1342 = vadd.f32 %v1181, %v1341
        %v1343 = vpop.f32.mrb[0].mxu0
        %1344 = vmatprep.mubr.bf16.mxu0 0
        %1345 = vmatmul.mubr.bf16.gmra.mrb[0].mxu0 %v796
        %v1346 = vpop.f32.mrb[0].mxu0
        %v1347 = vadd.f32 %v1186, %v1346
        %v1348 = vpop.f32.mrb[0].mxu0
        %v1349 = vpop.f32.mrb[0].mxu0
        %v1350 = vadd.f32 %v1189, %v1349
        %v1351 = vpop.f32.mrb[0].mxu0
        %1352 = vmatprep.mubr.bf16.mxu0 0
        %1353 = vmatmul.mubr.bf16.gmra.mrb[0].mxu0 %v799
        %v1354 = vpop.f32.mrb[0].mxu0
        %v1355 = vadd.f32 %v1194, %v1354
        %v1356 = vpop.f32.mrb[0].mxu0
        %v1357 = vpop.f32.mrb[0].mxu0
        %v1358 = vadd.f32 %v1197, %v1357
        %v1359 = vpop.f32.mrb[0].mxu0
        %1360 = vmatprep.mubr.bf16.mxu0 0
        %1361 = vmatmul.mubr.bf16.gmra.mrb[0].mxu0 %v802
        %v1362 = vpop.f32.mrb[0].mxu0
        %v1363 = vadd.f32 %v1202, %v1362
        %v1364 = vpop.f32.mrb[0].mxu0
        %v1365 = vpop.f32.mrb[0].mxu0
        %v1366 = vadd.f32 %v1205, %v1365
        %v1367 = vpop.f32.mrb[0].mxu0
        %1368 = vmatprep.mubr.bf16.mxu0 0
        %1369 = vmatmul.mubr.bf16.gmra.mrb[0].mxu0 %v805
        %v1370 = vpop.f32.mrb[0].mxu0
        %v1371 = vadd.f32 %v1210, %v1370
        %v1372 = vpop.f32.mrb[0].mxu0
        %v1373 = vpop.f32.mrb[0].mxu0
        %v1374 = vadd.f32 %v1213, %v1373
        %v1375 = vpop.f32.mrb[0].mxu0
        %1376 = vmatprep.mubr.bf16.mxu0 0
        %1377 = vmatmul.mubr.bf16.gmra.mrb[0].mxu0 %v808
        %v1378 = vpop.f32.mrb[0].mxu0
        %v1379 = vadd.f32 %v1218, %v1378
        %v1380 = vpop.f32.mrb[0].mxu0
        %v1381 = vpop.f32.mrb[0].mxu0
        %v1382 = vadd.f32 %v1221, %v1381
        %v1383 = vpop.f32.mrb[0].mxu0
        %1384 = vmatprep.mubr.bf16.mxu0 0
        %1385 = vmatmul.mubr.bf16.gmra.mrb[0].mxu0 %v811
        %v1386 = vpop.f32.mrb[0].mxu0
        %v1387 = vadd.f32 %v1226, %v1386
        %v1388 = vpop.f32.mrb[0].mxu0
        %v1389 = vpop.f32.mrb[0].mxu0
        %v1390 = vadd.f32 %v1229, %v1389
        %v1391 = vpop.f32.mrb[0].mxu0
        %1392 = vmatprep.mubr.bf16.mxu0 0
        %1393 = vmatmul.mubr.bf16.gmra.mrb[0].mxu0 %v814
        %v1394 = vpop.f32.mrb[0].mxu0
        %v1395 = vadd.f32 %v1234, %v1394
        %v1396 = vpop.f32.mrb[0].mxu0
        %v1397 = vpop.f32.mrb[0].mxu0
        %v1398 = vadd.f32 %v1237, %v1397
        %v1399 = vpop.f32.mrb[0].mxu0
        %1400 = vmatprep.mubr.bf16.mxu0 0
        %1401 = vmatmul.mubr.bf16.gmra.mrb[0].mxu0 %v817
        %v1402 = vpop.f32.mrb[0].mxu0
        %v1403 = vadd.f32 %v1242, %v1402
        %v1404 = vpop.f32.mrb[0].mxu0
        %v1405 = vpop.f32.mrb[0].mxu0
        %v1406 = vadd.f32 %v1245, %v1405
        %v1407 = vpop.f32.mrb[0].mxu0
        %1408 = vmatprep.mubr.bf16.mxu0 0
        %1409 = vmatmul.mubr.bf16.gmra.mrb[0].mxu0 %v820
        %v1410 = vpop.f32.mrb[0].mxu0
        %v1411 = vadd.f32 %v1250, %v1410
        %v1412 = vpop.f32.mrb[0].mxu0
        %v1413 = vpop.f32.mrb[0].mxu0
        %v1414 = vadd.f32 %v1253, %v1413
        %v1415 = vpop.f32.mrb[0].mxu0
        %1416 = vmatprep.mubr.bf16.mxu0 0
        %1417 = vmatmul.mubr.bf16.gmra.mrb[0].mxu0 %v909
        %v1418 = vpop.f32.mrb[0].mxu0
        %v1419 = vadd.f32 %v1258, %v1418
        %v1420 = vpop.f32.mrb[0].mxu0
        %v1421 = vpop.f32.mrb[0].mxu0
        %v1422 = vadd.f32 %v1261, %v1421
        %v1423 = vpop.f32.mrb[0].mxu0
        %1424 = vdwg.mxu0
        %v1473 = vunpack.c.l.b16 %v837
        %v1474 = vunpack.c.l.b16 %v838
        %v1475 = vunpack.c.l.b16 %v839
        %v1476 = vunpack.c.l.b16 %v840
        %v1477 = vunpack.c.l.b16 %v841
        %v1478 = vunpack.c.l.b16 %v842
        %v1479 = vunpack.c.l.b16 %v843
        %v1480 = vunpack.c.l.b16 %v844
        %v1481 = vunpack.c.l.b16 %v845
        %v1482 = vunpack.c.l.b16 %v846
        %v1483 = vunpack.c.l.b16 %v847
        %v1484 = vunpack.c.l.b16 %v848
        %v1485 = vunpack.c.l.b16 %v849
        %v1486 = vunpack.c.l.b16 %v850
        %v1487 = vunpack.c.l.b16 %v851
        %v1488 = vunpack.c.l.b16 %v852
        %v1489 = vunpack.c.l.b16 %v853
        %v1490 = vunpack.c.l.b16 %v854
        %v1491 = vunpack.c.l.b16 %v855
        %v1492 = vunpack.c.l.b16 %v856
        %v1493 = vunpack.c.l.b16 %v857
        %v1494 = vunpack.c.l.b16 %v858
        %v1495 = vunpack.c.l.b16 %v859
        %v1496 = vunpack.c.l.b16 %v860
        %v1497 = vunpack.c.l.b16 %v861
        %v1498 = vunpack.c.l.b16 %v862
        %v1499 = vunpack.c.l.b16 %v863
        %v1500 = vunpack.c.l.b16 %v864
        %v1501 = vunpack.c.l.b16 %v865
        %v1502 = vunpack.c.l.b16 %v866
        %v1503 = vunpack.c.l.b16 %v867
        %v1504 = vunpack.c.l.b16 %v868
        %v1505 = vunpack.c.l.b16 %v869
        %v1506 = vunpack.c.l.b16 %v870
        %v1507 = vunpack.c.l.b16 %v871
        %v1508 = vunpack.c.l.b16 %v872
        %v1509 = vunpack.c.l.b16 %v873
        %v1510 = vunpack.c.l.b16 %v874
        %v1511 = vunpack.c.l.b16 %v875
        %v1512 = vunpack.c.l.b16 %v876
        %v1513 = vunpack.c.l.b16 %v877
        %v1514 = vunpack.c.l.b16 %v878
        %v1515 = vunpack.c.l.b16 %v879
        %v1516 = vunpack.c.l.b16 %v880
        %v1517 = vunpack.c.l.b16 %v881
        %v1518 = vunpack.c.l.b16 %v882
        %v1519 = vunpack.c.l.b16 %v883
        %v1520 = vunpack.c.l.b16 %v884
        %v1521 = vpack.c.b16 %v1474, %v1473
        %v1522 = vpack.c.b16 %v1476, %v1475
        %v1523 = vpack.c.b16 %v1478, %v1477
        %v1524 = vpack.c.b16 %v1480, %v1479
        %v1525 = vpack.c.b16 %v1482, %v1481
        %v1526 = vpack.c.b16 %v1484, %v1483
        %v1527 = vpack.c.b16 %v1486, %v1485
        %v1528 = vpack.c.b16 %v1488, %v1487
        %v1529 = vpack.c.b16 %v1490, %v1489
        %v1530 = vpack.c.b16 %v1492, %v1491
        %v1531 = vpack.c.b16 %v1494, %v1493
        %v1532 = vpack.c.b16 %v1496, %v1495
        %v1533 = vpack.c.b16 %v1498, %v1497
        %v1534 = vpack.c.b16 %v1500, %v1499
        %v1535 = vpack.c.b16 %v1502, %v1501
        %v1536 = vpack.c.b16 %v1504, %v1503
        %v1537 = vpack.c.b16 %v1506, %v1505
        %v1538 = vpack.c.b16 %v1508, %v1507
        %v1539 = vpack.c.b16 %v1510, %v1509
        %v1540 = vpack.c.b16 %v1512, %v1511
        %v1541 = vpack.c.b16 %v1514, %v1513
        %v1542 = vpack.c.b16 %v1516, %v1515
        %v1543 = vpack.c.b16 %v1518, %v1517
        %v1544 = vpack.c.b16 %v1520, %v1519
        %1569 = vmatprep.subr.bf16.mxu0 0
        %1570 = vmatpush1.bf16.msra.mxu0 %v1521
        %1571 = vmatprep.subr.bf16.mxu0 0
        %1572 = vmatpush1.bf16.msra.mxu0 %v1522
        %1573 = vmatprep.subr.bf16.mxu0 0
        %1574 = vmatpush1.bf16.msra.mxu0 %v1523
        %1575 = vmatprep.subr.bf16.mxu0 0
        %1576 = vmatpush1.bf16.msra.mxu0 %v1524
        %1577 = vmatprep.subr.bf16.mxu0 0
        %1578 = vmatpush1.bf16.msra.mxu0 %v1525
        %1579 = vmatprep.subr.bf16.mxu0 0
        %1580 = vmatpush1.bf16.msra.mxu0 %v1526
        %1581 = vmatprep.subr.bf16.mxu0 0
        %1582 = vmatpush1.bf16.msra.mxu0 %v1527
        %1583 = vmatprep.subr.bf16.mxu0 0
        %1584 = vmatpush1.bf16.msra.mxu0 %v1528
        %1585 = vmatprep.subr.bf16.mxu0 0
        %1586 = vmatpush1.bf16.msra.mxu0 %v1529
        %1587 = vmatprep.subr.bf16.mxu0 0
        %1588 = vmatpush1.bf16.msra.mxu0 %v1530
        %1589 = vmatprep.subr.bf16.mxu0 0
        %1590 = vmatpush1.bf16.msra.mxu0 %v1531
        %1591 = vmatprep.subr.bf16.mxu0 0
        %1592 = vmatpush1.bf16.msra.mxu0 %v1532
        %1593 = vmatprep.subr.bf16.mxu0 0
        %1594 = vmatpush1.bf16.msra.mxu0 %v1533
        %1595 = vmatprep.subr.bf16.mxu0 0
        %1596 = vmatpush1.bf16.msra.mxu0 %v1534
        %1597 = vmatprep.subr.bf16.mxu0 0
        %1598 = vmatpush1.bf16.msra.mxu0 %v1535
        %1599 = vmatprep.subr.bf16.mxu0 0
        %1600 = vmatpush1.bf16.msra.mxu0 %v1536
        %1601 = vmatprep.mubr.bf16.mxu0 %v575
        %1602 = vmatmul.mubr.bf16.gmra.mrb[0].mxu0 %v483
        %v1603 = vpop.f32.mrb[0].mxu0
        %v1604 = vadd.f32 %v1299, %v1603
        %v1605 = vpop.f32.mrb[0].mxu0
        %v1606 = vpop.f32.mrb[0].mxu0
        %v1607 = vadd.f32 %v1302, %v1606
        %v1608 = vpop.f32.mrb[0].mxu0
        %1609 = vmatprep.mubr.bf16.mxu0 %v587
        %1610 = vmatmul.mubr.bf16.gmra.mrb[0].mxu0 %v484
        %v1611 = vpop.f32.mrb[0].mxu0
        %v1612 = vadd.f32 %v1307, %v1611
        %v1613 = vpop.f32.mrb[0].mxu0
        %v1614 = vpop.f32.mrb[0].mxu0
        %v1615 = vadd.f32 %v1310, %v1614
        %v1616 = vpop.f32.mrb[0].mxu0
        %1617 = vmatprep.mubr.bf16.mxu0 %v599
        %1618 = vmatmul.mubr.bf16.gmra.mrb[0].mxu0 %v485
        %v1619 = vpop.f32.mrb[0].mxu0
        %v1620 = vadd.f32 %v1315, %v1619
        %v1621 = vpop.f32.mrb[0].mxu0
        %v1622 = vpop.f32.mrb[0].mxu0
        %v1623 = vadd.f32 %v1318, %v1622
        %v1624 = vpop.f32.mrb[0].mxu0
        %1625 = vmatprep.mubr.bf16.mxu0 %v611
        %1626 = vmatmul.mubr.bf16.gmra.mrb[0].mxu0 %v486
        %v1627 = vpop.f32.mrb[0].mxu0
        %v1628 = vadd.f32 %v1323, %v1627
        %v1629 = vpop.f32.mrb[0].mxu0
        %v1630 = vpop.f32.mrb[0].mxu0
        %v1631 = vadd.f32 %v1326, %v1630
        %v1632 = vpop.f32.mrb[0].mxu0
        %1633 = vmatprep.mubr.bf16.mxu0 %v623
        %1634 = vmatmul.mubr.bf16.gmra.mrb[0].mxu0 %v487
        %v1635 = vpop.f32.mrb[0].mxu0
        %v1636 = vadd.f32 %v1331, %v1635
        %v1637 = vpop.f32.mrb[0].mxu0
        %v1638 = vpop.f32.mrb[0].mxu0
        %v1639 = vadd.f32 %v1334, %v1638
        %v1640 = vpop.f32.mrb[0].mxu0
        %1641 = vmatprep.mubr.bf16.mxu0 %v635
        %1642 = vmatmul.mubr.bf16.gmra.mrb[0].mxu0 %v488
        %v1643 = vpop.f32.mrb[0].mxu0
        %v1644 = vadd.f32 %v1339, %v1643
        %v1645 = vpop.f32.mrb[0].mxu0
        %v1646 = vpop.f32.mrb[0].mxu0
        %v1647 = vadd.f32 %v1342, %v1646
        %v1648 = vpop.f32.mrb[0].mxu0
        %1649 = vmatprep.mubr.bf16.mxu0 %v647
        %1650 = vmatmul.mubr.bf16.gmra.mrb[0].mxu0 %v489
        %v1651 = vpop.f32.mrb[0].mxu0
        %v1652 = vadd.f32 %v1347, %v1651
        %v1653 = vpop.f32.mrb[0].mxu0
        %v1654 = vpop.f32.mrb[0].mxu0
        %v1655 = vadd.f32 %v1350, %v1654
        %v1656 = vpop.f32.mrb[0].mxu0
        %1657 = vmatprep.mubr.bf16.mxu0 %v659
        %1658 = vmatmul.mubr.bf16.gmra.mrb[0].mxu0 %v490
        %v1659 = vpop.f32.mrb[0].mxu0
        %v1660 = vadd.f32 %v1355, %v1659
        %v1661 = vpop.f32.mrb[0].mxu0
        %v1662 = vpop.f32.mrb[0].mxu0
        %v1663 = vadd.f32 %v1358, %v1662
        %v1664 = vpop.f32.mrb[0].mxu0
        %1665 = vmatprep.mubr.bf16.mxu0 %v671
        %1666 = vmatmul.mubr.bf16.gmra.mrb[0].mxu0 %v491
        %v1667 = vpop.f32.mrb[0].mxu0
        %v1668 = vadd.f32 %v1363, %v1667
        %v1669 = vpop.f32.mrb[0].mxu0
        %v1670 = vpop.f32.mrb[0].mxu0
        %v1671 = vadd.f32 %v1366, %v1670
        %v1672 = vpop.f32.mrb[0].mxu0
        %1673 = vmatprep.mubr.bf16.mxu0 %v683
        %1674 = vmatmul.mubr.bf16.gmra.mrb[0].mxu0 %v492
        %v1675 = vpop.f32.mrb[0].mxu0
        %v1676 = vadd.f32 %v1371, %v1675
        %v1677 = vpop.f32.mrb[0].mxu0
        %v1678 = vpop.f32.mrb[0].mxu0
        %v1679 = vadd.f32 %v1374, %v1678
        %v1680 = vpop.f32.mrb[0].mxu0
        %1681 = vmatprep.mubr.bf16.mxu0 %v695
        %1682 = vmatmul.mubr.bf16.gmra.mrb[0].mxu0 %v493
        %v1683 = vpop.f32.mrb[0].mxu0
        %v1684 = vadd.f32 %v1379, %v1683
        %v1685 = vpop.f32.mrb[0].mxu0
        %v1686 = vpop.f32.mrb[0].mxu0
        %v1687 = vadd.f32 %v1382, %v1686
        %v1688 = vpop.f32.mrb[0].mxu0
        %1689 = vmatprep.mubr.bf16.mxu0 %v707
        %1690 = vmatmul.mubr.bf16.gmra.mrb[0].mxu0 %v494
        %v1691 = vpop.f32.mrb[0].mxu0
        %v1692 = vadd.f32 %v1387, %v1691
        %v1693 = vpop.f32.mrb[0].mxu0
        %v1694 = vpop.f32.mrb[0].mxu0
        %v1695 = vadd.f32 %v1390, %v1694
        %v1696 = vpop.f32.mrb[0].mxu0
        %1697 = vmatprep.mubr.bf16.mxu0 %v719
        %1698 = vmatmul.mubr.bf16.gmra.mrb[0].mxu0 %v495
        %v1699 = vpop.f32.mrb[0].mxu0
        %v1700 = vadd.f32 %v1395, %v1699
        %v1701 = vpop.f32.mrb[0].mxu0
        %v1702 = vpop.f32.mrb[0].mxu0
        %v1703 = vadd.f32 %v1398, %v1702
        %v1704 = vpop.f32.mrb[0].mxu0
        %1705 = vmatprep.mubr.bf16.mxu0 %v731
        %1706 = vmatmul.mubr.bf16.gmra.mrb[0].mxu0 %v496
        %v1707 = vpop.f32.mrb[0].mxu0
        %v1708 = vadd.f32 %v1403, %v1707
        %v1709 = vpop.f32.mrb[0].mxu0
        %v1710 = vpop.f32.mrb[0].mxu0
        %v1711 = vadd.f32 %v1406, %v1710
        %v1712 = vpop.f32.mrb[0].mxu0
        %1713 = vmatprep.mubr.bf16.mxu0 %v743
        %1714 = vmatmul.mubr.bf16.gmra.mrb[0].mxu0 %v497
        %v1715 = vpop.f32.mrb[0].mxu0
        %v1716 = vadd.f32 %v1411, %v1715
        %v1717 = vpop.f32.mrb[0].mxu0
        %v1718 = vpop.f32.mrb[0].mxu0
        %v1719 = vadd.f32 %v1414, %v1718
        %v1720 = vpop.f32.mrb[0].mxu0
        %1721 = vmatprep.mubr.bf16.mxu0 %v755
        %1722 = vmatmul.mubr.bf16.gmra.mrb[0].mxu0 %v498
        %v1723 = vpop.f32.mrb[0].mxu0
        %v1724 = vadd.f32 %v1419, %v1723
        %v1725 = vpop.f32.mrb[0].mxu0
        %v1726 = vpop.f32.mrb[0].mxu0
        %v1727 = vadd.f32 %v1422, %v1726
        %v1728 = vpop.f32.mrb[0].mxu0
        %1729 = vdwg.mxu0
        %1730 = vmatprep.subr.bf16.mxu0 0
        %1731 = vmatpush1.bf16.msra.mxu0 %v1537
        %1732 = vmatprep.subr.bf16.mxu0 0
        %1733 = vmatpush1.bf16.msra.mxu0 %v1538
        %1734 = vmatprep.subr.bf16.mxu0 0
        %1735 = vmatpush1.bf16.msra.mxu0 %v1539
        %1736 = vmatprep.subr.bf16.mxu0 0
        %1737 = vmatpush1.bf16.msra.mxu0 %v1540
        %1738 = vmatprep.subr.bf16.mxu0 0
        %1739 = vmatpush1.bf16.msra.mxu0 %v1541
        %1740 = vmatprep.subr.bf16.mxu0 0
        %1741 = vmatpush1.bf16.msra.mxu0 %v1542
        %1742 = vmatprep.subr.bf16.mxu0 0
        %1743 = vmatpush1.bf16.msra.mxu0 %v1543
        %1744 = vmatprep.subr.bf16.mxu0 0
        %1745 = vmatpush1.bf16.msra.mxu0 %v1544
        %1746 = vmatprep.subr.bf16.mxu0 0
        %1747 = vmatpush1.bf16.msra.mxu0 0
        %1748 = vmatprep.subr.bf16.mxu0 0
        %1749 = vmatpush1.bf16.msra.mxu0 0
        %1750 = vmatprep.subr.bf16.mxu0 0
        %1751 = vmatpush1.bf16.msra.mxu0 0
        %1752 = vmatprep.subr.bf16.mxu0 0
        %1753 = vmatpush1.bf16.msra.mxu0 0
        %1754 = vmatprep.subr.bf16.mxu0 0
        %1755 = vmatpush1.bf16.msra.mxu0 0
        %1756 = vmatprep.subr.bf16.mxu0 0
        %1757 = vmatpush1.bf16.msra.mxu0 0
        %1758 = vmatprep.subr.bf16.mxu0 0
        %1759 = vmatpush1.bf16.msra.mxu0 0
        %1760 = vmatprep.subr.bf16.mxu0 0
        %1761 = vmatpush1.bf16.msra.mxu0 0
        %1762 = vmatprep.mubr.bf16.mxu0 0
        %1763 = vmatmul.mubr.bf16.gmra.mrb[0].mxu0 %v775
        %v1764 = vpop.f32.mrb[0].mxu0
        %v1765 = vadd.f32 %v1604, %v1764
        %v1766 = vpop.f32.mrb[0].mxu0
        %v1767 = vpop.f32.mrb[0].mxu0
        %v1768 = vadd.f32 %v1607, %v1767
        %v1769 = vpop.f32.mrb[0].mxu0
        %1770 = vmatprep.mubr.bf16.mxu0 0
        %1771 = vmatmul.mubr.bf16.gmra.mrb[0].mxu0 %v778
        %v1772 = vpop.f32.mrb[0].mxu0
        %v1773 = vadd.f32 %v1612, %v1772
        %v1774 = vpop.f32.mrb[0].mxu0
        %v1775 = vpop.f32.mrb[0].mxu0
        %v1776 = vadd.f32 %v1615, %v1775
        %v1777 = vpop.f32.mrb[0].mxu0
        %1778 = vmatprep.mubr.bf16.mxu0 0
        %1779 = vmatmul.mubr.bf16.gmra.mrb[0].mxu0 %v781
        %v1780 = vpop.f32.mrb[0].mxu0
        %v1781 = vadd.f32 %v1620, %v1780
        %v1782 = vpop.f32.mrb[0].mxu0
        %v1783 = vpop.f32.mrb[0].mxu0
        %v1784 = vadd.f32 %v1623, %v1783
        %v1785 = vpop.f32.mrb[0].mxu0
        %1786 = vmatprep.mubr.bf16.mxu0 0
        %1787 = vmatmul.mubr.bf16.gmra.mrb[0].mxu0 %v784
        %v1788 = vpop.f32.mrb[0].mxu0
        %v1789 = vadd.f32 %v1628, %v1788
        %v1790 = vpop.f32.mrb[0].mxu0
        %v1791 = vpop.f32.mrb[0].mxu0
        %v1792 = vadd.f32 %v1631, %v1791
        %v1793 = vpop.f32.mrb[0].mxu0
        %1794 = vmatprep.mubr.bf16.mxu0 0
        %1795 = vmatmul.mubr.bf16.gmra.mrb[0].mxu0 %v787
        %v1796 = vpop.f32.mrb[0].mxu0
        %v1797 = vadd.f32 %v1636, %v1796
        %v1798 = vpop.f32.mrb[0].mxu0
        %v1799 = vpop.f32.mrb[0].mxu0
        %v1800 = vadd.f32 %v1639, %v1799
        %v1801 = vpop.f32.mrb[0].mxu0
        %1802 = vmatprep.mubr.bf16.mxu0 0
        %1803 = vmatmul.mubr.bf16.gmra.mrb[0].mxu0 %v790
        %v1804 = vpop.f32.mrb[0].mxu0
        %v1805 = vadd.f32 %v1644, %v1804
        %v1806 = vpop.f32.mrb[0].mxu0
        %v1807 = vpop.f32.mrb[0].mxu0
        %v1808 = vadd.f32 %v1647, %v1807
        %v1809 = vpop.f32.mrb[0].mxu0
        %1810 = vmatprep.mubr.bf16.mxu0 0
        %1811 = vmatmul.mubr.bf16.gmra.mrb[0].mxu0 %v793
        %v1812 = vpop.f32.mrb[0].mxu0
        %v1813 = vadd.f32 %v1652, %v1812
        %v1814 = vpop.f32.mrb[0].mxu0
        %v1815 = vpop.f32.mrb[0].mxu0
        %v1816 = vadd.f32 %v1655, %v1815
        %v1817 = vpop.f32.mrb[0].mxu0
        %1818 = vmatprep.mubr.bf16.mxu0 0
        %1819 = vmatmul.mubr.bf16.gmra.mrb[0].mxu0 %v796
        %v1820 = vpop.f32.mrb[0].mxu0
        %v1821 = vadd.f32 %v1660, %v1820
        %v1822 = vpop.f32.mrb[0].mxu0
        %v1823 = vpop.f32.mrb[0].mxu0
        %v1824 = vadd.f32 %v1663, %v1823
        %v1825 = vpop.f32.mrb[0].mxu0
        %1826 = vmatprep.mubr.bf16.mxu0 0
        %1827 = vmatmul.mubr.bf16.gmra.mrb[0].mxu0 %v799
        %v1828 = vpop.f32.mrb[0].mxu0
        %v1829 = vadd.f32 %v1668, %v1828
        %v1830 = vpop.f32.mrb[0].mxu0
        %v1831 = vpop.f32.mrb[0].mxu0
        %v1832 = vadd.f32 %v1671, %v1831
        %v1833 = vpop.f32.mrb[0].mxu0
        %1834 = vmatprep.mubr.bf16.mxu0 0
        %1835 = vmatmul.mubr.bf16.gmra.mrb[0].mxu0 %v802
        %v1836 = vpop.f32.mrb[0].mxu0
        %v1837 = vadd.f32 %v1676, %v1836
        %v1838 = vpop.f32.mrb[0].mxu0
        %v1839 = vpop.f32.mrb[0].mxu0
        %v1840 = vadd.f32 %v1679, %v1839
        %v1841 = vpop.f32.mrb[0].mxu0
        %1842 = vmatprep.mubr.bf16.mxu0 0
        %1843 = vmatmul.mubr.bf16.gmra.mrb[0].mxu0 %v805
        %v1844 = vpop.f32.mrb[0].mxu0
        %v1845 = vadd.f32 %v1684, %v1844
        %v1846 = vpop.f32.mrb[0].mxu0
        %v1847 = vpop.f32.mrb[0].mxu0
        %v1848 = vadd.f32 %v1687, %v1847
        %v1849 = vpop.f32.mrb[0].mxu0
        %1850 = vmatprep.mubr.bf16.mxu0 0
        %1851 = vmatmul.mubr.bf16.gmra.mrb[0].mxu0 %v808
        %v1852 = vpop.f32.mrb[0].mxu0
        %v1853 = vadd.f32 %v1692, %v1852
        %v1854 = vpop.f32.mrb[0].mxu0
        %v1855 = vpop.f32.mrb[0].mxu0
        %v1856 = vadd.f32 %v1695, %v1855
        %v1857 = vpop.f32.mrb[0].mxu0
        %1858 = vmatprep.mubr.bf16.mxu0 0
        %1859 = vmatmul.mubr.bf16.gmra.mrb[0].mxu0 %v811
        %v1860 = vpop.f32.mrb[0].mxu0
        %v1861 = vadd.f32 %v1700, %v1860
        %v1862 = vpop.f32.mrb[0].mxu0
        %v1863 = vpop.f32.mrb[0].mxu0
        %v1864 = vadd.f32 %v1703, %v1863
        %v1865 = vpop.f32.mrb[0].mxu0
        %1866 = vmatprep.mubr.bf16.mxu0 0
        %1867 = vmatmul.mubr.bf16.gmra.mrb[0].mxu0 %v814
        %v1868 = vpop.f32.mrb[0].mxu0
        %v1869 = vadd.f32 %v1708, %v1868
        %v1870 = vpop.f32.mrb[0].mxu0
        %v1871 = vpop.f32.mrb[0].mxu0
        %v1872 = vadd.f32 %v1711, %v1871
        %v1873 = vpop.f32.mrb[0].mxu0
        %1874 = vmatprep.mubr.bf16.mxu0 0
        %1875 = vmatmul.mubr.bf16.gmra.mrb[0].mxu0 %v817
        %v1876 = vpop.f32.mrb[0].mxu0
        %v1877 = vadd.f32 %v1716, %v1876
        %v1878 = vpop.f32.mrb[0].mxu0
        %v1879 = vpop.f32.mrb[0].mxu0
        %v1880 = vadd.f32 %v1719, %v1879
        %v1881 = vpop.f32.mrb[0].mxu0
        %1882 = vmatprep.mubr.bf16.mxu0 0
        %1883 = vmatmul.mubr.bf16.gmra.mrb[0].mxu0 %v820
        %v1884 = vpop.f32.mrb[0].mxu0
        %v1885 = vadd.f32 %v1724, %v1884
        %v1886 = vpop.f32.mrb[0].mxu0
        %v1887 = vpop.f32.mrb[0].mxu0
        %v1888 = vadd.f32 %v1727, %v1887
        %v1889 = vpop.f32.mrb[0].mxu0
        %1890 = vdwg.mxu0
        %v1893 = vunpack.c.l.b16 %v416
        %v1894 = vunpack.c.l.b16 %v417
        %v1895 = vpack.c.b16 %v1894, %v1893
        %v1898 = vunpack.c.l.b16 %v418
        %v1899 = vpack.c.b16 %v1898, %v1898
        %v1901 = vshrl.u32 %v1895, 16
        %v1903 = vshll.u32 %v1895, 16
        %v1905 = vrot.slane %v1903, 1
        %v1906 = vor.u32 %v1901, %v1905
        %v1908 = vshll.u32 %v1899, 16
        %v1910 = vrot.slane %v1908, 1
        %v1911 = vsel %vm563, %v1906, %v1910
        %v1913 = vrot.slane %v1895, 1
        %v1914 = vrot.slane %v1899, 1
        %v1915 = vsel %vm772, %v1913, %v1914
        %v1917 = vld [vmem:[#allocation8 + $0x180] sm:$0xf]
        %v1918 = vld [vmem:[#allocation8 + $0x184] sm:$0xf]
        %v1919 = vld [vmem:[#allocation8 + $0x188] sm:$0xf]
        %v1920 = vld [vmem:[#allocation8 + $0x18c] sm:$0xf]
        %v1921 = vld [vmem:[#allocation8 + $0x190] sm:$0xf]
        %v1922 = vld [vmem:[#allocation8 + $0x194] sm:$0xf]
        %v1923 = vld [vmem:[#allocation8 + $0x198] sm:$0xf]
        %v1924 = vld [vmem:[#allocation8 + $0x19c] sm:$0xf]
        %v1925 = vld [vmem:[#allocation8 + $0x1a0] sm:$0xf]
        %v1926 = vld [vmem:[#allocation8 + $0x1a4] sm:$0xf]
        %v1927 = vld [vmem:[#allocation8 + $0x1a8] sm:$0xf]
        %v1928 = vld [vmem:[#allocation8 + $0x1ac] sm:$0xf]
        %v1929 = vld [vmem:[#allocation8 + $0x1b0] sm:$0xf]
        %v1930 = vld [vmem:[#allocation8 + $0x1b4] sm:$0xf]
        %v1931 = vld [vmem:[#allocation8 + $0x1b8] sm:$0xf]
        %v1932 = vld [vmem:[#allocation8 + $0x1bc] sm:$0xf]
        %v1933 = vld [vmem:[#allocation8 + $0x1c0] sm:$0xf]
        %v1934 = vld [vmem:[#allocation8 + $0x1c4] sm:$0xf]
        %v1935 = vld [vmem:[#allocation8 + $0x1c8] sm:$0xf]
        %v1936 = vld [vmem:[#allocation8 + $0x1cc] sm:$0xf]
        %v1937 = vld [vmem:[#allocation8 + $0x1d0] sm:$0xf]
        %v1938 = vld [vmem:[#allocation8 + $0x1d4] sm:$0xf]
        %v1939 = vld [vmem:[#allocation8 + $0x1d8] sm:$0xf]
        %v1940 = vld [vmem:[#allocation8 + $0x1dc] sm:$0xf]
        %v1941 = vld [vmem:[#allocation8 + $0x1e0] sm:$0xf]
        %v1942 = vld [vmem:[#allocation8 + $0x1e4] sm:$0xf]
        %v1943 = vld [vmem:[#allocation8 + $0x1e8] sm:$0xf]
        %v1944 = vld [vmem:[#allocation8 + $0x1ec] sm:$0xf]
        %v1945 = vld [vmem:[#allocation8 + $0x1f0] sm:$0xf]
        %v1946 = vld [vmem:[#allocation8 + $0x1f4] sm:$0xf]
        %v1947 = vld [vmem:[#allocation8 + $0x1f8] sm:$0xf]
        %v1948 = vld [vmem:[#allocation8 + $0x1fc] sm:$0xf]
        %v1949 = vld [vmem:[#allocation8 + $0x200] sm:$0xf]
        %v1950 = vld [vmem:[#allocation8 + $0x204] sm:$0xf]
        %v1951 = vld [vmem:[#allocation8 + $0x208] sm:$0xf]
        %v1952 = vld [vmem:[#allocation8 + $0x20c] sm:$0xf]
        %v1953 = vld [vmem:[#allocation8 + $0x210] sm:$0xf]
        %v1954 = vld [vmem:[#allocation8 + $0x214] sm:$0xf]
        %v1955 = vld [vmem:[#allocation8 + $0x218] sm:$0xf]
        %v1956 = vld [vmem:[#allocation8 + $0x21c] sm:$0xf]
        %v1957 = vld [vmem:[#allocation8 + $0x220] sm:$0xf]
        %v1958 = vld [vmem:[#allocation8 + $0x224] sm:$0xf]
        %v1959 = vld [vmem:[#allocation8 + $0x228] sm:$0xf]
        %v1960 = vld [vmem:[#allocation8 + $0x22c] sm:$0xf]
        %v1961 = vld [vmem:[#allocation8 + $0x230] sm:$0xf]
        %v1962 = vld [vmem:[#allocation8 + $0x234] sm:$0xf]
        %v1963 = vld [vmem:[#allocation8 + $0x238] sm:$0xf]
        %v1964 = vld [vmem:[#allocation8 + $0x23c] sm:$0xf]
        %v2013 = vunpack.c.l.b16 %v1917
        %v2014 = vunpack.c.l.b16 %v1918
        %v2015 = vunpack.c.l.b16 %v1919
        %v2016 = vunpack.c.l.b16 %v1920
        %v2017 = vunpack.c.l.b16 %v1921
        %v2018 = vunpack.c.l.b16 %v1922
        %v2019 = vunpack.c.l.b16 %v1923
        %v2020 = vunpack.c.l.b16 %v1924
        %v2021 = vunpack.c.l.b16 %v1925
        %v2022 = vunpack.c.l.b16 %v1926
        %v2023 = vunpack.c.l.b16 %v1927
        %v2024 = vunpack.c.l.b16 %v1928
        %v2025 = vunpack.c.l.b16 %v1929
        %v2026 = vunpack.c.l.b16 %v1930
        %v2027 = vunpack.c.l.b16 %v1931
        %v2028 = vunpack.c.l.b16 %v1932
        %v2029 = vunpack.c.l.b16 %v1933
        %v2030 = vunpack.c.l.b16 %v1934
        %v2031 = vunpack.c.l.b16 %v1935
        %v2032 = vunpack.c.l.b16 %v1936
        %v2033 = vunpack.c.l.b16 %v1937
        %v2034 = vunpack.c.l.b16 %v1938
        %v2035 = vunpack.c.l.b16 %v1939
        %v2036 = vunpack.c.l.b16 %v1940
        %v2037 = vunpack.c.l.b16 %v1941
        %v2038 = vunpack.c.l.b16 %v1942
        %v2039 = vunpack.c.l.b16 %v1943
        %v2040 = vunpack.c.l.b16 %v1944
        %v2041 = vunpack.c.l.b16 %v1945
        %v2042 = vunpack.c.l.b16 %v1946
        %v2043 = vunpack.c.l.b16 %v1947
        %v2044 = vunpack.c.l.b16 %v1948
        %v2045 = vunpack.c.l.b16 %v1949
        %v2046 = vunpack.c.l.b16 %v1950
        %v2047 = vunpack.c.l.b16 %v1951
        %v2048 = vunpack.c.l.b16 %v1952
        %v2049 = vunpack.c.l.b16 %v1953
        %v2050 = vunpack.c.l.b16 %v1954
        %v2051 = vunpack.c.l.b16 %v1955
        %v2052 = vunpack.c.l.b16 %v1956
        %v2053 = vunpack.c.l.b16 %v1957
        %v2054 = vunpack.c.l.b16 %v1958
        %v2055 = vunpack.c.l.b16 %v1959
        %v2056 = vunpack.c.l.b16 %v1960
        %v2057 = vunpack.c.l.b16 %v1961
        %v2058 = vunpack.c.l.b16 %v1962
        %v2059 = vunpack.c.l.b16 %v1963
        %v2060 = vunpack.c.l.b16 %v1964
        %v2061 = vpack.c.b16 %v2014, %v2013
        %v2062 = vpack.c.b16 %v2016, %v2015
        %v2063 = vpack.c.b16 %v2018, %v2017
        %v2064 = vpack.c.b16 %v2020, %v2019
        %v2065 = vpack.c.b16 %v2022, %v2021
        %v2066 = vpack.c.b16 %v2024, %v2023
        %v2067 = vpack.c.b16 %v2026, %v2025
        %v2068 = vpack.c.b16 %v2028, %v2027
        %v2069 = vpack.c.b16 %v2030, %v2029
        %v2070 = vpack.c.b16 %v2032, %v2031
        %v2071 = vpack.c.b16 %v2034, %v2033
        %v2072 = vpack.c.b16 %v2036, %v2035
        %v2073 = vpack.c.b16 %v2038, %v2037
        %v2074 = vpack.c.b16 %v2040, %v2039
        %v2075 = vpack.c.b16 %v2042, %v2041
        %v2076 = vpack.c.b16 %v2044, %v2043
        %v2077 = vpack.c.b16 %v2046, %v2045
        %v2078 = vpack.c.b16 %v2048, %v2047
        %v2079 = vpack.c.b16 %v2050, %v2049
        %v2080 = vpack.c.b16 %v2052, %v2051
        %v2081 = vpack.c.b16 %v2054, %v2053
        %v2082 = vpack.c.b16 %v2056, %v2055
        %v2083 = vpack.c.b16 %v2058, %v2057
        %v2084 = vpack.c.b16 %v2060, %v2059
        %2109 = vmatprep.subr.bf16.mxu0 0
        %2110 = vmatpush1.bf16.msra.mxu0 %v2061
        %2111 = vmatprep.subr.bf16.mxu0 0
        %2112 = vmatpush1.bf16.msra.mxu0 %v2062
        %2113 = vmatprep.subr.bf16.mxu0 0
        %2114 = vmatpush1.bf16.msra.mxu0 %v2063
        %2115 = vmatprep.subr.bf16.mxu0 0
        %2116 = vmatpush1.bf16.msra.mxu0 %v2064
        %2117 = vmatprep.subr.bf16.mxu0 0
        %2118 = vmatpush1.bf16.msra.mxu0 %v2065
        %2119 = vmatprep.subr.bf16.mxu0 0
        %2120 = vmatpush1.bf16.msra.mxu0 %v2066
        %2121 = vmatprep.subr.bf16.mxu0 0
        %2122 = vmatpush1.bf16.msra.mxu0 %v2067
        %2123 = vmatprep.subr.bf16.mxu0 0
        %2124 = vmatpush1.bf16.msra.mxu0 %v2068
        %2125 = vmatprep.subr.bf16.mxu0 0
        %2126 = vmatpush1.bf16.msra.mxu0 %v2069
        %2127 = vmatprep.subr.bf16.mxu0 0
        %2128 = vmatpush1.bf16.msra.mxu0 %v2070
        %2129 = vmatprep.subr.bf16.mxu0 0
        %2130 = vmatpush1.bf16.msra.mxu0 %v2071
        %2131 = vmatprep.subr.bf16.mxu0 0
        %2132 = vmatpush1.bf16.msra.mxu0 %v2072
        %2133 = vmatprep.subr.bf16.mxu0 0
        %2134 = vmatpush1.bf16.msra.mxu0 %v2073
        %2135 = vmatprep.subr.bf16.mxu0 0
        %2136 = vmatpush1.bf16.msra.mxu0 %v2074
        %2137 = vmatprep.subr.bf16.mxu0 0
        %2138 = vmatpush1.bf16.msra.mxu0 %v2075
        %2139 = vmatprep.subr.bf16.mxu0 0
        %2140 = vmatpush1.bf16.msra.mxu0 %v2076
        %2141 = vmatprep.mubr.bf16.mxu0 %v599
        %2142 = vmatmul.mubr.bf16.gmra.mrb[0].mxu0 %v485
        %v2143 = vpop.f32.mrb[0].mxu0
        %v2144 = vadd.f32 0.0, %v2143
        %v2145 = vpop.f32.mrb[0].mxu0
        %v2146 = vpop.f32.mrb[0].mxu0
        %v2147 = vadd.f32 0.0, %v2146
        %v2148 = vpop.f32.mrb[0].mxu0
        %2149 = vmatprep.mubr.bf16.mxu0 %v611
        %2150 = vmatmul.mubr.bf16.gmra.mrb[0].mxu0 %v486
        %v2151 = vpop.f32.mrb[0].mxu0
        %v2152 = vadd.f32 0.0, %v2151
        %v2153 = vpop.f32.mrb[0].mxu0
        %v2154 = vpop.f32.mrb[0].mxu0
        %v2155 = vadd.f32 0.0, %v2154
        %v2156 = vpop.f32.mrb[0].mxu0
        %2157 = vmatprep.mubr.bf16.mxu0 %v623
        %2158 = vmatmul.mubr.bf16.gmra.mrb[0].mxu0 %v487
        %v2159 = vpop.f32.mrb[0].mxu0
        %v2160 = vadd.f32 0.0, %v2159
        %v2161 = vpop.f32.mrb[0].mxu0
        %v2162 = vpop.f32.mrb[0].mxu0
        %v2163 = vadd.f32 0.0, %v2162
        %v2164 = vpop.f32.mrb[0].mxu0
        %2165 = vmatprep.mubr.bf16.mxu0 %v635
        %2166 = vmatmul.mubr.bf16.gmra.mrb[0].mxu0 %v488
        %v2167 = vpop.f32.mrb[0].mxu0
        %v2168 = vadd.f32 0.0, %v2167
        %v2169 = vpop.f32.mrb[0].mxu0
        %v2170 = vpop.f32.mrb[0].mxu0
        %v2171 = vadd.f32 0.0, %v2170
        %v2172 = vpop.f32.mrb[0].mxu0
        %2173 = vmatprep.mubr.bf16.mxu0 %v647
        %2174 = vmatmul.mubr.bf16.gmra.mrb[0].mxu0 %v489
        %v2175 = vpop.f32.mrb[0].mxu0
        %v2176 = vadd.f32 0.0, %v2175
        %v2177 = vpop.f32.mrb[0].mxu0
        %v2178 = vpop.f32.mrb[0].mxu0
        %v2179 = vadd.f32 0.0, %v2178
        %v2180 = vpop.f32.mrb[0].mxu0
        %2181 = vmatprep.mubr.bf16.mxu0 %v659
        %2182 = vmatmul.mubr.bf16.gmra.mrb[0].mxu0 %v490
        %v2183 = vpop.f32.mrb[0].mxu0
        %v2184 = vadd.f32 0.0, %v2183
        %v2185 = vpop.f32.mrb[0].mxu0
        %v2186 = vpop.f32.mrb[0].mxu0
        %v2187 = vadd.f32 0.0, %v2186
        %v2188 = vpop.f32.mrb[0].mxu0
        %2189 = vmatprep.mubr.bf16.mxu0 %v671
        %2190 = vmatmul.mubr.bf16.gmra.mrb[0].mxu0 %v491
        %v2191 = vpop.f32.mrb[0].mxu0
        %v2192 = vadd.f32 0.0, %v2191
        %v2193 = vpop.f32.mrb[0].mxu0
        %v2194 = vpop.f32.mrb[0].mxu0
        %v2195 = vadd.f32 0.0, %v2194
        %v2196 = vpop.f32.mrb[0].mxu0
        %2197 = vmatprep.mubr.bf16.mxu0 %v683
        %2198 = vmatmul.mubr.bf16.gmra.mrb[0].mxu0 %v492
        %v2199 = vpop.f32.mrb[0].mxu0
        %v2200 = vadd.f32 0.0, %v2199
        %v2201 = vpop.f32.mrb[0].mxu0
        %v2202 = vpop.f32.mrb[0].mxu0
        %v2203 = vadd.f32 0.0, %v2202
        %v2204 = vpop.f32.mrb[0].mxu0
        %2205 = vmatprep.mubr.bf16.mxu0 %v695
        %2206 = vmatmul.mubr.bf16.gmra.mrb[0].mxu0 %v493
        %v2207 = vpop.f32.mrb[0].mxu0
        %v2208 = vadd.f32 0.0, %v2207
        %v2209 = vpop.f32.mrb[0].mxu0
        %v2210 = vpop.f32.mrb[0].mxu0
        %v2211 = vadd.f32 0.0, %v2210
        %v2212 = vpop.f32.mrb[0].mxu0
        %2213 = vmatprep.mubr.bf16.mxu0 %v707
        %2214 = vmatmul.mubr.bf16.gmra.mrb[0].mxu0 %v494
        %v2215 = vpop.f32.mrb[0].mxu0
        %v2216 = vadd.f32 0.0, %v2215
        %v2217 = vpop.f32.mrb[0].mxu0
        %v2218 = vpop.f32.mrb[0].mxu0
        %v2219 = vadd.f32 0.0, %v2218
        %v2220 = vpop.f32.mrb[0].mxu0
        %2221 = vmatprep.mubr.bf16.mxu0 %v719
        %2222 = vmatmul.mubr.bf16.gmra.mrb[0].mxu0 %v495
        %v2223 = vpop.f32.mrb[0].mxu0
        %v2224 = vadd.f32 0.0, %v2223
        %v2225 = vpop.f32.mrb[0].mxu0
        %v2226 = vpop.f32.mrb[0].mxu0
        %v2227 = vadd.f32 0.0, %v2226
        %v2228 = vpop.f32.mrb[0].mxu0
        %2229 = vmatprep.mubr.bf16.mxu0 %v731
        %2230 = vmatmul.mubr.bf16.gmra.mrb[0].mxu0 %v496
        %v2231 = vpop.f32.mrb[0].mxu0
        %v2232 = vadd.f32 0.0, %v2231
        %v2233 = vpop.f32.mrb[0].mxu0
        %v2234 = vpop.f32.mrb[0].mxu0
        %v2235 = vadd.f32 0.0, %v2234
        %v2236 = vpop.f32.mrb[0].mxu0
        %2237 = vmatprep.mubr.bf16.mxu0 %v743
        %2238 = vmatmul.mubr.bf16.gmra.mrb[0].mxu0 %v497
        %v2239 = vpop.f32.mrb[0].mxu0
        %v2240 = vadd.f32 0.0, %v2239
        %v2241 = vpop.f32.mrb[0].mxu0
        %v2242 = vpop.f32.mrb[0].mxu0
        %v2243 = vadd.f32 0.0, %v2242
        %v2244 = vpop.f32.mrb[0].mxu0
        %2245 = vmatprep.mubr.bf16.mxu0 %v755
        %2246 = vmatmul.mubr.bf16.gmra.mrb[0].mxu0 %v498
        %v2247 = vpop.f32.mrb[0].mxu0
        %v2248 = vadd.f32 0.0, %v2247
        %v2249 = vpop.f32.mrb[0].mxu0
        %v2250 = vpop.f32.mrb[0].mxu0
        %v2251 = vadd.f32 0.0, %v2250
        %v2252 = vpop.f32.mrb[0].mxu0
        %2253 = vmatprep.mubr.bf16.mxu0 %v905
        %2254 = vmatmul.mubr.bf16.gmra.mrb[0].mxu0 %v889
        %v2255 = vpop.f32.mrb[0].mxu0
        %v2256 = vadd.f32 0.0, %v2255
        %v2257 = vpop.f32.mrb[0].mxu0
        %v2258 = vpop.f32.mrb[0].mxu0
        %v2259 = vadd.f32 0.0, %v2258
        %v2260 = vpop.f32.mrb[0].mxu0
        %2261 = vmatprep.mubr.bf16.mxu0 %v1911
        %2262 = vmatmul.mubr.bf16.gmra.mrb[0].mxu0 %v1895
        %v2263 = vpop.f32.mrb[0].mxu0
        %v2264 = vadd.f32 0.0, %v2263
        %v2265 = vpop.f32.mrb[0].mxu0
        %v2266 = vpop.f32.mrb[0].mxu0
        %v2267 = vadd.f32 0.0, %v2266
        %v2268 = vpop.f32.mrb[0].mxu0
        %2269 = vdwg.mxu0
        %2270 = vmatprep.subr.bf16.mxu0 0
        %2271 = vmatpush1.bf16.msra.mxu0 %v2077
        %2272 = vmatprep.subr.bf16.mxu0 0
        %2273 = vmatpush1.bf16.msra.mxu0 %v2078
        %2274 = vmatprep.subr.bf16.mxu0 0
        %2275 = vmatpush1.bf16.msra.mxu0 %v2079
        %2276 = vmatprep.subr.bf16.mxu0 0
        %2277 = vmatpush1.bf16.msra.mxu0 %v2080
        %2278 = vmatprep.subr.bf16.mxu0 0
        %2279 = vmatpush1.bf16.msra.mxu0 %v2081
        %2280 = vmatprep.subr.bf16.mxu0 0
        %2281 = vmatpush1.bf16.msra.mxu0 %v2082
        %2282 = vmatprep.subr.bf16.mxu0 0
        %2283 = vmatpush1.bf16.msra.mxu0 %v2083
        %2284 = vmatprep.subr.bf16.mxu0 0
        %2285 = vmatpush1.bf16.msra.mxu0 %v2084
        %2286 = vmatprep.subr.bf16.mxu0 0
        %2287 = vmatpush1.bf16.msra.mxu0 0
        %2288 = vmatprep.subr.bf16.mxu0 0
        %2289 = vmatpush1.bf16.msra.mxu0 0
        %2290 = vmatprep.subr.bf16.mxu0 0
        %2291 = vmatpush1.bf16.msra.mxu0 0
        %2292 = vmatprep.subr.bf16.mxu0 0
        %2293 = vmatpush1.bf16.msra.mxu0 0
        %2294 = vmatprep.subr.bf16.mxu0 0
        %2295 = vmatpush1.bf16.msra.mxu0 0
        %2296 = vmatprep.subr.bf16.mxu0 0
        %2297 = vmatpush1.bf16.msra.mxu0 0
        %2298 = vmatprep.subr.bf16.mxu0 0
        %2299 = vmatpush1.bf16.msra.mxu0 0
        %2300 = vmatprep.subr.bf16.mxu0 0
        %2301 = vmatpush1.bf16.msra.mxu0 0
        %2302 = vmatprep.mubr.bf16.mxu0 0
        %2303 = vmatmul.mubr.bf16.gmra.mrb[0].mxu0 %v781
        %v2304 = vpop.f32.mrb[0].mxu0
        %v2305 = vadd.f32 %v2144, %v2304
        %v2306 = vpop.f32.mrb[0].mxu0
        %v2307 = vpop.f32.mrb[0].mxu0
        %v2308 = vadd.f32 %v2147, %v2307
        %v2309 = vpop.f32.mrb[0].mxu0
        %2310 = vmatprep.mubr.bf16.mxu0 0
        %2311 = vmatmul.mubr.bf16.gmra.mrb[0].mxu0 %v784
        %v2312 = vpop.f32.mrb[0].mxu0
        %v2313 = vadd.f32 %v2152, %v2312
        %v2314 = vpop.f32.mrb[0].mxu0
        %v2315 = vpop.f32.mrb[0].mxu0
        %v2316 = vadd.f32 %v2155, %v2315
        %v2317 = vpop.f32.mrb[0].mxu0
        %2318 = vmatprep.mubr.bf16.mxu0 0
        %2319 = vmatmul.mubr.bf16.gmra.mrb[0].mxu0 %v787
        %v2320 = vpop.f32.mrb[0].mxu0
        %v2321 = vadd.f32 %v2160, %v2320
        %v2322 = vpop.f32.mrb[0].mxu0
        %v2323 = vpop.f32.mrb[0].mxu0
        %v2324 = vadd.f32 %v2163, %v2323
        %v2325 = vpop.f32.mrb[0].mxu0
        %2326 = vmatprep.mubr.bf16.mxu0 0
        %2327 = vmatmul.mubr.bf16.gmra.mrb[0].mxu0 %v790
        %v2328 = vpop.f32.mrb[0].mxu0
        %v2329 = vadd.f32 %v2168, %v2328
        %v2330 = vpop.f32.mrb[0].mxu0
        %v2331 = vpop.f32.mrb[0].mxu0
        %v2332 = vadd.f32 %v2171, %v2331
        %v2333 = vpop.f32.mrb[0].mxu0
        %2334 = vmatprep.mubr.bf16.mxu0 0
        %2335 = vmatmul.mubr.bf16.gmra.mrb[0].mxu0 %v793
        %v2336 = vpop.f32.mrb[0].mxu0
        %v2337 = vadd.f32 %v2176, %v2336
        %v2338 = vpop.f32.mrb[0].mxu0
        %v2339 = vpop.f32.mrb[0].mxu0
        %v2340 = vadd.f32 %v2179, %v2339
        %v2341 = vpop.f32.mrb[0].mxu0
        %2342 = vmatprep.mubr.bf16.mxu0 0
        %2343 = vmatmul.mubr.bf16.gmra.mrb[0].mxu0 %v796
        %v2344 = vpop.f32.mrb[0].mxu0
        %v2345 = vadd.f32 %v2184, %v2344
        %v2346 = vpop.f32.mrb[0].mxu0
        %v2347 = vpop.f32.mrb[0].mxu0
        %v2348 = vadd.f32 %v2187, %v2347
        %v2349 = vpop.f32.mrb[0].mxu0
        %2350 = vmatprep.mubr.bf16.mxu0 0
        %2351 = vmatmul.mubr.bf16.gmra.mrb[0].mxu0 %v799
        %v2352 = vpop.f32.mrb[0].mxu0
        %v2353 = vadd.f32 %v2192, %v2352
        %v2354 = vpop.f32.mrb[0].mxu0
        %v2355 = vpop.f32.mrb[0].mxu0
        %v2356 = vadd.f32 %v2195, %v2355
        %v2357 = vpop.f32.mrb[0].mxu0
        %2358 = vmatprep.mubr.bf16.mxu0 0
        %2359 = vmatmul.mubr.bf16.gmra.mrb[0].mxu0 %v802
        %v2360 = vpop.f32.mrb[0].mxu0
        %v2361 = vadd.f32 %v2200, %v2360
        %v2362 = vpop.f32.mrb[0].mxu0
        %v2363 = vpop.f32.mrb[0].mxu0
        %v2364 = vadd.f32 %v2203, %v2363
        %v2365 = vpop.f32.mrb[0].mxu0
        %2366 = vmatprep.mubr.bf16.mxu0 0
        %2367 = vmatmul.mubr.bf16.gmra.mrb[0].mxu0 %v805
        %v2368 = vpop.f32.mrb[0].mxu0
        %v2369 = vadd.f32 %v2208, %v2368
        %v2370 = vpop.f32.mrb[0].mxu0
        %v2371 = vpop.f32.mrb[0].mxu0
        %v2372 = vadd.f32 %v2211, %v2371
        %v2373 = vpop.f32.mrb[0].mxu0
        %2374 = vmatprep.mubr.bf16.mxu0 0
        %2375 = vmatmul.mubr.bf16.gmra.mrb[0].mxu0 %v808
        %v2376 = vpop.f32.mrb[0].mxu0
        %v2377 = vadd.f32 %v2216, %v2376
        %v2378 = vpop.f32.mrb[0].mxu0
        %v2379 = vpop.f32.mrb[0].mxu0
        %v2380 = vadd.f32 %v2219, %v2379
        %v2381 = vpop.f32.mrb[0].mxu0
        %2382 = vmatprep.mubr.bf16.mxu0 0
        %2383 = vmatmul.mubr.bf16.gmra.mrb[0].mxu0 %v811
        %v2384 = vpop.f32.mrb[0].mxu0
        %v2385 = vadd.f32 %v2224, %v2384
        %v2386 = vpop.f32.mrb[0].mxu0
        %v2387 = vpop.f32.mrb[0].mxu0
        %v2388 = vadd.f32 %v2227, %v2387
        %v2389 = vpop.f32.mrb[0].mxu0
        %2390 = vmatprep.mubr.bf16.mxu0 0
        %2391 = vmatmul.mubr.bf16.gmra.mrb[0].mxu0 %v814
        %v2392 = vpop.f32.mrb[0].mxu0
        %v2393 = vadd.f32 %v2232, %v2392
        %v2394 = vpop.f32.mrb[0].mxu0
        %v2395 = vpop.f32.mrb[0].mxu0
        %v2396 = vadd.f32 %v2235, %v2395
        %v2397 = vpop.f32.mrb[0].mxu0
        %2398 = vmatprep.mubr.bf16.mxu0 0
        %2399 = vmatmul.mubr.bf16.gmra.mrb[0].mxu0 %v817
        %v2400 = vpop.f32.mrb[0].mxu0
        %v2401 = vadd.f32 %v2240, %v2400
        %v2402 = vpop.f32.mrb[0].mxu0
        %v2403 = vpop.f32.mrb[0].mxu0
        %v2404 = vadd.f32 %v2243, %v2403
        %v2405 = vpop.f32.mrb[0].mxu0
        %2406 = vmatprep.mubr.bf16.mxu0 0
        %2407 = vmatmul.mubr.bf16.gmra.mrb[0].mxu0 %v820
        %v2408 = vpop.f32.mrb[0].mxu0
        %v2409 = vadd.f32 %v2248, %v2408
        %v2410 = vpop.f32.mrb[0].mxu0
        %v2411 = vpop.f32.mrb[0].mxu0
        %v2412 = vadd.f32 %v2251, %v2411
        %v2413 = vpop.f32.mrb[0].mxu0
        %2414 = vmatprep.mubr.bf16.mxu0 0
        %2415 = vmatmul.mubr.bf16.gmra.mrb[0].mxu0 %v909
        %v2416 = vpop.f32.mrb[0].mxu0
        %v2417 = vadd.f32 %v2256, %v2416
        %v2418 = vpop.f32.mrb[0].mxu0
        %v2419 = vpop.f32.mrb[0].mxu0
        %v2420 = vadd.f32 %v2259, %v2419
        %v2421 = vpop.f32.mrb[0].mxu0
        %2422 = vmatprep.mubr.bf16.mxu0 0
        %2423 = vmatmul.mubr.bf16.gmra.mrb[0].mxu0 %v1915
        %v2424 = vpop.f32.mrb[0].mxu0
        %v2425 = vadd.f32 %v2264, %v2424
        %v2426 = vpop.f32.mrb[0].mxu0
        %v2427 = vpop.f32.mrb[0].mxu0
        %v2428 = vadd.f32 %v2267, %v2427
        %v2429 = vpop.f32.mrb[0].mxu0
        %2430 = vdwg.mxu0
        %v2431 = vadd.f32 %v1765, %v2305
        %v2432 = vadd.f32 %v1768, %v2308
        %v2433 = vadd.f32 %v1773, %v2313
        %v2434 = vadd.f32 %v1776, %v2316
        %v2435 = vadd.f32 %v1781, %v2321
        %v2436 = vadd.f32 %v1784, %v2324
        %v2437 = vadd.f32 %v1789, %v2329
        %v2438 = vadd.f32 %v1792, %v2332
        %v2439 = vadd.f32 %v1797, %v2337
        %v2440 = vadd.f32 %v1800, %v2340
        %v2441 = vadd.f32 %v1805, %v2345
        %v2442 = vadd.f32 %v1808, %v2348
        %v2443 = vadd.f32 %v1813, %v2353
        %v2444 = vadd.f32 %v1816, %v2356
        %v2445 = vadd.f32 %v1821, %v2361
        %v2446 = vadd.f32 %v1824, %v2364
        %v2447 = vadd.f32 %v1829, %v2369
        %v2448 = vadd.f32 %v1832, %v2372
        %v2449 = vadd.f32 %v1837, %v2377
        %v2450 = vadd.f32 %v1840, %v2380
        %v2451 = vadd.f32 %v1845, %v2385
        %v2452 = vadd.f32 %v1848, %v2388
        %v2453 = vadd.f32 %v1853, %v2393
        %v2454 = vadd.f32 %v1856, %v2396
        %v2455 = vadd.f32 %v1861, %v2401
        %v2456 = vadd.f32 %v1864, %v2404
        %v2457 = vadd.f32 %v1869, %v2409
        %v2458 = vadd.f32 %v1872, %v2412
        %v2459 = vadd.f32 %v1877, %v2417
        %v2460 = vadd.f32 %v1880, %v2420
        %v2461 = vadd.f32 %v1885, %v2425
        %v2462 = vadd.f32 %v1888, %v2428
        %v2463 = vld [vmem:[#allocation9] sm:$0x1]
        %v2465 = vlaneseq
        %v2466 = vshrl.u32 %v2465, 7
        %v2467 = vsub.s32 0, %v2466
        %v2468 = vrot.slane %v2463, %v2467
        %v2470 = vadd.f32 %v2431, %v2468
        %v2471 = vadd.f32 %v2432, %v2468
        %v2472 = vadd.f32 %v2433, %v2468
        %v2473 = vadd.f32 %v2434, %v2468
        %v2474 = vadd.f32 %v2435, %v2468
        %v2475 = vadd.f32 %v2436, %v2468
        %v2476 = vadd.f32 %v2437, %v2468
        %v2477 = vadd.f32 %v2438, %v2468
        %v2478 = vadd.f32 %v2439, %v2468
        %v2479 = vadd.f32 %v2440, %v2468
        %v2480 = vadd.f32 %v2441, %v2468
        %v2481 = vadd.f32 %v2442, %v2468
        %v2482 = vadd.f32 %v2443, %v2468
        %v2483 = vadd.f32 %v2444, %v2468
        %v2484 = vadd.f32 %v2445, %v2468
        %v2485 = vadd.f32 %v2446, %v2468
        %v2486 = vadd.f32 %v2447, %v2468
        %v2487 = vadd.f32 %v2448, %v2468
        %v2488 = vadd.f32 %v2449, %v2468
        %v2489 = vadd.f32 %v2450, %v2468
        %v2490 = vadd.f32 %v2451, %v2468
        %v2491 = vadd.f32 %v2452, %v2468
        %v2492 = vadd.f32 %v2453, %v2468
        %v2493 = vadd.f32 %v2454, %v2468
        %v2494 = vadd.f32 %v2455, %v2468
        %v2495 = vadd.f32 %v2456, %v2468
        %v2496 = vadd.f32 %v2457, %v2468
        %v2497 = vadd.f32 %v2458, %v2468
        %v2498 = vadd.f32 %v2459, %v2468
        %v2499 = vadd.f32 %v2460, %v2468
        %v2500 = vadd.f32 %v2461, %v2468
        %v2501 = vadd.f32 %v2462, %v2468
        %v2502 = vmax.f32 %v2470, 0.0
        %v2503 = vmax.f32 %v2471, 0.0
        %v2504 = vmax.f32 %v2472, 0.0
        %v2505 = vmax.f32 %v2473, 0.0
        %v2506 = vmax.f32 %v2474, 0.0
        %v2507 = vmax.f32 %v2475, 0.0
        %v2508 = vmax.f32 %v2476, 0.0
        %v2509 = vmax.f32 %v2477, 0.0
        %v2510 = vmax.f32 %v2478, 0.0
        %v2511 = vmax.f32 %v2479, 0.0
        %v2512 = vmax.f32 %v2480, 0.0
        %v2513 = vmax.f32 %v2481, 0.0
        %v2514 = vmax.f32 %v2482, 0.0
        %v2515 = vmax.f32 %v2483, 0.0
        %v2516 = vmax.f32 %v2484, 0.0
        %v2517 = vmax.f32 %v2485, 0.0
        %v2518 = vmax.f32 %v2486, 0.0
        %v2519 = vmax.f32 %v2487, 0.0
        %v2520 = vmax.f32 %v2488, 0.0
        %v2521 = vmax.f32 %v2489, 0.0
        %v2522 = vmax.f32 %v2490, 0.0
        %v2523 = vmax.f32 %v2491, 0.0
        %v2524 = vmax.f32 %v2492, 0.0
        %v2525 = vmax.f32 %v2493, 0.0
        %v2526 = vmax.f32 %v2494, 0.0
        %v2527 = vmax.f32 %v2495, 0.0
        %v2528 = vmax.f32 %v2496, 0.0
        %v2529 = vmax.f32 %v2497, 0.0
        %v2530 = vmax.f32 %v2498, 0.0
        %v2531 = vmax.f32 %v2499, 0.0
        %v2532 = vmax.f32 %v2500, 0.0
        %v2533 = vmax.f32 %v2501, 0.0
        %v2534 = vpack.c.bf16 %v2503, %v2502
        %v2535 = vpack.c.bf16 %v2505, %v2504
        %v2536 = vpack.c.bf16 %v2507, %v2506
        %v2537 = vpack.c.bf16 %v2509, %v2508
        %v2538 = vpack.c.bf16 %v2511, %v2510
        %v2539 = vpack.c.bf16 %v2513, %v2512
        %v2540 = vpack.c.bf16 %v2515, %v2514
        %v2541 = vpack.c.bf16 %v2517, %v2516
        %v2542 = vpack.c.bf16 %v2519, %v2518
        %v2543 = vpack.c.bf16 %v2521, %v2520
        %v2544 = vpack.c.bf16 %v2523, %v2522
        %v2545 = vpack.c.bf16 %v2525, %v2524
        %v2546 = vpack.c.bf16 %v2527, %v2526
        %v2547 = vpack.c.bf16 %v2529, %v2528
        %v2548 = vpack.c.bf16 %v2531, %v2530
        %v2549 = vpack.c.bf16 %v2533, %v2532
        %2550 = vst [vmem:[#allocation2] sm:$0xf] 0
        %2551 = vst [vmem:[#allocation2 + $0x4] sm:$0xf] 0
        %2552 = vst [vmem:[#allocation2 + $0x8] sm:$0x1] 0
        %s2553 = scalar_lea.vmem [#allocation2], 204
        %2554 = vst [vmem:[%s2553] sm:$0xf] 0
        %2555 = vst [vmem:[%s2553 + $0x4] sm:$0xf] 0
        %2556 = vst [vmem:[%s2553 + $0x8] sm:$0x1] 0
        %vm2557 = vcmask 1040384
        %vm2558 = vsmask.f32 256
        %vm2559 = vmand %vm2557, %vm2558
        %v2560 = vld [vmem:[#allocation2] sm:$0x1]
        %v2561 = vsel %vm2559, 0, %v2560
        %2562 = vst [vmem:[#allocation2] sm:$0x1] %v2561
        %v2563 = vld [vmem:[#allocation2 + $0xc] sm:$0x1]
        %v2564 = vsel %vm2559, 0, %v2563
        %2565 = vst [vmem:[#allocation2 + $0xc] sm:$0x1] %v2564
        %v2566 = vld [vmem:[#allocation2 + $0x18] sm:$0x1]
        %v2567 = vsel %vm2559, 0, %v2566
        %2568 = vst [vmem:[#allocation2 + $0x18] sm:$0x1] %v2567
        %v2569 = vld [vmem:[#allocation2 + $0x24] sm:$0x1]
        %v2570 = vsel %vm2559, 0, %v2569
        %2571 = vst [vmem:[#allocation2 + $0x24] sm:$0x1] %v2570
        %v2572 = vld [vmem:[#allocation2 + $0x30] sm:$0x1]
        %v2573 = vsel %vm2559, 0, %v2572
        %2574 = vst [vmem:[#allocation2 + $0x30] sm:$0x1] %v2573
        %v2575 = vld [vmem:[#allocation2 + $0x3c] sm:$0x1]
        %v2576 = vsel %vm2559, 0, %v2575
        %2577 = vst [vmem:[#allocation2 + $0x3c] sm:$0x1] %v2576
        %v2578 = vld [vmem:[#allocation2 + $0x48] sm:$0x1]
        %v2579 = vsel %vm2559, 0, %v2578
        %2580 = vst [vmem:[#allocation2 + $0x48] sm:$0x1] %v2579
        %v2581 = vld [vmem:[#allocation2 + $0x54] sm:$0x1]
        %v2582 = vsel %vm2559, 0, %v2581
        %2583 = vst [vmem:[#allocation2 + $0x54] sm:$0x1] %v2582
        %v2584 = vld [vmem:[#allocation2 + $0x60] sm:$0x1]
        %v2585 = vsel %vm2559, 0, %v2584
        %2586 = vst [vmem:[#allocation2 + $0x60] sm:$0x1] %v2585
        %v2587 = vld [vmem:[#allocation2 + $0x6c] sm:$0x1]
        %v2588 = vsel %vm2559, 0, %v2587
        %2589 = vst [vmem:[#allocation2 + $0x6c] sm:$0x1] %v2588
        %v2590 = vld [vmem:[#allocation2 + $0x78] sm:$0x1]
        %v2591 = vsel %vm2559, 0, %v2590
        %2592 = vst [vmem:[#allocation2 + $0x78] sm:$0x1] %v2591
        %v2593 = vld [vmem:[#allocation2 + $0x84] sm:$0x1]
        %v2594 = vsel %vm2559, 0, %v2593
        %2595 = vst [vmem:[#allocation2 + $0x84] sm:$0x1] %v2594
        %v2596 = vld [vmem:[#allocation2 + $0x90] sm:$0x1]
        %v2597 = vsel %vm2559, 0, %v2596
        %2598 = vst [vmem:[#allocation2 + $0x90] sm:$0x1] %v2597
        %v2599 = vld [vmem:[#allocation2 + $0x9c] sm:$0x1]
        %v2600 = vsel %vm2559, 0, %v2599
        %2601 = vst [vmem:[#allocation2 + $0x9c] sm:$0x1] %v2600
        %v2602 = vld [vmem:[#allocation2 + $0xa8] sm:$0x1]
        %v2603 = vsel %vm2559, 0, %v2602
        %2604 = vst [vmem:[#allocation2 + $0xa8] sm:$0x1] %v2603
        %v2605 = vld [vmem:[#allocation2 + $0xb4] sm:$0x1]
        %v2606 = vsel %vm2559, 0, %v2605
        %2607 = vst [vmem:[#allocation2 + $0xb4] sm:$0x1] %v2606
        %v2608 = vld [vmem:[#allocation2 + $0xc0] sm:$0x1]
        %v2609 = vsel %vm2559, 0, %v2608
        %2610 = vst [vmem:[#allocation2 + $0xc0] sm:$0x1] %v2609
        %v2611 = vld [vmem:[#allocation2 + $0xcc] sm:$0x1]
        %v2612 = vsel %vm2559, 0, %v2611
        %2613 = vst [vmem:[#allocation2 + $0xcc] sm:$0x1] %v2612
        %vm2614 = vsmask.f32 7938
        %vm2615 = vmand %vm2557, %vm2614
        %v2616 = vld [vmem:[#allocation2 + $0x8] sm:$0x1]
        %v2617 = vsel %vm2615, 0, %v2616
        %2618 = vst [vmem:[#allocation2 + $0x8] sm:$0x1] %v2617
        %v2619 = vld [vmem:[#allocation2 + $0x14] sm:$0x1]
        %v2620 = vsel %vm2615, 0, %v2619
        %2621 = vst [vmem:[#allocation2 + $0x14] sm:$0x1] %v2620
        %v2622 = vld [vmem:[#allocation2 + $0x20] sm:$0x1]
        %v2623 = vsel %vm2615, 0, %v2622
        %2624 = vst [vmem:[#allocation2 + $0x20] sm:$0x1] %v2623
        %v2625 = vld [vmem:[#allocation2 + $0x2c] sm:$0x1]
        %v2626 = vsel %vm2615, 0, %v2625
        %2627 = vst [vmem:[#allocation2 + $0x2c] sm:$0x1] %v2626
        %v2628 = vld [vmem:[#allocation2 + $0x38] sm:$0x1]
        %v2629 = vsel %vm2615, 0, %v2628
        %2630 = vst [vmem:[#allocation2 + $0x38] sm:$0x1] %v2629
        %v2631 = vld [vmem:[#allocation2 + $0x44] sm:$0x1]
        %v2632 = vsel %vm2615, 0, %v2631
        %2633 = vst [vmem:[#allocation2 + $0x44] sm:$0x1] %v2632
        %v2634 = vld [vmem:[#allocation2 + $0x50] sm:$0x1]
        %v2635 = vsel %vm2615, 0, %v2634
        %2636 = vst [vmem:[#allocation2 + $0x50] sm:$0x1] %v2635
        %v2637 = vld [vmem:[#allocation2 + $0x5c] sm:$0x1]
        %v2638 = vsel %vm2615, 0, %v2637
        %2639 = vst [vmem:[#allocation2 + $0x5c] sm:$0x1] %v2638
        %v2640 = vld [vmem:[#allocation2 + $0x68] sm:$0x1]
        %v2641 = vsel %vm2615, 0, %v2640
        %2642 = vst [vmem:[#allocation2 + $0x68] sm:$0x1] %v2641
        %v2643 = vld [vmem:[#allocation2 + $0x74] sm:$0x1]
        %v2644 = vsel %vm2615, 0, %v2643
        %2645 = vst [vmem:[#allocation2 + $0x74] sm:$0x1] %v2644
        %v2646 = vld [vmem:[#allocation2 + $0x80] sm:$0x1]
        %v2647 = vsel %vm2615, 0, %v2646
        %2648 = vst [vmem:[#allocation2 + $0x80] sm:$0x1] %v2647
        %v2649 = vld [vmem:[#allocation2 + $0x8c] sm:$0x1]
        %v2650 = vsel %vm2615, 0, %v2649
        %2651 = vst [vmem:[#allocation2 + $0x8c] sm:$0x1] %v2650
        %v2652 = vld [vmem:[#allocation2 + $0x98] sm:$0x1]
        %v2653 = vsel %vm2615, 0, %v2652
        %2654 = vst [vmem:[#allocation2 + $0x98] sm:$0x1] %v2653
        %v2655 = vld [vmem:[#allocation2 + $0xa4] sm:$0x1]
        %v2656 = vsel %vm2615, 0, %v2655
        %2657 = vst [vmem:[#allocation2 + $0xa4] sm:$0x1] %v2656
        %v2658 = vld [vmem:[#allocation2 + $0xb0] sm:$0x1]
        %v2659 = vsel %vm2615, 0, %v2658
        %2660 = vst [vmem:[#allocation2 + $0xb0] sm:$0x1] %v2659
        %v2661 = vld [vmem:[#allocation2 + $0xbc] sm:$0x1]
        %v2662 = vsel %vm2615, 0, %v2661
        %2663 = vst [vmem:[#allocation2 + $0xbc] sm:$0x1] %v2662
        %v2664 = vld [vmem:[#allocation2 + $0xc8] sm:$0x1]
        %v2665 = vsel %vm2615, 0, %v2664
        %2666 = vst [vmem:[#allocation2 + $0xc8] sm:$0x1] %v2665
        %v2667 = vld [vmem:[#allocation2 + $0xd4] sm:$0x1]
        %v2668 = vsel %vm2615, 0, %v2667
        %2669 = vst [vmem:[#allocation2 + $0xd4] sm:$0x1] %v2668
        %v2686 = vunpack.c.l.b16 %v2534
        %v2687 = vunpack.c.h.b16 %v2534
        %v2688 = vunpack.c.l.b16 %v2535
        %v2689 = vunpack.c.h.b16 %v2535
        %v2690 = vunpack.c.l.b16 %v2536
        %v2691 = vunpack.c.h.b16 %v2536
        %v2692 = vunpack.c.l.b16 %v2537
        %v2693 = vunpack.c.h.b16 %v2537
        %v2694 = vunpack.c.l.b16 %v2538
        %v2695 = vunpack.c.h.b16 %v2538
        %v2696 = vunpack.c.l.b16 %v2539
        %v2697 = vunpack.c.h.b16 %v2539
        %v2698 = vunpack.c.l.b16 %v2540
        %v2699 = vunpack.c.h.b16 %v2540
        %v2700 = vunpack.c.l.b16 %v2541
        %v2701 = vunpack.c.h.b16 %v2541
        %v2702 = vunpack.c.l.b16 %v2542
        %v2703 = vunpack.c.h.b16 %v2542
        %v2704 = vunpack.c.l.b16 %v2543
        %v2705 = vunpack.c.h.b16 %v2543
        %v2706 = vunpack.c.l.b16 %v2544
        %v2707 = vunpack.c.h.b16 %v2544
        %v2708 = vunpack.c.l.b16 %v2545
        %v2709 = vunpack.c.h.b16 %v2545
        %v2710 = vunpack.c.l.b16 %v2546
        %v2711 = vunpack.c.h.b16 %v2546
        %v2712 = vunpack.c.l.b16 %v2547
        %v2713 = vunpack.c.h.b16 %v2547
        %v2714 = vunpack.c.l.b16 %v2548
        %v2715 = vunpack.c.h.b16 %v2548
        %v2716 = vunpack.c.l.b16 %v2549
        %v2717 = vunpack.c.h.b16 %v2549
        %v2718 = vpack.c.b16 %v2686, %v2686
        %v2719 = vpack.c.b16 %v2687, %v2687
        %v2720 = vpack.c.b16 %v2688, %v2688
        %v2721 = vpack.c.b16 %v2689, %v2689
        %v2722 = vpack.c.b16 %v2690, %v2690
        %v2723 = vpack.c.b16 %v2691, %v2691
        %v2724 = vpack.c.b16 %v2692, %v2692
        %v2725 = vpack.c.b16 %v2693, %v2693
        %v2726 = vpack.c.b16 %v2694, %v2694
        %v2727 = vpack.c.b16 %v2695, %v2695
        %v2728 = vpack.c.b16 %v2696, %v2696
        %v2729 = vpack.c.b16 %v2697, %v2697
        %v2730 = vpack.c.b16 %v2698, %v2698
        %v2731 = vpack.c.b16 %v2699, %v2699
        %v2732 = vpack.c.b16 %v2700, %v2700
        %v2733 = vpack.c.b16 %v2701, %v2701
        %v2734 = vpack.c.b16 %v2702, %v2702
        %v2735 = vpack.c.b16 %v2703, %v2703
        %v2736 = vpack.c.b16 %v2704, %v2704
        %v2737 = vpack.c.b16 %v2705, %v2705
        %v2738 = vpack.c.b16 %v2706, %v2706
        %v2739 = vpack.c.b16 %v2707, %v2707
        %v2740 = vpack.c.b16 %v2708, %v2708
        %v2741 = vpack.c.b16 %v2709, %v2709
        %v2742 = vpack.c.b16 %v2710, %v2710
        %v2743 = vpack.c.b16 %v2711, %v2711
        %v2744 = vpack.c.b16 %v2712, %v2712
        %v2745 = vpack.c.b16 %v2713, %v2713
        %v2746 = vpack.c.b16 %v2714, %v2714
        %v2747 = vpack.c.b16 %v2715, %v2715
        %v2748 = vpack.c.b16 %v2716, %v2716
        %v2749 = vpack.c.b16 %v2717, %v2717
        %vm2750 = vsmask.f32 4368
        %vm2751 = vmor %vm2558, %vm2750
        %v2753 = vshrl.u32 %v2718, 16
        %v2755 = vrot.slane %v2753, 7
        %v2756 = vshll.u32 %v2718, 16
        %v2758 = vor.u32 %v2755, %v2756
        %v2759 = vrot.slane %v2755, 4
        %v2761 = vshrl.u32 %v2719, 16
        %v2763 = vrot.slane %v2761, 7
        %v2764 = vshll.u32 %v2719, 16
        %v2766 = vor.u32 %v2763, %v2764
        %v2767 = vsel %vm2751, %v2759, %v2766
        %v2768 = vrot.slane %v2763, 4
        %v2770 = vshrl.u32 %v2720, 16
        %v2772 = vrot.slane %v2770, 7
        %v2773 = vshll.u32 %v2720, 16
        %v2775 = vor.u32 %v2772, %v2773
        %v2776 = vrot.slane %v2772, 4
        %v2778 = vshrl.u32 %v2721, 16
        %v2780 = vrot.slane %v2778, 7
        %v2781 = vshll.u32 %v2721, 16
        %v2783 = vor.u32 %v2780, %v2781
        %v2784 = vsel %vm2751, %v2776, %v2783
        %v2785 = vrot.slane %v2780, 4
        %v2787 = vshrl.u32 %v2722, 16
        %v2789 = vrot.slane %v2787, 7
        %v2790 = vshll.u32 %v2722, 16
        %v2792 = vor.u32 %v2789, %v2790
        %v2793 = vrot.slane %v2789, 4
        %v2795 = vshrl.u32 %v2723, 16
        %v2797 = vrot.slane %v2795, 7
        %v2798 = vshll.u32 %v2723, 16
        %v2800 = vor.u32 %v2797, %v2798
        %v2801 = vsel %vm2751, %v2793, %v2800
        %v2802 = vrot.slane %v2797, 4
        %v2804 = vshrl.u32 %v2724, 16
        %v2806 = vrot.slane %v2804, 7
        %v2807 = vshll.u32 %v2724, 16
        %v2809 = vor.u32 %v2806, %v2807
        %v2810 = vrot.slane %v2806, 4
        %v2812 = vshrl.u32 %v2725, 16
        %v2814 = vrot.slane %v2812, 7
        %v2815 = vshll.u32 %v2725, 16
        %v2817 = vor.u32 %v2814, %v2815
        %v2818 = vsel %vm2751, %v2810, %v2817
        %v2819 = vrot.slane %v2814, 4
        %v2821 = vshrl.u32 %v2726, 16
        %v2823 = vrot.slane %v2821, 7
        %v2824 = vshll.u32 %v2726, 16
        %v2826 = vor.u32 %v2823, %v2824
        %v2827 = vrot.slane %v2823, 4
        %v2829 = vshrl.u32 %v2727, 16
        %v2831 = vrot.slane %v2829, 7
        %v2832 = vshll.u32 %v2727, 16
        %v2834 = vor.u32 %v2831, %v2832
        %v2835 = vsel %vm2751, %v2827, %v2834
        %v2836 = vrot.slane %v2831, 4
        %v2838 = vshrl.u32 %v2728, 16
        %v2840 = vrot.slane %v2838, 7
        %v2841 = vshll.u32 %v2728, 16
        %v2843 = vor.u32 %v2840, %v2841
        %v2844 = vrot.slane %v2840, 4
        %v2846 = vshrl.u32 %v2729, 16
        %v2848 = vrot.slane %v2846, 7
        %v2849 = vshll.u32 %v2729, 16
        %v2851 = vor.u32 %v2848, %v2849
        %v2852 = vsel %vm2751, %v2844, %v2851
        %v2853 = vrot.slane %v2848, 4
        %v2855 = vshrl.u32 %v2730, 16
        %v2857 = vrot.slane %v2855, 7
        %v2858 = vshll.u32 %v2730, 16
        %v2860 = vor.u32 %v2857, %v2858
        %v2861 = vrot.slane %v2857, 4
        %v2863 = vshrl.u32 %v2731, 16
        %v2865 = vrot.slane %v2863, 7
        %v2866 = vshll.u32 %v2731, 16
        %v2868 = vor.u32 %v2865, %v2866
        %v2869 = vsel %vm2751, %v2861, %v2868
        %v2870 = vrot.slane %v2865, 4
        %v2872 = vshrl.u32 %v2732, 16
        %v2874 = vrot.slane %v2872, 7
        %v2875 = vshll.u32 %v2732, 16
        %v2877 = vor.u32 %v2874, %v2875
        %v2878 = vrot.slane %v2874, 4
        %v2880 = vshrl.u32 %v2733, 16
        %v2882 = vrot.slane %v2880, 7
        %v2883 = vshll.u32 %v2733, 16
        %v2885 = vor.u32 %v2882, %v2883
        %v2886 = vsel %vm2751, %v2878, %v2885
        %v2887 = vrot.slane %v2882, 4
        %v2889 = vshrl.u32 %v2734, 16
        %v2891 = vrot.slane %v2889, 7
        %v2892 = vshll.u32 %v2734, 16
        %v2894 = vor.u32 %v2891, %v2892
        %v2895 = vrot.slane %v2891, 4
        %v2897 = vshrl.u32 %v2735, 16
        %v2899 = vrot.slane %v2897, 7
        %v2900 = vshll.u32 %v2735, 16
        %v2902 = vor.u32 %v2899, %v2900
        %v2903 = vsel %vm2751, %v2895, %v2902
        %v2904 = vrot.slane %v2899, 4
        %v2906 = vshrl.u32 %v2736, 16
        %v2908 = vrot.slane %v2906, 7
        %v2909 = vshll.u32 %v2736, 16
        %v2911 = vor.u32 %v2908, %v2909
        %v2912 = vrot.slane %v2908, 4
        %v2914 = vshrl.u32 %v2737, 16
        %v2916 = vrot.slane %v2914, 7
        %v2917 = vshll.u32 %v2737, 16
        %v2919 = vor.u32 %v2916, %v2917
        %v2920 = vsel %vm2751, %v2912, %v2919
        %v2921 = vrot.slane %v2916, 4
        %v2923 = vshrl.u32 %v2738, 16
        %v2925 = vrot.slane %v2923, 7
        %v2926 = vshll.u32 %v2738, 16
        %v2928 = vor.u32 %v2925, %v2926
        %v2929 = vrot.slane %v2925, 4
        %v2931 = vshrl.u32 %v2739, 16
        %v2933 = vrot.slane %v2931, 7
        %v2934 = vshll.u32 %v2739, 16
        %v2936 = vor.u32 %v2933, %v2934
        %v2937 = vsel %vm2751, %v2929, %v2936
        %v2938 = vrot.slane %v2933, 4
        %v2940 = vshrl.u32 %v2740, 16
        %v2942 = vrot.slane %v2940, 7
        %v2943 = vshll.u32 %v2740, 16
        %v2945 = vor.u32 %v2942, %v2943
        %v2946 = vrot.slane %v2942, 4
        %v2948 = vshrl.u32 %v2741, 16
        %v2950 = vrot.slane %v2948, 7
        %v2951 = vshll.u32 %v2741, 16
        %v2953 = vor.u32 %v2950, %v2951
        %v2954 = vsel %vm2751, %v2946, %v2953
        %v2955 = vrot.slane %v2950, 4
        %v2957 = vshrl.u32 %v2742, 16
        %v2959 = vrot.slane %v2957, 7
        %v2960 = vshll.u32 %v2742, 16
        %v2962 = vor.u32 %v2959, %v2960
        %v2963 = vrot.slane %v2959, 4
        %v2965 = vshrl.u32 %v2743, 16
        %v2967 = vrot.slane %v2965, 7
        %v2968 = vshll.u32 %v2743, 16
        %v2970 = vor.u32 %v2967, %v2968
        %v2971 = vsel %vm2751, %v2963, %v2970
        %v2972 = vrot.slane %v2967, 4
        %v2974 = vshrl.u32 %v2744, 16
        %v2976 = vrot.slane %v2974, 7
        %v2977 = vshll.u32 %v2744, 16
        %v2979 = vor.u32 %v2976, %v2977
        %v2980 = vrot.slane %v2976, 4
        %v2982 = vshrl.u32 %v2745, 16
        %v2984 = vrot.slane %v2982, 7
        %v2985 = vshll.u32 %v2745, 16
        %v2987 = vor.u32 %v2984, %v2985
        %v2988 = vsel %vm2751, %v2980, %v2987
        %v2989 = vrot.slane %v2984, 4
        %v2991 = vshrl.u32 %v2746, 16
        %v2993 = vrot.slane %v2991, 7
        %v2994 = vshll.u32 %v2746, 16
        %v2996 = vor.u32 %v2993, %v2994
        %v2997 = vrot.slane %v2993, 4
        %v2999 = vshrl.u32 %v2747, 16
        %v3001 = vrot.slane %v2999, 7
        %v3002 = vshll.u32 %v2747, 16
        %v3004 = vor.u32 %v3001, %v3002
        %v3005 = vsel %vm2751, %v2997, %v3004
        %v3006 = vrot.slane %v3001, 4
        %v3008 = vshrl.u32 %v2748, 16
        %v3010 = vrot.slane %v3008, 7
        %v3011 = vshll.u32 %v2748, 16
        %v3013 = vor.u32 %v3010, %v3011
        %v3014 = vrot.slane %v3010, 4
        %v3016 = vshrl.u32 %v2749, 16
        %v3018 = vrot.slane %v3016, 7
        %v3019 = vshll.u32 %v2749, 16
        %v3021 = vor.u32 %v3018, %v3019
        %v3022 = vsel %vm2751, %v3014, %v3021
        %v3023 = vrot.slane %v3018, 4
        %s3072 = scalar_lea.vmem [#allocation2], 12
        %vm3073 = vcmask 1043456
        %vm3074 = vmand %vm3073, %vm2614
        %v3075 = vld [vmem:[%s3072] sm:$0xf]
        %v3076 = vsel %vm3074, %v2758, %v3075
        %3077 = vst [vmem:[%s3072] sm:$0xf] %v3076
        %3078 = vst [vmem:[%s3072 + $0x4] sm:$0xf] %v2767
        %v3079 = vld [vmem:[%s3072 + $0x8] sm:$0x1]
        %v3080 = vsel %vm2559, %v2768, %v3079
        %3081 = vst [vmem:[%s3072 + $0x8] sm:$0x1] %v3080
        %v3082 = vld [vmem:[%s3072 + $0xc] sm:$0xf]
        %v3083 = vsel %vm3074, %v2775, %v3082
        %3084 = vst [vmem:[%s3072 + $0xc] sm:$0xf] %v3083
        %3085 = vst [vmem:[%s3072 + $0x10] sm:$0xf] %v2784
        %v3086 = vld [vmem:[%s3072 + $0x14] sm:$0x1]
        %v3087 = vsel %vm2559, %v2785, %v3086
        %3088 = vst [vmem:[%s3072 + $0x14] sm:$0x1] %v3087
        %v3089 = vld [vmem:[%s3072 + $0x18] sm:$0xf]
        %v3090 = vsel %vm3074, %v2792, %v3089
        %3091 = vst [vmem:[%s3072 + $0x18] sm:$0xf] %v3090
        %3092 = vst [vmem:[%s3072 + $0x1c] sm:$0xf] %v2801
        %v3093 = vld [vmem:[%s3072 + $0x20] sm:$0x1]
        %v3094 = vsel %vm2559, %v2802, %v3093
        %3095 = vst [vmem:[%s3072 + $0x20] sm:$0x1] %v3094
        %v3096 = vld [vmem:[%s3072 + $0x24] sm:$0xf]
        %v3097 = vsel %vm3074, %v2809, %v3096
        %3098 = vst [vmem:[%s3072 + $0x24] sm:$0xf] %v3097
        %3099 = vst [vmem:[%s3072 + $0x28] sm:$0xf] %v2818
        %v3100 = vld [vmem:[%s3072 + $0x2c] sm:$0x1]
        %v3101 = vsel %vm2559, %v2819, %v3100
        %3102 = vst [vmem:[%s3072 + $0x2c] sm:$0x1] %v3101
        %v3103 = vld [vmem:[%s3072 + $0x30] sm:$0xf]
        %v3104 = vsel %vm3074, %v2826, %v3103
        %3105 = vst [vmem:[%s3072 + $0x30] sm:$0xf] %v3104
        %3106 = vst [vmem:[%s3072 + $0x34] sm:$0xf] %v2835
        %v3107 = vld [vmem:[%s3072 + $0x38] sm:$0x1]
        %v3108 = vsel %vm2559, %v2836, %v3107
        %3109 = vst [vmem:[%s3072 + $0x38] sm:$0x1] %v3108
        %v3110 = vld [vmem:[%s3072 + $0x3c] sm:$0xf]
        %v3111 = vsel %vm3074, %v2843, %v3110
        %3112 = vst [vmem:[%s3072 + $0x3c] sm:$0xf] %v3111
        %3113 = vst [vmem:[%s3072 + $0x40] sm:$0xf] %v2852
        %v3114 = vld [vmem:[%s3072 + $0x44] sm:$0x1]
        %v3115 = vsel %vm2559, %v2853, %v3114
        %3116 = vst [vmem:[%s3072 + $0x44] sm:$0x1] %v3115
        %v3117 = vld [vmem:[%s3072 + $0x48] sm:$0xf]
        %v3118 = vsel %vm3074, %v2860, %v3117
        %3119 = vst [vmem:[%s3072 + $0x48] sm:$0xf] %v3118
        %3120 = vst [vmem:[%s3072 + $0x4c] sm:$0xf] %v2869
        %v3121 = vld [vmem:[%s3072 + $0x50] sm:$0x1]
        %v3122 = vsel %vm2559, %v2870, %v3121
        %3123 = vst [vmem:[%s3072 + $0x50] sm:$0x1] %v3122
        %v3124 = vld [vmem:[%s3072 + $0x54] sm:$0xf]
        %v3125 = vsel %vm3074, %v2877, %v3124
        %3126 = vst [vmem:[%s3072 + $0x54] sm:$0xf] %v3125
        %3127 = vst [vmem:[%s3072 + $0x58] sm:$0xf] %v2886
        %v3128 = vld [vmem:[%s3072 + $0x5c] sm:$0x1]
        %v3129 = vsel %vm2559, %v2887, %v3128
        %3130 = vst [vmem:[%s3072 + $0x5c] sm:$0x1] %v3129
        %v3131 = vld [vmem:[%s3072 + $0x60] sm:$0xf]
        %v3132 = vsel %vm3074, %v2894, %v3131
        %3133 = vst [vmem:[%s3072 + $0x60] sm:$0xf] %v3132
        %3134 = vst [vmem:[%s3072 + $0x64] sm:$0xf] %v2903
        %v3135 = vld [vmem:[%s3072 + $0x68] sm:$0x1]
        %v3136 = vsel %vm2559, %v2904, %v3135
        %3137 = vst [vmem:[%s3072 + $0x68] sm:$0x1] %v3136
        %v3138 = vld [vmem:[%s3072 + $0x6c] sm:$0xf]
        %v3139 = vsel %vm3074, %v2911, %v3138
        %3140 = vst [vmem:[%s3072 + $0x6c] sm:$0xf] %v3139
        %3141 = vst [vmem:[%s3072 + $0x70] sm:$0xf] %v2920
        %v3142 = vld [vmem:[%s3072 + $0x74] sm:$0x1]
        %v3143 = vsel %vm2559, %v2921, %v3142
        %3144 = vst [vmem:[%s3072 + $0x74] sm:$0x1] %v3143
        %v3145 = vld [vmem:[%s3072 + $0x78] sm:$0xf]
        %v3146 = vsel %vm3074, %v2928, %v3145
        %3147 = vst [vmem:[%s3072 + $0x78] sm:$0xf] %v3146
        %3148 = vst [vmem:[%s3072 + $0x7c] sm:$0xf] %v2937
        %v3149 = vld [vmem:[%s3072 + $0x80] sm:$0x1]
        %v3150 = vsel %vm2559, %v2938, %v3149
        %3151 = vst [vmem:[%s3072 + $0x80] sm:$0x1] %v3150
        %v3152 = vld [vmem:[%s3072 + $0x84] sm:$0xf]
        %v3153 = vsel %vm3074, %v2945, %v3152
        %3154 = vst [vmem:[%s3072 + $0x84] sm:$0xf] %v3153
        %3155 = vst [vmem:[%s3072 + $0x88] sm:$0xf] %v2954
        %v3156 = vld [vmem:[%s3072 + $0x8c] sm:$0x1]
        %v3157 = vsel %vm2559, %v2955, %v3156
        %3158 = vst [vmem:[%s3072 + $0x8c] sm:$0x1] %v3157
        %v3159 = vld [vmem:[%s3072 + $0x90] sm:$0xf]
        %v3160 = vsel %vm3074, %v2962, %v3159
        %3161 = vst [vmem:[%s3072 + $0x90] sm:$0xf] %v3160
        %3162 = vst [vmem:[%s3072 + $0x94] sm:$0xf] %v2971
        %v3163 = vld [vmem:[%s3072 + $0x98] sm:$0x1]
        %v3164 = vsel %vm2559, %v2972, %v3163
        %3165 = vst [vmem:[%s3072 + $0x98] sm:$0x1] %v3164
        %v3166 = vld [vmem:[%s3072 + $0x9c] sm:$0xf]
        %v3167 = vsel %vm3074, %v2979, %v3166
        %3168 = vst [vmem:[%s3072 + $0x9c] sm:$0xf] %v3167
        %3169 = vst [vmem:[%s3072 + $0xa0] sm:$0xf] %v2988
        %v3170 = vld [vmem:[%s3072 + $0xa4] sm:$0x1]
        %v3171 = vsel %vm2559, %v2989, %v3170
        %3172 = vst [vmem:[%s3072 + $0xa4] sm:$0x1] %v3171
        %v3173 = vld [vmem:[%s3072 + $0xa8] sm:$0xf]
        %v3174 = vsel %vm3074, %v2996, %v3173
        %3175 = vst [vmem:[%s3072 + $0xa8] sm:$0xf] %v3174
        %3176 = vst [vmem:[%s3072 + $0xac] sm:$0xf] %v3005
        %v3177 = vld [vmem:[%s3072 + $0xb0] sm:$0x1]
        %v3178 = vsel %vm2559, %v3006, %v3177
        %3179 = vst [vmem:[%s3072 + $0xb0] sm:$0x1] %v3178
        %v3180 = vld [vmem:[%s3072 + $0xb4] sm:$0xf]
        %v3181 = vsel %vm3074, %v3013, %v3180
        %3182 = vst [vmem:[%s3072 + $0xb4] sm:$0xf] %v3181
        %3183 = vst [vmem:[%s3072 + $0xb8] sm:$0xf] %v3022
        %v3184 = vld [vmem:[%s3072 + $0xbc] sm:$0x1]
        %v3185 = vsel %vm2559, %v3023, %v3184
        %3186 = vst [vmem:[%s3072 + $0xbc] sm:$0x1] %v3185
        %v3187 = vld [vmem:[#allocation2] sm:$0xf]
        %v3188 = vld [vmem:[#allocation2 + $0x4] sm:$0xf]
        %v3189 = vld [vmem:[#allocation2 + $0x8] sm:$0x1]
        %v3190 = vld [vmem:[#allocation2 + $0xc] sm:$0xf]
        %v3191 = vld [vmem:[#allocation2 + $0x10] sm:$0xf]
        %v3192 = vld [vmem:[#allocation2 + $0x14] sm:$0x1]
        %v3193 = vld [vmem:[#allocation2 + $0x18] sm:$0xf]
        %v3194 = vld [vmem:[#allocation2 + $0x1c] sm:$0xf]
        %v3195 = vld [vmem:[#allocation2 + $0x20] sm:$0x1]
        %v3196 = vld [vmem:[#allocation2 + $0x24] sm:$0xf]
        %v3197 = vld [vmem:[#allocation2 + $0x28] sm:$0xf]
        %v3198 = vld [vmem:[#allocation2 + $0x2c] sm:$0x1]
        %v3199 = vld [vmem:[#allocation2 + $0x30] sm:$0xf]
        %v3200 = vld [vmem:[#allocation2 + $0x34] sm:$0xf]
        %v3201 = vld [vmem:[#allocation2 + $0x38] sm:$0x1]
        %v3202 = vld [vmem:[#allocation2 + $0x3c] sm:$0xf]
        %v3203 = vld [vmem:[#allocation2 + $0x40] sm:$0xf]
        %v3204 = vld [vmem:[#allocation2 + $0x44] sm:$0x1]
        %v3205 = vld [vmem:[#allocation2 + $0x48] sm:$0xf]
        %v3206 = vld [vmem:[#allocation2 + $0x4c] sm:$0xf]
        %v3207 = vld [vmem:[#allocation2 + $0x50] sm:$0x1]
        %v3208 = vld [vmem:[#allocation2 + $0x54] sm:$0xf]
        %v3209 = vld [vmem:[#allocation2 + $0x58] sm:$0xf]
        %v3210 = vld [vmem:[#allocation2 + $0x5c] sm:$0x1]
        %v3211 = vld [vmem:[#allocation2 + $0x60] sm:$0xf]
        %v3212 = vld [vmem:[#allocation2 + $0x64] sm:$0xf]
        %v3213 = vld [vmem:[#allocation2 + $0x68] sm:$0x1]
        %v3214 = vld [vmem:[#allocation2 + $0x6c] sm:$0xf]
        %v3215 = vld [vmem:[#allocation2 + $0x70] sm:$0xf]
        %v3216 = vld [vmem:[#allocation2 + $0x74] sm:$0x1]
        %v3217 = vld [vmem:[#allocation2 + $0x78] sm:$0xf]
        %v3218 = vld [vmem:[#allocation2 + $0x7c] sm:$0xf]
        %v3219 = vld [vmem:[#allocation2 + $0x80] sm:$0x1]
        %v3220 = vld [vmem:[#allocation2 + $0x84] sm:$0xf]
        %v3221 = vld [vmem:[#allocation2 + $0x88] sm:$0xf]
        %v3222 = vld [vmem:[#allocation2 + $0x8c] sm:$0x1]
        %v3223 = vld [vmem:[#allocation2 + $0x90] sm:$0xf]
        %v3224 = vld [vmem:[#allocation2 + $0x94] sm:$0xf]
        %v3225 = vld [vmem:[#allocation2 + $0x98] sm:$0x1]
        %v3226 = vld [vmem:[#allocation2 + $0x9c] sm:$0xf]
        %v3227 = vld [vmem:[#allocation2 + $0xa0] sm:$0xf]
        %v3228 = vld [vmem:[#allocation2 + $0xa4] sm:$0x1]
        %v3229 = vld [vmem:[#allocation2 + $0xa8] sm:$0xf]
        %v3230 = vld [vmem:[#allocation2 + $0xac] sm:$0xf]
        %v3231 = vld [vmem:[#allocation2 + $0xb0] sm:$0x1]
        %v3232 = vld [vmem:[#allocation2 + $0xb4] sm:$0xf]
        %v3233 = vld [vmem:[#allocation2 + $0xb8] sm:$0xf]
        %v3234 = vld [vmem:[#allocation2 + $0xbc] sm:$0x1]
        %v3235 = vld [vmem:[#allocation2 + $0xc0] sm:$0xf]
        %v3236 = vld [vmem:[#allocation2 + $0xc4] sm:$0xf]
        %v3237 = vld [vmem:[#allocation2 + $0xc8] sm:$0x1]
        %v3238 = vld [vmem:[#allocation2 + $0xcc] sm:$0xf]
        %v3239 = vld [vmem:[#allocation2 + $0xd0] sm:$0xf]
        %v3240 = vld [vmem:[#allocation2 + $0xd4] sm:$0x1]
        %v3273 = vunpack.c.l.b16 %v3187
        %v3274 = vunpack.c.l.b16 %v3188
        %v3275 = vunpack.c.l.b16 %v3190
        %v3276 = vunpack.c.l.b16 %v3191
        %v3277 = vunpack.c.l.b16 %v3193
        %v3278 = vunpack.c.l.b16 %v3194
        %v3279 = vunpack.c.l.b16 %v3196
        %v3280 = vunpack.c.l.b16 %v3197
        %v3281 = vunpack.c.l.b16 %v3199
        %v3282 = vunpack.c.l.b16 %v3200
        %v3283 = vunpack.c.l.b16 %v3202
        %v3284 = vunpack.c.l.b16 %v3203
        %v3285 = vunpack.c.l.b16 %v3205
        %v3286 = vunpack.c.l.b16 %v3206
        %v3287 = vunpack.c.l.b16 %v3208
        %v3288 = vunpack.c.l.b16 %v3209
        %v3289 = vunpack.c.l.b16 %v3211
        %v3290 = vunpack.c.l.b16 %v3212
        %v3291 = vunpack.c.l.b16 %v3214
        %v3292 = vunpack.c.l.b16 %v3215
        %v3293 = vunpack.c.l.b16 %v3217
        %v3294 = vunpack.c.l.b16 %v3218
        %v3295 = vunpack.c.l.b16 %v3220
        %v3296 = vunpack.c.l.b16 %v3221
        %v3297 = vunpack.c.l.b16 %v3223
        %v3298 = vunpack.c.l.b16 %v3224
        %v3299 = vunpack.c.l.b16 %v3226
        %v3300 = vunpack.c.l.b16 %v3227
        %v3301 = vunpack.c.l.b16 %v3229
        %v3302 = vunpack.c.l.b16 %v3230
        %v3303 = vunpack.c.l.b16 %v3232
        %v3304 = vunpack.c.l.b16 %v3233
        %v3305 = vpack.c.b16 %v3274, %v3273
        %v3306 = vpack.c.b16 %v3276, %v3275
        %v3307 = vpack.c.b16 %v3278, %v3277
        %v3308 = vpack.c.b16 %v3280, %v3279
        %v3309 = vpack.c.b16 %v3282, %v3281
        %v3310 = vpack.c.b16 %v3284, %v3283
        %v3311 = vpack.c.b16 %v3286, %v3285
        %v3312 = vpack.c.b16 %v3288, %v3287
        %v3313 = vpack.c.b16 %v3290, %v3289
        %v3314 = vpack.c.b16 %v3292, %v3291
        %v3315 = vpack.c.b16 %v3294, %v3293
        %v3316 = vpack.c.b16 %v3296, %v3295
        %v3317 = vpack.c.b16 %v3298, %v3297
        %v3318 = vpack.c.b16 %v3300, %v3299
        %v3319 = vpack.c.b16 %v3302, %v3301
        %v3320 = vpack.c.b16 %v3304, %v3303
        %v3353 = vunpack.c.l.b16 %v3189
        %v3354 = vunpack.c.l.b16 %v3192
        %v3355 = vunpack.c.l.b16 %v3195
        %v3356 = vunpack.c.l.b16 %v3198
        %v3357 = vunpack.c.l.b16 %v3201
        %v3358 = vunpack.c.l.b16 %v3204
        %v3359 = vunpack.c.l.b16 %v3207
        %v3360 = vunpack.c.l.b16 %v3210
        %v3361 = vunpack.c.l.b16 %v3213
        %v3362 = vunpack.c.l.b16 %v3216
        %v3363 = vunpack.c.l.b16 %v3219
        %v3364 = vunpack.c.l.b16 %v3222
        %v3365 = vunpack.c.l.b16 %v3225
        %v3366 = vunpack.c.l.b16 %v3228
        %v3367 = vunpack.c.l.b16 %v3231
        %v3368 = vunpack.c.l.b16 %v3234
        %v3369 = vpack.c.b16 %v3353, %v3353
        %v3370 = vpack.c.b16 %v3354, %v3354
        %v3371 = vpack.c.b16 %v3355, %v3355
        %v3372 = vpack.c.b16 %v3356, %v3356
        %v3373 = vpack.c.b16 %v3357, %v3357
        %v3374 = vpack.c.b16 %v3358, %v3358
        %v3375 = vpack.c.b16 %v3359, %v3359
        %v3376 = vpack.c.b16 %v3360, %v3360
        %v3377 = vpack.c.b16 %v3361, %v3361
        %v3378 = vpack.c.b16 %v3362, %v3362
        %v3379 = vpack.c.b16 %v3363, %v3363
        %v3380 = vpack.c.b16 %v3364, %v3364
        %v3381 = vpack.c.b16 %v3365, %v3365
        %v3382 = vpack.c.b16 %v3366, %v3366
        %v3383 = vpack.c.b16 %v3367, %v3367
        %v3384 = vpack.c.b16 %v3368, %v3368
        %v3386 = vshrl.u32 %v3305, 16
        %v3388 = vshll.u32 %v3305, 16
        %v3390 = vrot.slane %v3388, 1
        %v3391 = vor.u32 %v3386, %v3390
        %v3393 = vshll.u32 %v3369, 16
        %v3395 = vrot.slane %v3393, 1
        %v3396 = vsel %vm563, %v3391, %v3395
        %v3398 = vshrl.u32 %v3306, 16
        %v3400 = vshll.u32 %v3306, 16
        %v3402 = vrot.slane %v3400, 1
        %v3403 = vor.u32 %v3398, %v3402
        %v3405 = vshll.u32 %v3370, 16
        %v3407 = vrot.slane %v3405, 1
        %v3408 = vsel %vm563, %v3403, %v3407
        %v3410 = vshrl.u32 %v3307, 16
        %v3412 = vshll.u32 %v3307, 16
        %v3414 = vrot.slane %v3412, 1
        %v3415 = vor.u32 %v3410, %v3414
        %v3417 = vshll.u32 %v3371, 16
        %v3419 = vrot.slane %v3417, 1
        %v3420 = vsel %vm563, %v3415, %v3419
        %v3422 = vshrl.u32 %v3308, 16
        %v3424 = vshll.u32 %v3308, 16
        %v3426 = vrot.slane %v3424, 1
        %v3427 = vor.u32 %v3422, %v3426
        %v3429 = vshll.u32 %v3372, 16
        %v3431 = vrot.slane %v3429, 1
        %v3432 = vsel %vm563, %v3427, %v3431
        %v3434 = vshrl.u32 %v3309, 16
        %v3436 = vshll.u32 %v3309, 16
        %v3438 = vrot.slane %v3436, 1
        %v3439 = vor.u32 %v3434, %v3438
        %v3441 = vshll.u32 %v3373, 16
        %v3443 = vrot.slane %v3441, 1
        %v3444 = vsel %vm563, %v3439, %v3443
        %v3446 = vshrl.u32 %v3310, 16
        %v3448 = vshll.u32 %v3310, 16
        %v3450 = vrot.slane %v3448, 1
        %v3451 = vor.u32 %v3446, %v3450
        %v3453 = vshll.u32 %v3374, 16
        %v3455 = vrot.slane %v3453, 1
        %v3456 = vsel %vm563, %v3451, %v3455
        %v3458 = vshrl.u32 %v3311, 16
        %v3460 = vshll.u32 %v3311, 16
        %v3462 = vrot.slane %v3460, 1
        %v3463 = vor.u32 %v3458, %v3462
        %v3465 = vshll.u32 %v3375, 16
        %v3467 = vrot.slane %v3465, 1
        %v3468 = vsel %vm563, %v3463, %v3467
        %v3470 = vshrl.u32 %v3312, 16
        %v3472 = vshll.u32 %v3312, 16
        %v3474 = vrot.slane %v3472, 1
        %v3475 = vor.u32 %v3470, %v3474
        %v3477 = vshll.u32 %v3376, 16
        %v3479 = vrot.slane %v3477, 1
        %v3480 = vsel %vm563, %v3475, %v3479
        %v3482 = vshrl.u32 %v3313, 16
        %v3484 = vshll.u32 %v3313, 16
        %v3486 = vrot.slane %v3484, 1
        %v3487 = vor.u32 %v3482, %v3486
        %v3489 = vshll.u32 %v3377, 16
        %v3491 = vrot.slane %v3489, 1
        %v3492 = vsel %vm563, %v3487, %v3491
        %v3494 = vshrl.u32 %v3314, 16
        %v3496 = vshll.u32 %v3314, 16
        %v3498 = vrot.slane %v3496, 1
        %v3499 = vor.u32 %v3494, %v3498
        %v3501 = vshll.u32 %v3378, 16
        %v3503 = vrot.slane %v3501, 1
        %v3504 = vsel %vm563, %v3499, %v3503
        %v3506 = vshrl.u32 %v3315, 16
        %v3508 = vshll.u32 %v3315, 16
        %v3510 = vrot.slane %v3508, 1
        %v3511 = vor.u32 %v3506, %v3510
        %v3513 = vshll.u32 %v3379, 16
        %v3515 = vrot.slane %v3513, 1
        %v3516 = vsel %vm563, %v3511, %v3515
        %v3518 = vshrl.u32 %v3316, 16
        %v3520 = vshll.u32 %v3316, 16
        %v3522 = vrot.slane %v3520, 1
        %v3523 = vor.u32 %v3518, %v3522
        %v3525 = vshll.u32 %v3380, 16
        %v3527 = vrot.slane %v3525, 1
        %v3528 = vsel %vm563, %v3523, %v3527
        %v3530 = vshrl.u32 %v3317, 16
        %v3532 = vshll.u32 %v3317, 16
        %v3534 = vrot.slane %v3532, 1
        %v3535 = vor.u32 %v3530, %v3534
        %v3537 = vshll.u32 %v3381, 16
        %v3539 = vrot.slane %v3537, 1
        %v3540 = vsel %vm563, %v3535, %v3539
        %v3542 = vshrl.u32 %v3318, 16
        %v3544 = vshll.u32 %v3318, 16
        %v3546 = vrot.slane %v3544, 1
        %v3547 = vor.u32 %v3542, %v3546
        %v3549 = vshll.u32 %v3382, 16
        %v3551 = vrot.slane %v3549, 1
        %v3552 = vsel %vm563, %v3547, %v3551
        %v3554 = vshrl.u32 %v3319, 16
        %v3556 = vshll.u32 %v3319, 16
        %v3558 = vrot.slane %v3556, 1
        %v3559 = vor.u32 %v3554, %v3558
        %v3561 = vshll.u32 %v3383, 16
        %v3563 = vrot.slane %v3561, 1
        %v3564 = vsel %vm563, %v3559, %v3563
        %v3566 = vshrl.u32 %v3320, 16
        %v3568 = vshll.u32 %v3320, 16
        %v3570 = vrot.slane %v3568, 1
        %v3571 = vor.u32 %v3566, %v3570
        %v3573 = vshll.u32 %v3384, 16
        %v3575 = vrot.slane %v3573, 1
        %v3576 = vsel %vm563, %v3571, %v3575
        %v3593 = vrot.slane %v3305, 1
        %v3594 = vrot.slane %v3369, 1
        %v3595 = vsel %vm772, %v3593, %v3594
        %v3596 = vrot.slane %v3306, 1
        %v3597 = vrot.slane %v3370, 1
        %v3598 = vsel %vm772, %v3596, %v3597
        %v3599 = vrot.slane %v3307, 1
        %v3600 = vrot.slane %v3371, 1
        %v3601 = vsel %vm772, %v3599, %v3600
        %v3602 = vrot.slane %v3308, 1
        %v3603 = vrot.slane %v3372, 1
        %v3604 = vsel %vm772, %v3602, %v3603
        %v3605 = vrot.slane %v3309, 1
        %v3606 = vrot.slane %v3373, 1
        %v3607 = vsel %vm772, %v3605, %v3606
        %v3608 = vrot.slane %v3310, 1
        %v3609 = vrot.slane %v3374, 1
        %v3610 = vsel %vm772, %v3608, %v3609
        %v3611 = vrot.slane %v3311, 1
        %v3612 = vrot.slane %v3375, 1
        %v3613 = vsel %vm772, %v3611, %v3612
        %v3614 = vrot.slane %v3312, 1
        %v3615 = vrot.slane %v3376, 1
        %v3616 = vsel %vm772, %v3614, %v3615
        %v3617 = vrot.slane %v3313, 1
        %v3618 = vrot.slane %v3377, 1
        %v3619 = vsel %vm772, %v3617, %v3618
        %v3620 = vrot.slane %v3314, 1
        %v3621 = vrot.slane %v3378, 1
        %v3622 = vsel %vm772, %v3620, %v3621
        %v3623 = vrot.slane %v3315, 1
        %v3624 = vrot.slane %v3379, 1
        %v3625 = vsel %vm772, %v3623, %v3624
        %v3626 = vrot.slane %v3316, 1
        %v3627 = vrot.slane %v3380, 1
        %v3628 = vsel %vm772, %v3626, %v3627
        %v3629 = vrot.slane %v3317, 1
        %v3630 = vrot.slane %v3381, 1
        %v3631 = vsel %vm772, %v3629, %v3630
        %v3632 = vrot.slane %v3318, 1
        %v3633 = vrot.slane %v3382, 1
        %v3634 = vsel %vm772, %v3632, %v3633
        %v3635 = vrot.slane %v3319, 1
        %v3636 = vrot.slane %v3383, 1
        %v3637 = vsel %vm772, %v3635, %v3636
        %v3638 = vrot.slane %v3320, 1
        %v3639 = vrot.slane %v3384, 1
        %v3640 = vsel %vm772, %v3638, %v3639
        %v3657 = vld [vmem:[#allocation11] sm:$0xf]
        %v3658 = vld [vmem:[#allocation11 + $0x4] sm:$0xf]
        %v3659 = vld [vmem:[#allocation11 + $0x8] sm:$0xf]
        %v3660 = vld [vmem:[#allocation11 + $0xc] sm:$0xf]
        %v3661 = vld [vmem:[#allocation11 + $0x10] sm:$0xf]
        %v3662 = vld [vmem:[#allocation11 + $0x14] sm:$0xf]
        %v3663 = vld [vmem:[#allocation11 + $0x18] sm:$0xf]
        %v3664 = vld [vmem:[#allocation11 + $0x1c] sm:$0xf]
        %v3665 = vld [vmem:[#allocation11 + $0x20] sm:$0xf]
        %v3666 = vld [vmem:[#allocation11 + $0x24] sm:$0xf]
        %v3667 = vld [vmem:[#allocation11 + $0x28] sm:$0xf]
        %v3668 = vld [vmem:[#allocation11 + $0x2c] sm:$0xf]
        %v3669 = vld [vmem:[#allocation11 + $0x30] sm:$0xf]
        %v3670 = vld [vmem:[#allocation11 + $0x34] sm:$0xf]
        %v3671 = vld [vmem:[#allocation11 + $0x38] sm:$0xf]
        %v3672 = vld [vmem:[#allocation11 + $0x3c] sm:$0xf]
        %v3673 = vld [vmem:[#allocation11 + $0x40] sm:$0xf]
        %v3674 = vld [vmem:[#allocation11 + $0x44] sm:$0xf]
        %v3675 = vld [vmem:[#allocation11 + $0x48] sm:$0xf]
        %v3676 = vld [vmem:[#allocation11 + $0x4c] sm:$0xf]
        %v3677 = vld [vmem:[#allocation11 + $0x50] sm:$0xf]
        %v3678 = vld [vmem:[#allocation11 + $0x54] sm:$0xf]
        %v3679 = vld [vmem:[#allocation11 + $0x58] sm:$0xf]
        %v3680 = vld [vmem:[#allocation11 + $0x5c] sm:$0xf]
        %v3681 = vld [vmem:[#allocation11 + $0x60] sm:$0xf]
        %v3682 = vld [vmem:[#allocation11 + $0x64] sm:$0xf]
        %v3683 = vld [vmem:[#allocation11 + $0x68] sm:$0xf]
        %v3684 = vld [vmem:[#allocation11 + $0x6c] sm:$0xf]
        %v3685 = vld [vmem:[#allocation11 + $0x70] sm:$0xf]
        %v3686 = vld [vmem:[#allocation11 + $0x74] sm:$0xf]
        %v3687 = vld [vmem:[#allocation11 + $0x78] sm:$0xf]
        %v3688 = vld [vmem:[#allocation11 + $0x7c] sm:$0xf]
        %v3689 = vld [vmem:[#allocation11 + $0x80] sm:$0xf]
        %v3690 = vld [vmem:[#allocation11 + $0x84] sm:$0xf]
        %v3691 = vld [vmem:[#allocation11 + $0x88] sm:$0xf]
        %v3692 = vld [vmem:[#allocation11 + $0x8c] sm:$0xf]
        %v3693 = vld [vmem:[#allocation11 + $0x90] sm:$0xf]
        %v3694 = vld [vmem:[#allocation11 + $0x94] sm:$0xf]
        %v3695 = vld [vmem:[#allocation11 + $0x98] sm:$0xf]
        %v3696 = vld [vmem:[#allocation11 + $0x9c] sm:$0xf]
        %v3697 = vld [vmem:[#allocation11 + $0xa0] sm:$0xf]
        %v3698 = vld [vmem:[#allocation11 + $0xa4] sm:$0xf]
        %v3699 = vld [vmem:[#allocation11 + $0xa8] sm:$0xf]
        %v3700 = vld [vmem:[#allocation11 + $0xac] sm:$0xf]
        %v3701 = vld [vmem:[#allocation11 + $0xb0] sm:$0xf]
        %v3702 = vld [vmem:[#allocation11 + $0xb4] sm:$0xf]
        %v3703 = vld [vmem:[#allocation11 + $0xb8] sm:$0xf]
        %v3704 = vld [vmem:[#allocation11 + $0xbc] sm:$0xf]
        %v3707 = vunpack.c.l.b16 %v3235
        %v3708 = vunpack.c.l.b16 %v3236
        %v3709 = vpack.c.b16 %v3708, %v3707
        %v3712 = vunpack.c.l.b16 %v3237
        %v3713 = vpack.c.b16 %v3712, %v3712
        %v3715 = vshrl.u32 %v3709, 16
        %v3717 = vshll.u32 %v3709, 16
        %v3719 = vrot.slane %v3717, 1
        %v3720 = vor.u32 %v3715, %v3719
        %v3722 = vshll.u32 %v3713, 16
        %v3724 = vrot.slane %v3722, 1
        %v3725 = vsel %vm563, %v3720, %v3724
        %v3727 = vrot.slane %v3709, 1
        %v3728 = vrot.slane %v3713, 1
        %v3729 = vsel %vm772, %v3727, %v3728
        %v3731 = vld [vmem:[#allocation11 + $0xc0] sm:$0xf]
        %v3732 = vld [vmem:[#allocation11 + $0xc4] sm:$0xf]
        %v3733 = vld [vmem:[#allocation11 + $0xc8] sm:$0xf]
        %v3734 = vld [vmem:[#allocation11 + $0xcc] sm:$0xf]
        %v3735 = vld [vmem:[#allocation11 + $0xd0] sm:$0xf]
        %v3736 = vld [vmem:[#allocation11 + $0xd4] sm:$0xf]
        %v3737 = vld [vmem:[#allocation11 + $0xd8] sm:$0xf]
        %v3738 = vld [vmem:[#allocation11 + $0xdc] sm:$0xf]
        %v3739 = vld [vmem:[#allocation11 + $0xe0] sm:$0xf]
        %v3740 = vld [vmem:[#allocation11 + $0xe4] sm:$0xf]
        %v3741 = vld [vmem:[#allocation11 + $0xe8] sm:$0xf]
        %v3742 = vld [vmem:[#allocation11 + $0xec] sm:$0xf]
        %v3743 = vld [vmem:[#allocation11 + $0xf0] sm:$0xf]
        %v3744 = vld [vmem:[#allocation11 + $0xf4] sm:$0xf]
        %v3745 = vld [vmem:[#allocation11 + $0xf8] sm:$0xf]
        %v3746 = vld [vmem:[#allocation11 + $0xfc] sm:$0xf]
        %v3747 = vld [vmem:[#allocation11 + $0x100] sm:$0xf]
        %v3748 = vld [vmem:[#allocation11 + $0x104] sm:$0xf]
        %v3749 = vld [vmem:[#allocation11 + $0x108] sm:$0xf]
        %v3750 = vld [vmem:[#allocation11 + $0x10c] sm:$0xf]
        %v3751 = vld [vmem:[#allocation11 + $0x110] sm:$0xf]
        %v3752 = vld [vmem:[#allocation11 + $0x114] sm:$0xf]
        %v3753 = vld [vmem:[#allocation11 + $0x118] sm:$0xf]
        %v3754 = vld [vmem:[#allocation11 + $0x11c] sm:$0xf]
        %v3755 = vld [vmem:[#allocation11 + $0x120] sm:$0xf]
        %v3756 = vld [vmem:[#allocation11 + $0x124] sm:$0xf]
        %v3757 = vld [vmem:[#allocation11 + $0x128] sm:$0xf]
        %v3758 = vld [vmem:[#allocation11 + $0x12c] sm:$0xf]
        %v3759 = vld [vmem:[#allocation11 + $0x130] sm:$0xf]
        %v3760 = vld [vmem:[#allocation11 + $0x134] sm:$0xf]
        %v3761 = vld [vmem:[#allocation11 + $0x138] sm:$0xf]
        %v3762 = vld [vmem:[#allocation11 + $0x13c] sm:$0xf]
        %v3763 = vld [vmem:[#allocation11 + $0x140] sm:$0xf]
        %v3764 = vld [vmem:[#allocation11 + $0x144] sm:$0xf]
        %v3765 = vld [vmem:[#allocation11 + $0x148] sm:$0xf]
        %v3766 = vld [vmem:[#allocation11 + $0x14c] sm:$0xf]
        %v3767 = vld [vmem:[#allocation11 + $0x150] sm:$0xf]
        %v3768 = vld [vmem:[#allocation11 + $0x154] sm:$0xf]
        %v3769 = vld [vmem:[#allocation11 + $0x158] sm:$0xf]
        %v3770 = vld [vmem:[#allocation11 + $0x15c] sm:$0xf]
        %v3771 = vld [vmem:[#allocation11 + $0x160] sm:$0xf]
        %v3772 = vld [vmem:[#allocation11 + $0x164] sm:$0xf]
        %v3773 = vld [vmem:[#allocation11 + $0x168] sm:$0xf]
        %v3774 = vld [vmem:[#allocation11 + $0x16c] sm:$0xf]
        %v3775 = vld [vmem:[#allocation11 + $0x170] sm:$0xf]
        %v3776 = vld [vmem:[#allocation11 + $0x174] sm:$0xf]
        %v3777 = vld [vmem:[#allocation11 + $0x178] sm:$0xf]
        %v3778 = vld [vmem:[#allocation11 + $0x17c] sm:$0xf]
        %v3827 = vunpack.c.l.b16 %v3731
        %v3828 = vunpack.c.l.b16 %v3732
        %v3829 = vunpack.c.l.b16 %v3733
        %v3830 = vunpack.c.l.b16 %v3734
        %v3831 = vunpack.c.l.b16 %v3735
        %v3832 = vunpack.c.l.b16 %v3736
        %v3833 = vunpack.c.l.b16 %v3737
        %v3834 = vunpack.c.l.b16 %v3738
        %v3835 = vunpack.c.l.b16 %v3739
        %v3836 = vunpack.c.l.b16 %v3740
        %v3837 = vunpack.c.l.b16 %v3741
        %v3838 = vunpack.c.l.b16 %v3742
        %v3839 = vunpack.c.l.b16 %v3743
        %v3840 = vunpack.c.l.b16 %v3744
        %v3841 = vunpack.c.l.b16 %v3745
        %v3842 = vunpack.c.l.b16 %v3746
        %v3843 = vunpack.c.l.b16 %v3747
        %v3844 = vunpack.c.l.b16 %v3748
        %v3845 = vunpack.c.l.b16 %v3749
        %v3846 = vunpack.c.l.b16 %v3750
        %v3847 = vunpack.c.l.b16 %v3751
        %v3848 = vunpack.c.l.b16 %v3752
        %v3849 = vunpack.c.l.b16 %v3753
        %v3850 = vunpack.c.l.b16 %v3754
        %v3851 = vunpack.c.l.b16 %v3755
        %v3852 = vunpack.c.l.b16 %v3756
        %v3853 = vunpack.c.l.b16 %v3757
        %v3854 = vunpack.c.l.b16 %v3758
        %v3855 = vunpack.c.l.b16 %v3759
        %v3856 = vunpack.c.l.b16 %v3760
        %v3857 = vunpack.c.l.b16 %v3761
        %v3858 = vunpack.c.l.b16 %v3762
        %v3859 = vunpack.c.l.b16 %v3763
        %v3860 = vunpack.c.l.b16 %v3764
        %v3861 = vunpack.c.l.b16 %v3765
        %v3862 = vunpack.c.l.b16 %v3766
        %v3863 = vunpack.c.l.b16 %v3767
        %v3864 = vunpack.c.l.b16 %v3768
        %v3865 = vunpack.c.l.b16 %v3769
        %v3866 = vunpack.c.l.b16 %v3770
        %v3867 = vunpack.c.l.b16 %v3771
        %v3868 = vunpack.c.l.b16 %v3772
        %v3869 = vunpack.c.l.b16 %v3773
        %v3870 = vunpack.c.l.b16 %v3774
        %v3871 = vunpack.c.l.b16 %v3775
        %v3872 = vunpack.c.l.b16 %v3776
        %v3873 = vunpack.c.l.b16 %v3777
        %v3874 = vunpack.c.l.b16 %v3778
        %v3875 = vpack.c.b16 %v3828, %v3827
        %v3876 = vpack.c.b16 %v3830, %v3829
        %v3877 = vpack.c.b16 %v3832, %v3831
        %v3878 = vpack.c.b16 %v3834, %v3833
        %v3879 = vpack.c.b16 %v3836, %v3835
        %v3880 = vpack.c.b16 %v3838, %v3837
        %v3881 = vpack.c.b16 %v3840, %v3839
        %v3882 = vpack.c.b16 %v3842, %v3841
        %v3883 = vpack.c.b16 %v3844, %v3843
        %v3884 = vpack.c.b16 %v3846, %v3845
        %v3885 = vpack.c.b16 %v3848, %v3847
        %v3886 = vpack.c.b16 %v3850, %v3849
        %v3887 = vpack.c.b16 %v3852, %v3851
        %v3888 = vpack.c.b16 %v3854, %v3853
        %v3889 = vpack.c.b16 %v3856, %v3855
        %v3890 = vpack.c.b16 %v3858, %v3857
        %v3891 = vpack.c.b16 %v3860, %v3859
        %v3892 = vpack.c.b16 %v3862, %v3861
        %v3893 = vpack.c.b16 %v3864, %v3863
        %v3894 = vpack.c.b16 %v3866, %v3865
        %v3895 = vpack.c.b16 %v3868, %v3867
        %v3896 = vpack.c.b16 %v3870, %v3869
        %v3897 = vpack.c.b16 %v3872, %v3871
        %v3898 = vpack.c.b16 %v3874, %v3873
        %3923 = vmatprep.subr.bf16.mxu0 0
        %3924 = vmatpush1.bf16.msra.mxu0 %v3875
        %3925 = vmatprep.subr.bf16.mxu0 0
        %3926 = vmatpush1.bf16.msra.mxu0 %v3876
        %3927 = vmatprep.subr.bf16.mxu0 0
        %3928 = vmatpush1.bf16.msra.mxu0 %v3877
        %3929 = vmatprep.subr.bf16.mxu0 0
        %3930 = vmatpush1.bf16.msra.mxu0 %v3878
        %3931 = vmatprep.subr.bf16.mxu0 0
        %3932 = vmatpush1.bf16.msra.mxu0 %v3879
        %3933 = vmatprep.subr.bf16.mxu0 0
        %3934 = vmatpush1.bf16.msra.mxu0 %v3880
        %3935 = vmatprep.subr.bf16.mxu0 0
        %3936 = vmatpush1.bf16.msra.mxu0 %v3881
        %3937 = vmatprep.subr.bf16.mxu0 0
        %3938 = vmatpush1.bf16.msra.mxu0 %v3882
        %3939 = vmatprep.subr.bf16.mxu0 0
        %3940 = vmatpush1.bf16.msra.mxu0 %v3883
        %3941 = vmatprep.subr.bf16.mxu0 0
        %3942 = vmatpush1.bf16.msra.mxu0 %v3884
        %3943 = vmatprep.subr.bf16.mxu0 0
        %3944 = vmatpush1.bf16.msra.mxu0 %v3885
        %3945 = vmatprep.subr.bf16.mxu0 0
        %3946 = vmatpush1.bf16.msra.mxu0 %v3886
        %3947 = vmatprep.subr.bf16.mxu0 0
        %3948 = vmatpush1.bf16.msra.mxu0 %v3887
        %3949 = vmatprep.subr.bf16.mxu0 0
        %3950 = vmatpush1.bf16.msra.mxu0 %v3888
        %3951 = vmatprep.subr.bf16.mxu0 0
        %3952 = vmatpush1.bf16.msra.mxu0 %v3889
        %3953 = vmatprep.subr.bf16.mxu0 0
        %3954 = vmatpush1.bf16.msra.mxu0 %v3890
        %3955 = vmatprep.mubr.bf16.mxu0 %v3408
        %3956 = vmatmul.mubr.bf16.gmra.mrb[0].mxu0 %v3306
        %v3957 = vpop.f32.mrb[0].mxu0
        %v3958 = vadd.f32 0.0, %v3957
        %v3959 = vpop.f32.mrb[0].mxu0
        %v3960 = vpop.f32.mrb[0].mxu0
        %v3961 = vadd.f32 0.0, %v3960
        %v3962 = vpop.f32.mrb[0].mxu0
        %3963 = vmatprep.mubr.bf16.mxu0 %v3420
        %3964 = vmatmul.mubr.bf16.gmra.mrb[0].mxu0 %v3307
        %v3965 = vpop.f32.mrb[0].mxu0
        %v3966 = vadd.f32 0.0, %v3965
        %v3967 = vpop.f32.mrb[0].mxu0
        %v3968 = vpop.f32.mrb[0].mxu0
        %v3969 = vadd.f32 0.0, %v3968
        %v3970 = vpop.f32.mrb[0].mxu0
        %3971 = vmatprep.mubr.bf16.mxu0 %v3432
        %3972 = vmatmul.mubr.bf16.gmra.mrb[0].mxu0 %v3308
        %v3973 = vpop.f32.mrb[0].mxu0
        %v3974 = vadd.f32 0.0, %v3973
        %v3975 = vpop.f32.mrb[0].mxu0
        %v3976 = vpop.f32.mrb[0].mxu0
        %v3977 = vadd.f32 0.0, %v3976
        %v3978 = vpop.f32.mrb[0].mxu0
        %3979 = vmatprep.mubr.bf16.mxu0 %v3444
        %3980 = vmatmul.mubr.bf16.gmra.mrb[0].mxu0 %v3309
        %v3981 = vpop.f32.mrb[0].mxu0
        %v3982 = vadd.f32 0.0, %v3981
        %v3983 = vpop.f32.mrb[0].mxu0
        %v3984 = vpop.f32.mrb[0].mxu0
        %v3985 = vadd.f32 0.0, %v3984
        %v3986 = vpop.f32.mrb[0].mxu0
        %3987 = vmatprep.mubr.bf16.mxu0 %v3456
        %3988 = vmatmul.mubr.bf16.gmra.mrb[0].mxu0 %v3310
        %v3989 = vpop.f32.mrb[0].mxu0
        %v3990 = vadd.f32 0.0, %v3989
        %v3991 = vpop.f32.mrb[0].mxu0
        %v3992 = vpop.f32.mrb[0].mxu0
        %v3993 = vadd.f32 0.0, %v3992
        %v3994 = vpop.f32.mrb[0].mxu0
        %3995 = vmatprep.mubr.bf16.mxu0 %v3468
        %3996 = vmatmul.mubr.bf16.gmra.mrb[0].mxu0 %v3311
        %v3997 = vpop.f32.mrb[0].mxu0
        %v3998 = vadd.f32 0.0, %v3997
        %v3999 = vpop.f32.mrb[0].mxu0
        %v4000 = vpop.f32.mrb[0].mxu0
        %v4001 = vadd.f32 0.0, %v4000
        %v4002 = vpop.f32.mrb[0].mxu0
        %4003 = vmatprep.mubr.bf16.mxu0 %v3480
        %4004 = vmatmul.mubr.bf16.gmra.mrb[0].mxu0 %v3312
        %v4005 = vpop.f32.mrb[0].mxu0
        %v4006 = vadd.f32 0.0, %v4005
        %v4007 = vpop.f32.mrb[0].mxu0
        %v4008 = vpop.f32.mrb[0].mxu0
        %v4009 = vadd.f32 0.0, %v4008
        %v4010 = vpop.f32.mrb[0].mxu0
        %4011 = vmatprep.mubr.bf16.mxu0 %v3492
        %4012 = vmatmul.mubr.bf16.gmra.mrb[0].mxu0 %v3313
        %v4013 = vpop.f32.mrb[0].mxu0
        %v4014 = vadd.f32 0.0, %v4013
        %v4015 = vpop.f32.mrb[0].mxu0
        %v4016 = vpop.f32.mrb[0].mxu0
        %v4017 = vadd.f32 0.0, %v4016
        %v4018 = vpop.f32.mrb[0].mxu0
        %4019 = vmatprep.mubr.bf16.mxu0 %v3504
        %4020 = vmatmul.mubr.bf16.gmra.mrb[0].mxu0 %v3314
        %v4021 = vpop.f32.mrb[0].mxu0
        %v4022 = vadd.f32 0.0, %v4021
        %v4023 = vpop.f32.mrb[0].mxu0
        %v4024 = vpop.f32.mrb[0].mxu0
        %v4025 = vadd.f32 0.0, %v4024
        %v4026 = vpop.f32.mrb[0].mxu0
        %4027 = vmatprep.mubr.bf16.mxu0 %v3516
        %4028 = vmatmul.mubr.bf16.gmra.mrb[0].mxu0 %v3315
        %v4029 = vpop.f32.mrb[0].mxu0
        %v4030 = vadd.f32 0.0, %v4029
        %v4031 = vpop.f32.mrb[0].mxu0
        %v4032 = vpop.f32.mrb[0].mxu0
        %v4033 = vadd.f32 0.0, %v4032
        %v4034 = vpop.f32.mrb[0].mxu0
        %4035 = vmatprep.mubr.bf16.mxu0 %v3528
        %4036 = vmatmul.mubr.bf16.gmra.mrb[0].mxu0 %v3316
        %v4037 = vpop.f32.mrb[0].mxu0
        %v4038 = vadd.f32 0.0, %v4037
        %v4039 = vpop.f32.mrb[0].mxu0
        %v4040 = vpop.f32.mrb[0].mxu0
        %v4041 = vadd.f32 0.0, %v4040
        %v4042 = vpop.f32.mrb[0].mxu0
        %4043 = vmatprep.mubr.bf16.mxu0 %v3540
        %4044 = vmatmul.mubr.bf16.gmra.mrb[0].mxu0 %v3317
        %v4045 = vpop.f32.mrb[0].mxu0
        %v4046 = vadd.f32 0.0, %v4045
        %v4047 = vpop.f32.mrb[0].mxu0
        %v4048 = vpop.f32.mrb[0].mxu0
        %v4049 = vadd.f32 0.0, %v4048
        %v4050 = vpop.f32.mrb[0].mxu0
        %4051 = vmatprep.mubr.bf16.mxu0 %v3552
        %4052 = vmatmul.mubr.bf16.gmra.mrb[0].mxu0 %v3318
        %v4053 = vpop.f32.mrb[0].mxu0
        %v4054 = vadd.f32 0.0, %v4053
        %v4055 = vpop.f32.mrb[0].mxu0
        %v4056 = vpop.f32.mrb[0].mxu0
        %v4057 = vadd.f32 0.0, %v4056
        %v4058 = vpop.f32.mrb[0].mxu0
        %4059 = vmatprep.mubr.bf16.mxu0 %v3564
        %4060 = vmatmul.mubr.bf16.gmra.mrb[0].mxu0 %v3319
        %v4061 = vpop.f32.mrb[0].mxu0
        %v4062 = vadd.f32 0.0, %v4061
        %v4063 = vpop.f32.mrb[0].mxu0
        %v4064 = vpop.f32.mrb[0].mxu0
        %v4065 = vadd.f32 0.0, %v4064
        %v4066 = vpop.f32.mrb[0].mxu0
        %4067 = vmatprep.mubr.bf16.mxu0 %v3576
        %4068 = vmatmul.mubr.bf16.gmra.mrb[0].mxu0 %v3320
        %v4069 = vpop.f32.mrb[0].mxu0
        %v4070 = vadd.f32 0.0, %v4069
        %v4071 = vpop.f32.mrb[0].mxu0
        %v4072 = vpop.f32.mrb[0].mxu0
        %v4073 = vadd.f32 0.0, %v4072
        %v4074 = vpop.f32.mrb[0].mxu0
        %4075 = vmatprep.mubr.bf16.mxu0 %v3725
        %4076 = vmatmul.mubr.bf16.gmra.mrb[0].mxu0 %v3709
        %v4077 = vpop.f32.mrb[0].mxu0
        %v4078 = vadd.f32 0.0, %v4077
        %v4079 = vpop.f32.mrb[0].mxu0
        %v4080 = vpop.f32.mrb[0].mxu0
        %v4081 = vadd.f32 0.0, %v4080
        %v4082 = vpop.f32.mrb[0].mxu0
        %4083 = vdwg.mxu0
        %4084 = vmatprep.subr.bf16.mxu0 0
        %4085 = vmatpush1.bf16.msra.mxu0 %v3891
        %4086 = vmatprep.subr.bf16.mxu0 0
        %4087 = vmatpush1.bf16.msra.mxu0 %v3892
        %4088 = vmatprep.subr.bf16.mxu0 0
        %4089 = vmatpush1.bf16.msra.mxu0 %v3893
        %4090 = vmatprep.subr.bf16.mxu0 0
        %4091 = vmatpush1.bf16.msra.mxu0 %v3894
        %4092 = vmatprep.subr.bf16.mxu0 0
        %4093 = vmatpush1.bf16.msra.mxu0 %v3895
        %4094 = vmatprep.subr.bf16.mxu0 0
        %4095 = vmatpush1.bf16.msra.mxu0 %v3896
        %4096 = vmatprep.subr.bf16.mxu0 0
        %4097 = vmatpush1.bf16.msra.mxu0 %v3897
        %4098 = vmatprep.subr.bf16.mxu0 0
        %4099 = vmatpush1.bf16.msra.mxu0 %v3898
        %4100 = vmatprep.subr.bf16.mxu0 0
        %4101 = vmatpush1.bf16.msra.mxu0 0
        %4102 = vmatprep.subr.bf16.mxu0 0
        %4103 = vmatpush1.bf16.msra.mxu0 0
        %4104 = vmatprep.subr.bf16.mxu0 0
        %4105 = vmatpush1.bf16.msra.mxu0 0
        %4106 = vmatprep.subr.bf16.mxu0 0
        %4107 = vmatpush1.bf16.msra.mxu0 0
        %4108 = vmatprep.subr.bf16.mxu0 0
        %4109 = vmatpush1.bf16.msra.mxu0 0
        %4110 = vmatprep.subr.bf16.mxu0 0
        %4111 = vmatpush1.bf16.msra.mxu0 0
        %4112 = vmatprep.subr.bf16.mxu0 0
        %4113 = vmatpush1.bf16.msra.mxu0 0
        %4114 = vmatprep.subr.bf16.mxu0 0
        %4115 = vmatpush1.bf16.msra.mxu0 0
        %4116 = vmatprep.mubr.bf16.mxu0 0
        %4117 = vmatmul.mubr.bf16.gmra.mrb[0].mxu0 %v3598
        %v4118 = vpop.f32.mrb[0].mxu0
        %v4119 = vadd.f32 %v3958, %v4118
        %v4120 = vpop.f32.mrb[0].mxu0
        %v4121 = vpop.f32.mrb[0].mxu0
        %v4122 = vadd.f32 %v3961, %v4121
        %v4123 = vpop.f32.mrb[0].mxu0
        %4124 = vmatprep.mubr.bf16.mxu0 0
        %4125 = vmatmul.mubr.bf16.gmra.mrb[0].mxu0 %v3601
        %v4126 = vpop.f32.mrb[0].mxu0
        %v4127 = vadd.f32 %v3966, %v4126
        %v4128 = vpop.f32.mrb[0].mxu0
        %v4129 = vpop.f32.mrb[0].mxu0
        %v4130 = vadd.f32 %v3969, %v4129
        %v4131 = vpop.f32.mrb[0].mxu0
        %4132 = vmatprep.mubr.bf16.mxu0 0
        %4133 = vmatmul.mubr.bf16.gmra.mrb[0].mxu0 %v3604
        %v4134 = vpop.f32.mrb[0].mxu0
        %v4135 = vadd.f32 %v3974, %v4134
        %v4136 = vpop.f32.mrb[0].mxu0
        %v4137 = vpop.f32.mrb[0].mxu0
        %v4138 = vadd.f32 %v3977, %v4137
        %v4139 = vpop.f32.mrb[0].mxu0
        %4140 = vmatprep.mubr.bf16.mxu0 0
        %4141 = vmatmul.mubr.bf16.gmra.mrb[0].mxu0 %v3607
        %v4142 = vpop.f32.mrb[0].mxu0
        %v4143 = vadd.f32 %v3982, %v4142
        %v4144 = vpop.f32.mrb[0].mxu0
        %v4145 = vpop.f32.mrb[0].mxu0
        %v4146 = vadd.f32 %v3985, %v4145
        %v4147 = vpop.f32.mrb[0].mxu0
        %4148 = vmatprep.mubr.bf16.mxu0 0
        %4149 = vmatmul.mubr.bf16.gmra.mrb[0].mxu0 %v3610
        %v4150 = vpop.f32.mrb[0].mxu0
        %v4151 = vadd.f32 %v3990, %v4150
        %v4152 = vpop.f32.mrb[0].mxu0
        %v4153 = vpop.f32.mrb[0].mxu0
        %v4154 = vadd.f32 %v3993, %v4153
        %v4155 = vpop.f32.mrb[0].mxu0
        %4156 = vmatprep.mubr.bf16.mxu0 0
        %4157 = vmatmul.mubr.bf16.gmra.mrb[0].mxu0 %v3613
        %v4158 = vpop.f32.mrb[0].mxu0
        %v4159 = vadd.f32 %v3998, %v4158
        %v4160 = vpop.f32.mrb[0].mxu0
        %v4161 = vpop.f32.mrb[0].mxu0
        %v4162 = vadd.f32 %v4001, %v4161
        %v4163 = vpop.f32.mrb[0].mxu0
        %4164 = vmatprep.mubr.bf16.mxu0 0
        %4165 = vmatmul.mubr.bf16.gmra.mrb[0].mxu0 %v3616
        %v4166 = vpop.f32.mrb[0].mxu0
        %v4167 = vadd.f32 %v4006, %v4166
        %v4168 = vpop.f32.mrb[0].mxu0
        %v4169 = vpop.f32.mrb[0].mxu0
        %v4170 = vadd.f32 %v4009, %v4169
        %v4171 = vpop.f32.mrb[0].mxu0
        %4172 = vmatprep.mubr.bf16.mxu0 0
        %4173 = vmatmul.mubr.bf16.gmra.mrb[0].mxu0 %v3619
        %v4174 = vpop.f32.mrb[0].mxu0
        %v4175 = vadd.f32 %v4014, %v4174
        %v4176 = vpop.f32.mrb[0].mxu0
        %v4177 = vpop.f32.mrb[0].mxu0
        %v4178 = vadd.f32 %v4017, %v4177
        %v4179 = vpop.f32.mrb[0].mxu0
        %4180 = vmatprep.mubr.bf16.mxu0 0
        %4181 = vmatmul.mubr.bf16.gmra.mrb[0].mxu0 %v3622
        %v4182 = vpop.f32.mrb[0].mxu0
        %v4183 = vadd.f32 %v4022, %v4182
        %v4184 = vpop.f32.mrb[0].mxu0
        %v4185 = vpop.f32.mrb[0].mxu0
        %v4186 = vadd.f32 %v4025, %v4185
        %v4187 = vpop.f32.mrb[0].mxu0
        %4188 = vmatprep.mubr.bf16.mxu0 0
        %4189 = vmatmul.mubr.bf16.gmra.mrb[0].mxu0 %v3625
        %v4190 = vpop.f32.mrb[0].mxu0
        %v4191 = vadd.f32 %v4030, %v4190
        %v4192 = vpop.f32.mrb[0].mxu0
        %v4193 = vpop.f32.mrb[0].mxu0
        %v4194 = vadd.f32 %v4033, %v4193
        %v4195 = vpop.f32.mrb[0].mxu0
        %4196 = vmatprep.mubr.bf16.mxu0 0
        %4197 = vmatmul.mubr.bf16.gmra.mrb[0].mxu0 %v3628
        %v4198 = vpop.f32.mrb[0].mxu0
        %v4199 = vadd.f32 %v4038, %v4198
        %v4200 = vpop.f32.mrb[0].mxu0
        %v4201 = vpop.f32.mrb[0].mxu0
        %v4202 = vadd.f32 %v4041, %v4201
        %v4203 = vpop.f32.mrb[0].mxu0
        %4204 = vmatprep.mubr.bf16.mxu0 0
        %4205 = vmatmul.mubr.bf16.gmra.mrb[0].mxu0 %v3631
        %v4206 = vpop.f32.mrb[0].mxu0
        %v4207 = vadd.f32 %v4046, %v4206
        %v4208 = vpop.f32.mrb[0].mxu0
        %v4209 = vpop.f32.mrb[0].mxu0
        %v4210 = vadd.f32 %v4049, %v4209
        %v4211 = vpop.f32.mrb[0].mxu0
        %4212 = vmatprep.mubr.bf16.mxu0 0
        %4213 = vmatmul.mubr.bf16.gmra.mrb[0].mxu0 %v3634
        %v4214 = vpop.f32.mrb[0].mxu0
        %v4215 = vadd.f32 %v4054, %v4214
        %v4216 = vpop.f32.mrb[0].mxu0
        %v4217 = vpop.f32.mrb[0].mxu0
        %v4218 = vadd.f32 %v4057, %v4217
        %v4219 = vpop.f32.mrb[0].mxu0
        %4220 = vmatprep.mubr.bf16.mxu0 0
        %4221 = vmatmul.mubr.bf16.gmra.mrb[0].mxu0 %v3637
        %v4222 = vpop.f32.mrb[0].mxu0
        %v4223 = vadd.f32 %v4062, %v4222
        %v4224 = vpop.f32.mrb[0].mxu0
        %v4225 = vpop.f32.mrb[0].mxu0
        %v4226 = vadd.f32 %v4065, %v4225
        %v4227 = vpop.f32.mrb[0].mxu0
        %4228 = vmatprep.mubr.bf16.mxu0 0
        %4229 = vmatmul.mubr.bf16.gmra.mrb[0].mxu0 %v3640
        %v4230 = vpop.f32.mrb[0].mxu0
        %v4231 = vadd.f32 %v4070, %v4230
        %v4232 = vpop.f32.mrb[0].mxu0
        %v4233 = vpop.f32.mrb[0].mxu0
        %v4234 = vadd.f32 %v4073, %v4233
        %v4235 = vpop.f32.mrb[0].mxu0
        %4236 = vmatprep.mubr.bf16.mxu0 0
        %4237 = vmatmul.mubr.bf16.gmra.mrb[0].mxu0 %v3729
        %v4238 = vpop.f32.mrb[0].mxu0
        %v4239 = vadd.f32 %v4078, %v4238
        %v4240 = vpop.f32.mrb[0].mxu0
        %v4241 = vpop.f32.mrb[0].mxu0
        %v4242 = vadd.f32 %v4081, %v4241
        %v4243 = vpop.f32.mrb[0].mxu0
        %4244 = vdwg.mxu0
        %v4293 = vunpack.c.l.b16 %v3657
        %v4294 = vunpack.c.l.b16 %v3658
        %v4295 = vunpack.c.l.b16 %v3659
        %v4296 = vunpack.c.l.b16 %v3660
        %v4297 = vunpack.c.l.b16 %v3661
        %v4298 = vunpack.c.l.b16 %v3662
        %v4299 = vunpack.c.l.b16 %v3663
        %v4300 = vunpack.c.l.b16 %v3664
        %v4301 = vunpack.c.l.b16 %v3665
        %v4302 = vunpack.c.l.b16 %v3666
        %v4303 = vunpack.c.l.b16 %v3667
        %v4304 = vunpack.c.l.b16 %v3668
        %v4305 = vunpack.c.l.b16 %v3669
        %v4306 = vunpack.c.l.b16 %v3670
        %v4307 = vunpack.c.l.b16 %v3671
        %v4308 = vunpack.c.l.b16 %v3672
        %v4309 = vunpack.c.l.b16 %v3673
        %v4310 = vunpack.c.l.b16 %v3674
        %v4311 = vunpack.c.l.b16 %v3675
        %v4312 = vunpack.c.l.b16 %v3676
        %v4313 = vunpack.c.l.b16 %v3677
        %v4314 = vunpack.c.l.b16 %v3678
        %v4315 = vunpack.c.l.b16 %v3679
        %v4316 = vunpack.c.l.b16 %v3680
        %v4317 = vunpack.c.l.b16 %v3681
        %v4318 = vunpack.c.l.b16 %v3682
        %v4319 = vunpack.c.l.b16 %v3683
        %v4320 = vunpack.c.l.b16 %v3684
        %v4321 = vunpack.c.l.b16 %v3685
        %v4322 = vunpack.c.l.b16 %v3686
        %v4323 = vunpack.c.l.b16 %v3687
        %v4324 = vunpack.c.l.b16 %v3688
        %v4325 = vunpack.c.l.b16 %v3689
        %v4326 = vunpack.c.l.b16 %v3690
        %v4327 = vunpack.c.l.b16 %v3691
        %v4328 = vunpack.c.l.b16 %v3692
        %v4329 = vunpack.c.l.b16 %v3693
        %v4330 = vunpack.c.l.b16 %v3694
        %v4331 = vunpack.c.l.b16 %v3695
        %v4332 = vunpack.c.l.b16 %v3696
        %v4333 = vunpack.c.l.b16 %v3697
        %v4334 = vunpack.c.l.b16 %v3698
        %v4335 = vunpack.c.l.b16 %v3699
        %v4336 = vunpack.c.l.b16 %v3700
        %v4337 = vunpack.c.l.b16 %v3701
        %v4338 = vunpack.c.l.b16 %v3702
        %v4339 = vunpack.c.l.b16 %v3703
        %v4340 = vunpack.c.l.b16 %v3704
        %v4341 = vpack.c.b16 %v4294, %v4293
        %v4342 = vpack.c.b16 %v4296, %v4295
        %v4343 = vpack.c.b16 %v4298, %v4297
        %v4344 = vpack.c.b16 %v4300, %v4299
        %v4345 = vpack.c.b16 %v4302, %v4301
        %v4346 = vpack.c.b16 %v4304, %v4303
        %v4347 = vpack.c.b16 %v4306, %v4305
        %v4348 = vpack.c.b16 %v4308, %v4307
        %v4349 = vpack.c.b16 %v4310, %v4309
        %v4350 = vpack.c.b16 %v4312, %v4311
        %v4351 = vpack.c.b16 %v4314, %v4313
        %v4352 = vpack.c.b16 %v4316, %v4315
        %v4353 = vpack.c.b16 %v4318, %v4317
        %v4354 = vpack.c.b16 %v4320, %v4319
        %v4355 = vpack.c.b16 %v4322, %v4321
        %v4356 = vpack.c.b16 %v4324, %v4323
        %v4357 = vpack.c.b16 %v4326, %v4325
        %v4358 = vpack.c.b16 %v4328, %v4327
        %v4359 = vpack.c.b16 %v4330, %v4329
        %v4360 = vpack.c.b16 %v4332, %v4331
        %v4361 = vpack.c.b16 %v4334, %v4333
        %v4362 = vpack.c.b16 %v4336, %v4335
        %v4363 = vpack.c.b16 %v4338, %v4337
        %v4364 = vpack.c.b16 %v4340, %v4339
        %4389 = vmatprep.subr.bf16.mxu0 0
        %4390 = vmatpush1.bf16.msra.mxu0 %v4341
        %4391 = vmatprep.subr.bf16.mxu0 0
        %4392 = vmatpush1.bf16.msra.mxu0 %v4342
        %4393 = vmatprep.subr.bf16.mxu0 0
        %4394 = vmatpush1.bf16.msra.mxu0 %v4343
        %4395 = vmatprep.subr.bf16.mxu0 0
        %4396 = vmatpush1.bf16.msra.mxu0 %v4344
        %4397 = vmatprep.subr.bf16.mxu0 0
        %4398 = vmatpush1.bf16.msra.mxu0 %v4345
        %4399 = vmatprep.subr.bf16.mxu0 0
        %4400 = vmatpush1.bf16.msra.mxu0 %v4346
        %4401 = vmatprep.subr.bf16.mxu0 0
        %4402 = vmatpush1.bf16.msra.mxu0 %v4347
        %4403 = vmatprep.subr.bf16.mxu0 0
        %4404 = vmatpush1.bf16.msra.mxu0 %v4348
        %4405 = vmatprep.subr.bf16.mxu0 0
        %4406 = vmatpush1.bf16.msra.mxu0 %v4349
        %4407 = vmatprep.subr.bf16.mxu0 0
        %4408 = vmatpush1.bf16.msra.mxu0 %v4350
        %4409 = vmatprep.subr.bf16.mxu0 0
        %4410 = vmatpush1.bf16.msra.mxu0 %v4351
        %4411 = vmatprep.subr.bf16.mxu0 0
        %4412 = vmatpush1.bf16.msra.mxu0 %v4352
        %4413 = vmatprep.subr.bf16.mxu0 0
        %4414 = vmatpush1.bf16.msra.mxu0 %v4353
        %4415 = vmatprep.subr.bf16.mxu0 0
        %4416 = vmatpush1.bf16.msra.mxu0 %v4354
        %4417 = vmatprep.subr.bf16.mxu0 0
        %4418 = vmatpush1.bf16.msra.mxu0 %v4355
        %4419 = vmatprep.subr.bf16.mxu0 0
        %4420 = vmatpush1.bf16.msra.mxu0 %v4356
        %4421 = vmatprep.mubr.bf16.mxu0 %v3396
        %4422 = vmatmul.mubr.bf16.gmra.mrb[0].mxu0 %v3305
        %v4423 = vpop.f32.mrb[0].mxu0
        %v4424 = vadd.f32 %v4119, %v4423
        %v4425 = vpop.f32.mrb[0].mxu0
        %v4426 = vpop.f32.mrb[0].mxu0
        %v4427 = vadd.f32 %v4122, %v4426
        %v4428 = vpop.f32.mrb[0].mxu0
        %4429 = vmatprep.mubr.bf16.mxu0 %v3408
        %4430 = vmatmul.mubr.bf16.gmra.mrb[0].mxu0 %v3306
        %v4431 = vpop.f32.mrb[0].mxu0
        %v4432 = vadd.f32 %v4127, %v4431
        %v4433 = vpop.f32.mrb[0].mxu0
        %v4434 = vpop.f32.mrb[0].mxu0
        %v4435 = vadd.f32 %v4130, %v4434
        %v4436 = vpop.f32.mrb[0].mxu0
        %4437 = vmatprep.mubr.bf16.mxu0 %v3420
        %4438 = vmatmul.mubr.bf16.gmra.mrb[0].mxu0 %v3307
        %v4439 = vpop.f32.mrb[0].mxu0
        %v4440 = vadd.f32 %v4135, %v4439
        %v4441 = vpop.f32.mrb[0].mxu0
        %v4442 = vpop.f32.mrb[0].mxu0
        %v4443 = vadd.f32 %v4138, %v4442
        %v4444 = vpop.f32.mrb[0].mxu0
        %4445 = vmatprep.mubr.bf16.mxu0 %v3432
        %4446 = vmatmul.mubr.bf16.gmra.mrb[0].mxu0 %v3308
        %v4447 = vpop.f32.mrb[0].mxu0
        %v4448 = vadd.f32 %v4143, %v4447
        %v4449 = vpop.f32.mrb[0].mxu0
        %v4450 = vpop.f32.mrb[0].mxu0
        %v4451 = vadd.f32 %v4146, %v4450
        %v4452 = vpop.f32.mrb[0].mxu0
        %4453 = vmatprep.mubr.bf16.mxu0 %v3444
        %4454 = vmatmul.mubr.bf16.gmra.mrb[0].mxu0 %v3309
        %v4455 = vpop.f32.mrb[0].mxu0
        %v4456 = vadd.f32 %v4151, %v4455
        %v4457 = vpop.f32.mrb[0].mxu0
        %v4458 = vpop.f32.mrb[0].mxu0
        %v4459 = vadd.f32 %v4154, %v4458
        %v4460 = vpop.f32.mrb[0].mxu0
        %4461 = vmatprep.mubr.bf16.mxu0 %v3456
        %4462 = vmatmul.mubr.bf16.gmra.mrb[0].mxu0 %v3310
        %v4463 = vpop.f32.mrb[0].mxu0
        %v4464 = vadd.f32 %v4159, %v4463
        %v4465 = vpop.f32.mrb[0].mxu0
        %v4466 = vpop.f32.mrb[0].mxu0
        %v4467 = vadd.f32 %v4162, %v4466
        %v4468 = vpop.f32.mrb[0].mxu0
        %4469 = vmatprep.mubr.bf16.mxu0 %v3468
        %4470 = vmatmul.mubr.bf16.gmra.mrb[0].mxu0 %v3311
        %v4471 = vpop.f32.mrb[0].mxu0
        %v4472 = vadd.f32 %v4167, %v4471
        %v4473 = vpop.f32.mrb[0].mxu0
        %v4474 = vpop.f32.mrb[0].mxu0
        %v4475 = vadd.f32 %v4170, %v4474
        %v4476 = vpop.f32.mrb[0].mxu0
        %4477 = vmatprep.mubr.bf16.mxu0 %v3480
        %4478 = vmatmul.mubr.bf16.gmra.mrb[0].mxu0 %v3312
        %v4479 = vpop.f32.mrb[0].mxu0
        %v4480 = vadd.f32 %v4175, %v4479
        %v4481 = vpop.f32.mrb[0].mxu0
        %v4482 = vpop.f32.mrb[0].mxu0
        %v4483 = vadd.f32 %v4178, %v4482
        %v4484 = vpop.f32.mrb[0].mxu0
        %4485 = vmatprep.mubr.bf16.mxu0 %v3492
        %4486 = vmatmul.mubr.bf16.gmra.mrb[0].mxu0 %v3313
        %v4487 = vpop.f32.mrb[0].mxu0
        %v4488 = vadd.f32 %v4183, %v4487
        %v4489 = vpop.f32.mrb[0].mxu0
        %v4490 = vpop.f32.mrb[0].mxu0
        %v4491 = vadd.f32 %v4186, %v4490
        %v4492 = vpop.f32.mrb[0].mxu0
        %4493 = vmatprep.mubr.bf16.mxu0 %v3504
        %4494 = vmatmul.mubr.bf16.gmra.mrb[0].mxu0 %v3314
        %v4495 = vpop.f32.mrb[0].mxu0
        %v4496 = vadd.f32 %v4191, %v4495
        %v4497 = vpop.f32.mrb[0].mxu0
        %v4498 = vpop.f32.mrb[0].mxu0
        %v4499 = vadd.f32 %v4194, %v4498
        %v4500 = vpop.f32.mrb[0].mxu0
        %4501 = vmatprep.mubr.bf16.mxu0 %v3516
        %4502 = vmatmul.mubr.bf16.gmra.mrb[0].mxu0 %v3315
        %v4503 = vpop.f32.mrb[0].mxu0
        %v4504 = vadd.f32 %v4199, %v4503
        %v4505 = vpop.f32.mrb[0].mxu0
        %v4506 = vpop.f32.mrb[0].mxu0
        %v4507 = vadd.f32 %v4202, %v4506
        %v4508 = vpop.f32.mrb[0].mxu0
        %4509 = vmatprep.mubr.bf16.mxu0 %v3528
        %4510 = vmatmul.mubr.bf16.gmra.mrb[0].mxu0 %v3316
        %v4511 = vpop.f32.mrb[0].mxu0
        %v4512 = vadd.f32 %v4207, %v4511
        %v4513 = vpop.f32.mrb[0].mxu0
        %v4514 = vpop.f32.mrb[0].mxu0
        %v4515 = vadd.f32 %v4210, %v4514
        %v4516 = vpop.f32.mrb[0].mxu0
        %4517 = vmatprep.mubr.bf16.mxu0 %v3540
        %4518 = vmatmul.mubr.bf16.gmra.mrb[0].mxu0 %v3317
        %v4519 = vpop.f32.mrb[0].mxu0
        %v4520 = vadd.f32 %v4215, %v4519
        %v4521 = vpop.f32.mrb[0].mxu0
        %v4522 = vpop.f32.mrb[0].mxu0
        %v4523 = vadd.f32 %v4218, %v4522
        %v4524 = vpop.f32.mrb[0].mxu0
        %4525 = vmatprep.mubr.bf16.mxu0 %v3552
        %4526 = vmatmul.mubr.bf16.gmra.mrb[0].mxu0 %v3318
        %v4527 = vpop.f32.mrb[0].mxu0
        %v4528 = vadd.f32 %v4223, %v4527
        %v4529 = vpop.f32.mrb[0].mxu0
        %v4530 = vpop.f32.mrb[0].mxu0
        %v4531 = vadd.f32 %v4226, %v4530
        %v4532 = vpop.f32.mrb[0].mxu0
        %4533 = vmatprep.mubr.bf16.mxu0 %v3564
        %4534 = vmatmul.mubr.bf16.gmra.mrb[0].mxu0 %v3319
        %v4535 = vpop.f32.mrb[0].mxu0
        %v4536 = vadd.f32 %v4231, %v4535
        %v4537 = vpop.f32.mrb[0].mxu0
        %v4538 = vpop.f32.mrb[0].mxu0
        %v4539 = vadd.f32 %v4234, %v4538
        %v4540 = vpop.f32.mrb[0].mxu0
        %4541 = vmatprep.mubr.bf16.mxu0 %v3576
        %4542 = vmatmul.mubr.bf16.gmra.mrb[0].mxu0 %v3320
        %v4543 = vpop.f32.mrb[0].mxu0
        %v4544 = vadd.f32 %v4239, %v4543
        %v4545 = vpop.f32.mrb[0].mxu0
        %v4546 = vpop.f32.mrb[0].mxu0
        %v4547 = vadd.f32 %v4242, %v4546
        %v4548 = vpop.f32.mrb[0].mxu0
        %4549 = vdwg.mxu0
        %4550 = vmatprep.subr.bf16.mxu0 0
        %4551 = vmatpush1.bf16.msra.mxu0 %v4357
        %4552 = vmatprep.subr.bf16.mxu0 0
        %4553 = vmatpush1.bf16.msra.mxu0 %v4358
        %4554 = vmatprep.subr.bf16.mxu0 0
        %4555 = vmatpush1.bf16.msra.mxu0 %v4359
        %4556 = vmatprep.subr.bf16.mxu0 0
        %4557 = vmatpush1.bf16.msra.mxu0 %v4360
        %4558 = vmatprep.subr.bf16.mxu0 0
        %4559 = vmatpush1.bf16.msra.mxu0 %v4361
        %4560 = vmatprep.subr.bf16.mxu0 0
        %4561 = vmatpush1.bf16.msra.mxu0 %v4362
        %4562 = vmatprep.subr.bf16.mxu0 0
        %4563 = vmatpush1.bf16.msra.mxu0 %v4363
        %4564 = vmatprep.subr.bf16.mxu0 0
        %4565 = vmatpush1.bf16.msra.mxu0 %v4364
        %4566 = vmatprep.subr.bf16.mxu0 0
        %4567 = vmatpush1.bf16.msra.mxu0 0
        %4568 = vmatprep.subr.bf16.mxu0 0
        %4569 = vmatpush1.bf16.msra.mxu0 0
        %4570 = vmatprep.subr.bf16.mxu0 0
        %4571 = vmatpush1.bf16.msra.mxu0 0
        %4572 = vmatprep.subr.bf16.mxu0 0
        %4573 = vmatpush1.bf16.msra.mxu0 0
        %4574 = vmatprep.subr.bf16.mxu0 0
        %4575 = vmatpush1.bf16.msra.mxu0 0
        %4576 = vmatprep.subr.bf16.mxu0 0
        %4577 = vmatpush1.bf16.msra.mxu0 0
        %4578 = vmatprep.subr.bf16.mxu0 0
        %4579 = vmatpush1.bf16.msra.mxu0 0
        %4580 = vmatprep.subr.bf16.mxu0 0
        %4581 = vmatpush1.bf16.msra.mxu0 0
        %4582 = vmatprep.mubr.bf16.mxu0 0
        %4583 = vmatmul.mubr.bf16.gmra.mrb[0].mxu0 %v3595
        %v4584 = vpop.f32.mrb[0].mxu0
        %v4585 = vadd.f32 %v4424, %v4584
        %v4586 = vpop.f32.mrb[0].mxu0
        %v4587 = vpop.f32.mrb[0].mxu0
        %v4588 = vadd.f32 %v4427, %v4587
        %v4589 = vpop.f32.mrb[0].mxu0
        %4590 = vmatprep.mubr.bf16.mxu0 0
        %4591 = vmatmul.mubr.bf16.gmra.mrb[0].mxu0 %v3598
        %v4592 = vpop.f32.mrb[0].mxu0
        %v4593 = vadd.f32 %v4432, %v4592
        %v4594 = vpop.f32.mrb[0].mxu0
        %v4595 = vpop.f32.mrb[0].mxu0
        %v4596 = vadd.f32 %v4435, %v4595
        %v4597 = vpop.f32.mrb[0].mxu0
        %4598 = vmatprep.mubr.bf16.mxu0 0
        %4599 = vmatmul.mubr.bf16.gmra.mrb[0].mxu0 %v3601
        %v4600 = vpop.f32.mrb[0].mxu0
        %v4601 = vadd.f32 %v4440, %v4600
        %v4602 = vpop.f32.mrb[0].mxu0
        %v4603 = vpop.f32.mrb[0].mxu0
        %v4604 = vadd.f32 %v4443, %v4603
        %v4605 = vpop.f32.mrb[0].mxu0
        %4606 = vmatprep.mubr.bf16.mxu0 0
        %4607 = vmatmul.mubr.bf16.gmra.mrb[0].mxu0 %v3604
        %v4608 = vpop.f32.mrb[0].mxu0
        %v4609 = vadd.f32 %v4448, %v4608
        %v4610 = vpop.f32.mrb[0].mxu0
        %v4611 = vpop.f32.mrb[0].mxu0
        %v4612 = vadd.f32 %v4451, %v4611
        %v4613 = vpop.f32.mrb[0].mxu0
        %4614 = vmatprep.mubr.bf16.mxu0 0
        %4615 = vmatmul.mubr.bf16.gmra.mrb[0].mxu0 %v3607
        %v4616 = vpop.f32.mrb[0].mxu0
        %v4617 = vadd.f32 %v4456, %v4616
        %v4618 = vpop.f32.mrb[0].mxu0
        %v4619 = vpop.f32.mrb[0].mxu0
        %v4620 = vadd.f32 %v4459, %v4619
        %v4621 = vpop.f32.mrb[0].mxu0
        %4622 = vmatprep.mubr.bf16.mxu0 0
        %4623 = vmatmul.mubr.bf16.gmra.mrb[0].mxu0 %v3610
        %v4624 = vpop.f32.mrb[0].mxu0
        %v4625 = vadd.f32 %v4464, %v4624
        %v4626 = vpop.f32.mrb[0].mxu0
        %v4627 = vpop.f32.mrb[0].mxu0
        %v4628 = vadd.f32 %v4467, %v4627
        %v4629 = vpop.f32.mrb[0].mxu0
        %4630 = vmatprep.mubr.bf16.mxu0 0
        %4631 = vmatmul.mubr.bf16.gmra.mrb[0].mxu0 %v3613
        %v4632 = vpop.f32.mrb[0].mxu0
        %v4633 = vadd.f32 %v4472, %v4632
        %v4634 = vpop.f32.mrb[0].mxu0
        %v4635 = vpop.f32.mrb[0].mxu0
        %v4636 = vadd.f32 %v4475, %v4635
        %v4637 = vpop.f32.mrb[0].mxu0
        %4638 = vmatprep.mubr.bf16.mxu0 0
        %4639 = vmatmul.mubr.bf16.gmra.mrb[0].mxu0 %v3616
        %v4640 = vpop.f32.mrb[0].mxu0
        %v4641 = vadd.f32 %v4480, %v4640
        %v4642 = vpop.f32.mrb[0].mxu0
        %v4643 = vpop.f32.mrb[0].mxu0
        %v4644 = vadd.f32 %v4483, %v4643
        %v4645 = vpop.f32.mrb[0].mxu0
        %4646 = vmatprep.mubr.bf16.mxu0 0
        %4647 = vmatmul.mubr.bf16.gmra.mrb[0].mxu0 %v3619
        %v4648 = vpop.f32.mrb[0].mxu0
        %v4649 = vadd.f32 %v4488, %v4648
        %v4650 = vpop.f32.mrb[0].mxu0
        %v4651 = vpop.f32.mrb[0].mxu0
        %v4652 = vadd.f32 %v4491, %v4651
        %v4653 = vpop.f32.mrb[0].mxu0
        %4654 = vmatprep.mubr.bf16.mxu0 0
        %4655 = vmatmul.mubr.bf16.gmra.mrb[0].mxu0 %v3622
        %v4656 = vpop.f32.mrb[0].mxu0
        %v4657 = vadd.f32 %v4496, %v4656
        %v4658 = vpop.f32.mrb[0].mxu0
        %v4659 = vpop.f32.mrb[0].mxu0
        %v4660 = vadd.f32 %v4499, %v4659
        %v4661 = vpop.f32.mrb[0].mxu0
        %4662 = vmatprep.mubr.bf16.mxu0 0
        %4663 = vmatmul.mubr.bf16.gmra.mrb[0].mxu0 %v3625
        %v4664 = vpop.f32.mrb[0].mxu0
        %v4665 = vadd.f32 %v4504, %v4664
        %v4666 = vpop.f32.mrb[0].mxu0
        %v4667 = vpop.f32.mrb[0].mxu0
        %v4668 = vadd.f32 %v4507, %v4667
        %v4669 = vpop.f32.mrb[0].mxu0
        %4670 = vmatprep.mubr.bf16.mxu0 0
        %4671 = vmatmul.mubr.bf16.gmra.mrb[0].mxu0 %v3628
        %v4672 = vpop.f32.mrb[0].mxu0
        %v4673 = vadd.f32 %v4512, %v4672
        %v4674 = vpop.f32.mrb[0].mxu0
        %v4675 = vpop.f32.mrb[0].mxu0
        %v4676 = vadd.f32 %v4515, %v4675
        %v4677 = vpop.f32.mrb[0].mxu0
        %4678 = vmatprep.mubr.bf16.mxu0 0
        %4679 = vmatmul.mubr.bf16.gmra.mrb[0].mxu0 %v3631
        %v4680 = vpop.f32.mrb[0].mxu0
        %v4681 = vadd.f32 %v4520, %v4680
        %v4682 = vpop.f32.mrb[0].mxu0
        %v4683 = vpop.f32.mrb[0].mxu0
        %v4684 = vadd.f32 %v4523, %v4683
        %v4685 = vpop.f32.mrb[0].mxu0
        %4686 = vmatprep.mubr.bf16.mxu0 0
        %4687 = vmatmul.mubr.bf16.gmra.mrb[0].mxu0 %v3634
        %v4688 = vpop.f32.mrb[0].mxu0
        %v4689 = vadd.f32 %v4528, %v4688
        %v4690 = vpop.f32.mrb[0].mxu0
        %v4691 = vpop.f32.mrb[0].mxu0
        %v4692 = vadd.f32 %v4531, %v4691
        %v4693 = vpop.f32.mrb[0].mxu0
        %4694 = vmatprep.mubr.bf16.mxu0 0
        %4695 = vmatmul.mubr.bf16.gmra.mrb[0].mxu0 %v3637
        %v4696 = vpop.f32.mrb[0].mxu0
        %v4697 = vadd.f32 %v4536, %v4696
        %v4698 = vpop.f32.mrb[0].mxu0
        %v4699 = vpop.f32.mrb[0].mxu0
        %v4700 = vadd.f32 %v4539, %v4699
        %v4701 = vpop.f32.mrb[0].mxu0
        %4702 = vmatprep.mubr.bf16.mxu0 0
        %4703 = vmatmul.mubr.bf16.gmra.mrb[0].mxu0 %v3640
        %v4704 = vpop.f32.mrb[0].mxu0
        %v4705 = vadd.f32 %v4544, %v4704
        %v4706 = vpop.f32.mrb[0].mxu0
        %v4707 = vpop.f32.mrb[0].mxu0
        %v4708 = vadd.f32 %v4547, %v4707
        %v4709 = vpop.f32.mrb[0].mxu0
        %4710 = vdwg.mxu0
        %v4713 = vunpack.c.l.b16 %v3238
        %v4714 = vunpack.c.l.b16 %v3239
        %v4715 = vpack.c.b16 %v4714, %v4713
        %v4718 = vunpack.c.l.b16 %v3240
        %v4719 = vpack.c.b16 %v4718, %v4718
        %v4721 = vshrl.u32 %v4715, 16
        %v4723 = vshll.u32 %v4715, 16
        %v4725 = vrot.slane %v4723, 1
        %v4726 = vor.u32 %v4721, %v4725
        %v4728 = vshll.u32 %v4719, 16
        %v4730 = vrot.slane %v4728, 1
        %v4731 = vsel %vm563, %v4726, %v4730
        %v4733 = vrot.slane %v4715, 1
        %v4734 = vrot.slane %v4719, 1
        %v4735 = vsel %vm772, %v4733, %v4734
        %v4737 = vld [vmem:[#allocation11 + $0x180] sm:$0xf]
        %v4738 = vld [vmem:[#allocation11 + $0x184] sm:$0xf]
        %v4739 = vld [vmem:[#allocation11 + $0x188] sm:$0xf]
        %v4740 = vld [vmem:[#allocation11 + $0x18c] sm:$0xf]
        %v4741 = vld [vmem:[#allocation11 + $0x190] sm:$0xf]
        %v4742 = vld [vmem:[#allocation11 + $0x194] sm:$0xf]
        %v4743 = vld [vmem:[#allocation11 + $0x198] sm:$0xf]
        %v4744 = vld [vmem:[#allocation11 + $0x19c] sm:$0xf]
        %v4745 = vld [vmem:[#allocation11 + $0x1a0] sm:$0xf]
        %v4746 = vld [vmem:[#allocation11 + $0x1a4] sm:$0xf]
        %v4747 = vld [vmem:[#allocation11 + $0x1a8] sm:$0xf]
        %v4748 = vld [vmem:[#allocation11 + $0x1ac] sm:$0xf]
        %v4749 = vld [vmem:[#allocation11 + $0x1b0] sm:$0xf]
        %v4750 = vld [vmem:[#allocation11 + $0x1b4] sm:$0xf]
        %v4751 = vld [vmem:[#allocation11 + $0x1b8] sm:$0xf]
        %v4752 = vld [vmem:[#allocation11 + $0x1bc] sm:$0xf]
        %v4753 = vld [vmem:[#allocation11 + $0x1c0] sm:$0xf]
        %v4754 = vld [vmem:[#allocation11 + $0x1c4] sm:$0xf]
        %v4755 = vld [vmem:[#allocation11 + $0x1c8] sm:$0xf]
        %v4756 = vld [vmem:[#allocation11 + $0x1cc] sm:$0xf]
        %v4757 = vld [vmem:[#allocation11 + $0x1d0] sm:$0xf]
        %v4758 = vld [vmem:[#allocation11 + $0x1d4] sm:$0xf]
        %v4759 = vld [vmem:[#allocation11 + $0x1d8] sm:$0xf]
        %v4760 = vld [vmem:[#allocation11 + $0x1dc] sm:$0xf]
        %v4761 = vld [vmem:[#allocation11 + $0x1e0] sm:$0xf]
        %v4762 = vld [vmem:[#allocation11 + $0x1e4] sm:$0xf]
        %v4763 = vld [vmem:[#allocation11 + $0x1e8] sm:$0xf]
        %v4764 = vld [vmem:[#allocation11 + $0x1ec] sm:$0xf]
        %v4765 = vld [vmem:[#allocation11 + $0x1f0] sm:$0xf]
        %v4766 = vld [vmem:[#allocation11 + $0x1f4] sm:$0xf]
        %v4767 = vld [vmem:[#allocation11 + $0x1f8] sm:$0xf]
        %v4768 = vld [vmem:[#allocation11 + $0x1fc] sm:$0xf]
        %v4769 = vld [vmem:[#allocation11 + $0x200] sm:$0xf]
        %v4770 = vld [vmem:[#allocation11 + $0x204] sm:$0xf]
        %v4771 = vld [vmem:[#allocation11 + $0x208] sm:$0xf]
        %v4772 = vld [vmem:[#allocation11 + $0x20c] sm:$0xf]
        %v4773 = vld [vmem:[#allocation11 + $0x210] sm:$0xf]
        %v4774 = vld [vmem:[#allocation11 + $0x214] sm:$0xf]
        %v4775 = vld [vmem:[#allocation11 + $0x218] sm:$0xf]
        %v4776 = vld [vmem:[#allocation11 + $0x21c] sm:$0xf]
        %v4777 = vld [vmem:[#allocation11 + $0x220] sm:$0xf]
        %v4778 = vld [vmem:[#allocation11 + $0x224] sm:$0xf]
        %v4779 = vld [vmem:[#allocation11 + $0x228] sm:$0xf]
        %v4780 = vld [vmem:[#allocation11 + $0x22c] sm:$0xf]
        %v4781 = vld [vmem:[#allocation11 + $0x230] sm:$0xf]
        %v4782 = vld [vmem:[#allocation11 + $0x234] sm:$0xf]
        %v4783 = vld [vmem:[#allocation11 + $0x238] sm:$0xf]
        %v4784 = vld [vmem:[#allocation11 + $0x23c] sm:$0xf]
        %v4833 = vunpack.c.l.b16 %v4737
        %v4834 = vunpack.c.l.b16 %v4738
        %v4835 = vunpack.c.l.b16 %v4739
        %v4836 = vunpack.c.l.b16 %v4740
        %v4837 = vunpack.c.l.b16 %v4741
        %v4838 = vunpack.c.l.b16 %v4742
        %v4839 = vunpack.c.l.b16 %v4743
        %v4840 = vunpack.c.l.b16 %v4744
        %v4841 = vunpack.c.l.b16 %v4745
        %v4842 = vunpack.c.l.b16 %v4746
        %v4843 = vunpack.c.l.b16 %v4747
        %v4844 = vunpack.c.l.b16 %v4748
        %v4845 = vunpack.c.l.b16 %v4749
        %v4846 = vunpack.c.l.b16 %v4750
        %v4847 = vunpack.c.l.b16 %v4751
        %v4848 = vunpack.c.l.b16 %v4752
        %v4849 = vunpack.c.l.b16 %v4753
        %v4850 = vunpack.c.l.b16 %v4754
        %v4851 = vunpack.c.l.b16 %v4755
        %v4852 = vunpack.c.l.b16 %v4756
        %v4853 = vunpack.c.l.b16 %v4757
        %v4854 = vunpack.c.l.b16 %v4758
        %v4855 = vunpack.c.l.b16 %v4759
        %v4856 = vunpack.c.l.b16 %v4760
        %v4857 = vunpack.c.l.b16 %v4761
        %v4858 = vunpack.c.l.b16 %v4762
        %v4859 = vunpack.c.l.b16 %v4763
        %v4860 = vunpack.c.l.b16 %v4764
        %v4861 = vunpack.c.l.b16 %v4765
        %v4862 = vunpack.c.l.b16 %v4766
        %v4863 = vunpack.c.l.b16 %v4767
        %v4864 = vunpack.c.l.b16 %v4768
        %v4865 = vunpack.c.l.b16 %v4769
        %v4866 = vunpack.c.l.b16 %v4770
        %v4867 = vunpack.c.l.b16 %v4771
        %v4868 = vunpack.c.l.b16 %v4772
        %v4869 = vunpack.c.l.b16 %v4773
        %v4870 = vunpack.c.l.b16 %v4774
        %v4871 = vunpack.c.l.b16 %v4775
        %v4872 = vunpack.c.l.b16 %v4776
        %v4873 = vunpack.c.l.b16 %v4777
        %v4874 = vunpack.c.l.b16 %v4778
        %v4875 = vunpack.c.l.b16 %v4779
        %v4876 = vunpack.c.l.b16 %v4780
        %v4877 = vunpack.c.l.b16 %v4781
        %v4878 = vunpack.c.l.b16 %v4782
        %v4879 = vunpack.c.l.b16 %v4783
        %v4880 = vunpack.c.l.b16 %v4784
        %v4881 = vpack.c.b16 %v4834, %v4833
        %v4882 = vpack.c.b16 %v4836, %v4835
        %v4883 = vpack.c.b16 %v4838, %v4837
        %v4884 = vpack.c.b16 %v4840, %v4839
        %v4885 = vpack.c.b16 %v4842, %v4841
        %v4886 = vpack.c.b16 %v4844, %v4843
        %v4887 = vpack.c.b16 %v4846, %v4845
        %v4888 = vpack.c.b16 %v4848, %v4847
        %v4889 = vpack.c.b16 %v4850, %v4849
        %v4890 = vpack.c.b16 %v4852, %v4851
        %v4891 = vpack.c.b16 %v4854, %v4853
        %v4892 = vpack.c.b16 %v4856, %v4855
        %v4893 = vpack.c.b16 %v4858, %v4857
        %v4894 = vpack.c.b16 %v4860, %v4859
        %v4895 = vpack.c.b16 %v4862, %v4861
        %v4896 = vpack.c.b16 %v4864, %v4863
        %v4897 = vpack.c.b16 %v4866, %v4865
        %v4898 = vpack.c.b16 %v4868, %v4867
        %v4899 = vpack.c.b16 %v4870, %v4869
        %v4900 = vpack.c.b16 %v4872, %v4871
        %v4901 = vpack.c.b16 %v4874, %v4873
        %v4902 = vpack.c.b16 %v4876, %v4875
        %v4903 = vpack.c.b16 %v4878, %v4877
        %v4904 = vpack.c.b16 %v4880, %v4879
        %4929 = vmatprep.subr.bf16.mxu0 0
        %4930 = vmatpush1.bf16.msra.mxu0 %v4881
        %4931 = vmatprep.subr.bf16.mxu0 0
        %4932 = vmatpush1.bf16.msra.mxu0 %v4882
        %4933 = vmatprep.subr.bf16.mxu0 0
        %4934 = vmatpush1.bf16.msra.mxu0 %v4883
        %4935 = vmatprep.subr.bf16.mxu0 0
        %4936 = vmatpush1.bf16.msra.mxu0 %v4884
        %4937 = vmatprep.subr.bf16.mxu0 0
        %4938 = vmatpush1.bf16.msra.mxu0 %v4885
        %4939 = vmatprep.subr.bf16.mxu0 0
        %4940 = vmatpush1.bf16.msra.mxu0 %v4886
        %4941 = vmatprep.subr.bf16.mxu0 0
        %4942 = vmatpush1.bf16.msra.mxu0 %v4887
        %4943 = vmatprep.subr.bf16.mxu0 0
        %4944 = vmatpush1.bf16.msra.mxu0 %v4888
        %4945 = vmatprep.subr.bf16.mxu0 0
        %4946 = vmatpush1.bf16.msra.mxu0 %v4889
        %4947 = vmatprep.subr.bf16.mxu0 0
        %4948 = vmatpush1.bf16.msra.mxu0 %v4890
        %4949 = vmatprep.subr.bf16.mxu0 0
        %4950 = vmatpush1.bf16.msra.mxu0 %v4891
        %4951 = vmatprep.subr.bf16.mxu0 0
        %4952 = vmatpush1.bf16.msra.mxu0 %v4892
        %4953 = vmatprep.subr.bf16.mxu0 0
        %4954 = vmatpush1.bf16.msra.mxu0 %v4893
        %4955 = vmatprep.subr.bf16.mxu0 0
        %4956 = vmatpush1.bf16.msra.mxu0 %v4894
        %4957 = vmatprep.subr.bf16.mxu0 0
        %4958 = vmatpush1.bf16.msra.mxu0 %v4895
        %4959 = vmatprep.subr.bf16.mxu0 0
        %4960 = vmatpush1.bf16.msra.mxu0 %v4896
        %4961 = vmatprep.mubr.bf16.mxu0 %v3420
        %4962 = vmatmul.mubr.bf16.gmra.mrb[0].mxu0 %v3307
        %v4963 = vpop.f32.mrb[0].mxu0
        %v4964 = vadd.f32 0.0, %v4963
        %v4965 = vpop.f32.mrb[0].mxu0
        %v4966 = vpop.f32.mrb[0].mxu0
        %v4967 = vadd.f32 0.0, %v4966
        %v4968 = vpop.f32.mrb[0].mxu0
        %4969 = vmatprep.mubr.bf16.mxu0 %v3432
        %4970 = vmatmul.mubr.bf16.gmra.mrb[0].mxu0 %v3308
        %v4971 = vpop.f32.mrb[0].mxu0
        %v4972 = vadd.f32 0.0, %v4971
        %v4973 = vpop.f32.mrb[0].mxu0
        %v4974 = vpop.f32.mrb[0].mxu0
        %v4975 = vadd.f32 0.0, %v4974
        %v4976 = vpop.f32.mrb[0].mxu0
        %4977 = vmatprep.mubr.bf16.mxu0 %v3444
        %4978 = vmatmul.mubr.bf16.gmra.mrb[0].mxu0 %v3309
        %v4979 = vpop.f32.mrb[0].mxu0
        %v4980 = vadd.f32 0.0, %v4979
        %v4981 = vpop.f32.mrb[0].mxu0
        %v4982 = vpop.f32.mrb[0].mxu0
        %v4983 = vadd.f32 0.0, %v4982
        %v4984 = vpop.f32.mrb[0].mxu0
        %4985 = vmatprep.mubr.bf16.mxu0 %v3456
        %4986 = vmatmul.mubr.bf16.gmra.mrb[0].mxu0 %v3310
        %v4987 = vpop.f32.mrb[0].mxu0
        %v4988 = vadd.f32 0.0, %v4987
        %v4989 = vpop.f32.mrb[0].mxu0
        %v4990 = vpop.f32.mrb[0].mxu0
        %v4991 = vadd.f32 0.0, %v4990
        %v4992 = vpop.f32.mrb[0].mxu0
        %4993 = vmatprep.mubr.bf16.mxu0 %v3468
        %4994 = vmatmul.mubr.bf16.gmra.mrb[0].mxu0 %v3311
        %v4995 = vpop.f32.mrb[0].mxu0
        %v4996 = vadd.f32 0.0, %v4995
        %v4997 = vpop.f32.mrb[0].mxu0
        %v4998 = vpop.f32.mrb[0].mxu0
        %v4999 = vadd.f32 0.0, %v4998
        %v5000 = vpop.f32.mrb[0].mxu0
        %5001 = vmatprep.mubr.bf16.mxu0 %v3480
        %5002 = vmatmul.mubr.bf16.gmra.mrb[0].mxu0 %v3312
        %v5003 = vpop.f32.mrb[0].mxu0
        %v5004 = vadd.f32 0.0, %v5003
        %v5005 = vpop.f32.mrb[0].mxu0
        %v5006 = vpop.f32.mrb[0].mxu0
        %v5007 = vadd.f32 0.0, %v5006
        %v5008 = vpop.f32.mrb[0].mxu0
        %5009 = vmatprep.mubr.bf16.mxu0 %v3492
        %5010 = vmatmul.mubr.bf16.gmra.mrb[0].mxu0 %v3313
        %v5011 = vpop.f32.mrb[0].mxu0
        %v5012 = vadd.f32 0.0, %v5011
        %v5013 = vpop.f32.mrb[0].mxu0
        %v5014 = vpop.f32.mrb[0].mxu0
        %v5015 = vadd.f32 0.0, %v5014
        %v5016 = vpop.f32.mrb[0].mxu0
        %5017 = vmatprep.mubr.bf16.mxu0 %v3504
        %5018 = vmatmul.mubr.bf16.gmra.mrb[0].mxu0 %v3314
        %v5019 = vpop.f32.mrb[0].mxu0
        %v5020 = vadd.f32 0.0, %v5019
        %v5021 = vpop.f32.mrb[0].mxu0
        %v5022 = vpop.f32.mrb[0].mxu0
        %v5023 = vadd.f32 0.0, %v5022
        %v5024 = vpop.f32.mrb[0].mxu0
        %5025 = vmatprep.mubr.bf16.mxu0 %v3516
        %5026 = vmatmul.mubr.bf16.gmra.mrb[0].mxu0 %v3315
        %v5027 = vpop.f32.mrb[0].mxu0
        %v5028 = vadd.f32 0.0, %v5027
        %v5029 = vpop.f32.mrb[0].mxu0
        %v5030 = vpop.f32.mrb[0].mxu0
        %v5031 = vadd.f32 0.0, %v5030
        %v5032 = vpop.f32.mrb[0].mxu0
        %5033 = vmatprep.mubr.bf16.mxu0 %v3528
        %5034 = vmatmul.mubr.bf16.gmra.mrb[0].mxu0 %v3316
        %v5035 = vpop.f32.mrb[0].mxu0
        %v5036 = vadd.f32 0.0, %v5035
        %v5037 = vpop.f32.mrb[0].mxu0
        %v5038 = vpop.f32.mrb[0].mxu0
        %v5039 = vadd.f32 0.0, %v5038
        %v5040 = vpop.f32.mrb[0].mxu0
        %5041 = vmatprep.mubr.bf16.mxu0 %v3540
        %5042 = vmatmul.mubr.bf16.gmra.mrb[0].mxu0 %v3317
        %v5043 = vpop.f32.mrb[0].mxu0
        %v5044 = vadd.f32 0.0, %v5043
        %v5045 = vpop.f32.mrb[0].mxu0
        %v5046 = vpop.f32.mrb[0].mxu0
        %v5047 = vadd.f32 0.0, %v5046
        %v5048 = vpop.f32.mrb[0].mxu0
        %5049 = vmatprep.mubr.bf16.mxu0 %v3552
        %5050 = vmatmul.mubr.bf16.gmra.mrb[0].mxu0 %v3318
        %v5051 = vpop.f32.mrb[0].mxu0
        %v5052 = vadd.f32 0.0, %v5051
        %v5053 = vpop.f32.mrb[0].mxu0
        %v5054 = vpop.f32.mrb[0].mxu0
        %v5055 = vadd.f32 0.0, %v5054
        %v5056 = vpop.f32.mrb[0].mxu0
        %5057 = vmatprep.mubr.bf16.mxu0 %v3564
        %5058 = vmatmul.mubr.bf16.gmra.mrb[0].mxu0 %v3319
        %v5059 = vpop.f32.mrb[0].mxu0
        %v5060 = vadd.f32 0.0, %v5059
        %v5061 = vpop.f32.mrb[0].mxu0
        %v5062 = vpop.f32.mrb[0].mxu0
        %v5063 = vadd.f32 0.0, %v5062
        %v5064 = vpop.f32.mrb[0].mxu0
        %5065 = vmatprep.mubr.bf16.mxu0 %v3576
        %5066 = vmatmul.mubr.bf16.gmra.mrb[0].mxu0 %v3320
        %v5067 = vpop.f32.mrb[0].mxu0
        %v5068 = vadd.f32 0.0, %v5067
        %v5069 = vpop.f32.mrb[0].mxu0
        %v5070 = vpop.f32.mrb[0].mxu0
        %v5071 = vadd.f32 0.0, %v5070
        %v5072 = vpop.f32.mrb[0].mxu0
        %5073 = vmatprep.mubr.bf16.mxu0 %v3725
        %5074 = vmatmul.mubr.bf16.gmra.mrb[0].mxu0 %v3709
        %v5075 = vpop.f32.mrb[0].mxu0
        %v5076 = vadd.f32 0.0, %v5075
        %v5077 = vpop.f32.mrb[0].mxu0
        %v5078 = vpop.f32.mrb[0].mxu0
        %v5079 = vadd.f32 0.0, %v5078
        %v5080 = vpop.f32.mrb[0].mxu0
        %5081 = vmatprep.mubr.bf16.mxu0 %v4731
        %5082 = vmatmul.mubr.bf16.gmra.mrb[0].mxu0 %v4715
        %v5083 = vpop.f32.mrb[0].mxu0
        %v5084 = vadd.f32 0.0, %v5083
        %v5085 = vpop.f32.mrb[0].mxu0
        %v5086 = vpop.f32.mrb[0].mxu0
        %v5087 = vadd.f32 0.0, %v5086
        %v5088 = vpop.f32.mrb[0].mxu0
        %5089 = vdwg.mxu0
        %5090 = vmatprep.subr.bf16.mxu0 0
        %5091 = vmatpush1.bf16.msra.mxu0 %v4897
        %5092 = vmatprep.subr.bf16.mxu0 0
        %5093 = vmatpush1.bf16.msra.mxu0 %v4898
        %5094 = vmatprep.subr.bf16.mxu0 0
        %5095 = vmatpush1.bf16.msra.mxu0 %v4899
        %5096 = vmatprep.subr.bf16.mxu0 0
        %5097 = vmatpush1.bf16.msra.mxu0 %v4900
        %5098 = vmatprep.subr.bf16.mxu0 0
        %5099 = vmatpush1.bf16.msra.mxu0 %v4901
        %5100 = vmatprep.subr.bf16.mxu0 0
        %5101 = vmatpush1.bf16.msra.mxu0 %v4902
        %5102 = vmatprep.subr.bf16.mxu0 0
        %5103 = vmatpush1.bf16.msra.mxu0 %v4903
        %5104 = vmatprep.subr.bf16.mxu0 0
        %5105 = vmatpush1.bf16.msra.mxu0 %v4904
        %5106 = vmatprep.subr.bf16.mxu0 0
        %5107 = vmatpush1.bf16.msra.mxu0 0
        %5108 = vmatprep.subr.bf16.mxu0 0
        %5109 = vmatpush1.bf16.msra.mxu0 0
        %5110 = vmatprep.subr.bf16.mxu0 0
        %5111 = vmatpush1.bf16.msra.mxu0 0
        %5112 = vmatprep.subr.bf16.mxu0 0
        %5113 = vmatpush1.bf16.msra.mxu0 0
        %5114 = vmatprep.subr.bf16.mxu0 0
        %5115 = vmatpush1.bf16.msra.mxu0 0
        %5116 = vmatprep.subr.bf16.mxu0 0
        %5117 = vmatpush1.bf16.msra.mxu0 0
        %5118 = vmatprep.subr.bf16.mxu0 0
        %5119 = vmatpush1.bf16.msra.mxu0 0
        %5120 = vmatprep.subr.bf16.mxu0 0
        %5121 = vmatpush1.bf16.msra.mxu0 0
        %5122 = vmatprep.mubr.bf16.mxu0 0
        %5123 = vmatmul.mubr.bf16.gmra.mrb[0].mxu0 %v3601
        %v5124 = vpop.f32.mrb[0].mxu0
        %v5125 = vadd.f32 %v4964, %v5124
        %v5126 = vpop.f32.mrb[0].mxu0
        %v5127 = vpop.f32.mrb[0].mxu0
        %v5128 = vadd.f32 %v4967, %v5127
        %v5129 = vpop.f32.mrb[0].mxu0
        %5130 = vmatprep.mubr.bf16.mxu0 0
        %5131 = vmatmul.mubr.bf16.gmra.mrb[0].mxu0 %v3604
        %v5132 = vpop.f32.mrb[0].mxu0
        %v5133 = vadd.f32 %v4972, %v5132
        %v5134 = vpop.f32.mrb[0].mxu0
        %v5135 = vpop.f32.mrb[0].mxu0
        %v5136 = vadd.f32 %v4975, %v5135
        %v5137 = vpop.f32.mrb[0].mxu0
        %5138 = vmatprep.mubr.bf16.mxu0 0
        %5139 = vmatmul.mubr.bf16.gmra.mrb[0].mxu0 %v3607
        %v5140 = vpop.f32.mrb[0].mxu0
        %v5141 = vadd.f32 %v4980, %v5140
        %v5142 = vpop.f32.mrb[0].mxu0
        %v5143 = vpop.f32.mrb[0].mxu0
        %v5144 = vadd.f32 %v4983, %v5143
        %v5145 = vpop.f32.mrb[0].mxu0
        %5146 = vmatprep.mubr.bf16.mxu0 0
        %5147 = vmatmul.mubr.bf16.gmra.mrb[0].mxu0 %v3610
        %v5148 = vpop.f32.mrb[0].mxu0
        %v5149 = vadd.f32 %v4988, %v5148
        %v5150 = vpop.f32.mrb[0].mxu0
        %v5151 = vpop.f32.mrb[0].mxu0
        %v5152 = vadd.f32 %v4991, %v5151
        %v5153 = vpop.f32.mrb[0].mxu0
        %5154 = vmatprep.mubr.bf16.mxu0 0
        %5155 = vmatmul.mubr.bf16.gmra.mrb[0].mxu0 %v3613
        %v5156 = vpop.f32.mrb[0].mxu0
        %v5157 = vadd.f32 %v4996, %v5156
        %v5158 = vpop.f32.mrb[0].mxu0
        %v5159 = vpop.f32.mrb[0].mxu0
        %v5160 = vadd.f32 %v4999, %v5159
        %v5161 = vpop.f32.mrb[0].mxu0
        %5162 = vmatprep.mubr.bf16.mxu0 0
        %5163 = vmatmul.mubr.bf16.gmra.mrb[0].mxu0 %v3616
        %v5164 = vpop.f32.mrb[0].mxu0
        %v5165 = vadd.f32 %v5004, %v5164
        %v5166 = vpop.f32.mrb[0].mxu0
        %v5167 = vpop.f32.mrb[0].mxu0
        %v5168 = vadd.f32 %v5007, %v5167
        %v5169 = vpop.f32.mrb[0].mxu0
        %5170 = vmatprep.mubr.bf16.mxu0 0
        %5171 = vmatmul.mubr.bf16.gmra.mrb[0].mxu0 %v3619
        %v5172 = vpop.f32.mrb[0].mxu0
        %v5173 = vadd.f32 %v5012, %v5172
        %v5174 = vpop.f32.mrb[0].mxu0
        %v5175 = vpop.f32.mrb[0].mxu0
        %v5176 = vadd.f32 %v5015, %v5175
        %v5177 = vpop.f32.mrb[0].mxu0
        %5178 = vmatprep.mubr.bf16.mxu0 0
        %5179 = vmatmul.mubr.bf16.gmra.mrb[0].mxu0 %v3622
        %v5180 = vpop.f32.mrb[0].mxu0
        %v5181 = vadd.f32 %v5020, %v5180
        %v5182 = vpop.f32.mrb[0].mxu0
        %v5183 = vpop.f32.mrb[0].mxu0
        %v5184 = vadd.f32 %v5023, %v5183
        %v5185 = vpop.f32.mrb[0].mxu0
        %5186 = vmatprep.mubr.bf16.mxu0 0
        %5187 = vmatmul.mubr.bf16.gmra.mrb[0].mxu0 %v3625
        %v5188 = vpop.f32.mrb[0].mxu0
        %v5189 = vadd.f32 %v5028, %v5188
        %v5190 = vpop.f32.mrb[0].mxu0
        %v5191 = vpop.f32.mrb[0].mxu0
        %v5192 = vadd.f32 %v5031, %v5191
        %v5193 = vpop.f32.mrb[0].mxu0
        %5194 = vmatprep.mubr.bf16.mxu0 0
        %5195 = vmatmul.mubr.bf16.gmra.mrb[0].mxu0 %v3628
        %v5196 = vpop.f32.mrb[0].mxu0
        %v5197 = vadd.f32 %v5036, %v5196
        %v5198 = vpop.f32.mrb[0].mxu0
        %v5199 = vpop.f32.mrb[0].mxu0
        %v5200 = vadd.f32 %v5039, %v5199
        %v5201 = vpop.f32.mrb[0].mxu0
        %5202 = vmatprep.mubr.bf16.mxu0 0
        %5203 = vmatmul.mubr.bf16.gmra.mrb[0].mxu0 %v3631
        %v5204 = vpop.f32.mrb[0].mxu0
        %v5205 = vadd.f32 %v5044, %v5204
        %v5206 = vpop.f32.mrb[0].mxu0
        %v5207 = vpop.f32.mrb[0].mxu0
        %v5208 = vadd.f32 %v5047, %v5207
        %v5209 = vpop.f32.mrb[0].mxu0
        %5210 = vmatprep.mubr.bf16.mxu0 0
        %5211 = vmatmul.mubr.bf16.gmra.mrb[0].mxu0 %v3634
        %v5212 = vpop.f32.mrb[0].mxu0
        %v5213 = vadd.f32 %v5052, %v5212
        %v5214 = vpop.f32.mrb[0].mxu0
        %v5215 = vpop.f32.mrb[0].mxu0
        %v5216 = vadd.f32 %v5055, %v5215
        %v5217 = vpop.f32.mrb[0].mxu0
        %5218 = vmatprep.mubr.bf16.mxu0 0
        %5219 = vmatmul.mubr.bf16.gmra.mrb[0].mxu0 %v3637
        %v5220 = vpop.f32.mrb[0].mxu0
        %v5221 = vadd.f32 %v5060, %v5220
        %v5222 = vpop.f32.mrb[0].mxu0
        %v5223 = vpop.f32.mrb[0].mxu0
        %v5224 = vadd.f32 %v5063, %v5223
        %v5225 = vpop.f32.mrb[0].mxu0
        %5226 = vmatprep.mubr.bf16.mxu0 0
        %5227 = vmatmul.mubr.bf16.gmra.mrb[0].mxu0 %v3640
        %v5228 = vpop.f32.mrb[0].mxu0
        %v5229 = vadd.f32 %v5068, %v5228
        %v5230 = vpop.f32.mrb[0].mxu0
        %v5231 = vpop.f32.mrb[0].mxu0
        %v5232 = vadd.f32 %v5071, %v5231
        %v5233 = vpop.f32.mrb[0].mxu0
        %5234 = vmatprep.mubr.bf16.mxu0 0
        %5235 = vmatmul.mubr.bf16.gmra.mrb[0].mxu0 %v3729
        %v5236 = vpop.f32.mrb[0].mxu0
        %v5237 = vadd.f32 %v5076, %v5236
        %v5238 = vpop.f32.mrb[0].mxu0
        %v5239 = vpop.f32.mrb[0].mxu0
        %v5240 = vadd.f32 %v5079, %v5239
        %v5241 = vpop.f32.mrb[0].mxu0
        %5242 = vmatprep.mubr.bf16.mxu0 0
        %5243 = vmatmul.mubr.bf16.gmra.mrb[0].mxu0 %v4735
        %v5244 = vpop.f32.mrb[0].mxu0
        %v5245 = vadd.f32 %v5084, %v5244
        %v5246 = vpop.f32.mrb[0].mxu0
        %v5247 = vpop.f32.mrb[0].mxu0
        %v5248 = vadd.f32 %v5087, %v5247
        %v5249 = vpop.f32.mrb[0].mxu0
        %5250 = vdwg.mxu0
        %v5251 = vadd.f32 %v4585, %v5125
        %v5252 = vadd.f32 %v4588, %v5128
        %v5253 = vadd.f32 %v4593, %v5133
        %v5254 = vadd.f32 %v4596, %v5136
        %v5255 = vadd.f32 %v4601, %v5141
        %v5256 = vadd.f32 %v4604, %v5144
        %v5257 = vadd.f32 %v4609, %v5149
        %v5258 = vadd.f32 %v4612, %v5152
        %v5259 = vadd.f32 %v4617, %v5157
        %v5260 = vadd.f32 %v4620, %v5160
        %v5261 = vadd.f32 %v4625, %v5165
        %v5262 = vadd.f32 %v4628, %v5168
        %v5263 = vadd.f32 %v4633, %v5173
        %v5264 = vadd.f32 %v4636, %v5176
        %v5265 = vadd.f32 %v4641, %v5181
        %v5266 = vadd.f32 %v4644, %v5184
        %v5267 = vadd.f32 %v4649, %v5189
        %v5268 = vadd.f32 %v4652, %v5192
        %v5269 = vadd.f32 %v4657, %v5197
        %v5270 = vadd.f32 %v4660, %v5200
        %v5271 = vadd.f32 %v4665, %v5205
        %v5272 = vadd.f32 %v4668, %v5208
        %v5273 = vadd.f32 %v4673, %v5213
        %v5274 = vadd.f32 %v4676, %v5216
        %v5275 = vadd.f32 %v4681, %v5221
        %v5276 = vadd.f32 %v4684, %v5224
        %v5277 = vadd.f32 %v4689, %v5229
        %v5278 = vadd.f32 %v4692, %v5232
        %v5279 = vadd.f32 %v4697, %v5237
        %v5280 = vadd.f32 %v4700, %v5240
        %v5281 = vadd.f32 %v4705, %v5245
        %v5282 = vadd.f32 %v4708, %v5248
        %v5283 = vld [vmem:[#allocation12] sm:$0x1]
        %v5285 = vlaneseq
        %v5286 = vshrl.u32 %v5285, 7
        %v5287 = vsub.s32 0, %v5286
        %v5288 = vrot.slane %v5283, %v5287
        %v5290 = vadd.f32 %v5251, %v5288
        %v5291 = vadd.f32 %v5252, %v5288
        %v5292 = vadd.f32 %v5253, %v5288
        %v5293 = vadd.f32 %v5254, %v5288
        %v5294 = vadd.f32 %v5255, %v5288
        %v5295 = vadd.f32 %v5256, %v5288
        %v5296 = vadd.f32 %v5257, %v5288
        %v5297 = vadd.f32 %v5258, %v5288
        %v5298 = vadd.f32 %v5259, %v5288
        %v5299 = vadd.f32 %v5260, %v5288
        %v5300 = vadd.f32 %v5261, %v5288
        %v5301 = vadd.f32 %v5262, %v5288
        %v5302 = vadd.f32 %v5263, %v5288
        %v5303 = vadd.f32 %v5264, %v5288
        %v5304 = vadd.f32 %v5265, %v5288
        %v5305 = vadd.f32 %v5266, %v5288
        %v5306 = vadd.f32 %v5267, %v5288
        %v5307 = vadd.f32 %v5268, %v5288
        %v5308 = vadd.f32 %v5269, %v5288
        %v5309 = vadd.f32 %v5270, %v5288
        %v5310 = vadd.f32 %v5271, %v5288
        %v5311 = vadd.f32 %v5272, %v5288
        %v5312 = vadd.f32 %v5273, %v5288
        %v5313 = vadd.f32 %v5274, %v5288
        %v5314 = vadd.f32 %v5275, %v5288
        %v5315 = vadd.f32 %v5276, %v5288
        %v5316 = vadd.f32 %v5277, %v5288
        %v5317 = vadd.f32 %v5278, %v5288
        %v5318 = vadd.f32 %v5279, %v5288
        %v5319 = vadd.f32 %v5280, %v5288
        %v5320 = vadd.f32 %v5281, %v5288
        %v5321 = vadd.f32 %v5282, %v5288
        %v5322 = vld [vmem:[%s314] sm:$0xff]
        %v5323 = vld [vmem:[%s314 + $0x8] sm:$0xff]
        %v5324 = vld [vmem:[%s314 + $0x10] sm:$0xff]
        %v5325 = vld [vmem:[%s314 + $0x18] sm:$0xff]
        %v5326 = vld [vmem:[%s314 + $0x20] sm:$0xff]
        %v5327 = vld [vmem:[%s314 + $0x28] sm:$0xff]
        %v5328 = vld [vmem:[%s314 + $0x30] sm:$0xff]
        %v5329 = vld [vmem:[%s314 + $0x38] sm:$0xff]
        %v5330 = vld [vmem:[%s314 + $0x40] sm:$0xff]
        %v5331 = vld [vmem:[%s314 + $0x48] sm:$0xff]
        %v5332 = vld [vmem:[%s314 + $0x50] sm:$0xff]
        %v5333 = vld [vmem:[%s314 + $0x58] sm:$0xff]
        %v5334 = vld [vmem:[%s314 + $0x60] sm:$0xff]
        %v5335 = vld [vmem:[%s314 + $0x68] sm:$0xff]
        %v5336 = vld [vmem:[%s314 + $0x70] sm:$0xff]
        %v5337 = vld [vmem:[%s314 + $0x78] sm:$0xff]
        %v5338 = vld [vmem:[%s314 + $0x80] sm:$0xff]
        %v5339 = vld [vmem:[%s314 + $0x88] sm:$0xff]
        %v5340 = vld [vmem:[%s314 + $0x90] sm:$0xff]
        %v5341 = vld [vmem:[%s314 + $0x98] sm:$0xff]
        %v5342 = vld [vmem:[%s314 + $0xa0] sm:$0xff]
        %v5343 = vld [vmem:[%s314 + $0xa8] sm:$0xff]
        %v5344 = vld [vmem:[%s314 + $0xb0] sm:$0xff]
        %v5345 = vld [vmem:[%s314 + $0xb8] sm:$0xff]
        %v5346 = vld [vmem:[%s314 + $0xc0] sm:$0xff]
        %v5347 = vld [vmem:[%s314 + $0xc8] sm:$0xff]
        %v5348 = vld [vmem:[%s314 + $0xd0] sm:$0xff]
        %v5349 = vld [vmem:[%s314 + $0xd8] sm:$0xff]
        %v5350 = vld [vmem:[%s314 + $0xe0] sm:$0xff]
        %v5351 = vld [vmem:[%s314 + $0xe8] sm:$0xff]
        %v5352 = vld [vmem:[%s314 + $0xf0] sm:$0xff]
        %v5353 = vld [vmem:[%s314 + $0xf8] sm:$0xff]
        %v5354 = vadd.f32 %v5290, %v5322
        %v5355 = vadd.f32 %v5291, %v5323
        %v5356 = vadd.f32 %v5292, %v5324
        %v5357 = vadd.f32 %v5293, %v5325
        %v5358 = vadd.f32 %v5294, %v5326
        %v5359 = vadd.f32 %v5295, %v5327
        %v5360 = vadd.f32 %v5296, %v5328
        %v5361 = vadd.f32 %v5297, %v5329
        %v5362 = vadd.f32 %v5298, %v5330
        %v5363 = vadd.f32 %v5299, %v5331
        %v5364 = vadd.f32 %v5300, %v5332
        %v5365 = vadd.f32 %v5301, %v5333
        %v5366 = vadd.f32 %v5302, %v5334
        %v5367 = vadd.f32 %v5303, %v5335
        %v5368 = vadd.f32 %v5304, %v5336
        %v5369 = vadd.f32 %v5305, %v5337
        %v5370 = vadd.f32 %v5306, %v5338
        %v5371 = vadd.f32 %v5307, %v5339
        %v5372 = vadd.f32 %v5308, %v5340
        %v5373 = vadd.f32 %v5309, %v5341
        %v5374 = vadd.f32 %v5310, %v5342
        %v5375 = vadd.f32 %v5311, %v5343
        %v5376 = vadd.f32 %v5312, %v5344
        %v5377 = vadd.f32 %v5313, %v5345
        %v5378 = vadd.f32 %v5314, %v5346
        %v5379 = vadd.f32 %v5315, %v5347
        %v5380 = vadd.f32 %v5316, %v5348
        %v5381 = vadd.f32 %v5317, %v5349
        %v5382 = vadd.f32 %v5318, %v5350
        %v5383 = vadd.f32 %v5319, %v5351
        %v5384 = vadd.f32 %v5320, %v5352
        %v5385 = vadd.f32 %v5321, %v5353
        %v5386 = vmax.f32 %v5354, 0.0
        %v5387 = vmax.f32 %v5355, 0.0
        %v5388 = vmax.f32 %v5356, 0.0
        %v5389 = vmax.f32 %v5357, 0.0
        %v5390 = vmax.f32 %v5358, 0.0
        %v5391 = vmax.f32 %v5359, 0.0
        %v5392 = vmax.f32 %v5360, 0.0
        %v5393 = vmax.f32 %v5361, 0.0
        %v5394 = vmax.f32 %v5362, 0.0
        %v5395 = vmax.f32 %v5363, 0.0
        %v5396 = vmax.f32 %v5364, 0.0
        %v5397 = vmax.f32 %v5365, 0.0
        %v5398 = vmax.f32 %v5366, 0.0
        %v5399 = vmax.f32 %v5367, 0.0
        %v5400 = vmax.f32 %v5368, 0.0
        %v5401 = vmax.f32 %v5369, 0.0
        %v5402 = vmax.f32 %v5370, 0.0
        %v5403 = vmax.f32 %v5371, 0.0
        %v5404 = vmax.f32 %v5372, 0.0
        %v5405 = vmax.f32 %v5373, 0.0
        %v5406 = vmax.f32 %v5374, 0.0
        %v5407 = vmax.f32 %v5375, 0.0
        %v5408 = vmax.f32 %v5376, 0.0
        %v5409 = vmax.f32 %v5377, 0.0
        %v5410 = vmax.f32 %v5378, 0.0
        %v5411 = vmax.f32 %v5379, 0.0
        %v5412 = vmax.f32 %v5380, 0.0
        %v5413 = vmax.f32 %v5381, 0.0
        %v5414 = vmax.f32 %v5382, 0.0
        %v5415 = vmax.f32 %v5383, 0.0
        %v5416 = vmax.f32 %v5384, 0.0
        %v5417 = vmax.f32 %v5385, 0.0
        %5418 = vst [vmem:[%s363] sm:$0xff] %v5386
        %5419 = vst [vmem:[%s363 + $0x8] sm:$0xff] %v5387
        %5420 = vst [vmem:[%s363 + $0x10] sm:$0xff] %v5388
        %5421 = vst [vmem:[%s363 + $0x18] sm:$0xff] %v5389
        %5422 = vst [vmem:[%s363 + $0x20] sm:$0xff] %v5390
        %5423 = vst [vmem:[%s363 + $0x28] sm:$0xff] %v5391
        %5424 = vst [vmem:[%s363 + $0x30] sm:$0xff] %v5392
        %5425 = vst [vmem:[%s363 + $0x38] sm:$0xff] %v5393
        %5426 = vst [vmem:[%s363 + $0x40] sm:$0xff] %v5394
        %5427 = vst [vmem:[%s363 + $0x48] sm:$0xff] %v5395
        %5428 = vst [vmem:[%s363 + $0x50] sm:$0xff] %v5396
        %5429 = vst [vmem:[%s363 + $0x58] sm:$0xff] %v5397
        %5430 = vst [vmem:[%s363 + $0x60] sm:$0xff] %v5398
        %5431 = vst [vmem:[%s363 + $0x68] sm:$0xff] %v5399
        %5432 = vst [vmem:[%s363 + $0x70] sm:$0xff] %v5400
        %5433 = vst [vmem:[%s363 + $0x78] sm:$0xff] %v5401
        %5434 = vst [vmem:[%s363 + $0x80] sm:$0xff] %v5402
        %5435 = vst [vmem:[%s363 + $0x88] sm:$0xff] %v5403
        %5436 = vst [vmem:[%s363 + $0x90] sm:$0xff] %v5404
        %5437 = vst [vmem:[%s363 + $0x98] sm:$0xff] %v5405
        %5438 = vst [vmem:[%s363 + $0xa0] sm:$0xff] %v5406
        %5439 = vst [vmem:[%s363 + $0xa8] sm:$0xff] %v5407
        %5440 = vst [vmem:[%s363 + $0xb0] sm:$0xff] %v5408
        %5441 = vst [vmem:[%s363 + $0xb8] sm:$0xff] %v5409
        %5442 = vst [vmem:[%s363 + $0xc0] sm:$0xff] %v5410
        %5443 = vst [vmem:[%s363 + $0xc8] sm:$0xff] %v5411
        %5444 = vst [vmem:[%s363 + $0xd0] sm:$0xff] %v5412
        %5445 = vst [vmem:[%s363 + $0xd8] sm:$0xff] %v5413
        %5446 = vst [vmem:[%s363 + $0xe0] sm:$0xff] %v5414
        %5447 = vst [vmem:[%s363 + $0xe8] sm:$0xff] %v5415
        %5448 = vst [vmem:[%s363 + $0xf0] sm:$0xff] %v5416
        %5449 = vst [vmem:[%s363 + $0xf8] sm:$0xff] %v5417
        %s5450 = sand.u32 %s172, 1
        %s5451 = scalar_lea.sflag [#allocation5], %s5450
        %s5452 = sand.u32 %s172, 1
        %s5453 = smul.addr %s5452, 256
        %s5454 = scalar_lea.vmem [#allocation14], %s5453
        // Predicated region
        $region69: #{tpu_custom_call.1} parent=43 // pred_check
          %p5455 = pneg %p182
        $region70: #{tpu_custom_call.1} parent=43 // pred_check_branch
          %5457 = sbr.rel (%p5455) target = $region72
        $region71: #{tpu_custom_call.1} parent=43 // pred_region
          %s5459 = ssub.s32 4096, 4096
          %5460 = vsyncadd %s5451, %s5459
          %s5461 = smul.addr %s28, 32
          %s5462 = smul.addr %s5461, 128
          %s5463 = scalar_lea.hbm %s6, %s5462
          %s5464 = sshll.u32 %s5454, 4
          %s5465 = int_to_ptr.vmem [resolvable:$true] %s5464
          %5470 = dma.vmem_to_hbm [thread:$0]  %s5465, 4096, %s5463, %s5451, 128, 128, 8
        $region72: #{tpu_custom_call.1} parent=43 // pred_fallthru
          _
      $region44: #{tpu_custom_call.1} parent=5 // pred_fallthru
        _
      %p5471 = scmp.le.s32.totalorder 2, %s23
      // Predicated region
      $region73: #{tpu_custom_call.1} parent=5 // pred_check
        %p5472 = pneg %p5471
      $region74: #{tpu_custom_call.1} parent=5 // pred_check_branch
        %5474 = sbr.rel (%p5472) target = $region76
      $region75: #{tpu_custom_call.1} parent=5 // pred_region
        %s5475 = ssub.s32 %s23, 2
        // Predicated region
        $region77: #{tpu_custom_call.1} parent=75 // pred_check
          %p5476 = pneg %p188
        $region78: #{tpu_custom_call.1} parent=75 // pred_check_branch
          %5478 = sbr.rel (%p5476) target = $region80
        $region79: #{tpu_custom_call.1} parent=75 // pred_region
          %s5479 = sand.u32 %s173, 1
          %s5480 = scalar_lea.sflag [#allocation5], %s5479
          %s5481 = sand.u32 %s173, 1
          %s5482 = smul.addr %s5481, 256
          %s5483 = scalar_lea.vmem [#allocation14], %s5482
          %5484 = dma.done %s5480, 4096
        $region80: #{tpu_custom_call.1} parent=75 // pred_fallthru
          _
      $region76: #{tpu_custom_call.1} parent=5 // pred_fallthru
        _
    $region6: #{tpu_custom_call.1} parent=1 // loop_footer
      %s27 = sadd.s32 1, %s23
    $region7: #{tpu_custom_call.1} parent=1 // loop_footer_branch
      %22 = sbr.rel target = $region3
    $region8: #{tpu_custom_call.1} parent=1 // loop_exit
      _
    %5485 = vsyncpa [#allocation4], 1
    %s5486 = scalar_lea.sflag [#allocation4], 1
    %5487 = vsyncpa %s5486, 1
    %5488 = vsyncpa [#allocation7], 1
    %s5489 = scalar_lea.sflag [#allocation7], 1
    %5490 = vsyncpa %s5489, 1
    %5491 = vsyncpa [#allocation10], 1
    %5492 = vsyncpa [#allocation13], 1
    %5493 = vsyncpa [#allocation5], 1
    %s5494 = scalar_lea.sflag [#allocation5], 1
    %5495 = vsyncpa %s5494, 1

</llo_original>
